<compile_context>
chip_gen: v5e
topology: v5e:2x2
jax: 0.10.0
libtpu: 0.0.40
codegen_flags: <defaults>
</compile_context>

<pallas_src>
import functools

import jax
import jax.numpy as jnp
from jax import lax
from jax.experimental import pallas as pl
from jax.experimental.pallas import tpu as pltpu


def _round_up(x, m):
    return ((x + m - 1) // m) * m


def _vmem_capacity_bytes():
    """Physical VMEM per core; conservative default (v7x) if the query is unavailable."""
    try:
        return int(pltpu.get_tpu_info().vmem_capacity_bytes)
    except Exception:
        return 64 * 1024 * 1024


def _score_dtype():
    """bf16 per-channel score math on chips with a native bf16 VALU (v6e/v7x); f32 elsewhere."""
    try:
        kind = jax.devices()[0].device_kind.lower()
    except Exception:
        return jnp.float32
    if any(tag in kind for tag in ("v6", "v7", "tpu7")):
        return jnp.bfloat16
    return jnp.float32


def _pick_tile_t(n_pad, edge_dim, vmem_bytes):
    """Largest 128-multiple target tile that divides n_pad, fits ~half of VMEM with the
    double-buffered bf16 ea/mask stream plus f32 score/softmax temps, and (when tiled)
    leaves an even tile count so v7x's two TensorCores stay balanced."""
    per_row = 2 * (edge_dim + 1) * n_pad * 2 + 4 * n_pad * 4   # streamed bf16 x2buf + f32 temps
    cap = max(128, (vmem_bytes // 2) // max(per_row, 1))
    best_even, best_single = None, None
    for t in range(128, min(n_pad, 512) + 1, 128):
        if n_pad % t or t > cap:
            continue
        n_tiles = n_pad // t
        if n_tiles >= 2 and n_tiles % 2 == 0:
            best_even = t
        elif n_tiles == 1:
            best_single = t
    return best_even or best_single or 128


# ----------------------------------------------------------------------------------
# Pallas kernels
# ----------------------------------------------------------------------------------
def gatv2_layer_kernel(gl_ref, gr_ref, we_ref, att_ref, bias_ref, ea_ref, mask_ref,
                       out_ref, *, heads, out_ch, edge_dim, apply_elu, neg_slope=0.2):
    """One GATv2Conv layer (concat=True) on a dense, lane-dense (tgt-tile, src) adjacency.

    gl_ref   : (H*C, N_src)  lin_l(x) at all sources (resident, score dtype, lane-dense)
    gr_ref   : (T, H*C)      lin_r(x) for this target tile (score dtype)
    we_ref   : (H*C, E)      lin_edge weight^T (score dtype, VMEM)
    att_ref  : (heads, C)    attention vector (f32, SMEM -> scalar reads)
    bias_ref : (H*C, 1)      final bias column (f32)
    ea_ref   : (E, T, N_src) dense edge features (bf16)
    mask_ref : (T, N_src)    additive softmax mask, 0 / -1e9 (bf16)
    out_ref  : (H*C, T)      transposed output block (targets on the lane axis)
    """
    f32 = jnp.float32
    gl = gl_ref[...]                       # (H*C, N) score dtype
    gr = gr_ref[...]                       # (T, H*C) score dtype
    we = we_ref[...]                       # (H*C, E) score dtype
    sd = gl.dtype
    n = mask_ref.shape[-1]

    # bf16 in HBM; cast once per tile only when the score path runs in f32 (v5e).
    ea = [ea_ref[e].astype(sd) for e in range(edge_dim)]
    mask_add = mask_ref[...].astype(f32)   # additive mask (0 edge / -1e9 none), f32 for logits
    ones_row = jnp.ones((1, n), sd)

    head_outs = []
    for h in range(heads):
        scores = mask_add                  # attention logits accumulate in f32
        for c in range(out_ch):
            hc = h * out_ch + c
            # s_ij = lin_r(x_i)[hc] + lin_l(x_j)[hc] + lin_edge(e_ij)[hc]
            s = gr[:, hc:hc + 1] + gl[hc:hc + 1, :]                 # (T,1)+(1,N) -> (T,N)
            for e in range(edge_dim):
                s = s + we[hc:hc + 1, e:e + 1] * ea[e]              # VPU FMA in score dtype
            s = jnp.maximum(s, neg_slope * s)                       # leaky_relu: mul + max
            scores = scores + att_ref[h, c] * s.astype(f32)         # scalar-from-SMEM FMA
        # softmax over sources (lane axis); masked / padded lanes underflow to 0 in exp.
        m = jnp.max(scores, axis=-1, keepdims=True)
        p = jnp.exp(scores - m).astype(sd)                          # (T, N)
        gl_h = gl[h * out_ch:(h + 1) * out_ch, :]                   # (C, N)
        # Transposed aggregation on the MXU: (C,N) x (T,N)^T -> (C,T) (targets on lanes).
        num = lax.dot_general(gl_h, p, (((1,), (1,)), ((), ())),
                              preferred_element_type=f32)           # (C, T)
        den = lax.dot_general(ones_row, p, (((1,), (1,)), ((), ())),
                              preferred_element_type=f32)           # (1, T) row sums
        head_outs.append(num * pl.reciprocal(den, approx=True))     # normalize after matmul

    out_t = jnp.concatenate(head_outs, axis=0) + bias_ref[...]      # (H*C, T) + (H*C, 1)
    if apply_elu:
        # ELU; clamp the EUP argument so exp never sees a large positive value.
        out_t = jnp.where(out_t > 0, out_t, jnp.exp(jnp.minimum(out_t, 0.0)) - 1.0)
    out_ref[...] = out_t.astype(out_ref.dtype)   # single full-width lane-dense store per tile


def mean_pool_kernel(pm_ref, xt_ref, out_ref):
    """global_mean_pool on the transposed node embeddings: (G, N_pad) x (F, N_pad)^T."""
    out_ref[...] = lax.dot_general(pm_ref[...], xt_ref[...], (((1,), (1,)), ((), ())),
                                   preferred_element_type=jnp.float32).astype(out_ref.dtype)


# ----------------------------------------------------------------------------------
# Wrappers (pallas_call glue)
# ----------------------------------------------------------------------------------
def gatv2_layer(gl_t, gr, we_sd, att, bias_col, ea, mask_add, *, heads, out_ch,
                apply_elu, tile_t, vmem_limit_bytes):
    hc = heads * out_ch
    e_dim, n_tgt, n_src = ea.shape
    assert n_tgt == n_src, "densify pads sources and targets to the same size"
    assert gl_t.shape == (hc, n_src) and gr.shape == (n_tgt, hc)
    assert n_tgt % tile_t == 0 and tile_t % 128 == 0 and n_src % 128 == 0
    n_tiles = n_tgt // tile_t

    kern = functools.partial(gatv2_layer_kernel, heads=heads, out_ch=out_ch,
                             edge_dim=e_dim, apply_elu=apply_elu)
    smem = pl.BlockSpec(memory_space=pltpu.MemorySpace.SMEM)
    in_specs = [
        pl.BlockSpec((hc, n_src), lambda i: (0, 0)),                 # gl_t resident
        pl.BlockSpec((tile_t, hc), lambda i: (i, 0)),                # gr tile
        pl.BlockSpec((hc, e_dim), lambda i: (0, 0)),                 # we (score dtype)
        smem,                                                        # att scalars
        pl.BlockSpec((hc, 1), lambda i: (0, 0)),                     # bias column
        pl.BlockSpec((e_dim, tile_t, n_src), lambda i: (0, i, 0)),   # dense edge feats (bf16)
        pl.BlockSpec((tile_t, n_src), lambda i: (i, 0)),             # additive mask (bf16)
    ]
    return pl.pallas_call(
        kern,
        out_shape=jax.ShapeDtypeStruct((hc, n_tgt), jnp.float32),    # transposed, lane-dense
        grid_spec=pltpu.PrefetchScalarGridSpec(
            num_scalar_prefetch=0,
            grid=(n_tiles,),
            in_specs=in_specs,
            out_specs=pl.BlockSpec((hc, tile_t), lambda i: (0, i))),
        compiler_params=pltpu.CompilerParams(
            dimension_semantics=("parallel",),       # shards target tiles across TCs on v7x
            vmem_limit_bytes=vmem_limit_bytes),
    )(gl_t, gr, we_sd, att, bias_col, ea, mask_add)


def global_mean_pool_t(x_t, batch, num_graphs, num_nodes):
    """x_t is (F, N_pad); padded / foreign columns are zeroed by pool_mat."""
    f, n_pad = x_t.shape
    batch_pad = jnp.full((n_pad,), -1, jnp.int32).at[:num_nodes].set(batch)
    onehot = (batch_pad[None, :] == jnp.arange(num_graphs)[:, None]).astype(jnp.float32)
    counts = jnp.maximum(onehot.sum(axis=1, keepdims=True), 1.0)
    pool_mat = onehot / counts                      # (G, N_pad)
    return pl.pallas_call(
        mean_pool_kernel,
        out_shape=jax.ShapeDtypeStruct((num_graphs, f), jnp.float32),
        in_specs=[pl.BlockSpec(memory_space=pltpu.MemorySpace.VMEM)] * 2,
        out_specs=pl.BlockSpec(memory_space=pltpu.MemorySpace.VMEM),
    )(pool_mat, x_t)


def densify(edge_index, edge_attr, num_nodes, n_pad):
    """Dense edge features + additive mask, built directly in the kernel's layout.

    Returns: ea (edge_dim, n_pad, n_pad) bf16 in (E, tgt, src) order; mask_add (n_pad, n_pad)
    bf16 with 0 where an edge (incl. PyG-style 'mean' self loops) exists, -1e9 elsewhere
    (padded rows/cols stay fully masked).  Assumes a simple graph (no duplicate edges /
    pre-existing self loops) -- scatter .set overwrites instead of coalescing.
    """
    src, dst = edge_index[0], edge_index[1]
    e_dim = edge_attr.shape[1]

    ea = jnp.zeros((e_dim, n_pad, n_pad), jnp.bfloat16)
    ea = ea.at[:, dst, src].set(edge_attr.T.astype(jnp.bfloat16))

    # PyG add_self_loops(fill_value='mean'): self-loop attr = mean of incoming edge attrs.
    deg = jnp.zeros((num_nodes,), jnp.float32).at[dst].add(1.0)
    inc = jnp.zeros((num_nodes, e_dim), jnp.float32).at[dst].add(edge_attr)
    loop_attr = (inc / jnp.maximum(deg, 1.0)[:, None]).astype(jnp.bfloat16)
    idx = jnp.arange(num_nodes)
    ea = ea.at[:, idx, idx].set(loop_attr.T)

    mask_add = jnp.full((n_pad, n_pad), -1e9, jnp.float32)
    mask_add = mask_add.at[dst, src].set(0.0)
    mask_add = mask_add.at[idx, idx].set(0.0)
    return ea, mask_add.astype(jnp.bfloat16)


def gatv2_actor_critic_forward(params, cfg, x, edge_index, edge_attr, batch, num_graphs):
    """== GATv2ActorCritic.forward(): conv1 -> ELU -> (dropout: eval id) -> conv2 -> mean pool."""
    n = x.shape[0]
    n_pad = _round_up(max(n, 1), 128)       # one padding for both lane (src) and target axes
    sd = _score_dtype()
    vmem_cap = _vmem_capacity_bytes()
    tile_t = _pick_tile_t(n_pad, cfg["edge_dim"], vmem_cap)
    vmem_limit = min(int(vmem_cap * 0.7), 100 * 1024 * 1024)

    ea, mask_add = densify(edge_index, edge_attr, n, n_pad)
    x_pad = jnp.pad(x, ((0, n_pad - n), (0, 0)))                     # (n_pad, F_in)

    def lin_pair(h, p):
        # lin_l / lin_r hoisted out of the kernel grid loop (tiny XLA matmuls, done once).
        gl_t = (jnp.dot(h, p["wl"]) + p["bl"][None, :]).T.astype(sd)   # (H*C, n_pad)
        gr = (jnp.dot(h, p["wr"]) + p["br"][None, :]).astype(sd)       # (n_pad, H*C)
        return gl_t, gr

    p1, p2 = params["conv1"], params["conv2"]

    gl1, gr1 = lin_pair(x_pad, p1)
    h1_t = gatv2_layer(gl1, gr1, p1["we_t"].astype(sd), p1["att"], p1["bias"][:, None],
                       ea, mask_add, heads=cfg["initial_heads"],
                       out_ch=cfg["hidden_channels"], apply_elu=True,
                       tile_t=tile_t, vmem_limit_bytes=vmem_limit)
    # F.dropout(..., training=self.training) -> identity in eval mode.
    # h1_t is (H1*C1, n_pad) lane-dense; padded-node columns hold finite garbage that every
    # downstream softmax masks out (-1e9) and the pool matrix zeroes.

    gl2, gr2 = lin_pair(h1_t.T, p2)        # one small (H1*C1 x n_pad) XLA transpose only
    h2_t = gatv2_layer(gl2, gr2, p2["we_t"].astype(sd), p2["att"], p2["bias"][:, None],
                       ea, mask_add, heads=cfg["second_heads"],
                       out_ch=cfg["out_channels"], apply_elu=False,
                       tile_t=tile_t, vmem_limit_bytes=vmem_limit)

    return global_mean_pool_t(h2_t, batch, num_graphs, n)


# ----------------------------------------------------------------------------------
# Deterministic parameter init (shapes follow GATv2Conv(in, out, heads, edge_dim))
# ----------------------------------------------------------------------------------
def _glorot(key, shape):
    fan_in, fan_out = shape[0], shape[1]
    lim = (6.0 / (fan_in + fan_out)) ** 0.5
    return jax.random.uniform(key, shape, jnp.float32, -lim, lim)


def init_gatv2_params(key, in_ch, out_ch, heads, edge_dim):
    ks = jax.random.split(key, 4)
    hc = heads * out_ch
    return {
        "wl": _glorot(ks[0], (in_ch, hc)),          # lin_l (source transform)
        "bl": jnp.zeros((hc,), jnp.float32),
        "wr": _glorot(ks[1], (in_ch, hc)),          # lin_r (target transform)
        "br": jnp.zeros((hc,), jnp.float32),
        "we_t": _glorot(ks[2], (edge_dim, hc)).T,   # (hc, edge_dim), lin_edge (no bias)
        "att": _glorot(ks[3], (heads, out_ch)),
        "bias": jnp.zeros((hc,), jnp.float32),      # final output bias
    }


# ----------------------------------------------------------------------------------
if __name__ == "__main__":
    cfg = dict(in_channels=4, hidden_channels=8, out_channels=8,
               initial_heads=2, second_heads=2, edge_dim=3)

    key = jax.random.PRNGKey(0)
    k_x, k_e, k_p1, k_p2 = jax.random.split(key, 4)

    num_nodes, num_graphs = 20, 2
    x = jax.random.normal(k_x, (num_nodes, cfg["in_channels"]), jnp.float32)

    # graph 0: 12-node directed ring + 6 chords ; graph 1: 8-node directed ring
    src0 = jnp.arange(0, 12, dtype=jnp.int32)
    dst0 = (src0 + 1) % 12
    chord_s = jnp.array([0, 2, 4, 6, 8, 10], jnp.int32)
    chord_d = jnp.array([6, 8, 10, 0, 2, 4], jnp.int32)
    src1 = jnp.arange(12, 20, dtype=jnp.int32)
    dst1 = 12 + (src1 - 12 + 1) % 8
    src = jnp.concatenate([src0, chord_s, src1])
    dst = jnp.concatenate([dst0, chord_d, dst1])
    edge_index = jnp.stack([src, dst])                               # (2, 26)
    edge_attr = jax.random.normal(k_e, (src.shape[0], cfg["edge_dim"]), jnp.float32)
    batch = jnp.concatenate([jnp.zeros(12, jnp.int32), jnp.ones(8, jnp.int32)])

    params = {
        "conv1": init_gatv2_params(k_p1, cfg["in_channels"], cfg["hidden_channels"],
                                   cfg["initial_heads"], cfg["edge_dim"]),
        "conv2": init_gatv2_params(k_p2, cfg["hidden_channels"] * cfg["initial_heads"],
                                   cfg["out_channels"], cfg["second_heads"],
                                   cfg["edge_dim"]),
    }

    fwd = jax.jit(functools.partial(gatv2_actor_critic_forward, params, cfg,
                                    num_graphs=num_graphs))
    out = fwd(x, edge_index, edge_attr, batch)        # (2, out_channels*second_heads)
    jax.block_until_ready(out)
    assert out.shape == (num_graphs, cfg["out_channels"] * cfg["second_heads"])
    assert bool(jnp.all(jnp.isfinite(out)))
    print("KERNEL_OK")
</pallas_src>

<mosaic_0001>
module attributes {stable_mosaic.version = 11 : i64} {
  func.func @gatv2_layer_kernel(%arg0: i32, %arg1: memref<16x128xf32, #tpu.memory_space<vmem>>, %arg2: memref<128x16xf32, #tpu.memory_space<vmem>>, %arg3: memref<16x3xf32, #tpu.memory_space<vmem>>, %arg4: memref<2x8xf32, #tpu.memory_space<smem>>, %arg5: memref<16x1xf32, #tpu.memory_space<vmem>>, %arg6: memref<3x128x128xbf16, #tpu.memory_space<vmem>>, %arg7: memref<128x128xbf16, #tpu.memory_space<vmem>>, %arg8: memref<16x128xf32, #tpu.memory_space<vmem>>) attributes {dimension_semantics = [#tpu.dimension_semantics<parallel>], iteration_bounds = array<i64: 1>, scalar_prefetch = 0 : i64, scratch_operands = 0 : i64, tpu.core_type = #tpu.core_type<tc>, window_params = [{pipeline_mode = #tpu.pipeline_mode<synchronous>, transform_indices = @transform_0, window_bounds = array<i64: 16, 128>}, {transform_indices = @transform_1, window_bounds = array<i64: 128, 16>}, {pipeline_mode = #tpu.pipeline_mode<synchronous>, transform_indices = @transform_2, window_bounds = array<i64: 16, 3>}, {transform_indices = @transform_3, window_bounds = array<i64: 2, 8>}, {pipeline_mode = #tpu.pipeline_mode<synchronous>, transform_indices = @transform_4, window_bounds = array<i64: 16, 1>}, {transform_indices = @transform_5, window_bounds = array<i64: 3, 128, 128>}, {transform_indices = @transform_6, window_bounds = array<i64: 128, 128>}, {transform_indices = @transform_7, window_bounds = array<i64: 16, 128>}]} {
    %c0 = arith.constant 0 : index
    %c0_0 = arith.constant 0 : index
    %0 = vector.load %arg1[%c0, %c0_0] : memref<16x128xf32, #tpu.memory_space<vmem>>, vector<16x128xf32>
    %c0_1 = arith.constant 0 : index
    %c0_2 = arith.constant 0 : index
    %1 = vector.load %arg2[%c0_1, %c0_2] : memref<128x16xf32, #tpu.memory_space<vmem>>, vector<128x16xf32>
    %c0_3 = arith.constant 0 : index
    %c0_4 = arith.constant 0 : index
    %2 = vector.load %arg3[%c0_3, %c0_4] : memref<16x3xf32, #tpu.memory_space<vmem>>, vector<16x3xf32>
    %c0_5 = arith.constant 0 : index
    %c0_6 = arith.constant 0 : index
    %c0_7 = arith.constant 0 : index
    %3 = vector.load %arg6[%c0_5, %c0_6, %c0_7] : memref<3x128x128xbf16, #tpu.memory_space<vmem>>, vector<1x128x128xbf16>
    %4 = vector.shape_cast %3 : vector<1x128x128xbf16> to vector<128x128xbf16>
    %5 = arith.extf %4 : vector<128x128xbf16> to vector<128x128xf32>
    %c1 = arith.constant 1 : index
    %c0_8 = arith.constant 0 : index
    %c0_9 = arith.constant 0 : index
    %6 = vector.load %arg6[%c1, %c0_8, %c0_9] : memref<3x128x128xbf16, #tpu.memory_space<vmem>>, vector<1x128x128xbf16>
    %7 = vector.shape_cast %6 : vector<1x128x128xbf16> to vector<128x128xbf16>
    %8 = arith.extf %7 : vector<128x128xbf16> to vector<128x128xf32>
    %c2 = arith.constant 2 : index
    %c0_10 = arith.constant 0 : index
    %c0_11 = arith.constant 0 : index
    %9 = vector.load %arg6[%c2, %c0_10, %c0_11] : memref<3x128x128xbf16, #tpu.memory_space<vmem>>, vector<1x128x128xbf16>
    %10 = vector.shape_cast %9 : vector<1x128x128xbf16> to vector<128x128xbf16>
    %11 = arith.extf %10 : vector<128x128xbf16> to vector<128x128xf32>
    %c0_12 = arith.constant 0 : index
    %c0_13 = arith.constant 0 : index
    %12 = vector.load %arg7[%c0_12, %c0_13] : memref<128x128xbf16, #tpu.memory_space<vmem>>, vector<128x128xbf16>
    %13 = arith.extf %12 : vector<128x128xbf16> to vector<128x128xf32>
    %cst = arith.constant 1.000000e+00 : f32
    %14 = vector.broadcast %cst : f32 to vector<1x128xf32>
    %15 = vector.extract_strided_slice %1 {offsets = [0, 0], sizes = [128, 1], strides = [1, 1]} : vector<128x16xf32> to vector<128x1xf32>
    %16 = vector.extract_strided_slice %0 {offsets = [0, 0], sizes = [1, 128], strides = [1, 1]} : vector<16x128xf32> to vector<1x128xf32>
    %17 = vector.broadcast %15 : vector<128x1xf32> to vector<128x128xf32>
    %18 = vector.broadcast %16 : vector<1x128xf32> to vector<128x128xf32>
    %19 = arith.addf %17, %18 : vector<128x128xf32>
    %20 = vector.extract_strided_slice %2 {offsets = [0, 0], sizes = [1, 1], strides = [1, 1]} : vector<16x3xf32> to vector<1x1xf32>
    %21 = vector.broadcast %20 : vector<1x1xf32> to vector<128x128xf32>
    %22 = arith.mulf %21, %5 : vector<128x128xf32>
    %23 = arith.addf %19, %22 : vector<128x128xf32>
    %24 = vector.extract_strided_slice %2 {offsets = [0, 1], sizes = [1, 1], strides = [1, 1]} : vector<16x3xf32> to vector<1x1xf32>
    %25 = vector.broadcast %24 : vector<1x1xf32> to vector<128x128xf32>
    %26 = arith.mulf %25, %8 : vector<128x128xf32>
    %27 = arith.addf %23, %26 : vector<128x128xf32>
    %28 = vector.extract_strided_slice %2 {offsets = [0, 2], sizes = [1, 1], strides = [1, 1]} : vector<16x3xf32> to vector<1x1xf32>
    %29 = vector.broadcast %28 : vector<1x1xf32> to vector<128x128xf32>
    %30 = arith.mulf %29, %11 : vector<128x128xf32>
    %31 = arith.addf %27, %30 : vector<128x128xf32>
    %cst_14 = arith.constant 2.000000e-01 : f32
    %32 = vector.broadcast %cst_14 : f32 to vector<128x128xf32>
    %33 = arith.mulf %32, %31 : vector<128x128xf32>
    %34 = arith.maximumf %31, %33 : vector<128x128xf32>
    %c0_15 = arith.constant 0 : index
    %c0_16 = arith.constant 0 : index
    %35 = memref.load %arg4[%c0_15, %c0_16] : memref<2x8xf32, #tpu.memory_space<smem>>
    %36 = vector.broadcast %35 : f32 to vector<128x128xf32>
    %37 = arith.mulf %36, %34 : vector<128x128xf32>
    %38 = arith.addf %13, %37 : vector<128x128xf32>
    %39 = vector.extract_strided_slice %1 {offsets = [0, 1], sizes = [128, 1], strides = [1, 1]} : vector<128x16xf32> to vector<128x1xf32>
    %40 = vector.extract_strided_slice %0 {offsets = [1, 0], sizes = [1, 128], strides = [1, 1]} : vector<16x128xf32> to vector<1x128xf32>
    %41 = vector.broadcast %39 : vector<128x1xf32> to vector<128x128xf32>
    %42 = vector.broadcast %40 : vector<1x128xf32> to vector<128x128xf32>
    %43 = arith.addf %41, %42 : vector<128x128xf32>
    %44 = vector.extract_strided_slice %2 {offsets = [1, 0], sizes = [1, 1], strides = [1, 1]} : vector<16x3xf32> to vector<1x1xf32>
    %45 = vector.broadcast %44 : vector<1x1xf32> to vector<128x128xf32>
    %46 = arith.mulf %45, %5 : vector<128x128xf32>
    %47 = arith.addf %43, %46 : vector<128x128xf32>
    %48 = vector.extract_strided_slice %2 {offsets = [1, 1], sizes = [1, 1], strides = [1, 1]} : vector<16x3xf32> to vector<1x1xf32>
    %49 = vector.broadcast %48 : vector<1x1xf32> to vector<128x128xf32>
    %50 = arith.mulf %49, %8 : vector<128x128xf32>
    %51 = arith.addf %47, %50 : vector<128x128xf32>
    %52 = vector.extract_strided_slice %2 {offsets = [1, 2], sizes = [1, 1], strides = [1, 1]} : vector<16x3xf32> to vector<1x1xf32>
    %53 = vector.broadcast %52 : vector<1x1xf32> to vector<128x128xf32>
    %54 = arith.mulf %53, %11 : vector<128x128xf32>
    %55 = arith.addf %51, %54 : vector<128x128xf32>
    %cst_17 = arith.constant 2.000000e-01 : f32
    %56 = vector.broadcast %cst_17 : f32 to vector<128x128xf32>
    %57 = arith.mulf %56, %55 : vector<128x128xf32>
    %58 = arith.maximumf %55, %57 : vector<128x128xf32>
    %c0_18 = arith.constant 0 : index
    %c1_19 = arith.constant 1 : index
    %59 = memref.load %arg4[%c0_18, %c1_19] : memref<2x8xf32, #tpu.memory_space<smem>>
    %60 = vector.broadcast %59 : f32 to vector<128x128xf32>
    %61 = arith.mulf %60, %58 : vector<128x128xf32>
    %62 = arith.addf %38, %61 : vector<128x128xf32>
    %63 = vector.extract_strided_slice %1 {offsets = [0, 2], sizes = [128, 1], strides = [1, 1]} : vector<128x16xf32> to vector<128x1xf32>
    %64 = vector.extract_strided_slice %0 {offsets = [2, 0], sizes = [1, 128], strides = [1, 1]} : vector<16x128xf32> to vector<1x128xf32>
    %65 = vector.broadcast %63 : vector<128x1xf32> to vector<128x128xf32>
    %66 = vector.broadcast %64 : vector<1x128xf32> to vector<128x128xf32>
    %67 = arith.addf %65, %66 : vector<128x128xf32>
    %68 = vector.extract_strided_slice %2 {offsets = [2, 0], sizes = [1, 1], strides = [1, 1]} : vector<16x3xf32> to vector<1x1xf32>
    %69 = vector.broadcast %68 : vector<1x1xf32> to vector<128x128xf32>
    %70 = arith.mulf %69, %5 : vector<128x128xf32>
    %71 = arith.addf %67, %70 : vector<128x128xf32>
    %72 = vector.extract_strided_slice %2 {offsets = [2, 1], sizes = [1, 1], strides = [1, 1]} : vector<16x3xf32> to vector<1x1xf32>
    %73 = vector.broadcast %72 : vector<1x1xf32> to vector<128x128xf32>
    %74 = arith.mulf %73, %8 : vector<128x128xf32>
    %75 = arith.addf %71, %74 : vector<128x128xf32>
    %76 = vector.extract_strided_slice %2 {offsets = [2, 2], sizes = [1, 1], strides = [1, 1]} : vector<16x3xf32> to vector<1x1xf32>
    %77 = vector.broadcast %76 : vector<1x1xf32> to vector<128x128xf32>
    %78 = arith.mulf %77, %11 : vector<128x128xf32>
    %79 = arith.addf %75, %78 : vector<128x128xf32>
    %cst_20 = arith.constant 2.000000e-01 : f32
    %80 = vector.broadcast %cst_20 : f32 to vector<128x128xf32>
    %81 = arith.mulf %80, %79 : vector<128x128xf32>
    %82 = arith.maximumf %79, %81 : vector<128x128xf32>
    %c0_21 = arith.constant 0 : index
    %c2_22 = arith.constant 2 : index
    %83 = memref.load %arg4[%c0_21, %c2_22] : memref<2x8xf32, #tpu.memory_space<smem>>
    %84 = vector.broadcast %83 : f32 to vector<128x128xf32>
    %85 = arith.mulf %84, %82 : vector<128x128xf32>
    %86 = arith.addf %62, %85 : vector<128x128xf32>
    %87 = vector.extract_strided_slice %1 {offsets = [0, 3], sizes = [128, 1], strides = [1, 1]} : vector<128x16xf32> to vector<128x1xf32>
    %88 = vector.extract_strided_slice %0 {offsets = [3, 0], sizes = [1, 128], strides = [1, 1]} : vector<16x128xf32> to vector<1x128xf32>
    %89 = vector.broadcast %87 : vector<128x1xf32> to vector<128x128xf32>
    %90 = vector.broadcast %88 : vector<1x128xf32> to vector<128x128xf32>
    %91 = arith.addf %89, %90 : vector<128x128xf32>
    %92 = vector.extract_strided_slice %2 {offsets = [3, 0], sizes = [1, 1], strides = [1, 1]} : vector<16x3xf32> to vector<1x1xf32>
    %93 = vector.broadcast %92 : vector<1x1xf32> to vector<128x128xf32>
    %94 = arith.mulf %93, %5 : vector<128x128xf32>
    %95 = arith.addf %91, %94 : vector<128x128xf32>
    %96 = vector.extract_strided_slice %2 {offsets = [3, 1], sizes = [1, 1], strides = [1, 1]} : vector<16x3xf32> to vector<1x1xf32>
    %97 = vector.broadcast %96 : vector<1x1xf32> to vector<128x128xf32>
    %98 = arith.mulf %97, %8 : vector<128x128xf32>
    %99 = arith.addf %95, %98 : vector<128x128xf32>
    %100 = vector.extract_strided_slice %2 {offsets = [3, 2], sizes = [1, 1], strides = [1, 1]} : vector<16x3xf32> to vector<1x1xf32>
    %101 = vector.broadcast %100 : vector<1x1xf32> to vector<128x128xf32>
    %102 = arith.mulf %101, %11 : vector<128x128xf32>
    %103 = arith.addf %99, %102 : vector<128x128xf32>
    %cst_23 = arith.constant 2.000000e-01 : f32
    %104 = vector.broadcast %cst_23 : f32 to vector<128x128xf32>
    %105 = arith.mulf %104, %103 : vector<128x128xf32>
    %106 = arith.maximumf %103, %105 : vector<128x128xf32>
    %c0_24 = arith.constant 0 : index
    %c3 = arith.constant 3 : index
    %107 = memref.load %arg4[%c0_24, %c3] : memref<2x8xf32, #tpu.memory_space<smem>>
    %108 = vector.broadcast %107 : f32 to vector<128x128xf32>
    %109 = arith.mulf %108, %106 : vector<128x128xf32>
    %110 = arith.addf %86, %109 : vector<128x128xf32>
    %111 = vector.extract_strided_slice %1 {offsets = [0, 4], sizes = [128, 1], strides = [1, 1]} : vector<128x16xf32> to vector<128x1xf32>
    %112 = vector.extract_strided_slice %0 {offsets = [4, 0], sizes = [1, 128], strides = [1, 1]} : vector<16x128xf32> to vector<1x128xf32>
    %113 = vector.broadcast %111 : vector<128x1xf32> to vector<128x128xf32>
    %114 = vector.broadcast %112 : vector<1x128xf32> to vector<128x128xf32>
    %115 = arith.addf %113, %114 : vector<128x128xf32>
    %116 = vector.extract_strided_slice %2 {offsets = [4, 0], sizes = [1, 1], strides = [1, 1]} : vector<16x3xf32> to vector<1x1xf32>
    %117 = vector.broadcast %116 : vector<1x1xf32> to vector<128x128xf32>
    %118 = arith.mulf %117, %5 : vector<128x128xf32>
    %119 = arith.addf %115, %118 : vector<128x128xf32>
    %120 = vector.extract_strided_slice %2 {offsets = [4, 1], sizes = [1, 1], strides = [1, 1]} : vector<16x3xf32> to vector<1x1xf32>
    %121 = vector.broadcast %120 : vector<1x1xf32> to vector<128x128xf32>
    %122 = arith.mulf %121, %8 : vector<128x128xf32>
    %123 = arith.addf %119, %122 : vector<128x128xf32>
    %124 = vector.extract_strided_slice %2 {offsets = [4, 2], sizes = [1, 1], strides = [1, 1]} : vector<16x3xf32> to vector<1x1xf32>
    %125 = vector.broadcast %124 : vector<1x1xf32> to vector<128x128xf32>
    %126 = arith.mulf %125, %11 : vector<128x128xf32>
    %127 = arith.addf %123, %126 : vector<128x128xf32>
    %cst_25 = arith.constant 2.000000e-01 : f32
    %128 = vector.broadcast %cst_25 : f32 to vector<128x128xf32>
    %129 = arith.mulf %128, %127 : vector<128x128xf32>
    %130 = arith.maximumf %127, %129 : vector<128x128xf32>
    %c0_26 = arith.constant 0 : index
    %c4 = arith.constant 4 : index
    %131 = memref.load %arg4[%c0_26, %c4] : memref<2x8xf32, #tpu.memory_space<smem>>
    %132 = vector.broadcast %131 : f32 to vector<128x128xf32>
    %133 = arith.mulf %132, %130 : vector<128x128xf32>
    %134 = arith.addf %110, %133 : vector<128x128xf32>
    %135 = vector.extract_strided_slice %1 {offsets = [0, 5], sizes = [128, 1], strides = [1, 1]} : vector<128x16xf32> to vector<128x1xf32>
    %136 = vector.extract_strided_slice %0 {offsets = [5, 0], sizes = [1, 128], strides = [1, 1]} : vector<16x128xf32> to vector<1x128xf32>
    %137 = vector.broadcast %135 : vector<128x1xf32> to vector<128x128xf32>
    %138 = vector.broadcast %136 : vector<1x128xf32> to vector<128x128xf32>
    %139 = arith.addf %137, %138 : vector<128x128xf32>
    %140 = vector.extract_strided_slice %2 {offsets = [5, 0], sizes = [1, 1], strides = [1, 1]} : vector<16x3xf32> to vector<1x1xf32>
    %141 = vector.broadcast %140 : vector<1x1xf32> to vector<128x128xf32>
    %142 = arith.mulf %141, %5 : vector<128x128xf32>
    %143 = arith.addf %139, %142 : vector<128x128xf32>
    %144 = vector.extract_strided_slice %2 {offsets = [5, 1], sizes = [1, 1], strides = [1, 1]} : vector<16x3xf32> to vector<1x1xf32>
    %145 = vector.broadcast %144 : vector<1x1xf32> to vector<128x128xf32>
    %146 = arith.mulf %145, %8 : vector<128x128xf32>
    %147 = arith.addf %143, %146 : vector<128x128xf32>
    %148 = vector.extract_strided_slice %2 {offsets = [5, 2], sizes = [1, 1], strides = [1, 1]} : vector<16x3xf32> to vector<1x1xf32>
    %149 = vector.broadcast %148 : vector<1x1xf32> to vector<128x128xf32>
    %150 = arith.mulf %149, %11 : vector<128x128xf32>
    %151 = arith.addf %147, %150 : vector<128x128xf32>
    %cst_27 = arith.constant 2.000000e-01 : f32
    %152 = vector.broadcast %cst_27 : f32 to vector<128x128xf32>
    %153 = arith.mulf %152, %151 : vector<128x128xf32>
    %154 = arith.maximumf %151, %153 : vector<128x128xf32>
    %c0_28 = arith.constant 0 : index
    %c5 = arith.constant 5 : index
    %155 = memref.load %arg4[%c0_28, %c5] : memref<2x8xf32, #tpu.memory_space<smem>>
    %156 = vector.broadcast %155 : f32 to vector<128x128xf32>
    %157 = arith.mulf %156, %154 : vector<128x128xf32>
    %158 = arith.addf %134, %157 : vector<128x128xf32>
    %159 = vector.extract_strided_slice %1 {offsets = [0, 6], sizes = [128, 1], strides = [1, 1]} : vector<128x16xf32> to vector<128x1xf32>
    %160 = vector.extract_strided_slice %0 {offsets = [6, 0], sizes = [1, 128], strides = [1, 1]} : vector<16x128xf32> to vector<1x128xf32>
    %161 = vector.broadcast %159 : vector<128x1xf32> to vector<128x128xf32>
    %162 = vector.broadcast %160 : vector<1x128xf32> to vector<128x128xf32>
    %163 = arith.addf %161, %162 : vector<128x128xf32>
    %164 = vector.extract_strided_slice %2 {offsets = [6, 0], sizes = [1, 1], strides = [1, 1]} : vector<16x3xf32> to vector<1x1xf32>
    %165 = vector.broadcast %164 : vector<1x1xf32> to vector<128x128xf32>
    %166 = arith.mulf %165, %5 : vector<128x128xf32>
    %167 = arith.addf %163, %166 : vector<128x128xf32>
    %168 = vector.extract_strided_slice %2 {offsets = [6, 1], sizes = [1, 1], strides = [1, 1]} : vector<16x3xf32> to vector<1x1xf32>
    %169 = vector.broadcast %168 : vector<1x1xf32> to vector<128x128xf32>
    %170 = arith.mulf %169, %8 : vector<128x128xf32>
    %171 = arith.addf %167, %170 : vector<128x128xf32>
    %172 = vector.extract_strided_slice %2 {offsets = [6, 2], sizes = [1, 1], strides = [1, 1]} : vector<16x3xf32> to vector<1x1xf32>
    %173 = vector.broadcast %172 : vector<1x1xf32> to vector<128x128xf32>
    %174 = arith.mulf %173, %11 : vector<128x128xf32>
    %175 = arith.addf %171, %174 : vector<128x128xf32>
    %cst_29 = arith.constant 2.000000e-01 : f32
    %176 = vector.broadcast %cst_29 : f32 to vector<128x128xf32>
    %177 = arith.mulf %176, %175 : vector<128x128xf32>
    %178 = arith.maximumf %175, %177 : vector<128x128xf32>
    %c0_30 = arith.constant 0 : index
    %c6 = arith.constant 6 : index
    %179 = memref.load %arg4[%c0_30, %c6] : memref<2x8xf32, #tpu.memory_space<smem>>
    %180 = vector.broadcast %179 : f32 to vector<128x128xf32>
    %181 = arith.mulf %180, %178 : vector<128x128xf32>
    %182 = arith.addf %158, %181 : vector<128x128xf32>
    %183 = vector.extract_strided_slice %1 {offsets = [0, 7], sizes = [128, 1], strides = [1, 1]} : vector<128x16xf32> to vector<128x1xf32>
    %184 = vector.extract_strided_slice %0 {offsets = [7, 0], sizes = [1, 128], strides = [1, 1]} : vector<16x128xf32> to vector<1x128xf32>
    %185 = vector.broadcast %183 : vector<128x1xf32> to vector<128x128xf32>
    %186 = vector.broadcast %184 : vector<1x128xf32> to vector<128x128xf32>
    %187 = arith.addf %185, %186 : vector<128x128xf32>
    %188 = vector.extract_strided_slice %2 {offsets = [7, 0], sizes = [1, 1], strides = [1, 1]} : vector<16x3xf32> to vector<1x1xf32>
    %189 = vector.broadcast %188 : vector<1x1xf32> to vector<128x128xf32>
    %190 = arith.mulf %189, %5 : vector<128x128xf32>
    %191 = arith.addf %187, %190 : vector<128x128xf32>
    %192 = vector.extract_strided_slice %2 {offsets = [7, 1], sizes = [1, 1], strides = [1, 1]} : vector<16x3xf32> to vector<1x1xf32>
    %193 = vector.broadcast %192 : vector<1x1xf32> to vector<128x128xf32>
    %194 = arith.mulf %193, %8 : vector<128x128xf32>
    %195 = arith.addf %191, %194 : vector<128x128xf32>
    %196 = vector.extract_strided_slice %2 {offsets = [7, 2], sizes = [1, 1], strides = [1, 1]} : vector<16x3xf32> to vector<1x1xf32>
    %197 = vector.broadcast %196 : vector<1x1xf32> to vector<128x128xf32>
    %198 = arith.mulf %197, %11 : vector<128x128xf32>
    %199 = arith.addf %195, %198 : vector<128x128xf32>
    %cst_31 = arith.constant 2.000000e-01 : f32
    %200 = vector.broadcast %cst_31 : f32 to vector<128x128xf32>
    %201 = arith.mulf %200, %199 : vector<128x128xf32>
    %202 = arith.maximumf %199, %201 : vector<128x128xf32>
    %c0_32 = arith.constant 0 : index
    %c7 = arith.constant 7 : index
    %203 = memref.load %arg4[%c0_32, %c7] : memref<2x8xf32, #tpu.memory_space<smem>>
    %204 = vector.broadcast %203 : f32 to vector<128x128xf32>
    %205 = arith.mulf %204, %202 : vector<128x128xf32>
    %206 = arith.addf %182, %205 : vector<128x128xf32>
    %cst_33 = arith.constant dense<0xFF800000> : vector<128xf32>
    %207 = vector.multi_reduction <maximumf>, %206, %cst_33 [1] : vector<128x128xf32> to vector<128xf32>
    %208 = vector.shape_cast %207 : vector<128xf32> to vector<128x1xf32>
    %209 = vector.broadcast %208 : vector<128x1xf32> to vector<128x128xf32>
    %210 = arith.subf %206, %209 : vector<128x128xf32>
    %211 = math.exp %210 : vector<128x128xf32>
    %212 = vector.extract_strided_slice %0 {offsets = [0, 0], sizes = [8, 128], strides = [1, 1]} : vector<16x128xf32> to vector<8x128xf32>
    %cst_34 = arith.constant dense<0.000000e+00> : vector<8x128xf32>
    %213 = tpu.matmul %212, %211, %cst_34 {dimension_numbers = #tpu.dot_dimension_numbers<[1], [1], [0], [0], [0, 0, 1, 0], [], []>} : vector<8x128xf32>, vector<128x128xf32>, vector<8x128xf32> -> vector<8x128xf32>
    %cst_35 = arith.constant dense<0.000000e+00> : vector<1x128xf32>
    %214 = tpu.matmul %14, %211, %cst_35 {dimension_numbers = #tpu.dot_dimension_numbers<[1], [1], [0], [0], [0, 0, 1, 0], [], []>} : vector<1x128xf32>, vector<128x128xf32>, vector<1x128xf32> -> vector<1x128xf32>
    %215 = tpu.reciprocal %214 {approx = true} : vector<1x128xf32> -> vector<1x128xf32>
    %216 = vector.broadcast %215 : vector<1x128xf32> to vector<8x128xf32>
    %217 = arith.mulf %213, %216 : vector<8x128xf32>
    %218 = vector.extract_strided_slice %1 {offsets = [0, 8], sizes = [128, 1], strides = [1, 1]} : vector<128x16xf32> to vector<128x1xf32>
    %219 = vector.extract_strided_slice %0 {offsets = [8, 0], sizes = [1, 128], strides = [1, 1]} : vector<16x128xf32> to vector<1x128xf32>
    %220 = vector.broadcast %218 : vector<128x1xf32> to vector<128x128xf32>
    %221 = vector.broadcast %219 : vector<1x128xf32> to vector<128x128xf32>
    %222 = arith.addf %220, %221 : vector<128x128xf32>
    %223 = vector.extract_strided_slice %2 {offsets = [8, 0], sizes = [1, 1], strides = [1, 1]} : vector<16x3xf32> to vector<1x1xf32>
    %224 = vector.broadcast %223 : vector<1x1xf32> to vector<128x128xf32>
    %225 = arith.mulf %224, %5 : vector<128x128xf32>
    %226 = arith.addf %222, %225 : vector<128x128xf32>
    %227 = vector.extract_strided_slice %2 {offsets = [8, 1], sizes = [1, 1], strides = [1, 1]} : vector<16x3xf32> to vector<1x1xf32>
    %228 = vector.broadcast %227 : vector<1x1xf32> to vector<128x128xf32>
    %229 = arith.mulf %228, %8 : vector<128x128xf32>
    %230 = arith.addf %226, %229 : vector<128x128xf32>
    %231 = vector.extract_strided_slice %2 {offsets = [8, 2], sizes = [1, 1], strides = [1, 1]} : vector<16x3xf32> to vector<1x1xf32>
    %232 = vector.broadcast %231 : vector<1x1xf32> to vector<128x128xf32>
    %233 = arith.mulf %232, %11 : vector<128x128xf32>
    %234 = arith.addf %230, %233 : vector<128x128xf32>
    %cst_36 = arith.constant 2.000000e-01 : f32
    %235 = vector.broadcast %cst_36 : f32 to vector<128x128xf32>
    %236 = arith.mulf %235, %234 : vector<128x128xf32>
    %237 = arith.maximumf %234, %236 : vector<128x128xf32>
    %c1_37 = arith.constant 1 : index
    %c0_38 = arith.constant 0 : index
    %238 = memref.load %arg4[%c1_37, %c0_38] : memref<2x8xf32, #tpu.memory_space<smem>>
    %239 = vector.broadcast %238 : f32 to vector<128x128xf32>
    %240 = arith.mulf %239, %237 : vector<128x128xf32>
    %241 = arith.addf %13, %240 : vector<128x128xf32>
    %242 = vector.extract_strided_slice %1 {offsets = [0, 9], sizes = [128, 1], strides = [1, 1]} : vector<128x16xf32> to vector<128x1xf32>
    %243 = vector.extract_strided_slice %0 {offsets = [9, 0], sizes = [1, 128], strides = [1, 1]} : vector<16x128xf32> to vector<1x128xf32>
    %244 = vector.broadcast %242 : vector<128x1xf32> to vector<128x128xf32>
    %245 = vector.broadcast %243 : vector<1x128xf32> to vector<128x128xf32>
    %246 = arith.addf %244, %245 : vector<128x128xf32>
    %247 = vector.extract_strided_slice %2 {offsets = [9, 0], sizes = [1, 1], strides = [1, 1]} : vector<16x3xf32> to vector<1x1xf32>
    %248 = vector.broadcast %247 : vector<1x1xf32> to vector<128x128xf32>
    %249 = arith.mulf %248, %5 : vector<128x128xf32>
    %250 = arith.addf %246, %249 : vector<128x128xf32>
    %251 = vector.extract_strided_slice %2 {offsets = [9, 1], sizes = [1, 1], strides = [1, 1]} : vector<16x3xf32> to vector<1x1xf32>
    %252 = vector.broadcast %251 : vector<1x1xf32> to vector<128x128xf32>
    %253 = arith.mulf %252, %8 : vector<128x128xf32>
    %254 = arith.addf %250, %253 : vector<128x128xf32>
    %255 = vector.extract_strided_slice %2 {offsets = [9, 2], sizes = [1, 1], strides = [1, 1]} : vector<16x3xf32> to vector<1x1xf32>
    %256 = vector.broadcast %255 : vector<1x1xf32> to vector<128x128xf32>
    %257 = arith.mulf %256, %11 : vector<128x128xf32>
    %258 = arith.addf %254, %257 : vector<128x128xf32>
    %cst_39 = arith.constant 2.000000e-01 : f32
    %259 = vector.broadcast %cst_39 : f32 to vector<128x128xf32>
    %260 = arith.mulf %259, %258 : vector<128x128xf32>
    %261 = arith.maximumf %258, %260 : vector<128x128xf32>
    %c1_40 = arith.constant 1 : index
    %c1_41 = arith.constant 1 : index
    %262 = memref.load %arg4[%c1_40, %c1_41] : memref<2x8xf32, #tpu.memory_space<smem>>
    %263 = vector.broadcast %262 : f32 to vector<128x128xf32>
    %264 = arith.mulf %263, %261 : vector<128x128xf32>
    %265 = arith.addf %241, %264 : vector<128x128xf32>
    %266 = vector.extract_strided_slice %1 {offsets = [0, 10], sizes = [128, 1], strides = [1, 1]} : vector<128x16xf32> to vector<128x1xf32>
    %267 = vector.extract_strided_slice %0 {offsets = [10, 0], sizes = [1, 128], strides = [1, 1]} : vector<16x128xf32> to vector<1x128xf32>
    %268 = vector.broadcast %266 : vector<128x1xf32> to vector<128x128xf32>
    %269 = vector.broadcast %267 : vector<1x128xf32> to vector<128x128xf32>
    %270 = arith.addf %268, %269 : vector<128x128xf32>
    %271 = vector.extract_strided_slice %2 {offsets = [10, 0], sizes = [1, 1], strides = [1, 1]} : vector<16x3xf32> to vector<1x1xf32>
    %272 = vector.broadcast %271 : vector<1x1xf32> to vector<128x128xf32>
    %273 = arith.mulf %272, %5 : vector<128x128xf32>
    %274 = arith.addf %270, %273 : vector<128x128xf32>
    %275 = vector.extract_strided_slice %2 {offsets = [10, 1], sizes = [1, 1], strides = [1, 1]} : vector<16x3xf32> to vector<1x1xf32>
    %276 = vector.broadcast %275 : vector<1x1xf32> to vector<128x128xf32>
    %277 = arith.mulf %276, %8 : vector<128x128xf32>
    %278 = arith.addf %274, %277 : vector<128x128xf32>
    %279 = vector.extract_strided_slice %2 {offsets = [10, 2], sizes = [1, 1], strides = [1, 1]} : vector<16x3xf32> to vector<1x1xf32>
    %280 = vector.broadcast %279 : vector<1x1xf32> to vector<128x128xf32>
    %281 = arith.mulf %280, %11 : vector<128x128xf32>
    %282 = arith.addf %278, %281 : vector<128x128xf32>
    %cst_42 = arith.constant 2.000000e-01 : f32
    %283 = vector.broadcast %cst_42 : f32 to vector<128x128xf32>
    %284 = arith.mulf %283, %282 : vector<128x128xf32>
    %285 = arith.maximumf %282, %284 : vector<128x128xf32>
    %c1_43 = arith.constant 1 : index
    %c2_44 = arith.constant 2 : index
    %286 = memref.load %arg4[%c1_43, %c2_44] : memref<2x8xf32, #tpu.memory_space<smem>>
    %287 = vector.broadcast %286 : f32 to vector<128x128xf32>
    %288 = arith.mulf %287, %285 : vector<128x128xf32>
    %289 = arith.addf %265, %288 : vector<128x128xf32>
    %290 = vector.extract_strided_slice %1 {offsets = [0, 11], sizes = [128, 1], strides = [1, 1]} : vector<128x16xf32> to vector<128x1xf32>
    %291 = vector.extract_strided_slice %0 {offsets = [11, 0], sizes = [1, 128], strides = [1, 1]} : vector<16x128xf32> to vector<1x128xf32>
    %292 = vector.broadcast %290 : vector<128x1xf32> to vector<128x128xf32>
    %293 = vector.broadcast %291 : vector<1x128xf32> to vector<128x128xf32>
    %294 = arith.addf %292, %293 : vector<128x128xf32>
    %295 = vector.extract_strided_slice %2 {offsets = [11, 0], sizes = [1, 1], strides = [1, 1]} : vector<16x3xf32> to vector<1x1xf32>
    %296 = vector.broadcast %295 : vector<1x1xf32> to vector<128x128xf32>
    %297 = arith.mulf %296, %5 : vector<128x128xf32>
    %298 = arith.addf %294, %297 : vector<128x128xf32>
    %299 = vector.extract_strided_slice %2 {offsets = [11, 1], sizes = [1, 1], strides = [1, 1]} : vector<16x3xf32> to vector<1x1xf32>
    %300 = vector.broadcast %299 : vector<1x1xf32> to vector<128x128xf32>
    %301 = arith.mulf %300, %8 : vector<128x128xf32>
    %302 = arith.addf %298, %301 : vector<128x128xf32>
    %303 = vector.extract_strided_slice %2 {offsets = [11, 2], sizes = [1, 1], strides = [1, 1]} : vector<16x3xf32> to vector<1x1xf32>
    %304 = vector.broadcast %303 : vector<1x1xf32> to vector<128x128xf32>
    %305 = arith.mulf %304, %11 : vector<128x128xf32>
    %306 = arith.addf %302, %305 : vector<128x128xf32>
    %cst_45 = arith.constant 2.000000e-01 : f32
    %307 = vector.broadcast %cst_45 : f32 to vector<128x128xf32>
    %308 = arith.mulf %307, %306 : vector<128x128xf32>
    %309 = arith.maximumf %306, %308 : vector<128x128xf32>
    %c1_46 = arith.constant 1 : index
    %c3_47 = arith.constant 3 : index
    %310 = memref.load %arg4[%c1_46, %c3_47] : memref<2x8xf32, #tpu.memory_space<smem>>
    %311 = vector.broadcast %310 : f32 to vector<128x128xf32>
    %312 = arith.mulf %311, %309 : vector<128x128xf32>
    %313 = arith.addf %289, %312 : vector<128x128xf32>
    %314 = vector.extract_strided_slice %1 {offsets = [0, 12], sizes = [128, 1], strides = [1, 1]} : vector<128x16xf32> to vector<128x1xf32>
    %315 = vector.extract_strided_slice %0 {offsets = [12, 0], sizes = [1, 128], strides = [1, 1]} : vector<16x128xf32> to vector<1x128xf32>
    %316 = vector.broadcast %314 : vector<128x1xf32> to vector<128x128xf32>
    %317 = vector.broadcast %315 : vector<1x128xf32> to vector<128x128xf32>
    %318 = arith.addf %316, %317 : vector<128x128xf32>
    %319 = vector.extract_strided_slice %2 {offsets = [12, 0], sizes = [1, 1], strides = [1, 1]} : vector<16x3xf32> to vector<1x1xf32>
    %320 = vector.broadcast %319 : vector<1x1xf32> to vector<128x128xf32>
    %321 = arith.mulf %320, %5 : vector<128x128xf32>
    %322 = arith.addf %318, %321 : vector<128x128xf32>
    %323 = vector.extract_strided_slice %2 {offsets = [12, 1], sizes = [1, 1], strides = [1, 1]} : vector<16x3xf32> to vector<1x1xf32>
    %324 = vector.broadcast %323 : vector<1x1xf32> to vector<128x128xf32>
    %325 = arith.mulf %324, %8 : vector<128x128xf32>
    %326 = arith.addf %322, %325 : vector<128x128xf32>
    %327 = vector.extract_strided_slice %2 {offsets = [12, 2], sizes = [1, 1], strides = [1, 1]} : vector<16x3xf32> to vector<1x1xf32>
    %328 = vector.broadcast %327 : vector<1x1xf32> to vector<128x128xf32>
    %329 = arith.mulf %328, %11 : vector<128x128xf32>
    %330 = arith.addf %326, %329 : vector<128x128xf32>
    %cst_48 = arith.constant 2.000000e-01 : f32
    %331 = vector.broadcast %cst_48 : f32 to vector<128x128xf32>
    %332 = arith.mulf %331, %330 : vector<128x128xf32>
    %333 = arith.maximumf %330, %332 : vector<128x128xf32>
    %c1_49 = arith.constant 1 : index
    %c4_50 = arith.constant 4 : index
    %334 = memref.load %arg4[%c1_49, %c4_50] : memref<2x8xf32, #tpu.memory_space<smem>>
    %335 = vector.broadcast %334 : f32 to vector<128x128xf32>
    %336 = arith.mulf %335, %333 : vector<128x128xf32>
    %337 = arith.addf %313, %336 : vector<128x128xf32>
    %338 = vector.extract_strided_slice %1 {offsets = [0, 13], sizes = [128, 1], strides = [1, 1]} : vector<128x16xf32> to vector<128x1xf32>
    %339 = vector.extract_strided_slice %0 {offsets = [13, 0], sizes = [1, 128], strides = [1, 1]} : vector<16x128xf32> to vector<1x128xf32>
    %340 = vector.broadcast %338 : vector<128x1xf32> to vector<128x128xf32>
    %341 = vector.broadcast %339 : vector<1x128xf32> to vector<128x128xf32>
    %342 = arith.addf %340, %341 : vector<128x128xf32>
    %343 = vector.extract_strided_slice %2 {offsets = [13, 0], sizes = [1, 1], strides = [1, 1]} : vector<16x3xf32> to vector<1x1xf32>
    %344 = vector.broadcast %343 : vector<1x1xf32> to vector<128x128xf32>
    %345 = arith.mulf %344, %5 : vector<128x128xf32>
    %346 = arith.addf %342, %345 : vector<128x128xf32>
    %347 = vector.extract_strided_slice %2 {offsets = [13, 1], sizes = [1, 1], strides = [1, 1]} : vector<16x3xf32> to vector<1x1xf32>
    %348 = vector.broadcast %347 : vector<1x1xf32> to vector<128x128xf32>
    %349 = arith.mulf %348, %8 : vector<128x128xf32>
    %350 = arith.addf %346, %349 : vector<128x128xf32>
    %351 = vector.extract_strided_slice %2 {offsets = [13, 2], sizes = [1, 1], strides = [1, 1]} : vector<16x3xf32> to vector<1x1xf32>
    %352 = vector.broadcast %351 : vector<1x1xf32> to vector<128x128xf32>
    %353 = arith.mulf %352, %11 : vector<128x128xf32>
    %354 = arith.addf %350, %353 : vector<128x128xf32>
    %cst_51 = arith.constant 2.000000e-01 : f32
    %355 = vector.broadcast %cst_51 : f32 to vector<128x128xf32>
    %356 = arith.mulf %355, %354 : vector<128x128xf32>
    %357 = arith.maximumf %354, %356 : vector<128x128xf32>
    %c1_52 = arith.constant 1 : index
    %c5_53 = arith.constant 5 : index
    %358 = memref.load %arg4[%c1_52, %c5_53] : memref<2x8xf32, #tpu.memory_space<smem>>
    %359 = vector.broadcast %358 : f32 to vector<128x128xf32>
    %360 = arith.mulf %359, %357 : vector<128x128xf32>
    %361 = arith.addf %337, %360 : vector<128x128xf32>
    %362 = vector.extract_strided_slice %1 {offsets = [0, 14], sizes = [128, 1], strides = [1, 1]} : vector<128x16xf32> to vector<128x1xf32>
    %363 = vector.extract_strided_slice %0 {offsets = [14, 0], sizes = [1, 128], strides = [1, 1]} : vector<16x128xf32> to vector<1x128xf32>
    %364 = vector.broadcast %362 : vector<128x1xf32> to vector<128x128xf32>
    %365 = vector.broadcast %363 : vector<1x128xf32> to vector<128x128xf32>
    %366 = arith.addf %364, %365 : vector<128x128xf32>
    %367 = vector.extract_strided_slice %2 {offsets = [14, 0], sizes = [1, 1], strides = [1, 1]} : vector<16x3xf32> to vector<1x1xf32>
    %368 = vector.broadcast %367 : vector<1x1xf32> to vector<128x128xf32>
    %369 = arith.mulf %368, %5 : vector<128x128xf32>
    %370 = arith.addf %366, %369 : vector<128x128xf32>
    %371 = vector.extract_strided_slice %2 {offsets = [14, 1], sizes = [1, 1], strides = [1, 1]} : vector<16x3xf32> to vector<1x1xf32>
    %372 = vector.broadcast %371 : vector<1x1xf32> to vector<128x128xf32>
    %373 = arith.mulf %372, %8 : vector<128x128xf32>
    %374 = arith.addf %370, %373 : vector<128x128xf32>
    %375 = vector.extract_strided_slice %2 {offsets = [14, 2], sizes = [1, 1], strides = [1, 1]} : vector<16x3xf32> to vector<1x1xf32>
    %376 = vector.broadcast %375 : vector<1x1xf32> to vector<128x128xf32>
    %377 = arith.mulf %376, %11 : vector<128x128xf32>
    %378 = arith.addf %374, %377 : vector<128x128xf32>
    %cst_54 = arith.constant 2.000000e-01 : f32
    %379 = vector.broadcast %cst_54 : f32 to vector<128x128xf32>
    %380 = arith.mulf %379, %378 : vector<128x128xf32>
    %381 = arith.maximumf %378, %380 : vector<128x128xf32>
    %c1_55 = arith.constant 1 : index
    %c6_56 = arith.constant 6 : index
    %382 = memref.load %arg4[%c1_55, %c6_56] : memref<2x8xf32, #tpu.memory_space<smem>>
    %383 = vector.broadcast %382 : f32 to vector<128x128xf32>
    %384 = arith.mulf %383, %381 : vector<128x128xf32>
    %385 = arith.addf %361, %384 : vector<128x128xf32>
    %386 = vector.extract_strided_slice %1 {offsets = [0, 15], sizes = [128, 1], strides = [1, 1]} : vector<128x16xf32> to vector<128x1xf32>
    %387 = vector.extract_strided_slice %0 {offsets = [15, 0], sizes = [1, 128], strides = [1, 1]} : vector<16x128xf32> to vector<1x128xf32>
    %388 = vector.broadcast %386 : vector<128x1xf32> to vector<128x128xf32>
    %389 = vector.broadcast %387 : vector<1x128xf32> to vector<128x128xf32>
    %390 = arith.addf %388, %389 : vector<128x128xf32>
    %391 = vector.extract_strided_slice %2 {offsets = [15, 0], sizes = [1, 1], strides = [1, 1]} : vector<16x3xf32> to vector<1x1xf32>
    %392 = vector.broadcast %391 : vector<1x1xf32> to vector<128x128xf32>
    %393 = arith.mulf %392, %5 : vector<128x128xf32>
    %394 = arith.addf %390, %393 : vector<128x128xf32>
    %395 = vector.extract_strided_slice %2 {offsets = [15, 1], sizes = [1, 1], strides = [1, 1]} : vector<16x3xf32> to vector<1x1xf32>
    %396 = vector.broadcast %395 : vector<1x1xf32> to vector<128x128xf32>
    %397 = arith.mulf %396, %8 : vector<128x128xf32>
    %398 = arith.addf %394, %397 : vector<128x128xf32>
    %399 = vector.extract_strided_slice %2 {offsets = [15, 2], sizes = [1, 1], strides = [1, 1]} : vector<16x3xf32> to vector<1x1xf32>
    %400 = vector.broadcast %399 : vector<1x1xf32> to vector<128x128xf32>
    %401 = arith.mulf %400, %11 : vector<128x128xf32>
    %402 = arith.addf %398, %401 : vector<128x128xf32>
    %cst_57 = arith.constant 2.000000e-01 : f32
    %403 = vector.broadcast %cst_57 : f32 to vector<128x128xf32>
    %404 = arith.mulf %403, %402 : vector<128x128xf32>
    %405 = arith.maximumf %402, %404 : vector<128x128xf32>
    %c1_58 = arith.constant 1 : index
    %c7_59 = arith.constant 7 : index
    %406 = memref.load %arg4[%c1_58, %c7_59] : memref<2x8xf32, #tpu.memory_space<smem>>
    %407 = vector.broadcast %406 : f32 to vector<128x128xf32>
    %408 = arith.mulf %407, %405 : vector<128x128xf32>
    %409 = arith.addf %385, %408 : vector<128x128xf32>
    %cst_60 = arith.constant dense<0xFF800000> : vector<128xf32>
    %410 = vector.multi_reduction <maximumf>, %409, %cst_60 [1] : vector<128x128xf32> to vector<128xf32>
    %411 = vector.shape_cast %410 : vector<128xf32> to vector<128x1xf32>
    %412 = vector.broadcast %411 : vector<128x1xf32> to vector<128x128xf32>
    %413 = arith.subf %409, %412 : vector<128x128xf32>
    %414 = math.exp %413 : vector<128x128xf32>
    %415 = vector.extract_strided_slice %0 {offsets = [8, 0], sizes = [8, 128], strides = [1, 1]} : vector<16x128xf32> to vector<8x128xf32>
    %cst_61 = arith.constant dense<0.000000e+00> : vector<8x128xf32>
    %416 = tpu.matmul %415, %414, %cst_61 {dimension_numbers = #tpu.dot_dimension_numbers<[1], [1], [0], [0], [0, 0, 1, 0], [], []>} : vector<8x128xf32>, vector<128x128xf32>, vector<8x128xf32> -> vector<8x128xf32>
    %cst_62 = arith.constant dense<0.000000e+00> : vector<1x128xf32>
    %417 = tpu.matmul %14, %414, %cst_62 {dimension_numbers = #tpu.dot_dimension_numbers<[1], [1], [0], [0], [0, 0, 1, 0], [], []>} : vector<1x128xf32>, vector<128x128xf32>, vector<1x128xf32> -> vector<1x128xf32>
    %418 = tpu.reciprocal %417 {approx = true} : vector<1x128xf32> -> vector<1x128xf32>
    %419 = vector.broadcast %418 : vector<1x128xf32> to vector<8x128xf32>
    %420 = arith.mulf %416, %419 : vector<8x128xf32>
    %421 = tpu.concatenate %217, %420 in 0 : vector<8x128xf32>, vector<8x128xf32> -> vector<16x128xf32>
    %c0_63 = arith.constant 0 : index
    %c0_64 = arith.constant 0 : index
    %422 = vector.load %arg5[%c0_63, %c0_64] : memref<16x1xf32, #tpu.memory_space<vmem>>, vector<16x1xf32>
    %423 = vector.broadcast %422 : vector<16x1xf32> to vector<16x128xf32>
    %424 = arith.addf %421, %423 : vector<16x128xf32>
    %cst_65 = arith.constant 0.000000e+00 : f32
    %425 = vector.broadcast %cst_65 : f32 to vector<16x128xf32>
    %426 = arith.cmpf ogt, %424, %425 : vector<16x128xf32>
    %cst_66 = arith.constant 0.000000e+00 : f32
    %427 = vector.broadcast %cst_66 : f32 to vector<16x128xf32>
    %428 = arith.minimumf %424, %427 : vector<16x128xf32>
    %429 = math.exp %428 : vector<16x128xf32>
    %cst_67 = arith.constant 1.000000e+00 : f32
    %430 = vector.broadcast %cst_67 : f32 to vector<16x128xf32>
    %431 = arith.subf %429, %430 : vector<16x128xf32>
    %432 = arith.select %426, %424, %431 : vector<16x128xi1>, vector<16x128xf32>
    %c0_68 = arith.constant 0 : index
    %c0_69 = arith.constant 0 : index
    %433 = vector.load %arg8[%c0_68, %c0_69] : memref<16x128xf32, #tpu.memory_space<vmem>>, vector<16x128xf32>
    tpu.vector_store %arg8[%c0_68, %c0_69], %432 {strides = array<i32>} : memref<16x128xf32, #tpu.memory_space<vmem>>, vector<16x128xf32>,
    return
  }
  func.func @transform_0(%arg0: i32) -> (i32, i32) {
    %c0_i32 = arith.constant 0 : i32
    %c0_i32_0 = arith.constant 0 : i32
    %c0_i32_1 = arith.constant 0 : i32
    return %c0_i32, %c0_i32_0 : i32, i32
  }
  func.func @transform_1(%arg0: i32) -> (i32, i32) {
    %c0_i32 = arith.constant 0 : i32
    %c0_i32_0 = arith.constant 0 : i32
    return %arg0, %c0_i32 : i32, i32
  }
  func.func @transform_2(%arg0: i32) -> (i32, i32) {
    %c0_i32 = arith.constant 0 : i32
    %c0_i32_0 = arith.constant 0 : i32
    %c0_i32_1 = arith.constant 0 : i32
    return %c0_i32, %c0_i32_0 : i32, i32
  }
  func.func @transform_3(%arg0: i32) -> (i32, i32) {
    %c0_i32 = arith.constant 0 : i32
    %c0_i32_0 = arith.constant 0 : i32
    %c0_i32_1 = arith.constant 0 : i32
    return %c0_i32, %c0_i32_0 : i32, i32
  }
  func.func @transform_4(%arg0: i32) -> (i32, i32) {
    %c0_i32 = arith.constant 0 : i32
    %c0_i32_0 = arith.constant 0 : i32
    %c0_i32_1 = arith.constant 0 : i32
    return %c0_i32, %c0_i32_0 : i32, i32
  }
  func.func @transform_5(%arg0: i32) -> (i32, i32, i32) {
    %c0_i32 = arith.constant 0 : i32
    %c0_i32_0 = arith.constant 0 : i32
    %c0_i32_1 = arith.constant 0 : i32
    return %c0_i32, %arg0, %c0_i32_0 : i32, i32, i32
  }
  func.func @transform_6(%arg0: i32) -> (i32, i32) {
    %c0_i32 = arith.constant 0 : i32
    %c0_i32_0 = arith.constant 0 : i32
    return %arg0, %c0_i32 : i32, i32
  }
  func.func @transform_7(%arg0: i32) -> (i32, i32) {
    %c0_i32 = arith.constant 0 : i32
    %c0_i32_0 = arith.constant 0 : i32
    return %c0_i32, %arg0 : i32, i32
  }
}

module attributes {stable_mosaic.version = 11 : i64} {
  func.func @gatv2_layer_kernel(%arg0: i32, %arg1: memref<16x128xf32, #tpu.memory_space<vmem>>, %arg2: memref<128x16xf32, #tpu.memory_space<vmem>>, %arg3: memref<16x3xf32, #tpu.memory_space<vmem>>, %arg4: memref<2x8xf32, #tpu.memory_space<smem>>, %arg5: memref<16x1xf32, #tpu.memory_space<vmem>>, %arg6: memref<3x128x128xbf16, #tpu.memory_space<vmem>>, %arg7: memref<128x128xbf16, #tpu.memory_space<vmem>>, %arg8: memref<16x128xf32, #tpu.memory_space<vmem>>) attributes {dimension_semantics = [#tpu.dimension_semantics<parallel>], iteration_bounds = array<i64: 1>, scalar_prefetch = 0 : i64, scratch_operands = 0 : i64, tpu.core_type = #tpu.core_type<tc>, window_params = [{pipeline_mode = #tpu.pipeline_mode<synchronous>, transform_indices = @transform_0, window_bounds = array<i64: 16, 128>}, {transform_indices = @transform_1, window_bounds = array<i64: 128, 16>}, {pipeline_mode = #tpu.pipeline_mode<synchronous>, transform_indices = @transform_2, window_bounds = array<i64: 16, 3>}, {transform_indices = @transform_3, window_bounds = array<i64: 2, 8>}, {pipeline_mode = #tpu.pipeline_mode<synchronous>, transform_indices = @transform_4, window_bounds = array<i64: 16, 1>}, {transform_indices = @transform_5, window_bounds = array<i64: 3, 128, 128>}, {transform_indices = @transform_6, window_bounds = array<i64: 128, 128>}, {transform_indices = @transform_7, window_bounds = array<i64: 16, 128>}]} {
    %c0 = arith.constant 0 : index
    %c0_0 = arith.constant 0 : index
    %0 = vector.load %arg1[%c0, %c0_0] : memref<16x128xf32, #tpu.memory_space<vmem>>, vector<16x128xf32>
    %c0_1 = arith.constant 0 : index
    %c0_2 = arith.constant 0 : index
    %1 = vector.load %arg2[%c0_1, %c0_2] : memref<128x16xf32, #tpu.memory_space<vmem>>, vector<128x16xf32>
    %c0_3 = arith.constant 0 : index
    %c0_4 = arith.constant 0 : index
    %2 = vector.load %arg3[%c0_3, %c0_4] : memref<16x3xf32, #tpu.memory_space<vmem>>, vector<16x3xf32>
    %c0_5 = arith.constant 0 : index
    %c0_6 = arith.constant 0 : index
    %c0_7 = arith.constant 0 : index
    %3 = vector.load %arg6[%c0_5, %c0_6, %c0_7] : memref<3x128x128xbf16, #tpu.memory_space<vmem>>, vector<1x128x128xbf16>
    %4 = vector.shape_cast %3 : vector<1x128x128xbf16> to vector<128x128xbf16>
    %5 = arith.extf %4 : vector<128x128xbf16> to vector<128x128xf32>
    %c1 = arith.constant 1 : index
    %c0_8 = arith.constant 0 : index
    %c0_9 = arith.constant 0 : index
    %6 = vector.load %arg6[%c1, %c0_8, %c0_9] : memref<3x128x128xbf16, #tpu.memory_space<vmem>>, vector<1x128x128xbf16>
    %7 = vector.shape_cast %6 : vector<1x128x128xbf16> to vector<128x128xbf16>
    %8 = arith.extf %7 : vector<128x128xbf16> to vector<128x128xf32>
    %c2 = arith.constant 2 : index
    %c0_10 = arith.constant 0 : index
    %c0_11 = arith.constant 0 : index
    %9 = vector.load %arg6[%c2, %c0_10, %c0_11] : memref<3x128x128xbf16, #tpu.memory_space<vmem>>, vector<1x128x128xbf16>
    %10 = vector.shape_cast %9 : vector<1x128x128xbf16> to vector<128x128xbf16>
    %11 = arith.extf %10 : vector<128x128xbf16> to vector<128x128xf32>
    %c0_12 = arith.constant 0 : index
    %c0_13 = arith.constant 0 : index
    %12 = vector.load %arg7[%c0_12, %c0_13] : memref<128x128xbf16, #tpu.memory_space<vmem>>, vector<128x128xbf16>
    %13 = arith.extf %12 : vector<128x128xbf16> to vector<128x128xf32>
    %cst = arith.constant 1.000000e+00 : f32
    %14 = vector.broadcast %cst : f32 to vector<1x128xf32>
    %15 = vector.extract_strided_slice %1 {offsets = [0, 0], sizes = [128, 1], strides = [1, 1]} : vector<128x16xf32> to vector<128x1xf32>
    %16 = vector.extract_strided_slice %0 {offsets = [0, 0], sizes = [1, 128], strides = [1, 1]} : vector<16x128xf32> to vector<1x128xf32>
    %17 = vector.broadcast %15 : vector<128x1xf32> to vector<128x128xf32>
    %18 = vector.broadcast %16 : vector<1x128xf32> to vector<128x128xf32>
    %19 = arith.addf %17, %18 : vector<128x128xf32>
    %20 = vector.extract_strided_slice %2 {offsets = [0, 0], sizes = [1, 1], strides = [1, 1]} : vector<16x3xf32> to vector<1x1xf32>
    %21 = vector.broadcast %20 : vector<1x1xf32> to vector<128x128xf32>
    %22 = arith.mulf %21, %5 : vector<128x128xf32>
    %23 = arith.addf %19, %22 : vector<128x128xf32>
    %24 = vector.extract_strided_slice %2 {offsets = [0, 1], sizes = [1, 1], strides = [1, 1]} : vector<16x3xf32> to vector<1x1xf32>
    %25 = vector.broadcast %24 : vector<1x1xf32> to vector<128x128xf32>
    %26 = arith.mulf %25, %8 : vector<128x128xf32>
    %27 = arith.addf %23, %26 : vector<128x128xf32>
    %28 = vector.extract_strided_slice %2 {offsets = [0, 2], sizes = [1, 1], strides = [1, 1]} : vector<16x3xf32> to vector<1x1xf32>
    %29 = vector.broadcast %28 : vector<1x1xf32> to vector<128x128xf32>
    %30 = arith.mulf %29, %11 : vector<128x128xf32>
    %31 = arith.addf %27, %30 : vector<128x128xf32>
    %cst_14 = arith.constant 2.000000e-01 : f32
    %32 = vector.broadcast %cst_14 : f32 to vector<128x128xf32>
    %33 = arith.mulf %32, %31 : vector<128x128xf32>
    %34 = arith.maximumf %31, %33 : vector<128x128xf32>
    %c0_15 = arith.constant 0 : index
    %c0_16 = arith.constant 0 : index
    %35 = memref.load %arg4[%c0_15, %c0_16] : memref<2x8xf32, #tpu.memory_space<smem>>
    %36 = vector.broadcast %35 : f32 to vector<128x128xf32>
    %37 = arith.mulf %36, %34 : vector<128x128xf32>
    %38 = arith.addf %13, %37 : vector<128x128xf32>
    %39 = vector.extract_strided_slice %1 {offsets = [0, 1], sizes = [128, 1], strides = [1, 1]} : vector<128x16xf32> to vector<128x1xf32>
    %40 = vector.extract_strided_slice %0 {offsets = [1, 0], sizes = [1, 128], strides = [1, 1]} : vector<16x128xf32> to vector<1x128xf32>
    %41 = vector.broadcast %39 : vector<128x1xf32> to vector<128x128xf32>
    %42 = vector.broadcast %40 : vector<1x128xf32> to vector<128x128xf32>
    %43 = arith.addf %41, %42 : vector<128x128xf32>
    %44 = vector.extract_strided_slice %2 {offsets = [1, 0], sizes = [1, 1], strides = [1, 1]} : vector<16x3xf32> to vector<1x1xf32>
    %45 = vector.broadcast %44 : vector<1x1xf32> to vector<128x128xf32>
    %46 = arith.mulf %45, %5 : vector<128x128xf32>
    %47 = arith.addf %43, %46 : vector<128x128xf32>
    %48 = vector.extract_strided_slice %2 {offsets = [1, 1], sizes = [1, 1], strides = [1, 1]} : vector<16x3xf32> to vector<1x1xf32>
    %49 = vector.broadcast %48 : vector<1x1xf32> to vector<128x128xf32>
    %50 = arith.mulf %49, %8 : vector<128x128xf32>
    %51 = arith.addf %47, %50 : vector<128x128xf32>
    %52 = vector.extract_strided_slice %2 {offsets = [1, 2], sizes = [1, 1], strides = [1, 1]} : vector<16x3xf32> to vector<1x1xf32>
    %53 = vector.broadcast %52 : vector<1x1xf32> to vector<128x128xf32>
    %54 = arith.mulf %53, %11 : vector<128x128xf32>
    %55 = arith.addf %51, %54 : vector<128x128xf32>
    %cst_17 = arith.constant 2.000000e-01 : f32
    %56 = vector.broadcast %cst_17 : f32 to vector<128x128xf32>
    %57 = arith.mulf %56, %55 : vector<128x128xf32>
    %58 = arith.maximumf %55, %57 : vector<128x128xf32>
    %c0_18 = arith.constant 0 : index
    %c1_19 = arith.constant 1 : index
    %59 = memref.load %arg4[%c0_18, %c1_19] : memref<2x8xf32, #tpu.memory_space<smem>>
    %60 = vector.broadcast %59 : f32 to vector<128x128xf32>
    %61 = arith.mulf %60, %58 : vector<128x128xf32>
    %62 = arith.addf %38, %61 : vector<128x128xf32>
    %63 = vector.extract_strided_slice %1 {offsets = [0, 2], sizes = [128, 1], strides = [1, 1]} : vector<128x16xf32> to vector<128x1xf32>
    %64 = vector.extract_strided_slice %0 {offsets = [2, 0], sizes = [1, 128], strides = [1, 1]} : vector<16x128xf32> to vector<1x128xf32>
    %65 = vector.broadcast %63 : vector<128x1xf32> to vector<128x128xf32>
    %66 = vector.broadcast %64 : vector<1x128xf32> to vector<128x128xf32>
    %67 = arith.addf %65, %66 : vector<128x128xf32>
    %68 = vector.extract_strided_slice %2 {offsets = [2, 0], sizes = [1, 1], strides = [1, 1]} : vector<16x3xf32> to vector<1x1xf32>
    %69 = vector.broadcast %68 : vector<1x1xf32> to vector<128x128xf32>
    %70 = arith.mulf %69, %5 : vector<128x128xf32>
    %71 = arith.addf %67, %70 : vector<128x128xf32>
    %72 = vector.extract_strided_slice %2 {offsets = [2, 1], sizes = [1, 1], strides = [1, 1]} : vector<16x3xf32> to vector<1x1xf32>
    %73 = vector.broadcast %72 : vector<1x1xf32> to vector<128x128xf32>
    %74 = arith.mulf %73, %8 : vector<128x128xf32>
    %75 = arith.addf %71, %74 : vector<128x128xf32>
    %76 = vector.extract_strided_slice %2 {offsets = [2, 2], sizes = [1, 1], strides = [1, 1]} : vector<16x3xf32> to vector<1x1xf32>
    %77 = vector.broadcast %76 : vector<1x1xf32> to vector<128x128xf32>
    %78 = arith.mulf %77, %11 : vector<128x128xf32>
    %79 = arith.addf %75, %78 : vector<128x128xf32>
    %cst_20 = arith.constant 2.000000e-01 : f32
    %80 = vector.broadcast %cst_20 : f32 to vector<128x128xf32>
    %81 = arith.mulf %80, %79 : vector<128x128xf32>
    %82 = arith.maximumf %79, %81 : vector<128x128xf32>
    %c0_21 = arith.constant 0 : index
    %c2_22 = arith.constant 2 : index
    %83 = memref.load %arg4[%c0_21, %c2_22] : memref<2x8xf32, #tpu.memory_space<smem>>
    %84 = vector.broadcast %83 : f32 to vector<128x128xf32>
    %85 = arith.mulf %84, %82 : vector<128x128xf32>
    %86 = arith.addf %62, %85 : vector<128x128xf32>
    %87 = vector.extract_strided_slice %1 {offsets = [0, 3], sizes = [128, 1], strides = [1, 1]} : vector<128x16xf32> to vector<128x1xf32>
    %88 = vector.extract_strided_slice %0 {offsets = [3, 0], sizes = [1, 128], strides = [1, 1]} : vector<16x128xf32> to vector<1x128xf32>
    %89 = vector.broadcast %87 : vector<128x1xf32> to vector<128x128xf32>
    %90 = vector.broadcast %88 : vector<1x128xf32> to vector<128x128xf32>
    %91 = arith.addf %89, %90 : vector<128x128xf32>
    %92 = vector.extract_strided_slice %2 {offsets = [3, 0], sizes = [1, 1], strides = [1, 1]} : vector<16x3xf32> to vector<1x1xf32>
    %93 = vector.broadcast %92 : vector<1x1xf32> to vector<128x128xf32>
    %94 = arith.mulf %93, %5 : vector<128x128xf32>
    %95 = arith.addf %91, %94 : vector<128x128xf32>
    %96 = vector.extract_strided_slice %2 {offsets = [3, 1], sizes = [1, 1], strides = [1, 1]} : vector<16x3xf32> to vector<1x1xf32>
    %97 = vector.broadcast %96 : vector<1x1xf32> to vector<128x128xf32>
    %98 = arith.mulf %97, %8 : vector<128x128xf32>
    %99 = arith.addf %95, %98 : vector<128x128xf32>
    %100 = vector.extract_strided_slice %2 {offsets = [3, 2], sizes = [1, 1], strides = [1, 1]} : vector<16x3xf32> to vector<1x1xf32>
    %101 = vector.broadcast %100 : vector<1x1xf32> to vector<128x128xf32>
    %102 = arith.mulf %101, %11 : vector<128x128xf32>
    %103 = arith.addf %99, %102 : vector<128x128xf32>
    %cst_23 = arith.constant 2.000000e-01 : f32
    %104 = vector.broadcast %cst_23 : f32 to vector<128x128xf32>
    %105 = arith.mulf %104, %103 : vector<128x128xf32>
    %106 = arith.maximumf %103, %105 : vector<128x128xf32>
    %c0_24 = arith.constant 0 : index
    %c3 = arith.constant 3 : index
    %107 = memref.load %arg4[%c0_24, %c3] : memref<2x8xf32, #tpu.memory_space<smem>>
    %108 = vector.broadcast %107 : f32 to vector<128x128xf32>
    %109 = arith.mulf %108, %106 : vector<128x128xf32>
    %110 = arith.addf %86, %109 : vector<128x128xf32>
    %111 = vector.extract_strided_slice %1 {offsets = [0, 4], sizes = [128, 1], strides = [1, 1]} : vector<128x16xf32> to vector<128x1xf32>
    %112 = vector.extract_strided_slice %0 {offsets = [4, 0], sizes = [1, 128], strides = [1, 1]} : vector<16x128xf32> to vector<1x128xf32>
    %113 = vector.broadcast %111 : vector<128x1xf32> to vector<128x128xf32>
    %114 = vector.broadcast %112 : vector<1x128xf32> to vector<128x128xf32>
    %115 = arith.addf %113, %114 : vector<128x128xf32>
    %116 = vector.extract_strided_slice %2 {offsets = [4, 0], sizes = [1, 1], strides = [1, 1]} : vector<16x3xf32> to vector<1x1xf32>
    %117 = vector.broadcast %116 : vector<1x1xf32> to vector<128x128xf32>
    %118 = arith.mulf %117, %5 : vector<128x128xf32>
    %119 = arith.addf %115, %118 : vector<128x128xf32>
    %120 = vector.extract_strided_slice %2 {offsets = [4, 1], sizes = [1, 1], strides = [1, 1]} : vector<16x3xf32> to vector<1x1xf32>
    %121 = vector.broadcast %120 : vector<1x1xf32> to vector<128x128xf32>
    %122 = arith.mulf %121, %8 : vector<128x128xf32>
    %123 = arith.addf %119, %122 : vector<128x128xf32>
    %124 = vector.extract_strided_slice %2 {offsets = [4, 2], sizes = [1, 1], strides = [1, 1]} : vector<16x3xf32> to vector<1x1xf32>
    %125 = vector.broadcast %124 : vector<1x1xf32> to vector<128x128xf32>
    %126 = arith.mulf %125, %11 : vector<128x128xf32>
    %127 = arith.addf %123, %126 : vector<128x128xf32>
    %cst_25 = arith.constant 2.000000e-01 : f32
    %128 = vector.broadcast %cst_25 : f32 to vector<128x128xf32>
    %129 = arith.mulf %128, %127 : vector<128x128xf32>
    %130 = arith.maximumf %127, %129 : vector<128x128xf32>
    %c0_26 = arith.constant 0 : index
    %c4 = arith.constant 4 : index
    %131 = memref.load %arg4[%c0_26, %c4] : memref<2x8xf32, #tpu.memory_space<smem>>
    %132 = vector.broadcast %131 : f32 to vector<128x128xf32>
    %133 = arith.mulf %132, %130 : vector<128x128xf32>
    %134 = arith.addf %110, %133 : vector<128x128xf32>
    %135 = vector.extract_strided_slice %1 {offsets = [0, 5], sizes = [128, 1], strides = [1, 1]} : vector<128x16xf32> to vector<128x1xf32>
    %136 = vector.extract_strided_slice %0 {offsets = [5, 0], sizes = [1, 128], strides = [1, 1]} : vector<16x128xf32> to vector<1x128xf32>
    %137 = vector.broadcast %135 : vector<128x1xf32> to vector<128x128xf32>
    %138 = vector.broadcast %136 : vector<1x128xf32> to vector<128x128xf32>
    %139 = arith.addf %137, %138 : vector<128x128xf32>
    %140 = vector.extract_strided_slice %2 {offsets = [5, 0], sizes = [1, 1], strides = [1, 1]} : vector<16x3xf32> to vector<1x1xf32>
    %141 = vector.broadcast %140 : vector<1x1xf32> to vector<128x128xf32>
    %142 = arith.mulf %141, %5 : vector<128x128xf32>
    %143 = arith.addf %139, %142 : vector<128x128xf32>
    %144 = vector.extract_strided_slice %2 {offsets = [5, 1], sizes = [1, 1], strides = [1, 1]} : vector<16x3xf32> to vector<1x1xf32>
    %145 = vector.broadcast %144 : vector<1x1xf32> to vector<128x128xf32>
    %146 = arith.mulf %145, %8 : vector<128x128xf32>
    %147 = arith.addf %143, %146 : vector<128x128xf32>
    %148 = vector.extract_strided_slice %2 {offsets = [5, 2], sizes = [1, 1], strides = [1, 1]} : vector<16x3xf32> to vector<1x1xf32>
    %149 = vector.broadcast %148 : vector<1x1xf32> to vector<128x128xf32>
    %150 = arith.mulf %149, %11 : vector<128x128xf32>
    %151 = arith.addf %147, %150 : vector<128x128xf32>
    %cst_27 = arith.constant 2.000000e-01 : f32
    %152 = vector.broadcast %cst_27 : f32 to vector<128x128xf32>
    %153 = arith.mulf %152, %151 : vector<128x128xf32>
    %154 = arith.maximumf %151, %153 : vector<128x128xf32>
    %c0_28 = arith.constant 0 : index
    %c5 = arith.constant 5 : index
    %155 = memref.load %arg4[%c0_28, %c5] : memref<2x8xf32, #tpu.memory_space<smem>>
    %156 = vector.broadcast %155 : f32 to vector<128x128xf32>
    %157 = arith.mulf %156, %154 : vector<128x128xf32>
    %158 = arith.addf %134, %157 : vector<128x128xf32>
    %159 = vector.extract_strided_slice %1 {offsets = [0, 6], sizes = [128, 1], strides = [1, 1]} : vector<128x16xf32> to vector<128x1xf32>
    %160 = vector.extract_strided_slice %0 {offsets = [6, 0], sizes = [1, 128], strides = [1, 1]} : vector<16x128xf32> to vector<1x128xf32>
    %161 = vector.broadcast %159 : vector<128x1xf32> to vector<128x128xf32>
    %162 = vector.broadcast %160 : vector<1x128xf32> to vector<128x128xf32>
    %163 = arith.addf %161, %162 : vector<128x128xf32>
    %164 = vector.extract_strided_slice %2 {offsets = [6, 0], sizes = [1, 1], strides = [1, 1]} : vector<16x3xf32> to vector<1x1xf32>
    %165 = vector.broadcast %164 : vector<1x1xf32> to vector<128x128xf32>
    %166 = arith.mulf %165, %5 : vector<128x128xf32>
    %167 = arith.addf %163, %166 : vector<128x128xf32>
    %168 = vector.extract_strided_slice %2 {offsets = [6, 1], sizes = [1, 1], strides = [1, 1]} : vector<16x3xf32> to vector<1x1xf32>
    %169 = vector.broadcast %168 : vector<1x1xf32> to vector<128x128xf32>
    %170 = arith.mulf %169, %8 : vector<128x128xf32>
    %171 = arith.addf %167, %170 : vector<128x128xf32>
    %172 = vector.extract_strided_slice %2 {offsets = [6, 2], sizes = [1, 1], strides = [1, 1]} : vector<16x3xf32> to vector<1x1xf32>
    %173 = vector.broadcast %172 : vector<1x1xf32> to vector<128x128xf32>
    %174 = arith.mulf %173, %11 : vector<128x128xf32>
    %175 = arith.addf %171, %174 : vector<128x128xf32>
    %cst_29 = arith.constant 2.000000e-01 : f32
    %176 = vector.broadcast %cst_29 : f32 to vector<128x128xf32>
    %177 = arith.mulf %176, %175 : vector<128x128xf32>
    %178 = arith.maximumf %175, %177 : vector<128x128xf32>
    %c0_30 = arith.constant 0 : index
    %c6 = arith.constant 6 : index
    %179 = memref.load %arg4[%c0_30, %c6] : memref<2x8xf32, #tpu.memory_space<smem>>
    %180 = vector.broadcast %179 : f32 to vector<128x128xf32>
    %181 = arith.mulf %180, %178 : vector<128x128xf32>
    %182 = arith.addf %158, %181 : vector<128x128xf32>
    %183 = vector.extract_strided_slice %1 {offsets = [0, 7], sizes = [128, 1], strides = [1, 1]} : vector<128x16xf32> to vector<128x1xf32>
    %184 = vector.extract_strided_slice %0 {offsets = [7, 0], sizes = [1, 128], strides = [1, 1]} : vector<16x128xf32> to vector<1x128xf32>
    %185 = vector.broadcast %183 : vector<128x1xf32> to vector<128x128xf32>
    %186 = vector.broadcast %184 : vector<1x128xf32> to vector<128x128xf32>
    %187 = arith.addf %185, %186 : vector<128x128xf32>
    %188 = vector.extract_strided_slice %2 {offsets = [7, 0], sizes = [1, 1], strides = [1, 1]} : vector<16x3xf32> to vector<1x1xf32>
    %189 = vector.broadcast %188 : vector<1x1xf32> to vector<128x128xf32>
    %190 = arith.mulf %189, %5 : vector<128x128xf32>
    %191 = arith.addf %187, %190 : vector<128x128xf32>
    %192 = vector.extract_strided_slice %2 {offsets = [7, 1], sizes = [1, 1], strides = [1, 1]} : vector<16x3xf32> to vector<1x1xf32>
    %193 = vector.broadcast %192 : vector<1x1xf32> to vector<128x128xf32>
    %194 = arith.mulf %193, %8 : vector<128x128xf32>
    %195 = arith.addf %191, %194 : vector<128x128xf32>
    %196 = vector.extract_strided_slice %2 {offsets = [7, 2], sizes = [1, 1], strides = [1, 1]} : vector<16x3xf32> to vector<1x1xf32>
    %197 = vector.broadcast %196 : vector<1x1xf32> to vector<128x128xf32>
    %198 = arith.mulf %197, %11 : vector<128x128xf32>
    %199 = arith.addf %195, %198 : vector<128x128xf32>
    %cst_31 = arith.constant 2.000000e-01 : f32
    %200 = vector.broadcast %cst_31 : f32 to vector<128x128xf32>
    %201 = arith.mulf %200, %199 : vector<128x128xf32>
    %202 = arith.maximumf %199, %201 : vector<128x128xf32>
    %c0_32 = arith.constant 0 : index
    %c7 = arith.constant 7 : index
    %203 = memref.load %arg4[%c0_32, %c7] : memref<2x8xf32, #tpu.memory_space<smem>>
    %204 = vector.broadcast %203 : f32 to vector<128x128xf32>
    %205 = arith.mulf %204, %202 : vector<128x128xf32>
    %206 = arith.addf %182, %205 : vector<128x128xf32>
    %cst_33 = arith.constant dense<0xFF800000> : vector<128xf32>
    %207 = vector.multi_reduction <maximumf>, %206, %cst_33 [1] : vector<128x128xf32> to vector<128xf32>
    %208 = vector.shape_cast %207 : vector<128xf32> to vector<128x1xf32>
    %209 = vector.broadcast %208 : vector<128x1xf32> to vector<128x128xf32>
    %210 = arith.subf %206, %209 : vector<128x128xf32>
    %211 = math.exp %210 : vector<128x128xf32>
    %212 = vector.extract_strided_slice %0 {offsets = [0, 0], sizes = [8, 128], strides = [1, 1]} : vector<16x128xf32> to vector<8x128xf32>
    %cst_34 = arith.constant dense<0.000000e+00> : vector<8x128xf32>
    %213 = tpu.matmul %212, %211, %cst_34 {dimension_numbers = #tpu.dot_dimension_numbers<[1], [1], [0], [0], [0, 0, 1, 0], [], []>} : vector<8x128xf32>, vector<128x128xf32>, vector<8x128xf32> -> vector<8x128xf32>
    %cst_35 = arith.constant dense<0.000000e+00> : vector<1x128xf32>
    %214 = tpu.matmul %14, %211, %cst_35 {dimension_numbers = #tpu.dot_dimension_numbers<[1], [1], [0], [0], [0, 0, 1, 0], [], []>} : vector<1x128xf32>, vector<128x128xf32>, vector<1x128xf32> -> vector<1x128xf32>
    %215 = tpu.reciprocal %214 {approx = true} : vector<1x128xf32> -> vector<1x128xf32>
    %216 = vector.broadcast %215 : vector<1x128xf32> to vector<8x128xf32>
    %217 = arith.mulf %213, %216 : vector<8x128xf32>
    %218 = vector.extract_strided_slice %1 {offsets = [0, 8], sizes = [128, 1], strides = [1, 1]} : vector<128x16xf32> to vector<128x1xf32>
    %219 = vector.extract_strided_slice %0 {offsets = [8, 0], sizes = [1, 128], strides = [1, 1]} : vector<16x128xf32> to vector<1x128xf32>
    %220 = vector.broadcast %218 : vector<128x1xf32> to vector<128x128xf32>
    %221 = vector.broadcast %219 : vector<1x128xf32> to vector<128x128xf32>
    %222 = arith.addf %220, %221 : vector<128x128xf32>
    %223 = vector.extract_strided_slice %2 {offsets = [8, 0], sizes = [1, 1], strides = [1, 1]} : vector<16x3xf32> to vector<1x1xf32>
    %224 = vector.broadcast %223 : vector<1x1xf32> to vector<128x128xf32>
    %225 = arith.mulf %224, %5 : vector<128x128xf32>
    %226 = arith.addf %222, %225 : vector<128x128xf32>
    %227 = vector.extract_strided_slice %2 {offsets = [8, 1], sizes = [1, 1], strides = [1, 1]} : vector<16x3xf32> to vector<1x1xf32>
    %228 = vector.broadcast %227 : vector<1x1xf32> to vector<128x128xf32>
    %229 = arith.mulf %228, %8 : vector<128x128xf32>
    %230 = arith.addf %226, %229 : vector<128x128xf32>
    %231 = vector.extract_strided_slice %2 {offsets = [8, 2], sizes = [1, 1], strides = [1, 1]} : vector<16x3xf32> to vector<1x1xf32>
    %232 = vector.broadcast %231 : vector<1x1xf32> to vector<128x128xf32>
    %233 = arith.mulf %232, %11 : vector<128x128xf32>
    %234 = arith.addf %230, %233 : vector<128x128xf32>
    %cst_36 = arith.constant 2.000000e-01 : f32
    %235 = vector.broadcast %cst_36 : f32 to vector<128x128xf32>
    %236 = arith.mulf %235, %234 : vector<128x128xf32>
    %237 = arith.maximumf %234, %236 : vector<128x128xf32>
    %c1_37 = arith.constant 1 : index
    %c0_38 = arith.constant 0 : index
    %238 = memref.load %arg4[%c1_37, %c0_38] : memref<2x8xf32, #tpu.memory_space<smem>>
    %239 = vector.broadcast %238 : f32 to vector<128x128xf32>
    %240 = arith.mulf %239, %237 : vector<128x128xf32>
    %241 = arith.addf %13, %240 : vector<128x128xf32>
    %242 = vector.extract_strided_slice %1 {offsets = [0, 9], sizes = [128, 1], strides = [1, 1]} : vector<128x16xf32> to vector<128x1xf32>
    %243 = vector.extract_strided_slice %0 {offsets = [9, 0], sizes = [1, 128], strides = [1, 1]} : vector<16x128xf32> to vector<1x128xf32>
    %244 = vector.broadcast %242 : vector<128x1xf32> to vector<128x128xf32>
    %245 = vector.broadcast %243 : vector<1x128xf32> to vector<128x128xf32>
    %246 = arith.addf %244, %245 : vector<128x128xf32>
    %247 = vector.extract_strided_slice %2 {offsets = [9, 0], sizes = [1, 1], strides = [1, 1]} : vector<16x3xf32> to vector<1x1xf32>
    %248 = vector.broadcast %247 : vector<1x1xf32> to vector<128x128xf32>
    %249 = arith.mulf %248, %5 : vector<128x128xf32>
    %250 = arith.addf %246, %249 : vector<128x128xf32>
    %251 = vector.extract_strided_slice %2 {offsets = [9, 1], sizes = [1, 1], strides = [1, 1]} : vector<16x3xf32> to vector<1x1xf32>
    %252 = vector.broadcast %251 : vector<1x1xf32> to vector<128x128xf32>
    %253 = arith.mulf %252, %8 : vector<128x128xf32>
    %254 = arith.addf %250, %253 : vector<128x128xf32>
    %255 = vector.extract_strided_slice %2 {offsets = [9, 2], sizes = [1, 1], strides = [1, 1]} : vector<16x3xf32> to vector<1x1xf32>
    %256 = vector.broadcast %255 : vector<1x1xf32> to vector<128x128xf32>
    %257 = arith.mulf %256, %11 : vector<128x128xf32>
    %258 = arith.addf %254, %257 : vector<128x128xf32>
    %cst_39 = arith.constant 2.000000e-01 : f32
    %259 = vector.broadcast %cst_39 : f32 to vector<128x128xf32>
    %260 = arith.mulf %259, %258 : vector<128x128xf32>
    %261 = arith.maximumf %258, %260 : vector<128x128xf32>
    %c1_40 = arith.constant 1 : index
    %c1_41 = arith.constant 1 : index
    %262 = memref.load %arg4[%c1_40, %c1_41] : memref<2x8xf32, #tpu.memory_space<smem>>
    %263 = vector.broadcast %262 : f32 to vector<128x128xf32>
    %264 = arith.mulf %263, %261 : vector<128x128xf32>
    %265 = arith.addf %241, %264 : vector<128x128xf32>
    %266 = vector.extract_strided_slice %1 {offsets = [0, 10], sizes = [128, 1], strides = [1, 1]} : vector<128x16xf32> to vector<128x1xf32>
    %267 = vector.extract_strided_slice %0 {offsets = [10, 0], sizes = [1, 128], strides = [1, 1]} : vector<16x128xf32> to vector<1x128xf32>
    %268 = vector.broadcast %266 : vector<128x1xf32> to vector<128x128xf32>
    %269 = vector.broadcast %267 : vector<1x128xf32> to vector<128x128xf32>
    %270 = arith.addf %268, %269 : vector<128x128xf32>
    %271 = vector.extract_strided_slice %2 {offsets = [10, 0], sizes = [1, 1], strides = [1, 1]} : vector<16x3xf32> to vector<1x1xf32>
    %272 = vector.broadcast %271 : vector<1x1xf32> to vector<128x128xf32>
    %273 = arith.mulf %272, %5 : vector<128x128xf32>
    %274 = arith.addf %270, %273 : vector<128x128xf32>
    %275 = vector.extract_strided_slice %2 {offsets = [10, 1], sizes = [1, 1], strides = [1, 1]} : vector<16x3xf32> to vector<1x1xf32>
    %276 = vector.broadcast %275 : vector<1x1xf32> to vector<128x128xf32>
    %277 = arith.mulf %276, %8 : vector<128x128xf32>
    %278 = arith.addf %274, %277 : vector<128x128xf32>
    %279 = vector.extract_strided_slice %2 {offsets = [10, 2], sizes = [1, 1], strides = [1, 1]} : vector<16x3xf32> to vector<1x1xf32>
    %280 = vector.broadcast %279 : vector<1x1xf32> to vector<128x128xf32>
    %281 = arith.mulf %280, %11 : vector<128x128xf32>
    %282 = arith.addf %278, %281 : vector<128x128xf32>
    %cst_42 = arith.constant 2.000000e-01 : f32
    %283 = vector.broadcast %cst_42 : f32 to vector<128x128xf32>
    %284 = arith.mulf %283, %282 : vector<128x128xf32>
    %285 = arith.maximumf %282, %284 : vector<128x128xf32>
    %c1_43 = arith.constant 1 : index
    %c2_44 = arith.constant 2 : index
    %286 = memref.load %arg4[%c1_43, %c2_44] : memref<2x8xf32, #tpu.memory_space<smem>>
    %287 = vector.broadcast %286 : f32 to vector<128x128xf32>
    %288 = arith.mulf %287, %285 : vector<128x128xf32>
    %289 = arith.addf %265, %288 : vector<128x128xf32>
    %290 = vector.extract_strided_slice %1 {offsets = [0, 11], sizes = [128, 1], strides = [1, 1]} : vector<128x16xf32> to vector<128x1xf32>
    %291 = vector.extract_strided_slice %0 {offsets = [11, 0], sizes = [1, 128], strides = [1, 1]} : vector<16x128xf32> to vector<1x128xf32>
    %292 = vector.broadcast %290 : vector<128x1xf32> to vector<128x128xf32>
    %293 = vector.broadcast %291 : vector<1x128xf32> to vector<128x128xf32>
    %294 = arith.addf %292, %293 : vector<128x128xf32>
    %295 = vector.extract_strided_slice %2 {offsets = [11, 0], sizes = [1, 1], strides = [1, 1]} : vector<16x3xf32> to vector<1x1xf32>
    %296 = vector.broadcast %295 : vector<1x1xf32> to vector<128x128xf32>
    %297 = arith.mulf %296, %5 : vector<128x128xf32>
    %298 = arith.addf %294, %297 : vector<128x128xf32>
    %299 = vector.extract_strided_slice %2 {offsets = [11, 1], sizes = [1, 1], strides = [1, 1]} : vector<16x3xf32> to vector<1x1xf32>
    %300 = vector.broadcast %299 : vector<1x1xf32> to vector<128x128xf32>
    %301 = arith.mulf %300, %8 : vector<128x128xf32>
    %302 = arith.addf %298, %301 : vector<128x128xf32>
    %303 = vector.extract_strided_slice %2 {offsets = [11, 2], sizes = [1, 1], strides = [1, 1]} : vector<16x3xf32> to vector<1x1xf32>
    %304 = vector.broadcast %303 : vector<1x1xf32> to vector<128x128xf32>
    %305 = arith.mulf %304, %11 : vector<128x128xf32>
    %306 = arith.addf %302, %305 : vector<128x128xf32>
    %cst_45 = arith.constant 2.000000e-01 : f32
    %307 = vector.broadcast %cst_45 : f32 to vector<128x128xf32>
    %308 = arith.mulf %307, %306 : vector<128x128xf32>
    %309 = arith.maximumf %306, %308 : vector<128x128xf32>
    %c1_46 = arith.constant 1 : index
    %c3_47 = arith.constant 3 : index
    %310 = memref.load %arg4[%c1_46, %c3_47] : memref<2x8xf32, #tpu.memory_space<smem>>
    %311 = vector.broadcast %310 : f32 to vector<128x128xf32>
    %312 = arith.mulf %311, %309 : vector<128x128xf32>
    %313 = arith.addf %289, %312 : vector<128x128xf32>
    %314 = vector.extract_strided_slice %1 {offsets = [0, 12], sizes = [128, 1], strides = [1, 1]} : vector<128x16xf32> to vector<128x1xf32>
    %315 = vector.extract_strided_slice %0 {offsets = [12, 0], sizes = [1, 128], strides = [1, 1]} : vector<16x128xf32> to vector<1x128xf32>
    %316 = vector.broadcast %314 : vector<128x1xf32> to vector<128x128xf32>
    %317 = vector.broadcast %315 : vector<1x128xf32> to vector<128x128xf32>
    %318 = arith.addf %316, %317 : vector<128x128xf32>
    %319 = vector.extract_strided_slice %2 {offsets = [12, 0], sizes = [1, 1], strides = [1, 1]} : vector<16x3xf32> to vector<1x1xf32>
    %320 = vector.broadcast %319 : vector<1x1xf32> to vector<128x128xf32>
    %321 = arith.mulf %320, %5 : vector<128x128xf32>
    %322 = arith.addf %318, %321 : vector<128x128xf32>
    %323 = vector.extract_strided_slice %2 {offsets = [12, 1], sizes = [1, 1], strides = [1, 1]} : vector<16x3xf32> to vector<1x1xf32>
    %324 = vector.broadcast %323 : vector<1x1xf32> to vector<128x128xf32>
    %325 = arith.mulf %324, %8 : vector<128x128xf32>
    %326 = arith.addf %322, %325 : vector<128x128xf32>
    %327 = vector.extract_strided_slice %2 {offsets = [12, 2], sizes = [1, 1], strides = [1, 1]} : vector<16x3xf32> to vector<1x1xf32>
    %328 = vector.broadcast %327 : vector<1x1xf32> to vector<128x128xf32>
    %329 = arith.mulf %328, %11 : vector<128x128xf32>
    %330 = arith.addf %326, %329 : vector<128x128xf32>
    %cst_48 = arith.constant 2.000000e-01 : f32
    %331 = vector.broadcast %cst_48 : f32 to vector<128x128xf32>
    %332 = arith.mulf %331, %330 : vector<128x128xf32>
    %333 = arith.maximumf %330, %332 : vector<128x128xf32>
    %c1_49 = arith.constant 1 : index
    %c4_50 = arith.constant 4 : index
    %334 = memref.load %arg4[%c1_49, %c4_50] : memref<2x8xf32, #tpu.memory_space<smem>>
    %335 = vector.broadcast %334 : f32 to vector<128x128xf32>
    %336 = arith.mulf %335, %333 : vector<128x128xf32>
    %337 = arith.addf %313, %336 : vector<128x128xf32>
    %338 = vector.extract_strided_slice %1 {offsets = [0, 13], sizes = [128, 1], strides = [1, 1]} : vector<128x16xf32> to vector<128x1xf32>
    %339 = vector.extract_strided_slice %0 {offsets = [13, 0], sizes = [1, 128], strides = [1, 1]} : vector<16x128xf32> to vector<1x128xf32>
    %340 = vector.broadcast %338 : vector<128x1xf32> to vector<128x128xf32>
    %341 = vector.broadcast %339 : vector<1x128xf32> to vector<128x128xf32>
    %342 = arith.addf %340, %341 : vector<128x128xf32>
    %343 = vector.extract_strided_slice %2 {offsets = [13, 0], sizes = [1, 1], strides = [1, 1]} : vector<16x3xf32> to vector<1x1xf32>
    %344 = vector.broadcast %343 : vector<1x1xf32> to vector<128x128xf32>
    %345 = arith.mulf %344, %5 : vector<128x128xf32>
    %346 = arith.addf %342, %345 : vector<128x128xf32>
    %347 = vector.extract_strided_slice %2 {offsets = [13, 1], sizes = [1, 1], strides = [1, 1]} : vector<16x3xf32> to vector<1x1xf32>
    %348 = vector.broadcast %347 : vector<1x1xf32> to vector<128x128xf32>
    %349 = arith.mulf %348, %8 : vector<128x128xf32>
    %350 = arith.addf %346, %349 : vector<128x128xf32>
    %351 = vector.extract_strided_slice %2 {offsets = [13, 2], sizes = [1, 1], strides = [1, 1]} : vector<16x3xf32> to vector<1x1xf32>
    %352 = vector.broadcast %351 : vector<1x1xf32> to vector<128x128xf32>
    %353 = arith.mulf %352, %11 : vector<128x128xf32>
    %354 = arith.addf %350, %353 : vector<128x128xf32>
    %cst_51 = arith.constant 2.000000e-01 : f32
    %355 = vector.broadcast %cst_51 : f32 to vector<128x128xf32>
    %356 = arith.mulf %355, %354 : vector<128x128xf32>
    %357 = arith.maximumf %354, %356 : vector<128x128xf32>
    %c1_52 = arith.constant 1 : index
    %c5_53 = arith.constant 5 : index
    %358 = memref.load %arg4[%c1_52, %c5_53] : memref<2x8xf32, #tpu.memory_space<smem>>
    %359 = vector.broadcast %358 : f32 to vector<128x128xf32>
    %360 = arith.mulf %359, %357 : vector<128x128xf32>
    %361 = arith.addf %337, %360 : vector<128x128xf32>
    %362 = vector.extract_strided_slice %1 {offsets = [0, 14], sizes = [128, 1], strides = [1, 1]} : vector<128x16xf32> to vector<128x1xf32>
    %363 = vector.extract_strided_slice %0 {offsets = [14, 0], sizes = [1, 128], strides = [1, 1]} : vector<16x128xf32> to vector<1x128xf32>
    %364 = vector.broadcast %362 : vector<128x1xf32> to vector<128x128xf32>
    %365 = vector.broadcast %363 : vector<1x128xf32> to vector<128x128xf32>
    %366 = arith.addf %364, %365 : vector<128x128xf32>
    %367 = vector.extract_strided_slice %2 {offsets = [14, 0], sizes = [1, 1], strides = [1, 1]} : vector<16x3xf32> to vector<1x1xf32>
    %368 = vector.broadcast %367 : vector<1x1xf32> to vector<128x128xf32>
    %369 = arith.mulf %368, %5 : vector<128x128xf32>
    %370 = arith.addf %366, %369 : vector<128x128xf32>
    %371 = vector.extract_strided_slice %2 {offsets = [14, 1], sizes = [1, 1], strides = [1, 1]} : vector<16x3xf32> to vector<1x1xf32>
    %372 = vector.broadcast %371 : vector<1x1xf32> to vector<128x128xf32>
    %373 = arith.mulf %372, %8 : vector<128x128xf32>
    %374 = arith.addf %370, %373 : vector<128x128xf32>
    %375 = vector.extract_strided_slice %2 {offsets = [14, 2], sizes = [1, 1], strides = [1, 1]} : vector<16x3xf32> to vector<1x1xf32>
    %376 = vector.broadcast %375 : vector<1x1xf32> to vector<128x128xf32>
    %377 = arith.mulf %376, %11 : vector<128x128xf32>
    %378 = arith.addf %374, %377 : vector<128x128xf32>
    %cst_54 = arith.constant 2.000000e-01 : f32
    %379 = vector.broadcast %cst_54 : f32 to vector<128x128xf32>
    %380 = arith.mulf %379, %378 : vector<128x128xf32>
    %381 = arith.maximumf %378, %380 : vector<128x128xf32>
    %c1_55 = arith.constant 1 : index
    %c6_56 = arith.constant 6 : index
    %382 = memref.load %arg4[%c1_55, %c6_56] : memref<2x8xf32, #tpu.memory_space<smem>>
    %383 = vector.broadcast %382 : f32 to vector<128x128xf32>
    %384 = arith.mulf %383, %381 : vector<128x128xf32>
    %385 = arith.addf %361, %384 : vector<128x128xf32>
    %386 = vector.extract_strided_slice %1 {offsets = [0, 15], sizes = [128, 1], strides = [1, 1]} : vector<128x16xf32> to vector<128x1xf32>
    %387 = vector.extract_strided_slice %0 {offsets = [15, 0], sizes = [1, 128], strides = [1, 1]} : vector<16x128xf32> to vector<1x128xf32>
    %388 = vector.broadcast %386 : vector<128x1xf32> to vector<128x128xf32>
    %389 = vector.broadcast %387 : vector<1x128xf32> to vector<128x128xf32>
    %390 = arith.addf %388, %389 : vector<128x128xf32>
    %391 = vector.extract_strided_slice %2 {offsets = [15, 0], sizes = [1, 1], strides = [1, 1]} : vector<16x3xf32> to vector<1x1xf32>
    %392 = vector.broadcast %391 : vector<1x1xf32> to vector<128x128xf32>
    %393 = arith.mulf %392, %5 : vector<128x128xf32>
    %394 = arith.addf %390, %393 : vector<128x128xf32>
    %395 = vector.extract_strided_slice %2 {offsets = [15, 1], sizes = [1, 1], strides = [1, 1]} : vector<16x3xf32> to vector<1x1xf32>
    %396 = vector.broadcast %395 : vector<1x1xf32> to vector<128x128xf32>
    %397 = arith.mulf %396, %8 : vector<128x128xf32>
    %398 = arith.addf %394, %397 : vector<128x128xf32>
    %399 = vector.extract_strided_slice %2 {offsets = [15, 2], sizes = [1, 1], strides = [1, 1]} : vector<16x3xf32> to vector<1x1xf32>
    %400 = vector.broadcast %399 : vector<1x1xf32> to vector<128x128xf32>
    %401 = arith.mulf %400, %11 : vector<128x128xf32>
    %402 = arith.addf %398, %401 : vector<128x128xf32>
    %cst_57 = arith.constant 2.000000e-01 : f32
    %403 = vector.broadcast %cst_57 : f32 to vector<128x128xf32>
    %404 = arith.mulf %403, %402 : vector<128x128xf32>
    %405 = arith.maximumf %402, %404 : vector<128x128xf32>
    %c1_58 = arith.constant 1 : index
    %c7_59 = arith.constant 7 : index
    %406 = memref.load %arg4[%c1_58, %c7_59] : memref<2x8xf32, #tpu.memory_space<smem>>
    %407 = vector.broadcast %406 : f32 to vector<128x128xf32>
    %408 = arith.mulf %407, %405 : vector<128x128xf32>
    %409 = arith.addf %385, %408 : vector<128x128xf32>
    %cst_60 = arith.constant dense<0xFF800000> : vector<128xf32>
    %410 = vector.multi_reduction <maximumf>, %409, %cst_60 [1] : vector<128x128xf32> to vector<128xf32>
    %411 = vector.shape_cast %410 : vector<128xf32> to vector<128x1xf32>
    %412 = vector.broadcast %411 : vector<128x1xf32> to vector<128x128xf32>
    %413 = arith.subf %409, %412 : vector<128x128xf32>
    %414 = math.exp %413 : vector<128x128xf32>
    %415 = vector.extract_strided_slice %0 {offsets = [8, 0], sizes = [8, 128], strides = [1, 1]} : vector<16x128xf32> to vector<8x128xf32>
    %cst_61 = arith.constant dense<0.000000e+00> : vector<8x128xf32>
    %416 = tpu.matmul %415, %414, %cst_61 {dimension_numbers = #tpu.dot_dimension_numbers<[1], [1], [0], [0], [0, 0, 1, 0], [], []>} : vector<8x128xf32>, vector<128x128xf32>, vector<8x128xf32> -> vector<8x128xf32>
    %cst_62 = arith.constant dense<0.000000e+00> : vector<1x128xf32>
    %417 = tpu.matmul %14, %414, %cst_62 {dimension_numbers = #tpu.dot_dimension_numbers<[1], [1], [0], [0], [0, 0, 1, 0], [], []>} : vector<1x128xf32>, vector<128x128xf32>, vector<1x128xf32> -> vector<1x128xf32>
    %418 = tpu.reciprocal %417 {approx = true} : vector<1x128xf32> -> vector<1x128xf32>
    %419 = vector.broadcast %418 : vector<1x128xf32> to vector<8x128xf32>
    %420 = arith.mulf %416, %419 : vector<8x128xf32>
    %421 = tpu.concatenate %217, %420 in 0 : vector<8x128xf32>, vector<8x128xf32> -> vector<16x128xf32>
    %c0_63 = arith.constant 0 : index
    %c0_64 = arith.constant 0 : index
    %422 = vector.load %arg5[%c0_63, %c0_64] : memref<16x1xf32, #tpu.memory_space<vmem>>, vector<16x1xf32>
    %423 = vector.broadcast %422 : vector<16x1xf32> to vector<16x128xf32>
    %424 = arith.addf %421, %423 : vector<16x128xf32>
    %c0_65 = arith.constant 0 : index
    %c0_66 = arith.constant 0 : index
    %425 = vector.load %arg8[%c0_65, %c0_66] : memref<16x128xf32, #tpu.memory_space<vmem>>, vector<16x128xf32>
    tpu.vector_store %arg8[%c0_65, %c0_66], %424 {strides = array<i32>} : memref<16x128xf32, #tpu.memory_space<vmem>>, vector<16x128xf32>,
    return
  }
  func.func @transform_0(%arg0: i32) -> (i32, i32) {
    %c0_i32 = arith.constant 0 : i32
    %c0_i32_0 = arith.constant 0 : i32
    %c0_i32_1 = arith.constant 0 : i32
    return %c0_i32, %c0_i32_0 : i32, i32
  }
  func.func @transform_1(%arg0: i32) -> (i32, i32) {
    %c0_i32 = arith.constant 0 : i32
    %c0_i32_0 = arith.constant 0 : i32
    return %arg0, %c0_i32 : i32, i32
  }
  func.func @transform_2(%arg0: i32) -> (i32, i32) {
    %c0_i32 = arith.constant 0 : i32
    %c0_i32_0 = arith.constant 0 : i32
    %c0_i32_1 = arith.constant 0 : i32
    return %c0_i32, %c0_i32_0 : i32, i32
  }
  func.func @transform_3(%arg0: i32) -> (i32, i32) {
    %c0_i32 = arith.constant 0 : i32
    %c0_i32_0 = arith.constant 0 : i32
    %c0_i32_1 = arith.constant 0 : i32
    return %c0_i32, %c0_i32_0 : i32, i32
  }
  func.func @transform_4(%arg0: i32) -> (i32, i32) {
    %c0_i32 = arith.constant 0 : i32
    %c0_i32_0 = arith.constant 0 : i32
    %c0_i32_1 = arith.constant 0 : i32
    return %c0_i32, %c0_i32_0 : i32, i32
  }
  func.func @transform_5(%arg0: i32) -> (i32, i32, i32) {
    %c0_i32 = arith.constant 0 : i32
    %c0_i32_0 = arith.constant 0 : i32
    %c0_i32_1 = arith.constant 0 : i32
    return %c0_i32, %arg0, %c0_i32_0 : i32, i32, i32
  }
  func.func @transform_6(%arg0: i32) -> (i32, i32) {
    %c0_i32 = arith.constant 0 : i32
    %c0_i32_0 = arith.constant 0 : i32
    return %arg0, %c0_i32 : i32, i32
  }
  func.func @transform_7(%arg0: i32) -> (i32, i32) {
    %c0_i32 = arith.constant 0 : i32
    %c0_i32_0 = arith.constant 0 : i32
    return %c0_i32, %arg0 : i32, i32
  }
}

module attributes {stable_mosaic.version = 11 : i64} {
  func.func @mean_pool_kernel(%arg0: memref<2x128xf32, #tpu.memory_space<vmem>>, %arg1: memref<16x128xf32, #tpu.memory_space<vmem>>, %arg2: memref<2x16xf32, #tpu.memory_space<vmem>>) attributes {dimension_semantics = [], scalar_prefetch = 0 : i64, scratch_operands = 0 : i64, tpu.core_type = #tpu.core_type<tc>} {
    %c0 = arith.constant 0 : index
    %c0_0 = arith.constant 0 : index
    %0 = vector.load %arg0[%c0, %c0_0] : memref<2x128xf32, #tpu.memory_space<vmem>>, vector<2x128xf32>
    %c0_1 = arith.constant 0 : index
    %c0_2 = arith.constant 0 : index
    %1 = vector.load %arg1[%c0_1, %c0_2] : memref<16x128xf32, #tpu.memory_space<vmem>>, vector<16x128xf32>
    %cst = arith.constant dense<0.000000e+00> : vector<2x16xf32>
    %2 = tpu.matmul %0, %1, %cst {dimension_numbers = #tpu.dot_dimension_numbers<[1], [1], [0], [0], [0, 0, 1, 0], [], []>} : vector<2x128xf32>, vector<16x128xf32>, vector<2x16xf32> -> vector<2x16xf32>
    %c0_3 = arith.constant 0 : index
    %c0_4 = arith.constant 0 : index
    %3 = vector.load %arg2[%c0_3, %c0_4] : memref<2x16xf32, #tpu.memory_space<vmem>>, vector<2x16xf32>
    tpu.vector_store %arg2[%c0_3, %c0_4], %2 {strides = array<i32>} : memref<2x16xf32, #tpu.memory_space<vmem>>, vector<2x16xf32>,
    return
  }
}

</mosaic_0001>

<llo_original>
// kernel: gatv2_actor_critic_forward.5
$region0: #{gatv2_actor_critic_forward.5}
  #allocation0 [shape = 'u32[]', space=smem, size = 0x4, offset = 0x4, fixed_abs, tag = 'smem constant byte address 0x4 - core index']
  #allocation1 [shape = 'u32[72,128]{1,0:T(1,128)}', space=vmem, size = 0x9000, scoped, tag = 'internal scratch']
  %s0 = inlined_call_operand.vmem [shape: f32[2,128], index: 0, kind: input, shape index: {}]
  %s1 = inlined_call_operand.vmem [shape: f32[16,128], index: 1, kind: input, shape index: {}]
  %s2 = inlined_call_operand.hbm [shape: f32[2,16], index: 2, kind: output, shape index: {}]
  %s3 = sld [smem:[#allocation0]]
  $region18: #{gatv2_actor_critic_forward.5} parent=0
    _
  %s5 = ssub.s32 1, %s3
  %s6 = scalar_select 0, %s5, %s3
  $region1: #{gatv2_actor_critic_forward.5} parent=0
    #allocation2 [shape = 'u8[1024]{0}', space=vmem, size = 0x400, scoped, tag = 'output window, operand 0, single buffered']
    #allocation3 [shape = 's32[1]{0}', space=sflag, size = 0x4, scoped, tag = 'scoped memory for gatv2_actor_critic_forward.5']
    %7 = vsyncpa [#allocation3], 0
    // Predicated region
    $region2: #{gatv2_actor_critic_forward.5} parent=1 // pred_check
      _
    $region3: #{gatv2_actor_critic_forward.5} parent=1 // pred_check_branch
      %9 = sbr.rel (0) target = $region5
    $region4: #{gatv2_actor_critic_forward.5} parent=1 // pred_region
      _
    $region5: #{gatv2_actor_critic_forward.5} parent=1 // pred_fallthru
      _
    // Predicated region
    $region6: #{gatv2_actor_critic_forward.5} parent=1 // pred_check
      _
    $region7: #{gatv2_actor_critic_forward.5} parent=1 // pred_check_branch
      %11 = sbr.rel (0) target = $region9
    $region8: #{gatv2_actor_critic_forward.5} parent=1 // pred_region
      _
    $region9: #{gatv2_actor_critic_forward.5} parent=1 // pred_fallthru
      _
    %v12 = vld [vmem:[%s0] sm:$0x3]
    %v13 = vld [vmem:[%s1] sm:$0xff]
    %v14 = vld [vmem:[%s1 + $0x8] sm:$0xff]
    %15 = vmatpush.xpose.msra.mxu0 0.0
    %16 = vmatpush.xpose.msra.mxu0 0.0
    %17 = vmatpush.xpose.msra.mxu0 0.0
    %18 = vmatpush.xpose.msra.mxu0 0.0
    %19 = vmatpush.xpose.msra.mxu0 0.0
    %20 = vmatpush.xpose.msra.mxu0 0.0
    %21 = vmatpush.xpose.msra.mxu0 0.0
    %22 = vmatpush.xpose.msra.mxu0 0.0
    %23 = vmatpush.xpose.msra.mxu0 0.0
    %24 = vmatpush.xpose.msra.mxu0 0.0
    %25 = vmatpush.xpose.msra.mxu0 0.0
    %26 = vmatpush.xpose.msra.mxu0 0.0
    %27 = vmatpush.xpose.msra.mxu0 0.0
    %28 = vmatpush.xpose.msra.mxu0 0.0
    %29 = vmatpush.xpose.msra.mxu0 %v14
    %30 = vmatpush.xpose.msra.mxu0 %v13
    %31 = vmatmul.f32.gmra.mxu0 %v12
    %v32 = vpop.f32.mrf.mxu0
    %v33 = vadd.f32 0.0, %v32
    %34 = vdwg.mxu0
    %vm35 = vcmask 123904
    %36 = vst.msk [vmem:[#allocation2] sm:$0x3] %vm35, %v33
    // Predicated region
    $region10: #{gatv2_actor_critic_forward.5} parent=1 // pred_check
      _
    $region11: #{gatv2_actor_critic_forward.5} parent=1 // pred_check_branch
      %38 = sbr.rel (0) target = $region13
    $region12: #{gatv2_actor_critic_forward.5} parent=1 // pred_region
      %40 = vsyncadd [#allocation3], 0
      %s42 = sshll.u32 [#allocation2], 4
      %s43 = int_to_ptr.vmem [resolvable:$true] %s42
      %s44 = sshll.u32 %s2, 4
      %s45 = int_to_ptr.hbm [resolvable:$true] %s44
      %47 = dma.vmem_to_hbm [thread:$0]  %s43, 32, %s45, [#allocation3]
    $region13: #{gatv2_actor_critic_forward.5} parent=1 // pred_fallthru
      _
    // Predicated region
    $region14: #{gatv2_actor_critic_forward.5} parent=1 // pred_check
      _
    $region15: #{gatv2_actor_critic_forward.5} parent=1 // pred_check_branch
      %49 = sbr.rel (0) target = $region17
    $region16: #{gatv2_actor_critic_forward.5} parent=1 // pred_region
      %51 = dma.done [#allocation3], 32
    $region17: #{gatv2_actor_critic_forward.5} parent=1 // pred_fallthru
      _
    %52 = vsyncpa [#allocation3], 1

// kernel: gatv2_actor_critic_forward.4
$region0: #{gatv2_actor_critic_forward.4}
  #allocation0 [shape = 'u32[]', space=smem, size = 0x4, offset = 0x4, fixed_abs, tag = 'smem constant byte address 0x4 - core index']
  #allocation1 [shape = 'u32[72,128]{1,0:T(1,128)}', space=vmem, size = 0x9000, scoped, tag = 'internal scratch']
  %s0 = inlined_call_operand.vmem [shape: f32[16,128], index: 0, kind: input, shape index: {}]
  %s1 = inlined_call_operand.vmem [shape: f32[128,16], index: 1, kind: input, shape index: {}]
  %s2 = inlined_call_operand.vmem [shape: f32[16,3], index: 2, kind: input, shape index: {}]
  %s3 = inlined_call_operand.vmem [shape: f32[2,8], index: 3, kind: input, shape index: {}]
  %s4 = inlined_call_operand.vmem [shape: f32[16,1], index: 4, kind: input, shape index: {}]
  %s5 = inlined_call_operand.vmem [shape: bf16[3,128,128], index: 5, kind: input, shape index: {}]
  %s6 = inlined_call_operand.vmem [shape: bf16[128,128], index: 6, kind: input, shape index: {}]
  %s7 = inlined_call_operand.vmem [shape: f32[16,128], index: 7, kind: output, shape index: {}]
  %s8 = sld [smem:[#allocation0]]
  $region42: #{gatv2_actor_critic_forward.4} parent=0
    _
  %s10 = ssub.s32 1, %s8
  %s11 = scalar_select 0, %s10, %s8
  $region1: #{gatv2_actor_critic_forward.4} parent=0
    #allocation2 [shape = 'u8[1024]{0}', space=smem, size = 0x400, scoped, tag = 'input window, operand 3, single buffered']
    #allocation3 [shape = 's32[1]{0}', space=sflag, size = 0x4, scoped, tag = 'scoped memory for gatv2_actor_critic_forward.4']
    %12 = vsyncpa [#allocation3], 0
    // Predicated region
    $region2: #{gatv2_actor_critic_forward.4} parent=1 // pred_check
      _
    $region3: #{gatv2_actor_critic_forward.4} parent=1 // pred_check_branch
      %14 = sbr.rel (0) target = $region5
    $region4: #{gatv2_actor_critic_forward.4} parent=1 // pred_region
      _
    $region5: #{gatv2_actor_critic_forward.4} parent=1 // pred_fallthru
      _
    // Predicated region
    $region6: #{gatv2_actor_critic_forward.4} parent=1 // pred_check
      _
    $region7: #{gatv2_actor_critic_forward.4} parent=1 // pred_check_branch
      %16 = sbr.rel (0) target = $region9
    $region8: #{gatv2_actor_critic_forward.4} parent=1 // pred_region
      _
    $region9: #{gatv2_actor_critic_forward.4} parent=1 // pred_fallthru
      _
    // Predicated region
    $region10: #{gatv2_actor_critic_forward.4} parent=1 // pred_check
      _
    $region11: #{gatv2_actor_critic_forward.4} parent=1 // pred_check_branch
      %18 = sbr.rel (0) target = $region13
    $region12: #{gatv2_actor_critic_forward.4} parent=1 // pred_region
      _
    $region13: #{gatv2_actor_critic_forward.4} parent=1 // pred_fallthru
      _
    // Predicated region
    $region14: #{gatv2_actor_critic_forward.4} parent=1 // pred_check
      _
    $region15: #{gatv2_actor_critic_forward.4} parent=1 // pred_check_branch
      %20 = sbr.rel (0) target = $region17
    $region16: #{gatv2_actor_critic_forward.4} parent=1 // pred_region
      %22 = vsyncadd [#allocation3], 0
      %s24 = sshll.u32 %s3, 4
      %s25 = int_to_ptr.vmem [resolvable:$true] %s24
      %27 = dma.vmem_to_smem %s25, 32, [#allocation2], [#allocation3]
    $region17: #{gatv2_actor_critic_forward.4} parent=1 // pred_fallthru
      _
    // Predicated region
    $region18: #{gatv2_actor_critic_forward.4} parent=1 // pred_check
      _
    $region19: #{gatv2_actor_critic_forward.4} parent=1 // pred_check_branch
      %29 = sbr.rel (0) target = $region21
    $region20: #{gatv2_actor_critic_forward.4} parent=1 // pred_region
      _
    $region21: #{gatv2_actor_critic_forward.4} parent=1 // pred_fallthru
      _
    // Predicated region
    $region22: #{gatv2_actor_critic_forward.4} parent=1 // pred_check
      _
    $region23: #{gatv2_actor_critic_forward.4} parent=1 // pred_check_branch
      %31 = sbr.rel (0) target = $region25
    $region24: #{gatv2_actor_critic_forward.4} parent=1 // pred_region
      _
    $region25: #{gatv2_actor_critic_forward.4} parent=1 // pred_fallthru
      _
    // Predicated region
    $region26: #{gatv2_actor_critic_forward.4} parent=1 // pred_check
      _
    $region27: #{gatv2_actor_critic_forward.4} parent=1 // pred_check_branch
      %33 = sbr.rel (0) target = $region29
    $region28: #{gatv2_actor_critic_forward.4} parent=1 // pred_region
      _
    $region29: #{gatv2_actor_critic_forward.4} parent=1 // pred_fallthru
      _
    // Predicated region
    $region30: #{gatv2_actor_critic_forward.4} parent=1 // pred_check
      _
    $region31: #{gatv2_actor_critic_forward.4} parent=1 // pred_check_branch
      %35 = sbr.rel (0) target = $region33
    $region32: #{gatv2_actor_critic_forward.4} parent=1 // pred_region
      %37 = dma.done [#allocation3], 32
    $region33: #{gatv2_actor_critic_forward.4} parent=1 // pred_fallthru
      _
    %38 = sfence
    %v39 = vld [vmem:[%s0] sm:$0xff]
    %v40 = vld [vmem:[%s0 + $0x8] sm:$0xff]
    %v41 = vld [vmem:[%s1] sm:$0xff]
    %v42 = vld [vmem:[%s1 + $0x8] sm:$0xff]
    %v43 = vld [vmem:[%s1 + $0x10] sm:$0xff]
    %v44 = vld [vmem:[%s1 + $0x18] sm:$0xff]
    %v45 = vld [vmem:[%s1 + $0x20] sm:$0xff]
    %v46 = vld [vmem:[%s1 + $0x28] sm:$0xff]
    %v47 = vld [vmem:[%s1 + $0x30] sm:$0xff]
    %v48 = vld [vmem:[%s1 + $0x38] sm:$0xff]
    %v49 = vld [vmem:[%s1 + $0x40] sm:$0xff]
    %v50 = vld [vmem:[%s1 + $0x48] sm:$0xff]
    %v51 = vld [vmem:[%s1 + $0x50] sm:$0xff]
    %v52 = vld [vmem:[%s1 + $0x58] sm:$0xff]
    %v53 = vld [vmem:[%s1 + $0x60] sm:$0xff]
    %v54 = vld [vmem:[%s1 + $0x68] sm:$0xff]
    %v55 = vld [vmem:[%s1 + $0x70] sm:$0xff]
    %v56 = vld [vmem:[%s1 + $0x78] sm:$0xff]
    %v57 = vld [vmem:[%s2] sm:$0xff]
    %v58 = vld [vmem:[%s2 + $0x8] sm:$0xff]
    %v59 = vld [vmem:[%s5] sm:$0xf]
    %v60 = vld [vmem:[%s5 + $0x4] sm:$0xf]
    %v61 = vld [vmem:[%s5 + $0x8] sm:$0xf]
    %v62 = vld [vmem:[%s5 + $0xc] sm:$0xf]
    %v63 = vld [vmem:[%s5 + $0x10] sm:$0xf]
    %v64 = vld [vmem:[%s5 + $0x14] sm:$0xf]
    %v65 = vld [vmem:[%s5 + $0x18] sm:$0xf]
    %v66 = vld [vmem:[%s5 + $0x1c] sm:$0xf]
    %v67 = vld [vmem:[%s5 + $0x20] sm:$0xf]
    %v68 = vld [vmem:[%s5 + $0x24] sm:$0xf]
    %v69 = vld [vmem:[%s5 + $0x28] sm:$0xf]
    %v70 = vld [vmem:[%s5 + $0x2c] sm:$0xf]
    %v71 = vld [vmem:[%s5 + $0x30] sm:$0xf]
    %v72 = vld [vmem:[%s5 + $0x34] sm:$0xf]
    %v73 = vld [vmem:[%s5 + $0x38] sm:$0xf]
    %v74 = vld [vmem:[%s5 + $0x3c] sm:$0xf]
    %v75 = vunpack.c.l.bf16 %v59
    %v76 = vunpack.c.l.bf16 %v60
    %v77 = vunpack.c.l.bf16 %v61
    %v78 = vunpack.c.l.bf16 %v62
    %v79 = vunpack.c.l.bf16 %v63
    %v80 = vunpack.c.l.bf16 %v64
    %v81 = vunpack.c.l.bf16 %v65
    %v82 = vunpack.c.l.bf16 %v66
    %v83 = vunpack.c.l.bf16 %v67
    %v84 = vunpack.c.l.bf16 %v68
    %v85 = vunpack.c.l.bf16 %v69
    %v86 = vunpack.c.l.bf16 %v70
    %v87 = vunpack.c.l.bf16 %v71
    %v88 = vunpack.c.l.bf16 %v72
    %v89 = vunpack.c.l.bf16 %v73
    %v90 = vunpack.c.l.bf16 %v74
    %s91 = scalar_lea.vmem %s5, 64
    %v92 = vld [vmem:[%s91] sm:$0xf]
    %v93 = vld [vmem:[%s91 + $0x4] sm:$0xf]
    %v94 = vld [vmem:[%s91 + $0x8] sm:$0xf]
    %v95 = vld [vmem:[%s91 + $0xc] sm:$0xf]
    %v96 = vld [vmem:[%s91 + $0x10] sm:$0xf]
    %v97 = vld [vmem:[%s91 + $0x14] sm:$0xf]
    %v98 = vld [vmem:[%s91 + $0x18] sm:$0xf]
    %v99 = vld [vmem:[%s91 + $0x1c] sm:$0xf]
    %v100 = vld [vmem:[%s91 + $0x20] sm:$0xf]
    %v101 = vld [vmem:[%s91 + $0x24] sm:$0xf]
    %v102 = vld [vmem:[%s91 + $0x28] sm:$0xf]
    %v103 = vld [vmem:[%s91 + $0x2c] sm:$0xf]
    %v104 = vld [vmem:[%s91 + $0x30] sm:$0xf]
    %v105 = vld [vmem:[%s91 + $0x34] sm:$0xf]
    %v106 = vld [vmem:[%s91 + $0x38] sm:$0xf]
    %v107 = vld [vmem:[%s91 + $0x3c] sm:$0xf]
    %v108 = vunpack.c.l.bf16 %v92
    %v109 = vunpack.c.l.bf16 %v93
    %v110 = vunpack.c.l.bf16 %v94
    %v111 = vunpack.c.l.bf16 %v95
    %v112 = vunpack.c.l.bf16 %v96
    %v113 = vunpack.c.l.bf16 %v97
    %v114 = vunpack.c.l.bf16 %v98
    %v115 = vunpack.c.l.bf16 %v99
    %v116 = vunpack.c.l.bf16 %v100
    %v117 = vunpack.c.l.bf16 %v101
    %v118 = vunpack.c.l.bf16 %v102
    %v119 = vunpack.c.l.bf16 %v103
    %v120 = vunpack.c.l.bf16 %v104
    %v121 = vunpack.c.l.bf16 %v105
    %v122 = vunpack.c.l.bf16 %v106
    %v123 = vunpack.c.l.bf16 %v107
    %s124 = scalar_lea.vmem %s5, 128
    %v125 = vld [vmem:[%s124] sm:$0xf]
    %v126 = vld [vmem:[%s124 + $0x4] sm:$0xf]
    %v127 = vld [vmem:[%s124 + $0x8] sm:$0xf]
    %v128 = vld [vmem:[%s124 + $0xc] sm:$0xf]
    %v129 = vld [vmem:[%s124 + $0x10] sm:$0xf]
    %v130 = vld [vmem:[%s124 + $0x14] sm:$0xf]
    %v131 = vld [vmem:[%s124 + $0x18] sm:$0xf]
    %v132 = vld [vmem:[%s124 + $0x1c] sm:$0xf]
    %v133 = vld [vmem:[%s124 + $0x20] sm:$0xf]
    %v134 = vld [vmem:[%s124 + $0x24] sm:$0xf]
    %v135 = vld [vmem:[%s124 + $0x28] sm:$0xf]
    %v136 = vld [vmem:[%s124 + $0x2c] sm:$0xf]
    %v137 = vld [vmem:[%s124 + $0x30] sm:$0xf]
    %v138 = vld [vmem:[%s124 + $0x34] sm:$0xf]
    %v139 = vld [vmem:[%s124 + $0x38] sm:$0xf]
    %v140 = vld [vmem:[%s124 + $0x3c] sm:$0xf]
    %v141 = vunpack.c.l.bf16 %v125
    %v142 = vunpack.c.l.bf16 %v126
    %v143 = vunpack.c.l.bf16 %v127
    %v144 = vunpack.c.l.bf16 %v128
    %v145 = vunpack.c.l.bf16 %v129
    %v146 = vunpack.c.l.bf16 %v130
    %v147 = vunpack.c.l.bf16 %v131
    %v148 = vunpack.c.l.bf16 %v132
    %v149 = vunpack.c.l.bf16 %v133
    %v150 = vunpack.c.l.bf16 %v134
    %v151 = vunpack.c.l.bf16 %v135
    %v152 = vunpack.c.l.bf16 %v136
    %v153 = vunpack.c.l.bf16 %v137
    %v154 = vunpack.c.l.bf16 %v138
    %v155 = vunpack.c.l.bf16 %v139
    %v156 = vunpack.c.l.bf16 %v140
    %v157 = vld [vmem:[%s6] sm:$0xf]
    %v158 = vld [vmem:[%s6 + $0x4] sm:$0xf]
    %v159 = vld [vmem:[%s6 + $0x8] sm:$0xf]
    %v160 = vld [vmem:[%s6 + $0xc] sm:$0xf]
    %v161 = vld [vmem:[%s6 + $0x10] sm:$0xf]
    %v162 = vld [vmem:[%s6 + $0x14] sm:$0xf]
    %v163 = vld [vmem:[%s6 + $0x18] sm:$0xf]
    %v164 = vld [vmem:[%s6 + $0x1c] sm:$0xf]
    %v165 = vld [vmem:[%s6 + $0x20] sm:$0xf]
    %v166 = vld [vmem:[%s6 + $0x24] sm:$0xf]
    %v167 = vld [vmem:[%s6 + $0x28] sm:$0xf]
    %v168 = vld [vmem:[%s6 + $0x2c] sm:$0xf]
    %v169 = vld [vmem:[%s6 + $0x30] sm:$0xf]
    %v170 = vld [vmem:[%s6 + $0x34] sm:$0xf]
    %v171 = vld [vmem:[%s6 + $0x38] sm:$0xf]
    %v172 = vld [vmem:[%s6 + $0x3c] sm:$0xf]
    %v173 = vunpack.c.l.bf16 %v157
    %v174 = vunpack.c.l.bf16 %v158
    %v175 = vunpack.c.l.bf16 %v159
    %v176 = vunpack.c.l.bf16 %v160
    %v177 = vunpack.c.l.bf16 %v161
    %v178 = vunpack.c.l.bf16 %v162
    %v179 = vunpack.c.l.bf16 %v163
    %v180 = vunpack.c.l.bf16 %v164
    %v181 = vunpack.c.l.bf16 %v165
    %v182 = vunpack.c.l.bf16 %v166
    %v183 = vunpack.c.l.bf16 %v167
    %v184 = vunpack.c.l.bf16 %v168
    %v185 = vunpack.c.l.bf16 %v169
    %v186 = vunpack.c.l.bf16 %v170
    %v187 = vunpack.c.l.bf16 %v171
    %v188 = vunpack.c.l.bf16 %v172
    %190 = vset.pattern.permute.xlu0 0
    %191 = vperm.xlu0 %190, %v41
    %v192 = vpop.permute.xlu0 %191
    %195 = vset.pattern.permute.xlu0 0
    %196 = vperm.xlu0 %195, %v42
    %v197 = vpop.permute.xlu0 %196
    %200 = vset.pattern.permute.xlu0 0
    %201 = vperm.xlu0 %200, %v43
    %v202 = vpop.permute.xlu0 %201
    %205 = vset.pattern.permute.xlu0 0
    %206 = vperm.xlu0 %205, %v44
    %v207 = vpop.permute.xlu0 %206
    %210 = vset.pattern.permute.xlu0 0
    %211 = vperm.xlu0 %210, %v45
    %v212 = vpop.permute.xlu0 %211
    %215 = vset.pattern.permute.xlu0 0
    %216 = vperm.xlu0 %215, %v46
    %v217 = vpop.permute.xlu0 %216
    %220 = vset.pattern.permute.xlu0 0
    %221 = vperm.xlu0 %220, %v47
    %v222 = vpop.permute.xlu0 %221
    %225 = vset.pattern.permute.xlu0 0
    %226 = vperm.xlu0 %225, %v48
    %v227 = vpop.permute.xlu0 %226
    %230 = vset.pattern.permute.xlu0 0
    %231 = vperm.xlu0 %230, %v49
    %v232 = vpop.permute.xlu0 %231
    %235 = vset.pattern.permute.xlu0 0
    %236 = vperm.xlu0 %235, %v50
    %v237 = vpop.permute.xlu0 %236
    %240 = vset.pattern.permute.xlu0 0
    %241 = vperm.xlu0 %240, %v51
    %v242 = vpop.permute.xlu0 %241
    %245 = vset.pattern.permute.xlu0 0
    %246 = vperm.xlu0 %245, %v52
    %v247 = vpop.permute.xlu0 %246
    %250 = vset.pattern.permute.xlu0 0
    %251 = vperm.xlu0 %250, %v53
    %v252 = vpop.permute.xlu0 %251
    %255 = vset.pattern.permute.xlu0 0
    %256 = vperm.xlu0 %255, %v54
    %v257 = vpop.permute.xlu0 %256
    %260 = vset.pattern.permute.xlu0 0
    %261 = vperm.xlu0 %260, %v55
    %v262 = vpop.permute.xlu0 %261
    %265 = vset.pattern.permute.xlu0 0
    %266 = vperm.xlu0 %265, %v56
    %v267 = vpop.permute.xlu0 %266
    %v269 = vperm.slane %v39, 0
    %v270 = vadd.f32 %v192, %v269
    %v271 = vadd.f32 %v197, %v269
    %v272 = vadd.f32 %v202, %v269
    %v273 = vadd.f32 %v207, %v269
    %v274 = vadd.f32 %v212, %v269
    %v275 = vadd.f32 %v217, %v269
    %v276 = vadd.f32 %v222, %v269
    %v277 = vadd.f32 %v227, %v269
    %v278 = vadd.f32 %v232, %v269
    %v279 = vadd.f32 %v237, %v269
    %v280 = vadd.f32 %v242, %v269
    %v281 = vadd.f32 %v247, %v269
    %v282 = vadd.f32 %v252, %v269
    %v283 = vadd.f32 %v257, %v269
    %v284 = vadd.f32 %v262, %v269
    %v285 = vadd.f32 %v267, %v269
    %s287 = vtos %v57
    %v288 = vstv %s287
    %v290 = vmul.f32 %v288, %v75
    %v291 = vmul.f32 %v288, %v76
    %v292 = vmul.f32 %v288, %v77
    %v293 = vmul.f32 %v288, %v78
    %v294 = vmul.f32 %v288, %v79
    %v295 = vmul.f32 %v288, %v80
    %v296 = vmul.f32 %v288, %v81
    %v297 = vmul.f32 %v288, %v82
    %v298 = vmul.f32 %v288, %v83
    %v299 = vmul.f32 %v288, %v84
    %v300 = vmul.f32 %v288, %v85
    %v301 = vmul.f32 %v288, %v86
    %v302 = vmul.f32 %v288, %v87
    %v303 = vmul.f32 %v288, %v88
    %v304 = vmul.f32 %v288, %v89
    %v305 = vmul.f32 %v288, %v90
    %v306 = vadd.f32 %v270, %v290
    %v307 = vadd.f32 %v271, %v291
    %v308 = vadd.f32 %v272, %v292
    %v309 = vadd.f32 %v273, %v293
    %v310 = vadd.f32 %v274, %v294
    %v311 = vadd.f32 %v275, %v295
    %v312 = vadd.f32 %v276, %v296
    %v313 = vadd.f32 %v277, %v297
    %v314 = vadd.f32 %v278, %v298
    %v315 = vadd.f32 %v279, %v299
    %v316 = vadd.f32 %v280, %v300
    %v317 = vadd.f32 %v281, %v301
    %v318 = vadd.f32 %v282, %v302
    %v319 = vadd.f32 %v283, %v303
    %v320 = vadd.f32 %v284, %v304
    %v321 = vadd.f32 %v285, %v305
    %322 = vrot.lane.b32.xlu0 %v57, 127
    %v323 = vpop.permute.xlu0 %322
    %s324 = vtos %v323
    %v325 = vstv %s324
    %v327 = vmul.f32 %v325, %v108
    %v328 = vmul.f32 %v325, %v109
    %v329 = vmul.f32 %v325, %v110
    %v330 = vmul.f32 %v325, %v111
    %v331 = vmul.f32 %v325, %v112
    %v332 = vmul.f32 %v325, %v113
    %v333 = vmul.f32 %v325, %v114
    %v334 = vmul.f32 %v325, %v115
    %v335 = vmul.f32 %v325, %v116
    %v336 = vmul.f32 %v325, %v117
    %v337 = vmul.f32 %v325, %v118
    %v338 = vmul.f32 %v325, %v119
    %v339 = vmul.f32 %v325, %v120
    %v340 = vmul.f32 %v325, %v121
    %v341 = vmul.f32 %v325, %v122
    %v342 = vmul.f32 %v325, %v123
    %v343 = vadd.f32 %v306, %v327
    %v344 = vadd.f32 %v307, %v328
    %v345 = vadd.f32 %v308, %v329
    %v346 = vadd.f32 %v309, %v330
    %v347 = vadd.f32 %v310, %v331
    %v348 = vadd.f32 %v311, %v332
    %v349 = vadd.f32 %v312, %v333
    %v350 = vadd.f32 %v313, %v334
    %v351 = vadd.f32 %v314, %v335
    %v352 = vadd.f32 %v315, %v336
    %v353 = vadd.f32 %v316, %v337
    %v354 = vadd.f32 %v317, %v338
    %v355 = vadd.f32 %v318, %v339
    %v356 = vadd.f32 %v319, %v340
    %v357 = vadd.f32 %v320, %v341
    %v358 = vadd.f32 %v321, %v342
    %359 = vrot.lane.b32.xlu0 %v57, 126
    %v360 = vpop.permute.xlu0 %359
    %s361 = vtos %v360
    %v362 = vstv %s361
    %v364 = vmul.f32 %v362, %v141
    %v365 = vmul.f32 %v362, %v142
    %v366 = vmul.f32 %v362, %v143
    %v367 = vmul.f32 %v362, %v144
    %v368 = vmul.f32 %v362, %v145
    %v369 = vmul.f32 %v362, %v146
    %v370 = vmul.f32 %v362, %v147
    %v371 = vmul.f32 %v362, %v148
    %v372 = vmul.f32 %v362, %v149
    %v373 = vmul.f32 %v362, %v150
    %v374 = vmul.f32 %v362, %v151
    %v375 = vmul.f32 %v362, %v152
    %v376 = vmul.f32 %v362, %v153
    %v377 = vmul.f32 %v362, %v154
    %v378 = vmul.f32 %v362, %v155
    %v379 = vmul.f32 %v362, %v156
    %v380 = vadd.f32 %v343, %v364
    %v381 = vadd.f32 %v344, %v365
    %v382 = vadd.f32 %v345, %v366
    %v383 = vadd.f32 %v346, %v367
    %v384 = vadd.f32 %v347, %v368
    %v385 = vadd.f32 %v348, %v369
    %v386 = vadd.f32 %v349, %v370
    %v387 = vadd.f32 %v350, %v371
    %v388 = vadd.f32 %v351, %v372
    %v389 = vadd.f32 %v352, %v373
    %v390 = vadd.f32 %v353, %v374
    %v391 = vadd.f32 %v354, %v375
    %v392 = vadd.f32 %v355, %v376
    %v393 = vadd.f32 %v356, %v377
    %v394 = vadd.f32 %v357, %v378
    %v395 = vadd.f32 %v358, %v379
    %v396 = vmul.f32 %v380, 0.2
    %v397 = vmul.f32 %v381, 0.2
    %v398 = vmul.f32 %v382, 0.2
    %v399 = vmul.f32 %v383, 0.2
    %v400 = vmul.f32 %v384, 0.2
    %v401 = vmul.f32 %v385, 0.2
    %v402 = vmul.f32 %v386, 0.2
    %v403 = vmul.f32 %v387, 0.2
    %v404 = vmul.f32 %v388, 0.2
    %v405 = vmul.f32 %v389, 0.2
    %v406 = vmul.f32 %v390, 0.2
    %v407 = vmul.f32 %v391, 0.2
    %v408 = vmul.f32 %v392, 0.2
    %v409 = vmul.f32 %v393, 0.2
    %v410 = vmul.f32 %v394, 0.2
    %v411 = vmul.f32 %v395, 0.2
    %v412 = vmax.f32 %v380, %v396
    %v413 = vmax.f32 %v381, %v397
    %v414 = vmax.f32 %v382, %v398
    %v415 = vmax.f32 %v383, %v399
    %v416 = vmax.f32 %v384, %v400
    %v417 = vmax.f32 %v385, %v401
    %v418 = vmax.f32 %v386, %v402
    %v419 = vmax.f32 %v387, %v403
    %v420 = vmax.f32 %v388, %v404
    %v421 = vmax.f32 %v389, %v405
    %v422 = vmax.f32 %v390, %v406
    %v423 = vmax.f32 %v391, %v407
    %v424 = vmax.f32 %v392, %v408
    %v425 = vmax.f32 %v393, %v409
    %v426 = vmax.f32 %v394, %v410
    %v427 = vmax.f32 %v395, %v411
    %s428 = sld [smem:[#allocation2]]
    %v429 = vstv %s428
    %v430 = vmul.f32 %v429, %v412
    %v431 = vmul.f32 %v429, %v413
    %v432 = vmul.f32 %v429, %v414
    %v433 = vmul.f32 %v429, %v415
    %v434 = vmul.f32 %v429, %v416
    %v435 = vmul.f32 %v429, %v417
    %v436 = vmul.f32 %v429, %v418
    %v437 = vmul.f32 %v429, %v419
    %v438 = vmul.f32 %v429, %v420
    %v439 = vmul.f32 %v429, %v421
    %v440 = vmul.f32 %v429, %v422
    %v441 = vmul.f32 %v429, %v423
    %v442 = vmul.f32 %v429, %v424
    %v443 = vmul.f32 %v429, %v425
    %v444 = vmul.f32 %v429, %v426
    %v445 = vmul.f32 %v429, %v427
    %v446 = vadd.f32 %v173, %v430
    %v447 = vadd.f32 %v174, %v431
    %v448 = vadd.f32 %v175, %v432
    %v449 = vadd.f32 %v176, %v433
    %v450 = vadd.f32 %v177, %v434
    %v451 = vadd.f32 %v178, %v435
    %v452 = vadd.f32 %v179, %v436
    %v453 = vadd.f32 %v180, %v437
    %v454 = vadd.f32 %v181, %v438
    %v455 = vadd.f32 %v182, %v439
    %v456 = vadd.f32 %v183, %v440
    %v457 = vadd.f32 %v184, %v441
    %v458 = vadd.f32 %v185, %v442
    %v459 = vadd.f32 %v186, %v443
    %v460 = vadd.f32 %v187, %v444
    %v461 = vadd.f32 %v188, %v445
    %462 = vset.pattern.permute.xlu0 1
    %463 = vperm.xlu0 %462, %v41
    %v464 = vpop.permute.xlu0 %463
    %466 = vset.pattern.permute.xlu0 1
    %467 = vperm.xlu0 %466, %v42
    %v468 = vpop.permute.xlu0 %467
    %470 = vset.pattern.permute.xlu0 1
    %471 = vperm.xlu0 %470, %v43
    %v472 = vpop.permute.xlu0 %471
    %474 = vset.pattern.permute.xlu0 1
    %475 = vperm.xlu0 %474, %v44
    %v476 = vpop.permute.xlu0 %475
    %478 = vset.pattern.permute.xlu0 1
    %479 = vperm.xlu0 %478, %v45
    %v480 = vpop.permute.xlu0 %479
    %482 = vset.pattern.permute.xlu0 1
    %483 = vperm.xlu0 %482, %v46
    %v484 = vpop.permute.xlu0 %483
    %486 = vset.pattern.permute.xlu0 1
    %487 = vperm.xlu0 %486, %v47
    %v488 = vpop.permute.xlu0 %487
    %490 = vset.pattern.permute.xlu0 1
    %491 = vperm.xlu0 %490, %v48
    %v492 = vpop.permute.xlu0 %491
    %494 = vset.pattern.permute.xlu0 1
    %495 = vperm.xlu0 %494, %v49
    %v496 = vpop.permute.xlu0 %495
    %498 = vset.pattern.permute.xlu0 1
    %499 = vperm.xlu0 %498, %v50
    %v500 = vpop.permute.xlu0 %499
    %502 = vset.pattern.permute.xlu0 1
    %503 = vperm.xlu0 %502, %v51
    %v504 = vpop.permute.xlu0 %503
    %506 = vset.pattern.permute.xlu0 1
    %507 = vperm.xlu0 %506, %v52
    %v508 = vpop.permute.xlu0 %507
    %510 = vset.pattern.permute.xlu0 1
    %511 = vperm.xlu0 %510, %v53
    %v512 = vpop.permute.xlu0 %511
    %514 = vset.pattern.permute.xlu0 1
    %515 = vperm.xlu0 %514, %v54
    %v516 = vpop.permute.xlu0 %515
    %518 = vset.pattern.permute.xlu0 1
    %519 = vperm.xlu0 %518, %v55
    %v520 = vpop.permute.xlu0 %519
    %522 = vset.pattern.permute.xlu0 1
    %523 = vperm.xlu0 %522, %v56
    %v524 = vpop.permute.xlu0 %523
    %v526 = vperm.slane %v39, 1
    %v527 = vadd.f32 %v464, %v526
    %v528 = vadd.f32 %v468, %v526
    %v529 = vadd.f32 %v472, %v526
    %v530 = vadd.f32 %v476, %v526
    %v531 = vadd.f32 %v480, %v526
    %v532 = vadd.f32 %v484, %v526
    %v533 = vadd.f32 %v488, %v526
    %v534 = vadd.f32 %v492, %v526
    %v535 = vadd.f32 %v496, %v526
    %v536 = vadd.f32 %v500, %v526
    %v537 = vadd.f32 %v504, %v526
    %v538 = vadd.f32 %v508, %v526
    %v539 = vadd.f32 %v512, %v526
    %v540 = vadd.f32 %v516, %v526
    %v541 = vadd.f32 %v520, %v526
    %v542 = vadd.f32 %v524, %v526
    %v543 = vrot.slane %v57, 1
    %s544 = vtos %v543
    %v545 = vstv %s544
    %v547 = vmul.f32 %v545, %v75
    %v548 = vmul.f32 %v545, %v76
    %v549 = vmul.f32 %v545, %v77
    %v550 = vmul.f32 %v545, %v78
    %v551 = vmul.f32 %v545, %v79
    %v552 = vmul.f32 %v545, %v80
    %v553 = vmul.f32 %v545, %v81
    %v554 = vmul.f32 %v545, %v82
    %v555 = vmul.f32 %v545, %v83
    %v556 = vmul.f32 %v545, %v84
    %v557 = vmul.f32 %v545, %v85
    %v558 = vmul.f32 %v545, %v86
    %v559 = vmul.f32 %v545, %v87
    %v560 = vmul.f32 %v545, %v88
    %v561 = vmul.f32 %v545, %v89
    %v562 = vmul.f32 %v545, %v90
    %v563 = vadd.f32 %v527, %v547
    %v564 = vadd.f32 %v528, %v548
    %v565 = vadd.f32 %v529, %v549
    %v566 = vadd.f32 %v530, %v550
    %v567 = vadd.f32 %v531, %v551
    %v568 = vadd.f32 %v532, %v552
    %v569 = vadd.f32 %v533, %v553
    %v570 = vadd.f32 %v534, %v554
    %v571 = vadd.f32 %v535, %v555
    %v572 = vadd.f32 %v536, %v556
    %v573 = vadd.f32 %v537, %v557
    %v574 = vadd.f32 %v538, %v558
    %v575 = vadd.f32 %v539, %v559
    %v576 = vadd.f32 %v540, %v560
    %v577 = vadd.f32 %v541, %v561
    %v578 = vadd.f32 %v542, %v562
    %579 = vrot.lane.b32.xlu0 %v543, 127
    %v580 = vpop.permute.xlu0 %579
    %s581 = vtos %v580
    %v582 = vstv %s581
    %v584 = vmul.f32 %v582, %v108
    %v585 = vmul.f32 %v582, %v109
    %v586 = vmul.f32 %v582, %v110
    %v587 = vmul.f32 %v582, %v111
    %v588 = vmul.f32 %v582, %v112
    %v589 = vmul.f32 %v582, %v113
    %v590 = vmul.f32 %v582, %v114
    %v591 = vmul.f32 %v582, %v115
    %v592 = vmul.f32 %v582, %v116
    %v593 = vmul.f32 %v582, %v117
    %v594 = vmul.f32 %v582, %v118
    %v595 = vmul.f32 %v582, %v119
    %v596 = vmul.f32 %v582, %v120
    %v597 = vmul.f32 %v582, %v121
    %v598 = vmul.f32 %v582, %v122
    %v599 = vmul.f32 %v582, %v123
    %v600 = vadd.f32 %v563, %v584
    %v601 = vadd.f32 %v564, %v585
    %v602 = vadd.f32 %v565, %v586
    %v603 = vadd.f32 %v566, %v587
    %v604 = vadd.f32 %v567, %v588
    %v605 = vadd.f32 %v568, %v589
    %v606 = vadd.f32 %v569, %v590
    %v607 = vadd.f32 %v570, %v591
    %v608 = vadd.f32 %v571, %v592
    %v609 = vadd.f32 %v572, %v593
    %v610 = vadd.f32 %v573, %v594
    %v611 = vadd.f32 %v574, %v595
    %v612 = vadd.f32 %v575, %v596
    %v613 = vadd.f32 %v576, %v597
    %v614 = vadd.f32 %v577, %v598
    %v615 = vadd.f32 %v578, %v599
    %616 = vrot.lane.b32.xlu0 %v543, 126
    %v617 = vpop.permute.xlu0 %616
    %s618 = vtos %v617
    %v619 = vstv %s618
    %v621 = vmul.f32 %v619, %v141
    %v622 = vmul.f32 %v619, %v142
    %v623 = vmul.f32 %v619, %v143
    %v624 = vmul.f32 %v619, %v144
    %v625 = vmul.f32 %v619, %v145
    %v626 = vmul.f32 %v619, %v146
    %v627 = vmul.f32 %v619, %v147
    %v628 = vmul.f32 %v619, %v148
    %v629 = vmul.f32 %v619, %v149
    %v630 = vmul.f32 %v619, %v150
    %v631 = vmul.f32 %v619, %v151
    %v632 = vmul.f32 %v619, %v152
    %v633 = vmul.f32 %v619, %v153
    %v634 = vmul.f32 %v619, %v154
    %v635 = vmul.f32 %v619, %v155
    %v636 = vmul.f32 %v619, %v156
    %v637 = vadd.f32 %v600, %v621
    %v638 = vadd.f32 %v601, %v622
    %v639 = vadd.f32 %v602, %v623
    %v640 = vadd.f32 %v603, %v624
    %v641 = vadd.f32 %v604, %v625
    %v642 = vadd.f32 %v605, %v626
    %v643 = vadd.f32 %v606, %v627
    %v644 = vadd.f32 %v607, %v628
    %v645 = vadd.f32 %v608, %v629
    %v646 = vadd.f32 %v609, %v630
    %v647 = vadd.f32 %v610, %v631
    %v648 = vadd.f32 %v611, %v632
    %v649 = vadd.f32 %v612, %v633
    %v650 = vadd.f32 %v613, %v634
    %v651 = vadd.f32 %v614, %v635
    %v652 = vadd.f32 %v615, %v636
    %v653 = vmul.f32 %v637, 0.2
    %v654 = vmul.f32 %v638, 0.2
    %v655 = vmul.f32 %v639, 0.2
    %v656 = vmul.f32 %v640, 0.2
    %v657 = vmul.f32 %v641, 0.2
    %v658 = vmul.f32 %v642, 0.2
    %v659 = vmul.f32 %v643, 0.2
    %v660 = vmul.f32 %v644, 0.2
    %v661 = vmul.f32 %v645, 0.2
    %v662 = vmul.f32 %v646, 0.2
    %v663 = vmul.f32 %v647, 0.2
    %v664 = vmul.f32 %v648, 0.2
    %v665 = vmul.f32 %v649, 0.2
    %v666 = vmul.f32 %v650, 0.2
    %v667 = vmul.f32 %v651, 0.2
    %v668 = vmul.f32 %v652, 0.2
    %v669 = vmax.f32 %v637, %v653
    %v670 = vmax.f32 %v638, %v654
    %v671 = vmax.f32 %v639, %v655
    %v672 = vmax.f32 %v640, %v656
    %v673 = vmax.f32 %v641, %v657
    %v674 = vmax.f32 %v642, %v658
    %v675 = vmax.f32 %v643, %v659
    %v676 = vmax.f32 %v644, %v660
    %v677 = vmax.f32 %v645, %v661
    %v678 = vmax.f32 %v646, %v662
    %v679 = vmax.f32 %v647, %v663
    %v680 = vmax.f32 %v648, %v664
    %v681 = vmax.f32 %v649, %v665
    %v682 = vmax.f32 %v650, %v666
    %v683 = vmax.f32 %v651, %v667
    %v684 = vmax.f32 %v652, %v668
    %s685 = sld [smem:[#allocation2 + $0x1]]
    %v686 = vstv %s685
    %v687 = vmul.f32 %v686, %v669
    %v688 = vmul.f32 %v686, %v670
    %v689 = vmul.f32 %v686, %v671
    %v690 = vmul.f32 %v686, %v672
    %v691 = vmul.f32 %v686, %v673
    %v692 = vmul.f32 %v686, %v674
    %v693 = vmul.f32 %v686, %v675
    %v694 = vmul.f32 %v686, %v676
    %v695 = vmul.f32 %v686, %v677
    %v696 = vmul.f32 %v686, %v678
    %v697 = vmul.f32 %v686, %v679
    %v698 = vmul.f32 %v686, %v680
    %v699 = vmul.f32 %v686, %v681
    %v700 = vmul.f32 %v686, %v682
    %v701 = vmul.f32 %v686, %v683
    %v702 = vmul.f32 %v686, %v684
    %v703 = vadd.f32 %v446, %v687
    %v704 = vadd.f32 %v447, %v688
    %v705 = vadd.f32 %v448, %v689
    %v706 = vadd.f32 %v449, %v690
    %v707 = vadd.f32 %v450, %v691
    %v708 = vadd.f32 %v451, %v692
    %v709 = vadd.f32 %v452, %v693
    %v710 = vadd.f32 %v453, %v694
    %v711 = vadd.f32 %v454, %v695
    %v712 = vadd.f32 %v455, %v696
    %v713 = vadd.f32 %v456, %v697
    %v714 = vadd.f32 %v457, %v698
    %v715 = vadd.f32 %v458, %v699
    %v716 = vadd.f32 %v459, %v700
    %v717 = vadd.f32 %v460, %v701
    %v718 = vadd.f32 %v461, %v702
    %719 = vset.pattern.permute.xlu0 2
    %720 = vperm.xlu0 %719, %v41
    %v721 = vpop.permute.xlu0 %720
    %723 = vset.pattern.permute.xlu0 2
    %724 = vperm.xlu0 %723, %v42
    %v725 = vpop.permute.xlu0 %724
    %727 = vset.pattern.permute.xlu0 2
    %728 = vperm.xlu0 %727, %v43
    %v729 = vpop.permute.xlu0 %728
    %731 = vset.pattern.permute.xlu0 2
    %732 = vperm.xlu0 %731, %v44
    %v733 = vpop.permute.xlu0 %732
    %735 = vset.pattern.permute.xlu0 2
    %736 = vperm.xlu0 %735, %v45
    %v737 = vpop.permute.xlu0 %736
    %739 = vset.pattern.permute.xlu0 2
    %740 = vperm.xlu0 %739, %v46
    %v741 = vpop.permute.xlu0 %740
    %743 = vset.pattern.permute.xlu0 2
    %744 = vperm.xlu0 %743, %v47
    %v745 = vpop.permute.xlu0 %744
    %747 = vset.pattern.permute.xlu0 2
    %748 = vperm.xlu0 %747, %v48
    %v749 = vpop.permute.xlu0 %748
    %751 = vset.pattern.permute.xlu0 2
    %752 = vperm.xlu0 %751, %v49
    %v753 = vpop.permute.xlu0 %752
    %755 = vset.pattern.permute.xlu0 2
    %756 = vperm.xlu0 %755, %v50
    %v757 = vpop.permute.xlu0 %756
    %759 = vset.pattern.permute.xlu0 2
    %760 = vperm.xlu0 %759, %v51
    %v761 = vpop.permute.xlu0 %760
    %763 = vset.pattern.permute.xlu0 2
    %764 = vperm.xlu0 %763, %v52
    %v765 = vpop.permute.xlu0 %764
    %767 = vset.pattern.permute.xlu0 2
    %768 = vperm.xlu0 %767, %v53
    %v769 = vpop.permute.xlu0 %768
    %771 = vset.pattern.permute.xlu0 2
    %772 = vperm.xlu0 %771, %v54
    %v773 = vpop.permute.xlu0 %772
    %775 = vset.pattern.permute.xlu0 2
    %776 = vperm.xlu0 %775, %v55
    %v777 = vpop.permute.xlu0 %776
    %779 = vset.pattern.permute.xlu0 2
    %780 = vperm.xlu0 %779, %v56
    %v781 = vpop.permute.xlu0 %780
    %v783 = vperm.slane %v39, 2
    %v784 = vadd.f32 %v721, %v783
    %v785 = vadd.f32 %v725, %v783
    %v786 = vadd.f32 %v729, %v783
    %v787 = vadd.f32 %v733, %v783
    %v788 = vadd.f32 %v737, %v783
    %v789 = vadd.f32 %v741, %v783
    %v790 = vadd.f32 %v745, %v783
    %v791 = vadd.f32 %v749, %v783
    %v792 = vadd.f32 %v753, %v783
    %v793 = vadd.f32 %v757, %v783
    %v794 = vadd.f32 %v761, %v783
    %v795 = vadd.f32 %v765, %v783
    %v796 = vadd.f32 %v769, %v783
    %v797 = vadd.f32 %v773, %v783
    %v798 = vadd.f32 %v777, %v783
    %v799 = vadd.f32 %v781, %v783
    %v800 = vrot.slane %v57, 2
    %s801 = vtos %v800
    %v802 = vstv %s801
    %v804 = vmul.f32 %v802, %v75
    %v805 = vmul.f32 %v802, %v76
    %v806 = vmul.f32 %v802, %v77
    %v807 = vmul.f32 %v802, %v78
    %v808 = vmul.f32 %v802, %v79
    %v809 = vmul.f32 %v802, %v80
    %v810 = vmul.f32 %v802, %v81
    %v811 = vmul.f32 %v802, %v82
    %v812 = vmul.f32 %v802, %v83
    %v813 = vmul.f32 %v802, %v84
    %v814 = vmul.f32 %v802, %v85
    %v815 = vmul.f32 %v802, %v86
    %v816 = vmul.f32 %v802, %v87
    %v817 = vmul.f32 %v802, %v88
    %v818 = vmul.f32 %v802, %v89
    %v819 = vmul.f32 %v802, %v90
    %v820 = vadd.f32 %v784, %v804
    %v821 = vadd.f32 %v785, %v805
    %v822 = vadd.f32 %v786, %v806
    %v823 = vadd.f32 %v787, %v807
    %v824 = vadd.f32 %v788, %v808
    %v825 = vadd.f32 %v789, %v809
    %v826 = vadd.f32 %v790, %v810
    %v827 = vadd.f32 %v791, %v811
    %v828 = vadd.f32 %v792, %v812
    %v829 = vadd.f32 %v793, %v813
    %v830 = vadd.f32 %v794, %v814
    %v831 = vadd.f32 %v795, %v815
    %v832 = vadd.f32 %v796, %v816
    %v833 = vadd.f32 %v797, %v817
    %v834 = vadd.f32 %v798, %v818
    %v835 = vadd.f32 %v799, %v819
    %836 = vrot.lane.b32.xlu0 %v800, 127
    %v837 = vpop.permute.xlu0 %836
    %s838 = vtos %v837
    %v839 = vstv %s838
    %v841 = vmul.f32 %v839, %v108
    %v842 = vmul.f32 %v839, %v109
    %v843 = vmul.f32 %v839, %v110
    %v844 = vmul.f32 %v839, %v111
    %v845 = vmul.f32 %v839, %v112
    %v846 = vmul.f32 %v839, %v113
    %v847 = vmul.f32 %v839, %v114
    %v848 = vmul.f32 %v839, %v115
    %v849 = vmul.f32 %v839, %v116
    %v850 = vmul.f32 %v839, %v117
    %v851 = vmul.f32 %v839, %v118
    %v852 = vmul.f32 %v839, %v119
    %v853 = vmul.f32 %v839, %v120
    %v854 = vmul.f32 %v839, %v121
    %v855 = vmul.f32 %v839, %v122
    %v856 = vmul.f32 %v839, %v123
    %v857 = vadd.f32 %v820, %v841
    %v858 = vadd.f32 %v821, %v842
    %v859 = vadd.f32 %v822, %v843
    %v860 = vadd.f32 %v823, %v844
    %v861 = vadd.f32 %v824, %v845
    %v862 = vadd.f32 %v825, %v846
    %v863 = vadd.f32 %v826, %v847
    %v864 = vadd.f32 %v827, %v848
    %v865 = vadd.f32 %v828, %v849
    %v866 = vadd.f32 %v829, %v850
    %v867 = vadd.f32 %v830, %v851
    %v868 = vadd.f32 %v831, %v852
    %v869 = vadd.f32 %v832, %v853
    %v870 = vadd.f32 %v833, %v854
    %v871 = vadd.f32 %v834, %v855
    %v872 = vadd.f32 %v835, %v856
    %873 = vrot.lane.b32.xlu0 %v800, 126
    %v874 = vpop.permute.xlu0 %873
    %s875 = vtos %v874
    %v876 = vstv %s875
    %v878 = vmul.f32 %v876, %v141
    %v879 = vmul.f32 %v876, %v142
    %v880 = vmul.f32 %v876, %v143
    %v881 = vmul.f32 %v876, %v144
    %v882 = vmul.f32 %v876, %v145
    %v883 = vmul.f32 %v876, %v146
    %v884 = vmul.f32 %v876, %v147
    %v885 = vmul.f32 %v876, %v148
    %v886 = vmul.f32 %v876, %v149
    %v887 = vmul.f32 %v876, %v150
    %v888 = vmul.f32 %v876, %v151
    %v889 = vmul.f32 %v876, %v152
    %v890 = vmul.f32 %v876, %v153
    %v891 = vmul.f32 %v876, %v154
    %v892 = vmul.f32 %v876, %v155
    %v893 = vmul.f32 %v876, %v156
    %v894 = vadd.f32 %v857, %v878
    %v895 = vadd.f32 %v858, %v879
    %v896 = vadd.f32 %v859, %v880
    %v897 = vadd.f32 %v860, %v881
    %v898 = vadd.f32 %v861, %v882
    %v899 = vadd.f32 %v862, %v883
    %v900 = vadd.f32 %v863, %v884
    %v901 = vadd.f32 %v864, %v885
    %v902 = vadd.f32 %v865, %v886
    %v903 = vadd.f32 %v866, %v887
    %v904 = vadd.f32 %v867, %v888
    %v905 = vadd.f32 %v868, %v889
    %v906 = vadd.f32 %v869, %v890
    %v907 = vadd.f32 %v870, %v891
    %v908 = vadd.f32 %v871, %v892
    %v909 = vadd.f32 %v872, %v893
    %v910 = vmul.f32 %v894, 0.2
    %v911 = vmul.f32 %v895, 0.2
    %v912 = vmul.f32 %v896, 0.2
    %v913 = vmul.f32 %v897, 0.2
    %v914 = vmul.f32 %v898, 0.2
    %v915 = vmul.f32 %v899, 0.2
    %v916 = vmul.f32 %v900, 0.2
    %v917 = vmul.f32 %v901, 0.2
    %v918 = vmul.f32 %v902, 0.2
    %v919 = vmul.f32 %v903, 0.2
    %v920 = vmul.f32 %v904, 0.2
    %v921 = vmul.f32 %v905, 0.2
    %v922 = vmul.f32 %v906, 0.2
    %v923 = vmul.f32 %v907, 0.2
    %v924 = vmul.f32 %v908, 0.2
    %v925 = vmul.f32 %v909, 0.2
    %v926 = vmax.f32 %v894, %v910
    %v927 = vmax.f32 %v895, %v911
    %v928 = vmax.f32 %v896, %v912
    %v929 = vmax.f32 %v897, %v913
    %v930 = vmax.f32 %v898, %v914
    %v931 = vmax.f32 %v899, %v915
    %v932 = vmax.f32 %v900, %v916
    %v933 = vmax.f32 %v901, %v917
    %v934 = vmax.f32 %v902, %v918
    %v935 = vmax.f32 %v903, %v919
    %v936 = vmax.f32 %v904, %v920
    %v937 = vmax.f32 %v905, %v921
    %v938 = vmax.f32 %v906, %v922
    %v939 = vmax.f32 %v907, %v923
    %v940 = vmax.f32 %v908, %v924
    %v941 = vmax.f32 %v909, %v925
    %s942 = sld [smem:[#allocation2 + $0x2]]
    %v943 = vstv %s942
    %v944 = vmul.f32 %v943, %v926
    %v945 = vmul.f32 %v943, %v927
    %v946 = vmul.f32 %v943, %v928
    %v947 = vmul.f32 %v943, %v929
    %v948 = vmul.f32 %v943, %v930
    %v949 = vmul.f32 %v943, %v931
    %v950 = vmul.f32 %v943, %v932
    %v951 = vmul.f32 %v943, %v933
    %v952 = vmul.f32 %v943, %v934
    %v953 = vmul.f32 %v943, %v935
    %v954 = vmul.f32 %v943, %v936
    %v955 = vmul.f32 %v943, %v937
    %v956 = vmul.f32 %v943, %v938
    %v957 = vmul.f32 %v943, %v939
    %v958 = vmul.f32 %v943, %v940
    %v959 = vmul.f32 %v943, %v941
    %v960 = vadd.f32 %v703, %v944
    %v961 = vadd.f32 %v704, %v945
    %v962 = vadd.f32 %v705, %v946
    %v963 = vadd.f32 %v706, %v947
    %v964 = vadd.f32 %v707, %v948
    %v965 = vadd.f32 %v708, %v949
    %v966 = vadd.f32 %v709, %v950
    %v967 = vadd.f32 %v710, %v951
    %v968 = vadd.f32 %v711, %v952
    %v969 = vadd.f32 %v712, %v953
    %v970 = vadd.f32 %v713, %v954
    %v971 = vadd.f32 %v714, %v955
    %v972 = vadd.f32 %v715, %v956
    %v973 = vadd.f32 %v716, %v957
    %v974 = vadd.f32 %v717, %v958
    %v975 = vadd.f32 %v718, %v959
    %976 = vset.pattern.permute.xlu0 3
    %977 = vperm.xlu0 %976, %v41
    %v978 = vpop.permute.xlu0 %977
    %980 = vset.pattern.permute.xlu0 3
    %981 = vperm.xlu0 %980, %v42
    %v982 = vpop.permute.xlu0 %981
    %984 = vset.pattern.permute.xlu0 3
    %985 = vperm.xlu0 %984, %v43
    %v986 = vpop.permute.xlu0 %985
    %988 = vset.pattern.permute.xlu0 3
    %989 = vperm.xlu0 %988, %v44
    %v990 = vpop.permute.xlu0 %989
    %992 = vset.pattern.permute.xlu0 3
    %993 = vperm.xlu0 %992, %v45
    %v994 = vpop.permute.xlu0 %993
    %996 = vset.pattern.permute.xlu0 3
    %997 = vperm.xlu0 %996, %v46
    %v998 = vpop.permute.xlu0 %997
    %1000 = vset.pattern.permute.xlu0 3
    %1001 = vperm.xlu0 %1000, %v47
    %v1002 = vpop.permute.xlu0 %1001
    %1004 = vset.pattern.permute.xlu0 3
    %1005 = vperm.xlu0 %1004, %v48
    %v1006 = vpop.permute.xlu0 %1005
    %1008 = vset.pattern.permute.xlu0 3
    %1009 = vperm.xlu0 %1008, %v49
    %v1010 = vpop.permute.xlu0 %1009
    %1012 = vset.pattern.permute.xlu0 3
    %1013 = vperm.xlu0 %1012, %v50
    %v1014 = vpop.permute.xlu0 %1013
    %1016 = vset.pattern.permute.xlu0 3
    %1017 = vperm.xlu0 %1016, %v51
    %v1018 = vpop.permute.xlu0 %1017
    %1020 = vset.pattern.permute.xlu0 3
    %1021 = vperm.xlu0 %1020, %v52
    %v1022 = vpop.permute.xlu0 %1021
    %1024 = vset.pattern.permute.xlu0 3
    %1025 = vperm.xlu0 %1024, %v53
    %v1026 = vpop.permute.xlu0 %1025
    %1028 = vset.pattern.permute.xlu0 3
    %1029 = vperm.xlu0 %1028, %v54
    %v1030 = vpop.permute.xlu0 %1029
    %1032 = vset.pattern.permute.xlu0 3
    %1033 = vperm.xlu0 %1032, %v55
    %v1034 = vpop.permute.xlu0 %1033
    %1036 = vset.pattern.permute.xlu0 3
    %1037 = vperm.xlu0 %1036, %v56
    %v1038 = vpop.permute.xlu0 %1037
    %v1040 = vperm.slane %v39, 3
    %v1041 = vadd.f32 %v978, %v1040
    %v1042 = vadd.f32 %v982, %v1040
    %v1043 = vadd.f32 %v986, %v1040
    %v1044 = vadd.f32 %v990, %v1040
    %v1045 = vadd.f32 %v994, %v1040
    %v1046 = vadd.f32 %v998, %v1040
    %v1047 = vadd.f32 %v1002, %v1040
    %v1048 = vadd.f32 %v1006, %v1040
    %v1049 = vadd.f32 %v1010, %v1040
    %v1050 = vadd.f32 %v1014, %v1040
    %v1051 = vadd.f32 %v1018, %v1040
    %v1052 = vadd.f32 %v1022, %v1040
    %v1053 = vadd.f32 %v1026, %v1040
    %v1054 = vadd.f32 %v1030, %v1040
    %v1055 = vadd.f32 %v1034, %v1040
    %v1056 = vadd.f32 %v1038, %v1040
    %v1057 = vrot.slane %v57, 3
    %s1058 = vtos %v1057
    %v1059 = vstv %s1058
    %v1061 = vmul.f32 %v1059, %v75
    %v1062 = vmul.f32 %v1059, %v76
    %v1063 = vmul.f32 %v1059, %v77
    %v1064 = vmul.f32 %v1059, %v78
    %v1065 = vmul.f32 %v1059, %v79
    %v1066 = vmul.f32 %v1059, %v80
    %v1067 = vmul.f32 %v1059, %v81
    %v1068 = vmul.f32 %v1059, %v82
    %v1069 = vmul.f32 %v1059, %v83
    %v1070 = vmul.f32 %v1059, %v84
    %v1071 = vmul.f32 %v1059, %v85
    %v1072 = vmul.f32 %v1059, %v86
    %v1073 = vmul.f32 %v1059, %v87
    %v1074 = vmul.f32 %v1059, %v88
    %v1075 = vmul.f32 %v1059, %v89
    %v1076 = vmul.f32 %v1059, %v90
    %v1077 = vadd.f32 %v1041, %v1061
    %v1078 = vadd.f32 %v1042, %v1062
    %v1079 = vadd.f32 %v1043, %v1063
    %v1080 = vadd.f32 %v1044, %v1064
    %v1081 = vadd.f32 %v1045, %v1065
    %v1082 = vadd.f32 %v1046, %v1066
    %v1083 = vadd.f32 %v1047, %v1067
    %v1084 = vadd.f32 %v1048, %v1068
    %v1085 = vadd.f32 %v1049, %v1069
    %v1086 = vadd.f32 %v1050, %v1070
    %v1087 = vadd.f32 %v1051, %v1071
    %v1088 = vadd.f32 %v1052, %v1072
    %v1089 = vadd.f32 %v1053, %v1073
    %v1090 = vadd.f32 %v1054, %v1074
    %v1091 = vadd.f32 %v1055, %v1075
    %v1092 = vadd.f32 %v1056, %v1076
    %1093 = vrot.lane.b32.xlu0 %v1057, 127
    %v1094 = vpop.permute.xlu0 %1093
    %s1095 = vtos %v1094
    %v1096 = vstv %s1095
    %v1098 = vmul.f32 %v1096, %v108
    %v1099 = vmul.f32 %v1096, %v109
    %v1100 = vmul.f32 %v1096, %v110
    %v1101 = vmul.f32 %v1096, %v111
    %v1102 = vmul.f32 %v1096, %v112
    %v1103 = vmul.f32 %v1096, %v113
    %v1104 = vmul.f32 %v1096, %v114
    %v1105 = vmul.f32 %v1096, %v115
    %v1106 = vmul.f32 %v1096, %v116
    %v1107 = vmul.f32 %v1096, %v117
    %v1108 = vmul.f32 %v1096, %v118
    %v1109 = vmul.f32 %v1096, %v119
    %v1110 = vmul.f32 %v1096, %v120
    %v1111 = vmul.f32 %v1096, %v121
    %v1112 = vmul.f32 %v1096, %v122
    %v1113 = vmul.f32 %v1096, %v123
    %v1114 = vadd.f32 %v1077, %v1098
    %v1115 = vadd.f32 %v1078, %v1099
    %v1116 = vadd.f32 %v1079, %v1100
    %v1117 = vadd.f32 %v1080, %v1101
    %v1118 = vadd.f32 %v1081, %v1102
    %v1119 = vadd.f32 %v1082, %v1103
    %v1120 = vadd.f32 %v1083, %v1104
    %v1121 = vadd.f32 %v1084, %v1105
    %v1122 = vadd.f32 %v1085, %v1106
    %v1123 = vadd.f32 %v1086, %v1107
    %v1124 = vadd.f32 %v1087, %v1108
    %v1125 = vadd.f32 %v1088, %v1109
    %v1126 = vadd.f32 %v1089, %v1110
    %v1127 = vadd.f32 %v1090, %v1111
    %v1128 = vadd.f32 %v1091, %v1112
    %v1129 = vadd.f32 %v1092, %v1113
    %1130 = vrot.lane.b32.xlu0 %v1057, 126
    %v1131 = vpop.permute.xlu0 %1130
    %s1132 = vtos %v1131
    %v1133 = vstv %s1132
    %v1135 = vmul.f32 %v1133, %v141
    %v1136 = vmul.f32 %v1133, %v142
    %v1137 = vmul.f32 %v1133, %v143
    %v1138 = vmul.f32 %v1133, %v144
    %v1139 = vmul.f32 %v1133, %v145
    %v1140 = vmul.f32 %v1133, %v146
    %v1141 = vmul.f32 %v1133, %v147
    %v1142 = vmul.f32 %v1133, %v148
    %v1143 = vmul.f32 %v1133, %v149
    %v1144 = vmul.f32 %v1133, %v150
    %v1145 = vmul.f32 %v1133, %v151
    %v1146 = vmul.f32 %v1133, %v152
    %v1147 = vmul.f32 %v1133, %v153
    %v1148 = vmul.f32 %v1133, %v154
    %v1149 = vmul.f32 %v1133, %v155
    %v1150 = vmul.f32 %v1133, %v156
    %v1151 = vadd.f32 %v1114, %v1135
    %v1152 = vadd.f32 %v1115, %v1136
    %v1153 = vadd.f32 %v1116, %v1137
    %v1154 = vadd.f32 %v1117, %v1138
    %v1155 = vadd.f32 %v1118, %v1139
    %v1156 = vadd.f32 %v1119, %v1140
    %v1157 = vadd.f32 %v1120, %v1141
    %v1158 = vadd.f32 %v1121, %v1142
    %v1159 = vadd.f32 %v1122, %v1143
    %v1160 = vadd.f32 %v1123, %v1144
    %v1161 = vadd.f32 %v1124, %v1145
    %v1162 = vadd.f32 %v1125, %v1146
    %v1163 = vadd.f32 %v1126, %v1147
    %v1164 = vadd.f32 %v1127, %v1148
    %v1165 = vadd.f32 %v1128, %v1149
    %v1166 = vadd.f32 %v1129, %v1150
    %v1167 = vmul.f32 %v1151, 0.2
    %v1168 = vmul.f32 %v1152, 0.2
    %v1169 = vmul.f32 %v1153, 0.2
    %v1170 = vmul.f32 %v1154, 0.2
    %v1171 = vmul.f32 %v1155, 0.2
    %v1172 = vmul.f32 %v1156, 0.2
    %v1173 = vmul.f32 %v1157, 0.2
    %v1174 = vmul.f32 %v1158, 0.2
    %v1175 = vmul.f32 %v1159, 0.2
    %v1176 = vmul.f32 %v1160, 0.2
    %v1177 = vmul.f32 %v1161, 0.2
    %v1178 = vmul.f32 %v1162, 0.2
    %v1179 = vmul.f32 %v1163, 0.2
    %v1180 = vmul.f32 %v1164, 0.2
    %v1181 = vmul.f32 %v1165, 0.2
    %v1182 = vmul.f32 %v1166, 0.2
    %v1183 = vmax.f32 %v1151, %v1167
    %v1184 = vmax.f32 %v1152, %v1168
    %v1185 = vmax.f32 %v1153, %v1169
    %v1186 = vmax.f32 %v1154, %v1170
    %v1187 = vmax.f32 %v1155, %v1171
    %v1188 = vmax.f32 %v1156, %v1172
    %v1189 = vmax.f32 %v1157, %v1173
    %v1190 = vmax.f32 %v1158, %v1174
    %v1191 = vmax.f32 %v1159, %v1175
    %v1192 = vmax.f32 %v1160, %v1176
    %v1193 = vmax.f32 %v1161, %v1177
    %v1194 = vmax.f32 %v1162, %v1178
    %v1195 = vmax.f32 %v1163, %v1179
    %v1196 = vmax.f32 %v1164, %v1180
    %v1197 = vmax.f32 %v1165, %v1181
    %v1198 = vmax.f32 %v1166, %v1182
    %s1199 = sld [smem:[#allocation2 + $0x3]]
    %v1200 = vstv %s1199
    %v1201 = vmul.f32 %v1200, %v1183
    %v1202 = vmul.f32 %v1200, %v1184
    %v1203 = vmul.f32 %v1200, %v1185
    %v1204 = vmul.f32 %v1200, %v1186
    %v1205 = vmul.f32 %v1200, %v1187
    %v1206 = vmul.f32 %v1200, %v1188
    %v1207 = vmul.f32 %v1200, %v1189
    %v1208 = vmul.f32 %v1200, %v1190
    %v1209 = vmul.f32 %v1200, %v1191
    %v1210 = vmul.f32 %v1200, %v1192
    %v1211 = vmul.f32 %v1200, %v1193
    %v1212 = vmul.f32 %v1200, %v1194
    %v1213 = vmul.f32 %v1200, %v1195
    %v1214 = vmul.f32 %v1200, %v1196
    %v1215 = vmul.f32 %v1200, %v1197
    %v1216 = vmul.f32 %v1200, %v1198
    %v1217 = vadd.f32 %v960, %v1201
    %v1218 = vadd.f32 %v961, %v1202
    %v1219 = vadd.f32 %v962, %v1203
    %v1220 = vadd.f32 %v963, %v1204
    %v1221 = vadd.f32 %v964, %v1205
    %v1222 = vadd.f32 %v965, %v1206
    %v1223 = vadd.f32 %v966, %v1207
    %v1224 = vadd.f32 %v967, %v1208
    %v1225 = vadd.f32 %v968, %v1209
    %v1226 = vadd.f32 %v969, %v1210
    %v1227 = vadd.f32 %v970, %v1211
    %v1228 = vadd.f32 %v971, %v1212
    %v1229 = vadd.f32 %v972, %v1213
    %v1230 = vadd.f32 %v973, %v1214
    %v1231 = vadd.f32 %v974, %v1215
    %v1232 = vadd.f32 %v975, %v1216
    %1233 = vset.pattern.permute.xlu0 4
    %1234 = vperm.xlu0 %1233, %v41
    %v1235 = vpop.permute.xlu0 %1234
    %1237 = vset.pattern.permute.xlu0 4
    %1238 = vperm.xlu0 %1237, %v42
    %v1239 = vpop.permute.xlu0 %1238
    %1241 = vset.pattern.permute.xlu0 4
    %1242 = vperm.xlu0 %1241, %v43
    %v1243 = vpop.permute.xlu0 %1242
    %1245 = vset.pattern.permute.xlu0 4
    %1246 = vperm.xlu0 %1245, %v44
    %v1247 = vpop.permute.xlu0 %1246
    %1249 = vset.pattern.permute.xlu0 4
    %1250 = vperm.xlu0 %1249, %v45
    %v1251 = vpop.permute.xlu0 %1250
    %1253 = vset.pattern.permute.xlu0 4
    %1254 = vperm.xlu0 %1253, %v46
    %v1255 = vpop.permute.xlu0 %1254
    %1257 = vset.pattern.permute.xlu0 4
    %1258 = vperm.xlu0 %1257, %v47
    %v1259 = vpop.permute.xlu0 %1258
    %1261 = vset.pattern.permute.xlu0 4
    %1262 = vperm.xlu0 %1261, %v48
    %v1263 = vpop.permute.xlu0 %1262
    %1265 = vset.pattern.permute.xlu0 4
    %1266 = vperm.xlu0 %1265, %v49
    %v1267 = vpop.permute.xlu0 %1266
    %1269 = vset.pattern.permute.xlu0 4
    %1270 = vperm.xlu0 %1269, %v50
    %v1271 = vpop.permute.xlu0 %1270
    %1273 = vset.pattern.permute.xlu0 4
    %1274 = vperm.xlu0 %1273, %v51
    %v1275 = vpop.permute.xlu0 %1274
    %1277 = vset.pattern.permute.xlu0 4
    %1278 = vperm.xlu0 %1277, %v52
    %v1279 = vpop.permute.xlu0 %1278
    %1281 = vset.pattern.permute.xlu0 4
    %1282 = vperm.xlu0 %1281, %v53
    %v1283 = vpop.permute.xlu0 %1282
    %1285 = vset.pattern.permute.xlu0 4
    %1286 = vperm.xlu0 %1285, %v54
    %v1287 = vpop.permute.xlu0 %1286
    %1289 = vset.pattern.permute.xlu0 4
    %1290 = vperm.xlu0 %1289, %v55
    %v1291 = vpop.permute.xlu0 %1290
    %1293 = vset.pattern.permute.xlu0 4
    %1294 = vperm.xlu0 %1293, %v56
    %v1295 = vpop.permute.xlu0 %1294
    %v1297 = vperm.slane %v39, 4
    %v1298 = vadd.f32 %v1235, %v1297
    %v1299 = vadd.f32 %v1239, %v1297
    %v1300 = vadd.f32 %v1243, %v1297
    %v1301 = vadd.f32 %v1247, %v1297
    %v1302 = vadd.f32 %v1251, %v1297
    %v1303 = vadd.f32 %v1255, %v1297
    %v1304 = vadd.f32 %v1259, %v1297
    %v1305 = vadd.f32 %v1263, %v1297
    %v1306 = vadd.f32 %v1267, %v1297
    %v1307 = vadd.f32 %v1271, %v1297
    %v1308 = vadd.f32 %v1275, %v1297
    %v1309 = vadd.f32 %v1279, %v1297
    %v1310 = vadd.f32 %v1283, %v1297
    %v1311 = vadd.f32 %v1287, %v1297
    %v1312 = vadd.f32 %v1291, %v1297
    %v1313 = vadd.f32 %v1295, %v1297
    %v1314 = vrot.slane %v57, 4
    %s1315 = vtos %v1314
    %v1316 = vstv %s1315
    %v1318 = vmul.f32 %v1316, %v75
    %v1319 = vmul.f32 %v1316, %v76
    %v1320 = vmul.f32 %v1316, %v77
    %v1321 = vmul.f32 %v1316, %v78
    %v1322 = vmul.f32 %v1316, %v79
    %v1323 = vmul.f32 %v1316, %v80
    %v1324 = vmul.f32 %v1316, %v81
    %v1325 = vmul.f32 %v1316, %v82
    %v1326 = vmul.f32 %v1316, %v83
    %v1327 = vmul.f32 %v1316, %v84
    %v1328 = vmul.f32 %v1316, %v85
    %v1329 = vmul.f32 %v1316, %v86
    %v1330 = vmul.f32 %v1316, %v87
    %v1331 = vmul.f32 %v1316, %v88
    %v1332 = vmul.f32 %v1316, %v89
    %v1333 = vmul.f32 %v1316, %v90
    %v1334 = vadd.f32 %v1298, %v1318
    %v1335 = vadd.f32 %v1299, %v1319
    %v1336 = vadd.f32 %v1300, %v1320
    %v1337 = vadd.f32 %v1301, %v1321
    %v1338 = vadd.f32 %v1302, %v1322
    %v1339 = vadd.f32 %v1303, %v1323
    %v1340 = vadd.f32 %v1304, %v1324
    %v1341 = vadd.f32 %v1305, %v1325
    %v1342 = vadd.f32 %v1306, %v1326
    %v1343 = vadd.f32 %v1307, %v1327
    %v1344 = vadd.f32 %v1308, %v1328
    %v1345 = vadd.f32 %v1309, %v1329
    %v1346 = vadd.f32 %v1310, %v1330
    %v1347 = vadd.f32 %v1311, %v1331
    %v1348 = vadd.f32 %v1312, %v1332
    %v1349 = vadd.f32 %v1313, %v1333
    %1350 = vrot.lane.b32.xlu0 %v1314, 127
    %v1351 = vpop.permute.xlu0 %1350
    %s1352 = vtos %v1351
    %v1353 = vstv %s1352
    %v1355 = vmul.f32 %v1353, %v108
    %v1356 = vmul.f32 %v1353, %v109
    %v1357 = vmul.f32 %v1353, %v110
    %v1358 = vmul.f32 %v1353, %v111
    %v1359 = vmul.f32 %v1353, %v112
    %v1360 = vmul.f32 %v1353, %v113
    %v1361 = vmul.f32 %v1353, %v114
    %v1362 = vmul.f32 %v1353, %v115
    %v1363 = vmul.f32 %v1353, %v116
    %v1364 = vmul.f32 %v1353, %v117
    %v1365 = vmul.f32 %v1353, %v118
    %v1366 = vmul.f32 %v1353, %v119
    %v1367 = vmul.f32 %v1353, %v120
    %v1368 = vmul.f32 %v1353, %v121
    %v1369 = vmul.f32 %v1353, %v122
    %v1370 = vmul.f32 %v1353, %v123
    %v1371 = vadd.f32 %v1334, %v1355
    %v1372 = vadd.f32 %v1335, %v1356
    %v1373 = vadd.f32 %v1336, %v1357
    %v1374 = vadd.f32 %v1337, %v1358
    %v1375 = vadd.f32 %v1338, %v1359
    %v1376 = vadd.f32 %v1339, %v1360
    %v1377 = vadd.f32 %v1340, %v1361
    %v1378 = vadd.f32 %v1341, %v1362
    %v1379 = vadd.f32 %v1342, %v1363
    %v1380 = vadd.f32 %v1343, %v1364
    %v1381 = vadd.f32 %v1344, %v1365
    %v1382 = vadd.f32 %v1345, %v1366
    %v1383 = vadd.f32 %v1346, %v1367
    %v1384 = vadd.f32 %v1347, %v1368
    %v1385 = vadd.f32 %v1348, %v1369
    %v1386 = vadd.f32 %v1349, %v1370
    %1387 = vrot.lane.b32.xlu0 %v1314, 126
    %v1388 = vpop.permute.xlu0 %1387
    %s1389 = vtos %v1388
    %v1390 = vstv %s1389
    %v1392 = vmul.f32 %v1390, %v141
    %v1393 = vmul.f32 %v1390, %v142
    %v1394 = vmul.f32 %v1390, %v143
    %v1395 = vmul.f32 %v1390, %v144
    %v1396 = vmul.f32 %v1390, %v145
    %v1397 = vmul.f32 %v1390, %v146
    %v1398 = vmul.f32 %v1390, %v147
    %v1399 = vmul.f32 %v1390, %v148
    %v1400 = vmul.f32 %v1390, %v149
    %v1401 = vmul.f32 %v1390, %v150
    %v1402 = vmul.f32 %v1390, %v151
    %v1403 = vmul.f32 %v1390, %v152
    %v1404 = vmul.f32 %v1390, %v153
    %v1405 = vmul.f32 %v1390, %v154
    %v1406 = vmul.f32 %v1390, %v155
    %v1407 = vmul.f32 %v1390, %v156
    %v1408 = vadd.f32 %v1371, %v1392
    %v1409 = vadd.f32 %v1372, %v1393
    %v1410 = vadd.f32 %v1373, %v1394
    %v1411 = vadd.f32 %v1374, %v1395
    %v1412 = vadd.f32 %v1375, %v1396
    %v1413 = vadd.f32 %v1376, %v1397
    %v1414 = vadd.f32 %v1377, %v1398
    %v1415 = vadd.f32 %v1378, %v1399
    %v1416 = vadd.f32 %v1379, %v1400
    %v1417 = vadd.f32 %v1380, %v1401
    %v1418 = vadd.f32 %v1381, %v1402
    %v1419 = vadd.f32 %v1382, %v1403
    %v1420 = vadd.f32 %v1383, %v1404
    %v1421 = vadd.f32 %v1384, %v1405
    %v1422 = vadd.f32 %v1385, %v1406
    %v1423 = vadd.f32 %v1386, %v1407
    %v1424 = vmul.f32 %v1408, 0.2
    %v1425 = vmul.f32 %v1409, 0.2
    %v1426 = vmul.f32 %v1410, 0.2
    %v1427 = vmul.f32 %v1411, 0.2
    %v1428 = vmul.f32 %v1412, 0.2
    %v1429 = vmul.f32 %v1413, 0.2
    %v1430 = vmul.f32 %v1414, 0.2
    %v1431 = vmul.f32 %v1415, 0.2
    %v1432 = vmul.f32 %v1416, 0.2
    %v1433 = vmul.f32 %v1417, 0.2
    %v1434 = vmul.f32 %v1418, 0.2
    %v1435 = vmul.f32 %v1419, 0.2
    %v1436 = vmul.f32 %v1420, 0.2
    %v1437 = vmul.f32 %v1421, 0.2
    %v1438 = vmul.f32 %v1422, 0.2
    %v1439 = vmul.f32 %v1423, 0.2
    %v1440 = vmax.f32 %v1408, %v1424
    %v1441 = vmax.f32 %v1409, %v1425
    %v1442 = vmax.f32 %v1410, %v1426
    %v1443 = vmax.f32 %v1411, %v1427
    %v1444 = vmax.f32 %v1412, %v1428
    %v1445 = vmax.f32 %v1413, %v1429
    %v1446 = vmax.f32 %v1414, %v1430
    %v1447 = vmax.f32 %v1415, %v1431
    %v1448 = vmax.f32 %v1416, %v1432
    %v1449 = vmax.f32 %v1417, %v1433
    %v1450 = vmax.f32 %v1418, %v1434
    %v1451 = vmax.f32 %v1419, %v1435
    %v1452 = vmax.f32 %v1420, %v1436
    %v1453 = vmax.f32 %v1421, %v1437
    %v1454 = vmax.f32 %v1422, %v1438
    %v1455 = vmax.f32 %v1423, %v1439
    %s1456 = sld [smem:[#allocation2 + $0x4]]
    %v1457 = vstv %s1456
    %v1458 = vmul.f32 %v1457, %v1440
    %v1459 = vmul.f32 %v1457, %v1441
    %v1460 = vmul.f32 %v1457, %v1442
    %v1461 = vmul.f32 %v1457, %v1443
    %v1462 = vmul.f32 %v1457, %v1444
    %v1463 = vmul.f32 %v1457, %v1445
    %v1464 = vmul.f32 %v1457, %v1446
    %v1465 = vmul.f32 %v1457, %v1447
    %v1466 = vmul.f32 %v1457, %v1448
    %v1467 = vmul.f32 %v1457, %v1449
    %v1468 = vmul.f32 %v1457, %v1450
    %v1469 = vmul.f32 %v1457, %v1451
    %v1470 = vmul.f32 %v1457, %v1452
    %v1471 = vmul.f32 %v1457, %v1453
    %v1472 = vmul.f32 %v1457, %v1454
    %v1473 = vmul.f32 %v1457, %v1455
    %v1474 = vadd.f32 %v1217, %v1458
    %v1475 = vadd.f32 %v1218, %v1459
    %v1476 = vadd.f32 %v1219, %v1460
    %v1477 = vadd.f32 %v1220, %v1461
    %v1478 = vadd.f32 %v1221, %v1462
    %v1479 = vadd.f32 %v1222, %v1463
    %v1480 = vadd.f32 %v1223, %v1464
    %v1481 = vadd.f32 %v1224, %v1465
    %v1482 = vadd.f32 %v1225, %v1466
    %v1483 = vadd.f32 %v1226, %v1467
    %v1484 = vadd.f32 %v1227, %v1468
    %v1485 = vadd.f32 %v1228, %v1469
    %v1486 = vadd.f32 %v1229, %v1470
    %v1487 = vadd.f32 %v1230, %v1471
    %v1488 = vadd.f32 %v1231, %v1472
    %v1489 = vadd.f32 %v1232, %v1473
    %1490 = vset.pattern.permute.xlu0 5
    %1491 = vperm.xlu0 %1490, %v41
    %v1492 = vpop.permute.xlu0 %1491
    %1494 = vset.pattern.permute.xlu0 5
    %1495 = vperm.xlu0 %1494, %v42
    %v1496 = vpop.permute.xlu0 %1495
    %1498 = vset.pattern.permute.xlu0 5
    %1499 = vperm.xlu0 %1498, %v43
    %v1500 = vpop.permute.xlu0 %1499
    %1502 = vset.pattern.permute.xlu0 5
    %1503 = vperm.xlu0 %1502, %v44
    %v1504 = vpop.permute.xlu0 %1503
    %1506 = vset.pattern.permute.xlu0 5
    %1507 = vperm.xlu0 %1506, %v45
    %v1508 = vpop.permute.xlu0 %1507
    %1510 = vset.pattern.permute.xlu0 5
    %1511 = vperm.xlu0 %1510, %v46
    %v1512 = vpop.permute.xlu0 %1511
    %1514 = vset.pattern.permute.xlu0 5
    %1515 = vperm.xlu0 %1514, %v47
    %v1516 = vpop.permute.xlu0 %1515
    %1518 = vset.pattern.permute.xlu0 5
    %1519 = vperm.xlu0 %1518, %v48
    %v1520 = vpop.permute.xlu0 %1519
    %1522 = vset.pattern.permute.xlu0 5
    %1523 = vperm.xlu0 %1522, %v49
    %v1524 = vpop.permute.xlu0 %1523
    %1526 = vset.pattern.permute.xlu0 5
    %1527 = vperm.xlu0 %1526, %v50
    %v1528 = vpop.permute.xlu0 %1527
    %1530 = vset.pattern.permute.xlu0 5
    %1531 = vperm.xlu0 %1530, %v51
    %v1532 = vpop.permute.xlu0 %1531
    %1534 = vset.pattern.permute.xlu0 5
    %1535 = vperm.xlu0 %1534, %v52
    %v1536 = vpop.permute.xlu0 %1535
    %1538 = vset.pattern.permute.xlu0 5
    %1539 = vperm.xlu0 %1538, %v53
    %v1540 = vpop.permute.xlu0 %1539
    %1542 = vset.pattern.permute.xlu0 5
    %1543 = vperm.xlu0 %1542, %v54
    %v1544 = vpop.permute.xlu0 %1543
    %1546 = vset.pattern.permute.xlu0 5
    %1547 = vperm.xlu0 %1546, %v55
    %v1548 = vpop.permute.xlu0 %1547
    %1550 = vset.pattern.permute.xlu0 5
    %1551 = vperm.xlu0 %1550, %v56
    %v1552 = vpop.permute.xlu0 %1551
    %v1554 = vperm.slane %v39, 5
    %v1555 = vadd.f32 %v1492, %v1554
    %v1556 = vadd.f32 %v1496, %v1554
    %v1557 = vadd.f32 %v1500, %v1554
    %v1558 = vadd.f32 %v1504, %v1554
    %v1559 = vadd.f32 %v1508, %v1554
    %v1560 = vadd.f32 %v1512, %v1554
    %v1561 = vadd.f32 %v1516, %v1554
    %v1562 = vadd.f32 %v1520, %v1554
    %v1563 = vadd.f32 %v1524, %v1554
    %v1564 = vadd.f32 %v1528, %v1554
    %v1565 = vadd.f32 %v1532, %v1554
    %v1566 = vadd.f32 %v1536, %v1554
    %v1567 = vadd.f32 %v1540, %v1554
    %v1568 = vadd.f32 %v1544, %v1554
    %v1569 = vadd.f32 %v1548, %v1554
    %v1570 = vadd.f32 %v1552, %v1554
    %v1571 = vrot.slane %v57, 5
    %s1572 = vtos %v1571
    %v1573 = vstv %s1572
    %v1575 = vmul.f32 %v1573, %v75
    %v1576 = vmul.f32 %v1573, %v76
    %v1577 = vmul.f32 %v1573, %v77
    %v1578 = vmul.f32 %v1573, %v78
    %v1579 = vmul.f32 %v1573, %v79
    %v1580 = vmul.f32 %v1573, %v80
    %v1581 = vmul.f32 %v1573, %v81
    %v1582 = vmul.f32 %v1573, %v82
    %v1583 = vmul.f32 %v1573, %v83
    %v1584 = vmul.f32 %v1573, %v84
    %v1585 = vmul.f32 %v1573, %v85
    %v1586 = vmul.f32 %v1573, %v86
    %v1587 = vmul.f32 %v1573, %v87
    %v1588 = vmul.f32 %v1573, %v88
    %v1589 = vmul.f32 %v1573, %v89
    %v1590 = vmul.f32 %v1573, %v90
    %v1591 = vadd.f32 %v1555, %v1575
    %v1592 = vadd.f32 %v1556, %v1576
    %v1593 = vadd.f32 %v1557, %v1577
    %v1594 = vadd.f32 %v1558, %v1578
    %v1595 = vadd.f32 %v1559, %v1579
    %v1596 = vadd.f32 %v1560, %v1580
    %v1597 = vadd.f32 %v1561, %v1581
    %v1598 = vadd.f32 %v1562, %v1582
    %v1599 = vadd.f32 %v1563, %v1583
    %v1600 = vadd.f32 %v1564, %v1584
    %v1601 = vadd.f32 %v1565, %v1585
    %v1602 = vadd.f32 %v1566, %v1586
    %v1603 = vadd.f32 %v1567, %v1587
    %v1604 = vadd.f32 %v1568, %v1588
    %v1605 = vadd.f32 %v1569, %v1589
    %v1606 = vadd.f32 %v1570, %v1590
    %1607 = vrot.lane.b32.xlu0 %v1571, 127
    %v1608 = vpop.permute.xlu0 %1607
    %s1609 = vtos %v1608
    %v1610 = vstv %s1609
    %v1612 = vmul.f32 %v1610, %v108
    %v1613 = vmul.f32 %v1610, %v109
    %v1614 = vmul.f32 %v1610, %v110
    %v1615 = vmul.f32 %v1610, %v111
    %v1616 = vmul.f32 %v1610, %v112
    %v1617 = vmul.f32 %v1610, %v113
    %v1618 = vmul.f32 %v1610, %v114
    %v1619 = vmul.f32 %v1610, %v115
    %v1620 = vmul.f32 %v1610, %v116
    %v1621 = vmul.f32 %v1610, %v117
    %v1622 = vmul.f32 %v1610, %v118
    %v1623 = vmul.f32 %v1610, %v119
    %v1624 = vmul.f32 %v1610, %v120
    %v1625 = vmul.f32 %v1610, %v121
    %v1626 = vmul.f32 %v1610, %v122
    %v1627 = vmul.f32 %v1610, %v123
    %v1628 = vadd.f32 %v1591, %v1612
    %v1629 = vadd.f32 %v1592, %v1613
    %v1630 = vadd.f32 %v1593, %v1614
    %v1631 = vadd.f32 %v1594, %v1615
    %v1632 = vadd.f32 %v1595, %v1616
    %v1633 = vadd.f32 %v1596, %v1617
    %v1634 = vadd.f32 %v1597, %v1618
    %v1635 = vadd.f32 %v1598, %v1619
    %v1636 = vadd.f32 %v1599, %v1620
    %v1637 = vadd.f32 %v1600, %v1621
    %v1638 = vadd.f32 %v1601, %v1622
    %v1639 = vadd.f32 %v1602, %v1623
    %v1640 = vadd.f32 %v1603, %v1624
    %v1641 = vadd.f32 %v1604, %v1625
    %v1642 = vadd.f32 %v1605, %v1626
    %v1643 = vadd.f32 %v1606, %v1627
    %1644 = vrot.lane.b32.xlu0 %v1571, 126
    %v1645 = vpop.permute.xlu0 %1644
    %s1646 = vtos %v1645
    %v1647 = vstv %s1646
    %v1649 = vmul.f32 %v1647, %v141
    %v1650 = vmul.f32 %v1647, %v142
    %v1651 = vmul.f32 %v1647, %v143
    %v1652 = vmul.f32 %v1647, %v144
    %v1653 = vmul.f32 %v1647, %v145
    %v1654 = vmul.f32 %v1647, %v146
    %v1655 = vmul.f32 %v1647, %v147
    %v1656 = vmul.f32 %v1647, %v148
    %v1657 = vmul.f32 %v1647, %v149
    %v1658 = vmul.f32 %v1647, %v150
    %v1659 = vmul.f32 %v1647, %v151
    %v1660 = vmul.f32 %v1647, %v152
    %v1661 = vmul.f32 %v1647, %v153
    %v1662 = vmul.f32 %v1647, %v154
    %v1663 = vmul.f32 %v1647, %v155
    %v1664 = vmul.f32 %v1647, %v156
    %v1665 = vadd.f32 %v1628, %v1649
    %v1666 = vadd.f32 %v1629, %v1650
    %v1667 = vadd.f32 %v1630, %v1651
    %v1668 = vadd.f32 %v1631, %v1652
    %v1669 = vadd.f32 %v1632, %v1653
    %v1670 = vadd.f32 %v1633, %v1654
    %v1671 = vadd.f32 %v1634, %v1655
    %v1672 = vadd.f32 %v1635, %v1656
    %v1673 = vadd.f32 %v1636, %v1657
    %v1674 = vadd.f32 %v1637, %v1658
    %v1675 = vadd.f32 %v1638, %v1659
    %v1676 = vadd.f32 %v1639, %v1660
    %v1677 = vadd.f32 %v1640, %v1661
    %v1678 = vadd.f32 %v1641, %v1662
    %v1679 = vadd.f32 %v1642, %v1663
    %v1680 = vadd.f32 %v1643, %v1664
    %v1681 = vmul.f32 %v1665, 0.2
    %v1682 = vmul.f32 %v1666, 0.2
    %v1683 = vmul.f32 %v1667, 0.2
    %v1684 = vmul.f32 %v1668, 0.2
    %v1685 = vmul.f32 %v1669, 0.2
    %v1686 = vmul.f32 %v1670, 0.2
    %v1687 = vmul.f32 %v1671, 0.2
    %v1688 = vmul.f32 %v1672, 0.2
    %v1689 = vmul.f32 %v1673, 0.2
    %v1690 = vmul.f32 %v1674, 0.2
    %v1691 = vmul.f32 %v1675, 0.2
    %v1692 = vmul.f32 %v1676, 0.2
    %v1693 = vmul.f32 %v1677, 0.2
    %v1694 = vmul.f32 %v1678, 0.2
    %v1695 = vmul.f32 %v1679, 0.2
    %v1696 = vmul.f32 %v1680, 0.2
    %v1697 = vmax.f32 %v1665, %v1681
    %v1698 = vmax.f32 %v1666, %v1682
    %v1699 = vmax.f32 %v1667, %v1683
    %v1700 = vmax.f32 %v1668, %v1684
    %v1701 = vmax.f32 %v1669, %v1685
    %v1702 = vmax.f32 %v1670, %v1686
    %v1703 = vmax.f32 %v1671, %v1687
    %v1704 = vmax.f32 %v1672, %v1688
    %v1705 = vmax.f32 %v1673, %v1689
    %v1706 = vmax.f32 %v1674, %v1690
    %v1707 = vmax.f32 %v1675, %v1691
    %v1708 = vmax.f32 %v1676, %v1692
    %v1709 = vmax.f32 %v1677, %v1693
    %v1710 = vmax.f32 %v1678, %v1694
    %v1711 = vmax.f32 %v1679, %v1695
    %v1712 = vmax.f32 %v1680, %v1696
    %s1713 = sld [smem:[#allocation2 + $0x5]]
    %v1714 = vstv %s1713
    %v1715 = vmul.f32 %v1714, %v1697
    %v1716 = vmul.f32 %v1714, %v1698
    %v1717 = vmul.f32 %v1714, %v1699
    %v1718 = vmul.f32 %v1714, %v1700
    %v1719 = vmul.f32 %v1714, %v1701
    %v1720 = vmul.f32 %v1714, %v1702
    %v1721 = vmul.f32 %v1714, %v1703
    %v1722 = vmul.f32 %v1714, %v1704
    %v1723 = vmul.f32 %v1714, %v1705
    %v1724 = vmul.f32 %v1714, %v1706
    %v1725 = vmul.f32 %v1714, %v1707
    %v1726 = vmul.f32 %v1714, %v1708
    %v1727 = vmul.f32 %v1714, %v1709
    %v1728 = vmul.f32 %v1714, %v1710
    %v1729 = vmul.f32 %v1714, %v1711
    %v1730 = vmul.f32 %v1714, %v1712
    %v1731 = vadd.f32 %v1474, %v1715
    %v1732 = vadd.f32 %v1475, %v1716
    %v1733 = vadd.f32 %v1476, %v1717
    %v1734 = vadd.f32 %v1477, %v1718
    %v1735 = vadd.f32 %v1478, %v1719
    %v1736 = vadd.f32 %v1479, %v1720
    %v1737 = vadd.f32 %v1480, %v1721
    %v1738 = vadd.f32 %v1481, %v1722
    %v1739 = vadd.f32 %v1482, %v1723
    %v1740 = vadd.f32 %v1483, %v1724
    %v1741 = vadd.f32 %v1484, %v1725
    %v1742 = vadd.f32 %v1485, %v1726
    %v1743 = vadd.f32 %v1486, %v1727
    %v1744 = vadd.f32 %v1487, %v1728
    %v1745 = vadd.f32 %v1488, %v1729
    %v1746 = vadd.f32 %v1489, %v1730
    %1747 = vset.pattern.permute.xlu0 6
    %1748 = vperm.xlu0 %1747, %v41
    %v1749 = vpop.permute.xlu0 %1748
    %1751 = vset.pattern.permute.xlu0 6
    %1752 = vperm.xlu0 %1751, %v42
    %v1753 = vpop.permute.xlu0 %1752
    %1755 = vset.pattern.permute.xlu0 6
    %1756 = vperm.xlu0 %1755, %v43
    %v1757 = vpop.permute.xlu0 %1756
    %1759 = vset.pattern.permute.xlu0 6
    %1760 = vperm.xlu0 %1759, %v44
    %v1761 = vpop.permute.xlu0 %1760
    %1763 = vset.pattern.permute.xlu0 6
    %1764 = vperm.xlu0 %1763, %v45
    %v1765 = vpop.permute.xlu0 %1764
    %1767 = vset.pattern.permute.xlu0 6
    %1768 = vperm.xlu0 %1767, %v46
    %v1769 = vpop.permute.xlu0 %1768
    %1771 = vset.pattern.permute.xlu0 6
    %1772 = vperm.xlu0 %1771, %v47
    %v1773 = vpop.permute.xlu0 %1772
    %1775 = vset.pattern.permute.xlu0 6
    %1776 = vperm.xlu0 %1775, %v48
    %v1777 = vpop.permute.xlu0 %1776
    %1779 = vset.pattern.permute.xlu0 6
    %1780 = vperm.xlu0 %1779, %v49
    %v1781 = vpop.permute.xlu0 %1780
    %1783 = vset.pattern.permute.xlu0 6
    %1784 = vperm.xlu0 %1783, %v50
    %v1785 = vpop.permute.xlu0 %1784
    %1787 = vset.pattern.permute.xlu0 6
    %1788 = vperm.xlu0 %1787, %v51
    %v1789 = vpop.permute.xlu0 %1788
    %1791 = vset.pattern.permute.xlu0 6
    %1792 = vperm.xlu0 %1791, %v52
    %v1793 = vpop.permute.xlu0 %1792
    %1795 = vset.pattern.permute.xlu0 6
    %1796 = vperm.xlu0 %1795, %v53
    %v1797 = vpop.permute.xlu0 %1796
    %1799 = vset.pattern.permute.xlu0 6
    %1800 = vperm.xlu0 %1799, %v54
    %v1801 = vpop.permute.xlu0 %1800
    %1803 = vset.pattern.permute.xlu0 6
    %1804 = vperm.xlu0 %1803, %v55
    %v1805 = vpop.permute.xlu0 %1804
    %1807 = vset.pattern.permute.xlu0 6
    %1808 = vperm.xlu0 %1807, %v56
    %v1809 = vpop.permute.xlu0 %1808
    %v1811 = vperm.slane %v39, 6
    %v1812 = vadd.f32 %v1749, %v1811
    %v1813 = vadd.f32 %v1753, %v1811
    %v1814 = vadd.f32 %v1757, %v1811
    %v1815 = vadd.f32 %v1761, %v1811
    %v1816 = vadd.f32 %v1765, %v1811
    %v1817 = vadd.f32 %v1769, %v1811
    %v1818 = vadd.f32 %v1773, %v1811
    %v1819 = vadd.f32 %v1777, %v1811
    %v1820 = vadd.f32 %v1781, %v1811
    %v1821 = vadd.f32 %v1785, %v1811
    %v1822 = vadd.f32 %v1789, %v1811
    %v1823 = vadd.f32 %v1793, %v1811
    %v1824 = vadd.f32 %v1797, %v1811
    %v1825 = vadd.f32 %v1801, %v1811
    %v1826 = vadd.f32 %v1805, %v1811
    %v1827 = vadd.f32 %v1809, %v1811
    %v1828 = vrot.slane %v57, 6
    %s1829 = vtos %v1828
    %v1830 = vstv %s1829
    %v1832 = vmul.f32 %v1830, %v75
    %v1833 = vmul.f32 %v1830, %v76
    %v1834 = vmul.f32 %v1830, %v77
    %v1835 = vmul.f32 %v1830, %v78
    %v1836 = vmul.f32 %v1830, %v79
    %v1837 = vmul.f32 %v1830, %v80
    %v1838 = vmul.f32 %v1830, %v81
    %v1839 = vmul.f32 %v1830, %v82
    %v1840 = vmul.f32 %v1830, %v83
    %v1841 = vmul.f32 %v1830, %v84
    %v1842 = vmul.f32 %v1830, %v85
    %v1843 = vmul.f32 %v1830, %v86
    %v1844 = vmul.f32 %v1830, %v87
    %v1845 = vmul.f32 %v1830, %v88
    %v1846 = vmul.f32 %v1830, %v89
    %v1847 = vmul.f32 %v1830, %v90
    %v1848 = vadd.f32 %v1812, %v1832
    %v1849 = vadd.f32 %v1813, %v1833
    %v1850 = vadd.f32 %v1814, %v1834
    %v1851 = vadd.f32 %v1815, %v1835
    %v1852 = vadd.f32 %v1816, %v1836
    %v1853 = vadd.f32 %v1817, %v1837
    %v1854 = vadd.f32 %v1818, %v1838
    %v1855 = vadd.f32 %v1819, %v1839
    %v1856 = vadd.f32 %v1820, %v1840
    %v1857 = vadd.f32 %v1821, %v1841
    %v1858 = vadd.f32 %v1822, %v1842
    %v1859 = vadd.f32 %v1823, %v1843
    %v1860 = vadd.f32 %v1824, %v1844
    %v1861 = vadd.f32 %v1825, %v1845
    %v1862 = vadd.f32 %v1826, %v1846
    %v1863 = vadd.f32 %v1827, %v1847
    %1864 = vrot.lane.b32.xlu0 %v1828, 127
    %v1865 = vpop.permute.xlu0 %1864
    %s1866 = vtos %v1865
    %v1867 = vstv %s1866
    %v1869 = vmul.f32 %v1867, %v108
    %v1870 = vmul.f32 %v1867, %v109
    %v1871 = vmul.f32 %v1867, %v110
    %v1872 = vmul.f32 %v1867, %v111
    %v1873 = vmul.f32 %v1867, %v112
    %v1874 = vmul.f32 %v1867, %v113
    %v1875 = vmul.f32 %v1867, %v114
    %v1876 = vmul.f32 %v1867, %v115
    %v1877 = vmul.f32 %v1867, %v116
    %v1878 = vmul.f32 %v1867, %v117
    %v1879 = vmul.f32 %v1867, %v118
    %v1880 = vmul.f32 %v1867, %v119
    %v1881 = vmul.f32 %v1867, %v120
    %v1882 = vmul.f32 %v1867, %v121
    %v1883 = vmul.f32 %v1867, %v122
    %v1884 = vmul.f32 %v1867, %v123
    %v1885 = vadd.f32 %v1848, %v1869
    %v1886 = vadd.f32 %v1849, %v1870
    %v1887 = vadd.f32 %v1850, %v1871
    %v1888 = vadd.f32 %v1851, %v1872
    %v1889 = vadd.f32 %v1852, %v1873
    %v1890 = vadd.f32 %v1853, %v1874
    %v1891 = vadd.f32 %v1854, %v1875
    %v1892 = vadd.f32 %v1855, %v1876
    %v1893 = vadd.f32 %v1856, %v1877
    %v1894 = vadd.f32 %v1857, %v1878
    %v1895 = vadd.f32 %v1858, %v1879
    %v1896 = vadd.f32 %v1859, %v1880
    %v1897 = vadd.f32 %v1860, %v1881
    %v1898 = vadd.f32 %v1861, %v1882
    %v1899 = vadd.f32 %v1862, %v1883
    %v1900 = vadd.f32 %v1863, %v1884
    %1901 = vrot.lane.b32.xlu0 %v1828, 126
    %v1902 = vpop.permute.xlu0 %1901
    %s1903 = vtos %v1902
    %v1904 = vstv %s1903
    %v1906 = vmul.f32 %v1904, %v141
    %v1907 = vmul.f32 %v1904, %v142
    %v1908 = vmul.f32 %v1904, %v143
    %v1909 = vmul.f32 %v1904, %v144
    %v1910 = vmul.f32 %v1904, %v145
    %v1911 = vmul.f32 %v1904, %v146
    %v1912 = vmul.f32 %v1904, %v147
    %v1913 = vmul.f32 %v1904, %v148
    %v1914 = vmul.f32 %v1904, %v149
    %v1915 = vmul.f32 %v1904, %v150
    %v1916 = vmul.f32 %v1904, %v151
    %v1917 = vmul.f32 %v1904, %v152
    %v1918 = vmul.f32 %v1904, %v153
    %v1919 = vmul.f32 %v1904, %v154
    %v1920 = vmul.f32 %v1904, %v155
    %v1921 = vmul.f32 %v1904, %v156
    %v1922 = vadd.f32 %v1885, %v1906
    %v1923 = vadd.f32 %v1886, %v1907
    %v1924 = vadd.f32 %v1887, %v1908
    %v1925 = vadd.f32 %v1888, %v1909
    %v1926 = vadd.f32 %v1889, %v1910
    %v1927 = vadd.f32 %v1890, %v1911
    %v1928 = vadd.f32 %v1891, %v1912
    %v1929 = vadd.f32 %v1892, %v1913
    %v1930 = vadd.f32 %v1893, %v1914
    %v1931 = vadd.f32 %v1894, %v1915
    %v1932 = vadd.f32 %v1895, %v1916
    %v1933 = vadd.f32 %v1896, %v1917
    %v1934 = vadd.f32 %v1897, %v1918
    %v1935 = vadd.f32 %v1898, %v1919
    %v1936 = vadd.f32 %v1899, %v1920
    %v1937 = vadd.f32 %v1900, %v1921
    %v1938 = vmul.f32 %v1922, 0.2
    %v1939 = vmul.f32 %v1923, 0.2
    %v1940 = vmul.f32 %v1924, 0.2
    %v1941 = vmul.f32 %v1925, 0.2
    %v1942 = vmul.f32 %v1926, 0.2
    %v1943 = vmul.f32 %v1927, 0.2
    %v1944 = vmul.f32 %v1928, 0.2
    %v1945 = vmul.f32 %v1929, 0.2
    %v1946 = vmul.f32 %v1930, 0.2
    %v1947 = vmul.f32 %v1931, 0.2
    %v1948 = vmul.f32 %v1932, 0.2
    %v1949 = vmul.f32 %v1933, 0.2
    %v1950 = vmul.f32 %v1934, 0.2
    %v1951 = vmul.f32 %v1935, 0.2
    %v1952 = vmul.f32 %v1936, 0.2
    %v1953 = vmul.f32 %v1937, 0.2
    %v1954 = vmax.f32 %v1922, %v1938
    %v1955 = vmax.f32 %v1923, %v1939
    %v1956 = vmax.f32 %v1924, %v1940
    %v1957 = vmax.f32 %v1925, %v1941
    %v1958 = vmax.f32 %v1926, %v1942
    %v1959 = vmax.f32 %v1927, %v1943
    %v1960 = vmax.f32 %v1928, %v1944
    %v1961 = vmax.f32 %v1929, %v1945
    %v1962 = vmax.f32 %v1930, %v1946
    %v1963 = vmax.f32 %v1931, %v1947
    %v1964 = vmax.f32 %v1932, %v1948
    %v1965 = vmax.f32 %v1933, %v1949
    %v1966 = vmax.f32 %v1934, %v1950
    %v1967 = vmax.f32 %v1935, %v1951
    %v1968 = vmax.f32 %v1936, %v1952
    %v1969 = vmax.f32 %v1937, %v1953
    %s1970 = sld [smem:[#allocation2 + $0x6]]
    %v1971 = vstv %s1970
    %v1972 = vmul.f32 %v1971, %v1954
    %v1973 = vmul.f32 %v1971, %v1955
    %v1974 = vmul.f32 %v1971, %v1956
    %v1975 = vmul.f32 %v1971, %v1957
    %v1976 = vmul.f32 %v1971, %v1958
    %v1977 = vmul.f32 %v1971, %v1959
    %v1978 = vmul.f32 %v1971, %v1960
    %v1979 = vmul.f32 %v1971, %v1961
    %v1980 = vmul.f32 %v1971, %v1962
    %v1981 = vmul.f32 %v1971, %v1963
    %v1982 = vmul.f32 %v1971, %v1964
    %v1983 = vmul.f32 %v1971, %v1965
    %v1984 = vmul.f32 %v1971, %v1966
    %v1985 = vmul.f32 %v1971, %v1967
    %v1986 = vmul.f32 %v1971, %v1968
    %v1987 = vmul.f32 %v1971, %v1969
    %v1988 = vadd.f32 %v1731, %v1972
    %v1989 = vadd.f32 %v1732, %v1973
    %v1990 = vadd.f32 %v1733, %v1974
    %v1991 = vadd.f32 %v1734, %v1975
    %v1992 = vadd.f32 %v1735, %v1976
    %v1993 = vadd.f32 %v1736, %v1977
    %v1994 = vadd.f32 %v1737, %v1978
    %v1995 = vadd.f32 %v1738, %v1979
    %v1996 = vadd.f32 %v1739, %v1980
    %v1997 = vadd.f32 %v1740, %v1981
    %v1998 = vadd.f32 %v1741, %v1982
    %v1999 = vadd.f32 %v1742, %v1983
    %v2000 = vadd.f32 %v1743, %v1984
    %v2001 = vadd.f32 %v1744, %v1985
    %v2002 = vadd.f32 %v1745, %v1986
    %v2003 = vadd.f32 %v1746, %v1987
    %2004 = vset.pattern.permute.xlu0 7
    %2005 = vperm.xlu0 %2004, %v41
    %v2006 = vpop.permute.xlu0 %2005
    %2008 = vset.pattern.permute.xlu0 7
    %2009 = vperm.xlu0 %2008, %v42
    %v2010 = vpop.permute.xlu0 %2009
    %2012 = vset.pattern.permute.xlu0 7
    %2013 = vperm.xlu0 %2012, %v43
    %v2014 = vpop.permute.xlu0 %2013
    %2016 = vset.pattern.permute.xlu0 7
    %2017 = vperm.xlu0 %2016, %v44
    %v2018 = vpop.permute.xlu0 %2017
    %2020 = vset.pattern.permute.xlu0 7
    %2021 = vperm.xlu0 %2020, %v45
    %v2022 = vpop.permute.xlu0 %2021
    %2024 = vset.pattern.permute.xlu0 7
    %2025 = vperm.xlu0 %2024, %v46
    %v2026 = vpop.permute.xlu0 %2025
    %2028 = vset.pattern.permute.xlu0 7
    %2029 = vperm.xlu0 %2028, %v47
    %v2030 = vpop.permute.xlu0 %2029
    %2032 = vset.pattern.permute.xlu0 7
    %2033 = vperm.xlu0 %2032, %v48
    %v2034 = vpop.permute.xlu0 %2033
    %2036 = vset.pattern.permute.xlu0 7
    %2037 = vperm.xlu0 %2036, %v49
    %v2038 = vpop.permute.xlu0 %2037
    %2040 = vset.pattern.permute.xlu0 7
    %2041 = vperm.xlu0 %2040, %v50
    %v2042 = vpop.permute.xlu0 %2041
    %2044 = vset.pattern.permute.xlu0 7
    %2045 = vperm.xlu0 %2044, %v51
    %v2046 = vpop.permute.xlu0 %2045
    %2048 = vset.pattern.permute.xlu0 7
    %2049 = vperm.xlu0 %2048, %v52
    %v2050 = vpop.permute.xlu0 %2049
    %2052 = vset.pattern.permute.xlu0 7
    %2053 = vperm.xlu0 %2052, %v53
    %v2054 = vpop.permute.xlu0 %2053
    %2056 = vset.pattern.permute.xlu0 7
    %2057 = vperm.xlu0 %2056, %v54
    %v2058 = vpop.permute.xlu0 %2057
    %2060 = vset.pattern.permute.xlu0 7
    %2061 = vperm.xlu0 %2060, %v55
    %v2062 = vpop.permute.xlu0 %2061
    %2064 = vset.pattern.permute.xlu0 7
    %2065 = vperm.xlu0 %2064, %v56
    %v2066 = vpop.permute.xlu0 %2065
    %v2068 = vperm.slane %v39, 7
    %v2069 = vadd.f32 %v2006, %v2068
    %v2070 = vadd.f32 %v2010, %v2068
    %v2071 = vadd.f32 %v2014, %v2068
    %v2072 = vadd.f32 %v2018, %v2068
    %v2073 = vadd.f32 %v2022, %v2068
    %v2074 = vadd.f32 %v2026, %v2068
    %v2075 = vadd.f32 %v2030, %v2068
    %v2076 = vadd.f32 %v2034, %v2068
    %v2077 = vadd.f32 %v2038, %v2068
    %v2078 = vadd.f32 %v2042, %v2068
    %v2079 = vadd.f32 %v2046, %v2068
    %v2080 = vadd.f32 %v2050, %v2068
    %v2081 = vadd.f32 %v2054, %v2068
    %v2082 = vadd.f32 %v2058, %v2068
    %v2083 = vadd.f32 %v2062, %v2068
    %v2084 = vadd.f32 %v2066, %v2068
    %v2085 = vrot.slane %v57, 7
    %s2086 = vtos %v2085
    %v2087 = vstv %s2086
    %v2089 = vmul.f32 %v2087, %v75
    %v2090 = vmul.f32 %v2087, %v76
    %v2091 = vmul.f32 %v2087, %v77
    %v2092 = vmul.f32 %v2087, %v78
    %v2093 = vmul.f32 %v2087, %v79
    %v2094 = vmul.f32 %v2087, %v80
    %v2095 = vmul.f32 %v2087, %v81
    %v2096 = vmul.f32 %v2087, %v82
    %v2097 = vmul.f32 %v2087, %v83
    %v2098 = vmul.f32 %v2087, %v84
    %v2099 = vmul.f32 %v2087, %v85
    %v2100 = vmul.f32 %v2087, %v86
    %v2101 = vmul.f32 %v2087, %v87
    %v2102 = vmul.f32 %v2087, %v88
    %v2103 = vmul.f32 %v2087, %v89
    %v2104 = vmul.f32 %v2087, %v90
    %v2105 = vadd.f32 %v2069, %v2089
    %v2106 = vadd.f32 %v2070, %v2090
    %v2107 = vadd.f32 %v2071, %v2091
    %v2108 = vadd.f32 %v2072, %v2092
    %v2109 = vadd.f32 %v2073, %v2093
    %v2110 = vadd.f32 %v2074, %v2094
    %v2111 = vadd.f32 %v2075, %v2095
    %v2112 = vadd.f32 %v2076, %v2096
    %v2113 = vadd.f32 %v2077, %v2097
    %v2114 = vadd.f32 %v2078, %v2098
    %v2115 = vadd.f32 %v2079, %v2099
    %v2116 = vadd.f32 %v2080, %v2100
    %v2117 = vadd.f32 %v2081, %v2101
    %v2118 = vadd.f32 %v2082, %v2102
    %v2119 = vadd.f32 %v2083, %v2103
    %v2120 = vadd.f32 %v2084, %v2104
    %2121 = vrot.lane.b32.xlu0 %v2085, 127
    %v2122 = vpop.permute.xlu0 %2121
    %s2123 = vtos %v2122
    %v2124 = vstv %s2123
    %v2126 = vmul.f32 %v2124, %v108
    %v2127 = vmul.f32 %v2124, %v109
    %v2128 = vmul.f32 %v2124, %v110
    %v2129 = vmul.f32 %v2124, %v111
    %v2130 = vmul.f32 %v2124, %v112
    %v2131 = vmul.f32 %v2124, %v113
    %v2132 = vmul.f32 %v2124, %v114
    %v2133 = vmul.f32 %v2124, %v115
    %v2134 = vmul.f32 %v2124, %v116
    %v2135 = vmul.f32 %v2124, %v117
    %v2136 = vmul.f32 %v2124, %v118
    %v2137 = vmul.f32 %v2124, %v119
    %v2138 = vmul.f32 %v2124, %v120
    %v2139 = vmul.f32 %v2124, %v121
    %v2140 = vmul.f32 %v2124, %v122
    %v2141 = vmul.f32 %v2124, %v123
    %v2142 = vadd.f32 %v2105, %v2126
    %v2143 = vadd.f32 %v2106, %v2127
    %v2144 = vadd.f32 %v2107, %v2128
    %v2145 = vadd.f32 %v2108, %v2129
    %v2146 = vadd.f32 %v2109, %v2130
    %v2147 = vadd.f32 %v2110, %v2131
    %v2148 = vadd.f32 %v2111, %v2132
    %v2149 = vadd.f32 %v2112, %v2133
    %v2150 = vadd.f32 %v2113, %v2134
    %v2151 = vadd.f32 %v2114, %v2135
    %v2152 = vadd.f32 %v2115, %v2136
    %v2153 = vadd.f32 %v2116, %v2137
    %v2154 = vadd.f32 %v2117, %v2138
    %v2155 = vadd.f32 %v2118, %v2139
    %v2156 = vadd.f32 %v2119, %v2140
    %v2157 = vadd.f32 %v2120, %v2141
    %2158 = vrot.lane.b32.xlu0 %v2085, 126
    %v2159 = vpop.permute.xlu0 %2158
    %s2160 = vtos %v2159
    %v2161 = vstv %s2160
    %v2163 = vmul.f32 %v2161, %v141
    %v2164 = vmul.f32 %v2161, %v142
    %v2165 = vmul.f32 %v2161, %v143
    %v2166 = vmul.f32 %v2161, %v144
    %v2167 = vmul.f32 %v2161, %v145
    %v2168 = vmul.f32 %v2161, %v146
    %v2169 = vmul.f32 %v2161, %v147
    %v2170 = vmul.f32 %v2161, %v148
    %v2171 = vmul.f32 %v2161, %v149
    %v2172 = vmul.f32 %v2161, %v150
    %v2173 = vmul.f32 %v2161, %v151
    %v2174 = vmul.f32 %v2161, %v152
    %v2175 = vmul.f32 %v2161, %v153
    %v2176 = vmul.f32 %v2161, %v154
    %v2177 = vmul.f32 %v2161, %v155
    %v2178 = vmul.f32 %v2161, %v156
    %v2179 = vadd.f32 %v2142, %v2163
    %v2180 = vadd.f32 %v2143, %v2164
    %v2181 = vadd.f32 %v2144, %v2165
    %v2182 = vadd.f32 %v2145, %v2166
    %v2183 = vadd.f32 %v2146, %v2167
    %v2184 = vadd.f32 %v2147, %v2168
    %v2185 = vadd.f32 %v2148, %v2169
    %v2186 = vadd.f32 %v2149, %v2170
    %v2187 = vadd.f32 %v2150, %v2171
    %v2188 = vadd.f32 %v2151, %v2172
    %v2189 = vadd.f32 %v2152, %v2173
    %v2190 = vadd.f32 %v2153, %v2174
    %v2191 = vadd.f32 %v2154, %v2175
    %v2192 = vadd.f32 %v2155, %v2176
    %v2193 = vadd.f32 %v2156, %v2177
    %v2194 = vadd.f32 %v2157, %v2178
    %v2195 = vmul.f32 %v2179, 0.2
    %v2196 = vmul.f32 %v2180, 0.2
    %v2197 = vmul.f32 %v2181, 0.2
    %v2198 = vmul.f32 %v2182, 0.2
    %v2199 = vmul.f32 %v2183, 0.2
    %v2200 = vmul.f32 %v2184, 0.2
    %v2201 = vmul.f32 %v2185, 0.2
    %v2202 = vmul.f32 %v2186, 0.2
    %v2203 = vmul.f32 %v2187, 0.2
    %v2204 = vmul.f32 %v2188, 0.2
    %v2205 = vmul.f32 %v2189, 0.2
    %v2206 = vmul.f32 %v2190, 0.2
    %v2207 = vmul.f32 %v2191, 0.2
    %v2208 = vmul.f32 %v2192, 0.2
    %v2209 = vmul.f32 %v2193, 0.2
    %v2210 = vmul.f32 %v2194, 0.2
    %v2211 = vmax.f32 %v2179, %v2195
    %v2212 = vmax.f32 %v2180, %v2196
    %v2213 = vmax.f32 %v2181, %v2197
    %v2214 = vmax.f32 %v2182, %v2198
    %v2215 = vmax.f32 %v2183, %v2199
    %v2216 = vmax.f32 %v2184, %v2200
    %v2217 = vmax.f32 %v2185, %v2201
    %v2218 = vmax.f32 %v2186, %v2202
    %v2219 = vmax.f32 %v2187, %v2203
    %v2220 = vmax.f32 %v2188, %v2204
    %v2221 = vmax.f32 %v2189, %v2205
    %v2222 = vmax.f32 %v2190, %v2206
    %v2223 = vmax.f32 %v2191, %v2207
    %v2224 = vmax.f32 %v2192, %v2208
    %v2225 = vmax.f32 %v2193, %v2209
    %v2226 = vmax.f32 %v2194, %v2210
    %s2227 = sld [smem:[#allocation2 + $0x7]]
    %v2228 = vstv %s2227
    %v2229 = vmul.f32 %v2228, %v2211
    %v2230 = vmul.f32 %v2228, %v2212
    %v2231 = vmul.f32 %v2228, %v2213
    %v2232 = vmul.f32 %v2228, %v2214
    %v2233 = vmul.f32 %v2228, %v2215
    %v2234 = vmul.f32 %v2228, %v2216
    %v2235 = vmul.f32 %v2228, %v2217
    %v2236 = vmul.f32 %v2228, %v2218
    %v2237 = vmul.f32 %v2228, %v2219
    %v2238 = vmul.f32 %v2228, %v2220
    %v2239 = vmul.f32 %v2228, %v2221
    %v2240 = vmul.f32 %v2228, %v2222
    %v2241 = vmul.f32 %v2228, %v2223
    %v2242 = vmul.f32 %v2228, %v2224
    %v2243 = vmul.f32 %v2228, %v2225
    %v2244 = vmul.f32 %v2228, %v2226
    %v2245 = vadd.f32 %v1988, %v2229
    %v2246 = vadd.f32 %v1989, %v2230
    %v2247 = vadd.f32 %v1990, %v2231
    %v2248 = vadd.f32 %v1991, %v2232
    %v2249 = vadd.f32 %v1992, %v2233
    %v2250 = vadd.f32 %v1993, %v2234
    %v2251 = vadd.f32 %v1994, %v2235
    %v2252 = vadd.f32 %v1995, %v2236
    %v2253 = vadd.f32 %v1996, %v2237
    %v2254 = vadd.f32 %v1997, %v2238
    %v2255 = vadd.f32 %v1998, %v2239
    %v2256 = vadd.f32 %v1999, %v2240
    %v2257 = vadd.f32 %v2000, %v2241
    %v2258 = vadd.f32 %v2001, %v2242
    %v2259 = vadd.f32 %v2002, %v2243
    %v2260 = vadd.f32 %v2003, %v2244
    %2261 = vmax.xlane.f32.xlu0 %v2245
    %v2262 = vpop.xlane.xlu0 %2261
    %2263 = vmax.xlane.f32.xlu0 %v2246
    %v2264 = vpop.xlane.xlu0 %2263
    %2265 = vmax.xlane.f32.xlu0 %v2247
    %v2266 = vpop.xlane.xlu0 %2265
    %2267 = vmax.xlane.f32.xlu0 %v2248
    %v2268 = vpop.xlane.xlu0 %2267
    %2269 = vmax.xlane.f32.xlu0 %v2249
    %v2270 = vpop.xlane.xlu0 %2269
    %2271 = vmax.xlane.f32.xlu0 %v2250
    %v2272 = vpop.xlane.xlu0 %2271
    %2273 = vmax.xlane.f32.xlu0 %v2251
    %v2274 = vpop.xlane.xlu0 %2273
    %2275 = vmax.xlane.f32.xlu0 %v2252
    %v2276 = vpop.xlane.xlu0 %2275
    %2277 = vmax.xlane.f32.xlu0 %v2253
    %v2278 = vpop.xlane.xlu0 %2277
    %2279 = vmax.xlane.f32.xlu0 %v2254
    %v2280 = vpop.xlane.xlu0 %2279
    %2281 = vmax.xlane.f32.xlu0 %v2255
    %v2282 = vpop.xlane.xlu0 %2281
    %2283 = vmax.xlane.f32.xlu0 %v2256
    %v2284 = vpop.xlane.xlu0 %2283
    %2285 = vmax.xlane.f32.xlu0 %v2257
    %v2286 = vpop.xlane.xlu0 %2285
    %2287 = vmax.xlane.f32.xlu0 %v2258
    %v2288 = vpop.xlane.xlu0 %2287
    %2289 = vmax.xlane.f32.xlu0 %v2259
    %v2290 = vpop.xlane.xlu0 %2289
    %2291 = vmax.xlane.f32.xlu0 %v2260
    %v2292 = vpop.xlane.xlu0 %2291
    %v2293 = vsub.f32 %v2245, %v2262
    %v2294 = vsub.f32 %v2246, %v2264
    %v2295 = vsub.f32 %v2247, %v2266
    %v2296 = vsub.f32 %v2248, %v2268
    %v2297 = vsub.f32 %v2249, %v2270
    %v2298 = vsub.f32 %v2250, %v2272
    %v2299 = vsub.f32 %v2251, %v2274
    %v2300 = vsub.f32 %v2252, %v2276
    %v2301 = vsub.f32 %v2253, %v2278
    %v2302 = vsub.f32 %v2254, %v2280
    %v2303 = vsub.f32 %v2255, %v2282
    %v2304 = vsub.f32 %v2256, %v2284
    %v2305 = vsub.f32 %v2257, %v2286
    %v2306 = vsub.f32 %v2258, %v2288
    %v2307 = vsub.f32 %v2259, %v2290
    %v2308 = vsub.f32 %v2260, %v2292
    %v2309 = vmul.f32 %v2293, 1.442695
    %v2310 = vpow.pop %v2309
    %v2311 = vmul.f32 %v2294, 1.442695
    %v2312 = vpow.pop %v2311
    %v2313 = vmul.f32 %v2295, 1.442695
    %v2314 = vpow.pop %v2313
    %v2315 = vmul.f32 %v2296, 1.442695
    %v2316 = vpow.pop %v2315
    %v2317 = vmul.f32 %v2297, 1.442695
    %v2318 = vpow.pop %v2317
    %v2319 = vmul.f32 %v2298, 1.442695
    %v2320 = vpow.pop %v2319
    %v2321 = vmul.f32 %v2299, 1.442695
    %v2322 = vpow.pop %v2321
    %v2323 = vmul.f32 %v2300, 1.442695
    %v2324 = vpow.pop %v2323
    %v2325 = vmul.f32 %v2301, 1.442695
    %v2326 = vpow.pop %v2325
    %v2327 = vmul.f32 %v2302, 1.442695
    %v2328 = vpow.pop %v2327
    %v2329 = vmul.f32 %v2303, 1.442695
    %v2330 = vpow.pop %v2329
    %v2331 = vmul.f32 %v2304, 1.442695
    %v2332 = vpow.pop %v2331
    %v2333 = vmul.f32 %v2305, 1.442695
    %v2334 = vpow.pop %v2333
    %v2335 = vmul.f32 %v2306, 1.442695
    %v2336 = vpow.pop %v2335
    %v2337 = vmul.f32 %v2307, 1.442695
    %v2338 = vpow.pop %v2337
    %v2339 = vmul.f32 %v2308, 1.442695
    %v2340 = vpow.pop %v2339
    %2341 = vmatpush.xpose.msra.mxu0 %v2340
    %2342 = vmatpush.xpose.msra.mxu0 %v2338
    %2343 = vmatpush.xpose.msra.mxu0 %v2336
    %2344 = vmatpush.xpose.msra.mxu0 %v2334
    %2345 = vmatpush.xpose.msra.mxu0 %v2332
    %2346 = vmatpush.xpose.msra.mxu0 %v2330
    %2347 = vmatpush.xpose.msra.mxu0 %v2328
    %2348 = vmatpush.xpose.msra.mxu0 %v2326
    %2349 = vmatpush.xpose.msra.mxu0 %v2324
    %2350 = vmatpush.xpose.msra.mxu0 %v2322
    %2351 = vmatpush.xpose.msra.mxu0 %v2320
    %2352 = vmatpush.xpose.msra.mxu0 %v2318
    %2353 = vmatpush.xpose.msra.mxu0 %v2316
    %2354 = vmatpush.xpose.msra.mxu0 %v2314
    %2355 = vmatpush.xpose.msra.mxu0 %v2312
    %2356 = vmatpush.xpose.msra.mxu0 %v2310
    %2357 = vmatmul.f32.gmra.mxu0 %v39
    %v2358 = vpop.f32.mrf.mxu0
    %v2359 = vadd.f32 0.0, %v2358
    %2360 = vdwg.mxu0
    %2361 = vmatpush.xpose.msra.mxu0 %v2340
    %2362 = vmatpush.xpose.msra.mxu0 %v2338
    %2363 = vmatpush.xpose.msra.mxu0 %v2336
    %2364 = vmatpush.xpose.msra.mxu0 %v2334
    %2365 = vmatpush.xpose.msra.mxu0 %v2332
    %2366 = vmatpush.xpose.msra.mxu0 %v2330
    %2367 = vmatpush.xpose.msra.mxu0 %v2328
    %2368 = vmatpush.xpose.msra.mxu0 %v2326
    %2369 = vmatpush.xpose.msra.mxu0 %v2324
    %2370 = vmatpush.xpose.msra.mxu0 %v2322
    %2371 = vmatpush.xpose.msra.mxu0 %v2320
    %2372 = vmatpush.xpose.msra.mxu0 %v2318
    %2373 = vmatpush.xpose.msra.mxu0 %v2316
    %2374 = vmatpush.xpose.msra.mxu0 %v2314
    %2375 = vmatpush.xpose.msra.mxu0 %v2312
    %2376 = vmatpush.xpose.msra.mxu0 %v2310
    %2377 = vmatmul.f32.gmra.mxu0 1.0
    %v2378 = vpop.f32.mrf.mxu0
    %v2379 = vadd.f32 0.0, %v2378
    %2380 = vdwg.mxu0
    %v2381 = vrcp.pop %v2379
    %v2382 = vperm.slane %v2381, 0
    %v2383 = vmul.f32 %v2359, %v2382
    %2384 = vset.pattern.permute.xlu0 8
    %2385 = vperm.xlu0 %2384, %v41
    %v2386 = vpop.permute.xlu0 %2385
    %2388 = vset.pattern.permute.xlu0 8
    %2389 = vperm.xlu0 %2388, %v42
    %v2390 = vpop.permute.xlu0 %2389
    %2392 = vset.pattern.permute.xlu0 8
    %2393 = vperm.xlu0 %2392, %v43
    %v2394 = vpop.permute.xlu0 %2393
    %2396 = vset.pattern.permute.xlu0 8
    %2397 = vperm.xlu0 %2396, %v44
    %v2398 = vpop.permute.xlu0 %2397
    %2400 = vset.pattern.permute.xlu0 8
    %2401 = vperm.xlu0 %2400, %v45
    %v2402 = vpop.permute.xlu0 %2401
    %2404 = vset.pattern.permute.xlu0 8
    %2405 = vperm.xlu0 %2404, %v46
    %v2406 = vpop.permute.xlu0 %2405
    %2408 = vset.pattern.permute.xlu0 8
    %2409 = vperm.xlu0 %2408, %v47
    %v2410 = vpop.permute.xlu0 %2409
    %2412 = vset.pattern.permute.xlu0 8
    %2413 = vperm.xlu0 %2412, %v48
    %v2414 = vpop.permute.xlu0 %2413
    %2416 = vset.pattern.permute.xlu0 8
    %2417 = vperm.xlu0 %2416, %v49
    %v2418 = vpop.permute.xlu0 %2417
    %2420 = vset.pattern.permute.xlu0 8
    %2421 = vperm.xlu0 %2420, %v50
    %v2422 = vpop.permute.xlu0 %2421
    %2424 = vset.pattern.permute.xlu0 8
    %2425 = vperm.xlu0 %2424, %v51
    %v2426 = vpop.permute.xlu0 %2425
    %2428 = vset.pattern.permute.xlu0 8
    %2429 = vperm.xlu0 %2428, %v52
    %v2430 = vpop.permute.xlu0 %2429
    %2432 = vset.pattern.permute.xlu0 8
    %2433 = vperm.xlu0 %2432, %v53
    %v2434 = vpop.permute.xlu0 %2433
    %2436 = vset.pattern.permute.xlu0 8
    %2437 = vperm.xlu0 %2436, %v54
    %v2438 = vpop.permute.xlu0 %2437
    %2440 = vset.pattern.permute.xlu0 8
    %2441 = vperm.xlu0 %2440, %v55
    %v2442 = vpop.permute.xlu0 %2441
    %2444 = vset.pattern.permute.xlu0 8
    %2445 = vperm.xlu0 %2444, %v56
    %v2446 = vpop.permute.xlu0 %2445
    %v2448 = vperm.slane %v40, 0
    %v2449 = vadd.f32 %v2386, %v2448
    %v2450 = vadd.f32 %v2390, %v2448
    %v2451 = vadd.f32 %v2394, %v2448
    %v2452 = vadd.f32 %v2398, %v2448
    %v2453 = vadd.f32 %v2402, %v2448
    %v2454 = vadd.f32 %v2406, %v2448
    %v2455 = vadd.f32 %v2410, %v2448
    %v2456 = vadd.f32 %v2414, %v2448
    %v2457 = vadd.f32 %v2418, %v2448
    %v2458 = vadd.f32 %v2422, %v2448
    %v2459 = vadd.f32 %v2426, %v2448
    %v2460 = vadd.f32 %v2430, %v2448
    %v2461 = vadd.f32 %v2434, %v2448
    %v2462 = vadd.f32 %v2438, %v2448
    %v2463 = vadd.f32 %v2442, %v2448
    %v2464 = vadd.f32 %v2446, %v2448
    %s2466 = vtos %v58
    %v2467 = vstv %s2466
    %v2469 = vmul.f32 %v2467, %v75
    %v2470 = vmul.f32 %v2467, %v76
    %v2471 = vmul.f32 %v2467, %v77
    %v2472 = vmul.f32 %v2467, %v78
    %v2473 = vmul.f32 %v2467, %v79
    %v2474 = vmul.f32 %v2467, %v80
    %v2475 = vmul.f32 %v2467, %v81
    %v2476 = vmul.f32 %v2467, %v82
    %v2477 = vmul.f32 %v2467, %v83
    %v2478 = vmul.f32 %v2467, %v84
    %v2479 = vmul.f32 %v2467, %v85
    %v2480 = vmul.f32 %v2467, %v86
    %v2481 = vmul.f32 %v2467, %v87
    %v2482 = vmul.f32 %v2467, %v88
    %v2483 = vmul.f32 %v2467, %v89
    %v2484 = vmul.f32 %v2467, %v90
    %v2485 = vadd.f32 %v2449, %v2469
    %v2486 = vadd.f32 %v2450, %v2470
    %v2487 = vadd.f32 %v2451, %v2471
    %v2488 = vadd.f32 %v2452, %v2472
    %v2489 = vadd.f32 %v2453, %v2473
    %v2490 = vadd.f32 %v2454, %v2474
    %v2491 = vadd.f32 %v2455, %v2475
    %v2492 = vadd.f32 %v2456, %v2476
    %v2493 = vadd.f32 %v2457, %v2477
    %v2494 = vadd.f32 %v2458, %v2478
    %v2495 = vadd.f32 %v2459, %v2479
    %v2496 = vadd.f32 %v2460, %v2480
    %v2497 = vadd.f32 %v2461, %v2481
    %v2498 = vadd.f32 %v2462, %v2482
    %v2499 = vadd.f32 %v2463, %v2483
    %v2500 = vadd.f32 %v2464, %v2484
    %2501 = vrot.lane.b32.xlu0 %v58, 127
    %v2502 = vpop.permute.xlu0 %2501
    %s2503 = vtos %v2502
    %v2504 = vstv %s2503
    %v2506 = vmul.f32 %v2504, %v108
    %v2507 = vmul.f32 %v2504, %v109
    %v2508 = vmul.f32 %v2504, %v110
    %v2509 = vmul.f32 %v2504, %v111
    %v2510 = vmul.f32 %v2504, %v112
    %v2511 = vmul.f32 %v2504, %v113
    %v2512 = vmul.f32 %v2504, %v114
    %v2513 = vmul.f32 %v2504, %v115
    %v2514 = vmul.f32 %v2504, %v116
    %v2515 = vmul.f32 %v2504, %v117
    %v2516 = vmul.f32 %v2504, %v118
    %v2517 = vmul.f32 %v2504, %v119
    %v2518 = vmul.f32 %v2504, %v120
    %v2519 = vmul.f32 %v2504, %v121
    %v2520 = vmul.f32 %v2504, %v122
    %v2521 = vmul.f32 %v2504, %v123
    %v2522 = vadd.f32 %v2485, %v2506
    %v2523 = vadd.f32 %v2486, %v2507
    %v2524 = vadd.f32 %v2487, %v2508
    %v2525 = vadd.f32 %v2488, %v2509
    %v2526 = vadd.f32 %v2489, %v2510
    %v2527 = vadd.f32 %v2490, %v2511
    %v2528 = vadd.f32 %v2491, %v2512
    %v2529 = vadd.f32 %v2492, %v2513
    %v2530 = vadd.f32 %v2493, %v2514
    %v2531 = vadd.f32 %v2494, %v2515
    %v2532 = vadd.f32 %v2495, %v2516
    %v2533 = vadd.f32 %v2496, %v2517
    %v2534 = vadd.f32 %v2497, %v2518
    %v2535 = vadd.f32 %v2498, %v2519
    %v2536 = vadd.f32 %v2499, %v2520
    %v2537 = vadd.f32 %v2500, %v2521
    %2538 = vrot.lane.b32.xlu0 %v58, 126
    %v2539 = vpop.permute.xlu0 %2538
    %s2540 = vtos %v2539
    %v2541 = vstv %s2540
    %v2543 = vmul.f32 %v2541, %v141
    %v2544 = vmul.f32 %v2541, %v142
    %v2545 = vmul.f32 %v2541, %v143
    %v2546 = vmul.f32 %v2541, %v144
    %v2547 = vmul.f32 %v2541, %v145
    %v2548 = vmul.f32 %v2541, %v146
    %v2549 = vmul.f32 %v2541, %v147
    %v2550 = vmul.f32 %v2541, %v148
    %v2551 = vmul.f32 %v2541, %v149
    %v2552 = vmul.f32 %v2541, %v150
    %v2553 = vmul.f32 %v2541, %v151
    %v2554 = vmul.f32 %v2541, %v152
    %v2555 = vmul.f32 %v2541, %v153
    %v2556 = vmul.f32 %v2541, %v154
    %v2557 = vmul.f32 %v2541, %v155
    %v2558 = vmul.f32 %v2541, %v156
    %v2559 = vadd.f32 %v2522, %v2543
    %v2560 = vadd.f32 %v2523, %v2544
    %v2561 = vadd.f32 %v2524, %v2545
    %v2562 = vadd.f32 %v2525, %v2546
    %v2563 = vadd.f32 %v2526, %v2547
    %v2564 = vadd.f32 %v2527, %v2548
    %v2565 = vadd.f32 %v2528, %v2549
    %v2566 = vadd.f32 %v2529, %v2550
    %v2567 = vadd.f32 %v2530, %v2551
    %v2568 = vadd.f32 %v2531, %v2552
    %v2569 = vadd.f32 %v2532, %v2553
    %v2570 = vadd.f32 %v2533, %v2554
    %v2571 = vadd.f32 %v2534, %v2555
    %v2572 = vadd.f32 %v2535, %v2556
    %v2573 = vadd.f32 %v2536, %v2557
    %v2574 = vadd.f32 %v2537, %v2558
    %v2575 = vmul.f32 %v2559, 0.2
    %v2576 = vmul.f32 %v2560, 0.2
    %v2577 = vmul.f32 %v2561, 0.2
    %v2578 = vmul.f32 %v2562, 0.2
    %v2579 = vmul.f32 %v2563, 0.2
    %v2580 = vmul.f32 %v2564, 0.2
    %v2581 = vmul.f32 %v2565, 0.2
    %v2582 = vmul.f32 %v2566, 0.2
    %v2583 = vmul.f32 %v2567, 0.2
    %v2584 = vmul.f32 %v2568, 0.2
    %v2585 = vmul.f32 %v2569, 0.2
    %v2586 = vmul.f32 %v2570, 0.2
    %v2587 = vmul.f32 %v2571, 0.2
    %v2588 = vmul.f32 %v2572, 0.2
    %v2589 = vmul.f32 %v2573, 0.2
    %v2590 = vmul.f32 %v2574, 0.2
    %v2591 = vmax.f32 %v2559, %v2575
    %v2592 = vmax.f32 %v2560, %v2576
    %v2593 = vmax.f32 %v2561, %v2577
    %v2594 = vmax.f32 %v2562, %v2578
    %v2595 = vmax.f32 %v2563, %v2579
    %v2596 = vmax.f32 %v2564, %v2580
    %v2597 = vmax.f32 %v2565, %v2581
    %v2598 = vmax.f32 %v2566, %v2582
    %v2599 = vmax.f32 %v2567, %v2583
    %v2600 = vmax.f32 %v2568, %v2584
    %v2601 = vmax.f32 %v2569, %v2585
    %v2602 = vmax.f32 %v2570, %v2586
    %v2603 = vmax.f32 %v2571, %v2587
    %v2604 = vmax.f32 %v2572, %v2588
    %v2605 = vmax.f32 %v2573, %v2589
    %v2606 = vmax.f32 %v2574, %v2590
    %s2607 = sld [smem:[#allocation2 + $0x80]]
    %v2608 = vstv %s2607
    %v2609 = vmul.f32 %v2608, %v2591
    %v2610 = vmul.f32 %v2608, %v2592
    %v2611 = vmul.f32 %v2608, %v2593
    %v2612 = vmul.f32 %v2608, %v2594
    %v2613 = vmul.f32 %v2608, %v2595
    %v2614 = vmul.f32 %v2608, %v2596
    %v2615 = vmul.f32 %v2608, %v2597
    %v2616 = vmul.f32 %v2608, %v2598
    %v2617 = vmul.f32 %v2608, %v2599
    %v2618 = vmul.f32 %v2608, %v2600
    %v2619 = vmul.f32 %v2608, %v2601
    %v2620 = vmul.f32 %v2608, %v2602
    %v2621 = vmul.f32 %v2608, %v2603
    %v2622 = vmul.f32 %v2608, %v2604
    %v2623 = vmul.f32 %v2608, %v2605
    %v2624 = vmul.f32 %v2608, %v2606
    %v2625 = vadd.f32 %v173, %v2609
    %v2626 = vadd.f32 %v174, %v2610
    %v2627 = vadd.f32 %v175, %v2611
    %v2628 = vadd.f32 %v176, %v2612
    %v2629 = vadd.f32 %v177, %v2613
    %v2630 = vadd.f32 %v178, %v2614
    %v2631 = vadd.f32 %v179, %v2615
    %v2632 = vadd.f32 %v180, %v2616
    %v2633 = vadd.f32 %v181, %v2617
    %v2634 = vadd.f32 %v182, %v2618
    %v2635 = vadd.f32 %v183, %v2619
    %v2636 = vadd.f32 %v184, %v2620
    %v2637 = vadd.f32 %v185, %v2621
    %v2638 = vadd.f32 %v186, %v2622
    %v2639 = vadd.f32 %v187, %v2623
    %v2640 = vadd.f32 %v188, %v2624
    %2641 = vset.pattern.permute.xlu0 9
    %2642 = vperm.xlu0 %2641, %v41
    %v2643 = vpop.permute.xlu0 %2642
    %2645 = vset.pattern.permute.xlu0 9
    %2646 = vperm.xlu0 %2645, %v42
    %v2647 = vpop.permute.xlu0 %2646
    %2649 = vset.pattern.permute.xlu0 9
    %2650 = vperm.xlu0 %2649, %v43
    %v2651 = vpop.permute.xlu0 %2650
    %2653 = vset.pattern.permute.xlu0 9
    %2654 = vperm.xlu0 %2653, %v44
    %v2655 = vpop.permute.xlu0 %2654
    %2657 = vset.pattern.permute.xlu0 9
    %2658 = vperm.xlu0 %2657, %v45
    %v2659 = vpop.permute.xlu0 %2658
    %2661 = vset.pattern.permute.xlu0 9
    %2662 = vperm.xlu0 %2661, %v46
    %v2663 = vpop.permute.xlu0 %2662
    %2665 = vset.pattern.permute.xlu0 9
    %2666 = vperm.xlu0 %2665, %v47
    %v2667 = vpop.permute.xlu0 %2666
    %2669 = vset.pattern.permute.xlu0 9
    %2670 = vperm.xlu0 %2669, %v48
    %v2671 = vpop.permute.xlu0 %2670
    %2673 = vset.pattern.permute.xlu0 9
    %2674 = vperm.xlu0 %2673, %v49
    %v2675 = vpop.permute.xlu0 %2674
    %2677 = vset.pattern.permute.xlu0 9
    %2678 = vperm.xlu0 %2677, %v50
    %v2679 = vpop.permute.xlu0 %2678
    %2681 = vset.pattern.permute.xlu0 9
    %2682 = vperm.xlu0 %2681, %v51
    %v2683 = vpop.permute.xlu0 %2682
    %2685 = vset.pattern.permute.xlu0 9
    %2686 = vperm.xlu0 %2685, %v52
    %v2687 = vpop.permute.xlu0 %2686
    %2689 = vset.pattern.permute.xlu0 9
    %2690 = vperm.xlu0 %2689, %v53
    %v2691 = vpop.permute.xlu0 %2690
    %2693 = vset.pattern.permute.xlu0 9
    %2694 = vperm.xlu0 %2693, %v54
    %v2695 = vpop.permute.xlu0 %2694
    %2697 = vset.pattern.permute.xlu0 9
    %2698 = vperm.xlu0 %2697, %v55
    %v2699 = vpop.permute.xlu0 %2698
    %2701 = vset.pattern.permute.xlu0 9
    %2702 = vperm.xlu0 %2701, %v56
    %v2703 = vpop.permute.xlu0 %2702
    %v2705 = vperm.slane %v40, 1
    %v2706 = vadd.f32 %v2643, %v2705
    %v2707 = vadd.f32 %v2647, %v2705
    %v2708 = vadd.f32 %v2651, %v2705
    %v2709 = vadd.f32 %v2655, %v2705
    %v2710 = vadd.f32 %v2659, %v2705
    %v2711 = vadd.f32 %v2663, %v2705
    %v2712 = vadd.f32 %v2667, %v2705
    %v2713 = vadd.f32 %v2671, %v2705
    %v2714 = vadd.f32 %v2675, %v2705
    %v2715 = vadd.f32 %v2679, %v2705
    %v2716 = vadd.f32 %v2683, %v2705
    %v2717 = vadd.f32 %v2687, %v2705
    %v2718 = vadd.f32 %v2691, %v2705
    %v2719 = vadd.f32 %v2695, %v2705
    %v2720 = vadd.f32 %v2699, %v2705
    %v2721 = vadd.f32 %v2703, %v2705
    %v2722 = vrot.slane %v58, 1
    %s2723 = vtos %v2722
    %v2724 = vstv %s2723
    %v2726 = vmul.f32 %v2724, %v75
    %v2727 = vmul.f32 %v2724, %v76
    %v2728 = vmul.f32 %v2724, %v77
    %v2729 = vmul.f32 %v2724, %v78
    %v2730 = vmul.f32 %v2724, %v79
    %v2731 = vmul.f32 %v2724, %v80
    %v2732 = vmul.f32 %v2724, %v81
    %v2733 = vmul.f32 %v2724, %v82
    %v2734 = vmul.f32 %v2724, %v83
    %v2735 = vmul.f32 %v2724, %v84
    %v2736 = vmul.f32 %v2724, %v85
    %v2737 = vmul.f32 %v2724, %v86
    %v2738 = vmul.f32 %v2724, %v87
    %v2739 = vmul.f32 %v2724, %v88
    %v2740 = vmul.f32 %v2724, %v89
    %v2741 = vmul.f32 %v2724, %v90
    %v2742 = vadd.f32 %v2706, %v2726
    %v2743 = vadd.f32 %v2707, %v2727
    %v2744 = vadd.f32 %v2708, %v2728
    %v2745 = vadd.f32 %v2709, %v2729
    %v2746 = vadd.f32 %v2710, %v2730
    %v2747 = vadd.f32 %v2711, %v2731
    %v2748 = vadd.f32 %v2712, %v2732
    %v2749 = vadd.f32 %v2713, %v2733
    %v2750 = vadd.f32 %v2714, %v2734
    %v2751 = vadd.f32 %v2715, %v2735
    %v2752 = vadd.f32 %v2716, %v2736
    %v2753 = vadd.f32 %v2717, %v2737
    %v2754 = vadd.f32 %v2718, %v2738
    %v2755 = vadd.f32 %v2719, %v2739
    %v2756 = vadd.f32 %v2720, %v2740
    %v2757 = vadd.f32 %v2721, %v2741
    %2758 = vrot.lane.b32.xlu0 %v2722, 127
    %v2759 = vpop.permute.xlu0 %2758
    %s2760 = vtos %v2759
    %v2761 = vstv %s2760
    %v2763 = vmul.f32 %v2761, %v108
    %v2764 = vmul.f32 %v2761, %v109
    %v2765 = vmul.f32 %v2761, %v110
    %v2766 = vmul.f32 %v2761, %v111
    %v2767 = vmul.f32 %v2761, %v112
    %v2768 = vmul.f32 %v2761, %v113
    %v2769 = vmul.f32 %v2761, %v114
    %v2770 = vmul.f32 %v2761, %v115
    %v2771 = vmul.f32 %v2761, %v116
    %v2772 = vmul.f32 %v2761, %v117
    %v2773 = vmul.f32 %v2761, %v118
    %v2774 = vmul.f32 %v2761, %v119
    %v2775 = vmul.f32 %v2761, %v120
    %v2776 = vmul.f32 %v2761, %v121
    %v2777 = vmul.f32 %v2761, %v122
    %v2778 = vmul.f32 %v2761, %v123
    %v2779 = vadd.f32 %v2742, %v2763
    %v2780 = vadd.f32 %v2743, %v2764
    %v2781 = vadd.f32 %v2744, %v2765
    %v2782 = vadd.f32 %v2745, %v2766
    %v2783 = vadd.f32 %v2746, %v2767
    %v2784 = vadd.f32 %v2747, %v2768
    %v2785 = vadd.f32 %v2748, %v2769
    %v2786 = vadd.f32 %v2749, %v2770
    %v2787 = vadd.f32 %v2750, %v2771
    %v2788 = vadd.f32 %v2751, %v2772
    %v2789 = vadd.f32 %v2752, %v2773
    %v2790 = vadd.f32 %v2753, %v2774
    %v2791 = vadd.f32 %v2754, %v2775
    %v2792 = vadd.f32 %v2755, %v2776
    %v2793 = vadd.f32 %v2756, %v2777
    %v2794 = vadd.f32 %v2757, %v2778
    %2795 = vrot.lane.b32.xlu0 %v2722, 126
    %v2796 = vpop.permute.xlu0 %2795
    %s2797 = vtos %v2796
    %v2798 = vstv %s2797
    %v2800 = vmul.f32 %v2798, %v141
    %v2801 = vmul.f32 %v2798, %v142
    %v2802 = vmul.f32 %v2798, %v143
    %v2803 = vmul.f32 %v2798, %v144
    %v2804 = vmul.f32 %v2798, %v145
    %v2805 = vmul.f32 %v2798, %v146
    %v2806 = vmul.f32 %v2798, %v147
    %v2807 = vmul.f32 %v2798, %v148
    %v2808 = vmul.f32 %v2798, %v149
    %v2809 = vmul.f32 %v2798, %v150
    %v2810 = vmul.f32 %v2798, %v151
    %v2811 = vmul.f32 %v2798, %v152
    %v2812 = vmul.f32 %v2798, %v153
    %v2813 = vmul.f32 %v2798, %v154
    %v2814 = vmul.f32 %v2798, %v155
    %v2815 = vmul.f32 %v2798, %v156
    %v2816 = vadd.f32 %v2779, %v2800
    %v2817 = vadd.f32 %v2780, %v2801
    %v2818 = vadd.f32 %v2781, %v2802
    %v2819 = vadd.f32 %v2782, %v2803
    %v2820 = vadd.f32 %v2783, %v2804
    %v2821 = vadd.f32 %v2784, %v2805
    %v2822 = vadd.f32 %v2785, %v2806
    %v2823 = vadd.f32 %v2786, %v2807
    %v2824 = vadd.f32 %v2787, %v2808
    %v2825 = vadd.f32 %v2788, %v2809
    %v2826 = vadd.f32 %v2789, %v2810
    %v2827 = vadd.f32 %v2790, %v2811
    %v2828 = vadd.f32 %v2791, %v2812
    %v2829 = vadd.f32 %v2792, %v2813
    %v2830 = vadd.f32 %v2793, %v2814
    %v2831 = vadd.f32 %v2794, %v2815
    %v2832 = vmul.f32 %v2816, 0.2
    %v2833 = vmul.f32 %v2817, 0.2
    %v2834 = vmul.f32 %v2818, 0.2
    %v2835 = vmul.f32 %v2819, 0.2
    %v2836 = vmul.f32 %v2820, 0.2
    %v2837 = vmul.f32 %v2821, 0.2
    %v2838 = vmul.f32 %v2822, 0.2
    %v2839 = vmul.f32 %v2823, 0.2
    %v2840 = vmul.f32 %v2824, 0.2
    %v2841 = vmul.f32 %v2825, 0.2
    %v2842 = vmul.f32 %v2826, 0.2
    %v2843 = vmul.f32 %v2827, 0.2
    %v2844 = vmul.f32 %v2828, 0.2
    %v2845 = vmul.f32 %v2829, 0.2
    %v2846 = vmul.f32 %v2830, 0.2
    %v2847 = vmul.f32 %v2831, 0.2
    %v2848 = vmax.f32 %v2816, %v2832
    %v2849 = vmax.f32 %v2817, %v2833
    %v2850 = vmax.f32 %v2818, %v2834
    %v2851 = vmax.f32 %v2819, %v2835
    %v2852 = vmax.f32 %v2820, %v2836
    %v2853 = vmax.f32 %v2821, %v2837
    %v2854 = vmax.f32 %v2822, %v2838
    %v2855 = vmax.f32 %v2823, %v2839
    %v2856 = vmax.f32 %v2824, %v2840
    %v2857 = vmax.f32 %v2825, %v2841
    %v2858 = vmax.f32 %v2826, %v2842
    %v2859 = vmax.f32 %v2827, %v2843
    %v2860 = vmax.f32 %v2828, %v2844
    %v2861 = vmax.f32 %v2829, %v2845
    %v2862 = vmax.f32 %v2830, %v2846
    %v2863 = vmax.f32 %v2831, %v2847
    %s2864 = sld [smem:[#allocation2 + $0x81]]
    %v2865 = vstv %s2864
    %v2866 = vmul.f32 %v2865, %v2848
    %v2867 = vmul.f32 %v2865, %v2849
    %v2868 = vmul.f32 %v2865, %v2850
    %v2869 = vmul.f32 %v2865, %v2851
    %v2870 = vmul.f32 %v2865, %v2852
    %v2871 = vmul.f32 %v2865, %v2853
    %v2872 = vmul.f32 %v2865, %v2854
    %v2873 = vmul.f32 %v2865, %v2855
    %v2874 = vmul.f32 %v2865, %v2856
    %v2875 = vmul.f32 %v2865, %v2857
    %v2876 = vmul.f32 %v2865, %v2858
    %v2877 = vmul.f32 %v2865, %v2859
    %v2878 = vmul.f32 %v2865, %v2860
    %v2879 = vmul.f32 %v2865, %v2861
    %v2880 = vmul.f32 %v2865, %v2862
    %v2881 = vmul.f32 %v2865, %v2863
    %v2882 = vadd.f32 %v2625, %v2866
    %v2883 = vadd.f32 %v2626, %v2867
    %v2884 = vadd.f32 %v2627, %v2868
    %v2885 = vadd.f32 %v2628, %v2869
    %v2886 = vadd.f32 %v2629, %v2870
    %v2887 = vadd.f32 %v2630, %v2871
    %v2888 = vadd.f32 %v2631, %v2872
    %v2889 = vadd.f32 %v2632, %v2873
    %v2890 = vadd.f32 %v2633, %v2874
    %v2891 = vadd.f32 %v2634, %v2875
    %v2892 = vadd.f32 %v2635, %v2876
    %v2893 = vadd.f32 %v2636, %v2877
    %v2894 = vadd.f32 %v2637, %v2878
    %v2895 = vadd.f32 %v2638, %v2879
    %v2896 = vadd.f32 %v2639, %v2880
    %v2897 = vadd.f32 %v2640, %v2881
    %2898 = vset.pattern.permute.xlu0 10
    %2899 = vperm.xlu0 %2898, %v41
    %v2900 = vpop.permute.xlu0 %2899
    %2902 = vset.pattern.permute.xlu0 10
    %2903 = vperm.xlu0 %2902, %v42
    %v2904 = vpop.permute.xlu0 %2903
    %2906 = vset.pattern.permute.xlu0 10
    %2907 = vperm.xlu0 %2906, %v43
    %v2908 = vpop.permute.xlu0 %2907
    %2910 = vset.pattern.permute.xlu0 10
    %2911 = vperm.xlu0 %2910, %v44
    %v2912 = vpop.permute.xlu0 %2911
    %2914 = vset.pattern.permute.xlu0 10
    %2915 = vperm.xlu0 %2914, %v45
    %v2916 = vpop.permute.xlu0 %2915
    %2918 = vset.pattern.permute.xlu0 10
    %2919 = vperm.xlu0 %2918, %v46
    %v2920 = vpop.permute.xlu0 %2919
    %2922 = vset.pattern.permute.xlu0 10
    %2923 = vperm.xlu0 %2922, %v47
    %v2924 = vpop.permute.xlu0 %2923
    %2926 = vset.pattern.permute.xlu0 10
    %2927 = vperm.xlu0 %2926, %v48
    %v2928 = vpop.permute.xlu0 %2927
    %2930 = vset.pattern.permute.xlu0 10
    %2931 = vperm.xlu0 %2930, %v49
    %v2932 = vpop.permute.xlu0 %2931
    %2934 = vset.pattern.permute.xlu0 10
    %2935 = vperm.xlu0 %2934, %v50
    %v2936 = vpop.permute.xlu0 %2935
    %2938 = vset.pattern.permute.xlu0 10
    %2939 = vperm.xlu0 %2938, %v51
    %v2940 = vpop.permute.xlu0 %2939
    %2942 = vset.pattern.permute.xlu0 10
    %2943 = vperm.xlu0 %2942, %v52
    %v2944 = vpop.permute.xlu0 %2943
    %2946 = vset.pattern.permute.xlu0 10
    %2947 = vperm.xlu0 %2946, %v53
    %v2948 = vpop.permute.xlu0 %2947
    %2950 = vset.pattern.permute.xlu0 10
    %2951 = vperm.xlu0 %2950, %v54
    %v2952 = vpop.permute.xlu0 %2951
    %2954 = vset.pattern.permute.xlu0 10
    %2955 = vperm.xlu0 %2954, %v55
    %v2956 = vpop.permute.xlu0 %2955
    %2958 = vset.pattern.permute.xlu0 10
    %2959 = vperm.xlu0 %2958, %v56
    %v2960 = vpop.permute.xlu0 %2959
    %v2962 = vperm.slane %v40, 2
    %v2963 = vadd.f32 %v2900, %v2962
    %v2964 = vadd.f32 %v2904, %v2962
    %v2965 = vadd.f32 %v2908, %v2962
    %v2966 = vadd.f32 %v2912, %v2962
    %v2967 = vadd.f32 %v2916, %v2962
    %v2968 = vadd.f32 %v2920, %v2962
    %v2969 = vadd.f32 %v2924, %v2962
    %v2970 = vadd.f32 %v2928, %v2962
    %v2971 = vadd.f32 %v2932, %v2962
    %v2972 = vadd.f32 %v2936, %v2962
    %v2973 = vadd.f32 %v2940, %v2962
    %v2974 = vadd.f32 %v2944, %v2962
    %v2975 = vadd.f32 %v2948, %v2962
    %v2976 = vadd.f32 %v2952, %v2962
    %v2977 = vadd.f32 %v2956, %v2962
    %v2978 = vadd.f32 %v2960, %v2962
    %v2979 = vrot.slane %v58, 2
    %s2980 = vtos %v2979
    %v2981 = vstv %s2980
    %v2983 = vmul.f32 %v2981, %v75
    %v2984 = vmul.f32 %v2981, %v76
    %v2985 = vmul.f32 %v2981, %v77
    %v2986 = vmul.f32 %v2981, %v78
    %v2987 = vmul.f32 %v2981, %v79
    %v2988 = vmul.f32 %v2981, %v80
    %v2989 = vmul.f32 %v2981, %v81
    %v2990 = vmul.f32 %v2981, %v82
    %v2991 = vmul.f32 %v2981, %v83
    %v2992 = vmul.f32 %v2981, %v84
    %v2993 = vmul.f32 %v2981, %v85
    %v2994 = vmul.f32 %v2981, %v86
    %v2995 = vmul.f32 %v2981, %v87
    %v2996 = vmul.f32 %v2981, %v88
    %v2997 = vmul.f32 %v2981, %v89
    %v2998 = vmul.f32 %v2981, %v90
    %v2999 = vadd.f32 %v2963, %v2983
    %v3000 = vadd.f32 %v2964, %v2984
    %v3001 = vadd.f32 %v2965, %v2985
    %v3002 = vadd.f32 %v2966, %v2986
    %v3003 = vadd.f32 %v2967, %v2987
    %v3004 = vadd.f32 %v2968, %v2988
    %v3005 = vadd.f32 %v2969, %v2989
    %v3006 = vadd.f32 %v2970, %v2990
    %v3007 = vadd.f32 %v2971, %v2991
    %v3008 = vadd.f32 %v2972, %v2992
    %v3009 = vadd.f32 %v2973, %v2993
    %v3010 = vadd.f32 %v2974, %v2994
    %v3011 = vadd.f32 %v2975, %v2995
    %v3012 = vadd.f32 %v2976, %v2996
    %v3013 = vadd.f32 %v2977, %v2997
    %v3014 = vadd.f32 %v2978, %v2998
    %3015 = vrot.lane.b32.xlu0 %v2979, 127
    %v3016 = vpop.permute.xlu0 %3015
    %s3017 = vtos %v3016
    %v3018 = vstv %s3017
    %v3020 = vmul.f32 %v3018, %v108
    %v3021 = vmul.f32 %v3018, %v109
    %v3022 = vmul.f32 %v3018, %v110
    %v3023 = vmul.f32 %v3018, %v111
    %v3024 = vmul.f32 %v3018, %v112
    %v3025 = vmul.f32 %v3018, %v113
    %v3026 = vmul.f32 %v3018, %v114
    %v3027 = vmul.f32 %v3018, %v115
    %v3028 = vmul.f32 %v3018, %v116
    %v3029 = vmul.f32 %v3018, %v117
    %v3030 = vmul.f32 %v3018, %v118
    %v3031 = vmul.f32 %v3018, %v119
    %v3032 = vmul.f32 %v3018, %v120
    %v3033 = vmul.f32 %v3018, %v121
    %v3034 = vmul.f32 %v3018, %v122
    %v3035 = vmul.f32 %v3018, %v123
    %v3036 = vadd.f32 %v2999, %v3020
    %v3037 = vadd.f32 %v3000, %v3021
    %v3038 = vadd.f32 %v3001, %v3022
    %v3039 = vadd.f32 %v3002, %v3023
    %v3040 = vadd.f32 %v3003, %v3024
    %v3041 = vadd.f32 %v3004, %v3025
    %v3042 = vadd.f32 %v3005, %v3026
    %v3043 = vadd.f32 %v3006, %v3027
    %v3044 = vadd.f32 %v3007, %v3028
    %v3045 = vadd.f32 %v3008, %v3029
    %v3046 = vadd.f32 %v3009, %v3030
    %v3047 = vadd.f32 %v3010, %v3031
    %v3048 = vadd.f32 %v3011, %v3032
    %v3049 = vadd.f32 %v3012, %v3033
    %v3050 = vadd.f32 %v3013, %v3034
    %v3051 = vadd.f32 %v3014, %v3035
    %3052 = vrot.lane.b32.xlu0 %v2979, 126
    %v3053 = vpop.permute.xlu0 %3052
    %s3054 = vtos %v3053
    %v3055 = vstv %s3054
    %v3057 = vmul.f32 %v3055, %v141
    %v3058 = vmul.f32 %v3055, %v142
    %v3059 = vmul.f32 %v3055, %v143
    %v3060 = vmul.f32 %v3055, %v144
    %v3061 = vmul.f32 %v3055, %v145
    %v3062 = vmul.f32 %v3055, %v146
    %v3063 = vmul.f32 %v3055, %v147
    %v3064 = vmul.f32 %v3055, %v148
    %v3065 = vmul.f32 %v3055, %v149
    %v3066 = vmul.f32 %v3055, %v150
    %v3067 = vmul.f32 %v3055, %v151
    %v3068 = vmul.f32 %v3055, %v152
    %v3069 = vmul.f32 %v3055, %v153
    %v3070 = vmul.f32 %v3055, %v154
    %v3071 = vmul.f32 %v3055, %v155
    %v3072 = vmul.f32 %v3055, %v156
    %v3073 = vadd.f32 %v3036, %v3057
    %v3074 = vadd.f32 %v3037, %v3058
    %v3075 = vadd.f32 %v3038, %v3059
    %v3076 = vadd.f32 %v3039, %v3060
    %v3077 = vadd.f32 %v3040, %v3061
    %v3078 = vadd.f32 %v3041, %v3062
    %v3079 = vadd.f32 %v3042, %v3063
    %v3080 = vadd.f32 %v3043, %v3064
    %v3081 = vadd.f32 %v3044, %v3065
    %v3082 = vadd.f32 %v3045, %v3066
    %v3083 = vadd.f32 %v3046, %v3067
    %v3084 = vadd.f32 %v3047, %v3068
    %v3085 = vadd.f32 %v3048, %v3069
    %v3086 = vadd.f32 %v3049, %v3070
    %v3087 = vadd.f32 %v3050, %v3071
    %v3088 = vadd.f32 %v3051, %v3072
    %v3089 = vmul.f32 %v3073, 0.2
    %v3090 = vmul.f32 %v3074, 0.2
    %v3091 = vmul.f32 %v3075, 0.2
    %v3092 = vmul.f32 %v3076, 0.2
    %v3093 = vmul.f32 %v3077, 0.2
    %v3094 = vmul.f32 %v3078, 0.2
    %v3095 = vmul.f32 %v3079, 0.2
    %v3096 = vmul.f32 %v3080, 0.2
    %v3097 = vmul.f32 %v3081, 0.2
    %v3098 = vmul.f32 %v3082, 0.2
    %v3099 = vmul.f32 %v3083, 0.2
    %v3100 = vmul.f32 %v3084, 0.2
    %v3101 = vmul.f32 %v3085, 0.2
    %v3102 = vmul.f32 %v3086, 0.2
    %v3103 = vmul.f32 %v3087, 0.2
    %v3104 = vmul.f32 %v3088, 0.2
    %v3105 = vmax.f32 %v3073, %v3089
    %v3106 = vmax.f32 %v3074, %v3090
    %v3107 = vmax.f32 %v3075, %v3091
    %v3108 = vmax.f32 %v3076, %v3092
    %v3109 = vmax.f32 %v3077, %v3093
    %v3110 = vmax.f32 %v3078, %v3094
    %v3111 = vmax.f32 %v3079, %v3095
    %v3112 = vmax.f32 %v3080, %v3096
    %v3113 = vmax.f32 %v3081, %v3097
    %v3114 = vmax.f32 %v3082, %v3098
    %v3115 = vmax.f32 %v3083, %v3099
    %v3116 = vmax.f32 %v3084, %v3100
    %v3117 = vmax.f32 %v3085, %v3101
    %v3118 = vmax.f32 %v3086, %v3102
    %v3119 = vmax.f32 %v3087, %v3103
    %v3120 = vmax.f32 %v3088, %v3104
    %s3121 = sld [smem:[#allocation2 + $0x82]]
    %v3122 = vstv %s3121
    %v3123 = vmul.f32 %v3122, %v3105
    %v3124 = vmul.f32 %v3122, %v3106
    %v3125 = vmul.f32 %v3122, %v3107
    %v3126 = vmul.f32 %v3122, %v3108
    %v3127 = vmul.f32 %v3122, %v3109
    %v3128 = vmul.f32 %v3122, %v3110
    %v3129 = vmul.f32 %v3122, %v3111
    %v3130 = vmul.f32 %v3122, %v3112
    %v3131 = vmul.f32 %v3122, %v3113
    %v3132 = vmul.f32 %v3122, %v3114
    %v3133 = vmul.f32 %v3122, %v3115
    %v3134 = vmul.f32 %v3122, %v3116
    %v3135 = vmul.f32 %v3122, %v3117
    %v3136 = vmul.f32 %v3122, %v3118
    %v3137 = vmul.f32 %v3122, %v3119
    %v3138 = vmul.f32 %v3122, %v3120
    %v3139 = vadd.f32 %v2882, %v3123
    %v3140 = vadd.f32 %v2883, %v3124
    %v3141 = vadd.f32 %v2884, %v3125
    %v3142 = vadd.f32 %v2885, %v3126
    %v3143 = vadd.f32 %v2886, %v3127
    %v3144 = vadd.f32 %v2887, %v3128
    %v3145 = vadd.f32 %v2888, %v3129
    %v3146 = vadd.f32 %v2889, %v3130
    %v3147 = vadd.f32 %v2890, %v3131
    %v3148 = vadd.f32 %v2891, %v3132
    %v3149 = vadd.f32 %v2892, %v3133
    %v3150 = vadd.f32 %v2893, %v3134
    %v3151 = vadd.f32 %v2894, %v3135
    %v3152 = vadd.f32 %v2895, %v3136
    %v3153 = vadd.f32 %v2896, %v3137
    %v3154 = vadd.f32 %v2897, %v3138
    %3155 = vset.pattern.permute.xlu0 11
    %3156 = vperm.xlu0 %3155, %v41
    %v3157 = vpop.permute.xlu0 %3156
    %3159 = vset.pattern.permute.xlu0 11
    %3160 = vperm.xlu0 %3159, %v42
    %v3161 = vpop.permute.xlu0 %3160
    %3163 = vset.pattern.permute.xlu0 11
    %3164 = vperm.xlu0 %3163, %v43
    %v3165 = vpop.permute.xlu0 %3164
    %3167 = vset.pattern.permute.xlu0 11
    %3168 = vperm.xlu0 %3167, %v44
    %v3169 = vpop.permute.xlu0 %3168
    %3171 = vset.pattern.permute.xlu0 11
    %3172 = vperm.xlu0 %3171, %v45
    %v3173 = vpop.permute.xlu0 %3172
    %3175 = vset.pattern.permute.xlu0 11
    %3176 = vperm.xlu0 %3175, %v46
    %v3177 = vpop.permute.xlu0 %3176
    %3179 = vset.pattern.permute.xlu0 11
    %3180 = vperm.xlu0 %3179, %v47
    %v3181 = vpop.permute.xlu0 %3180
    %3183 = vset.pattern.permute.xlu0 11
    %3184 = vperm.xlu0 %3183, %v48
    %v3185 = vpop.permute.xlu0 %3184
    %3187 = vset.pattern.permute.xlu0 11
    %3188 = vperm.xlu0 %3187, %v49
    %v3189 = vpop.permute.xlu0 %3188
    %3191 = vset.pattern.permute.xlu0 11
    %3192 = vperm.xlu0 %3191, %v50
    %v3193 = vpop.permute.xlu0 %3192
    %3195 = vset.pattern.permute.xlu0 11
    %3196 = vperm.xlu0 %3195, %v51
    %v3197 = vpop.permute.xlu0 %3196
    %3199 = vset.pattern.permute.xlu0 11
    %3200 = vperm.xlu0 %3199, %v52
    %v3201 = vpop.permute.xlu0 %3200
    %3203 = vset.pattern.permute.xlu0 11
    %3204 = vperm.xlu0 %3203, %v53
    %v3205 = vpop.permute.xlu0 %3204
    %3207 = vset.pattern.permute.xlu0 11
    %3208 = vperm.xlu0 %3207, %v54
    %v3209 = vpop.permute.xlu0 %3208
    %3211 = vset.pattern.permute.xlu0 11
    %3212 = vperm.xlu0 %3211, %v55
    %v3213 = vpop.permute.xlu0 %3212
    %3215 = vset.pattern.permute.xlu0 11
    %3216 = vperm.xlu0 %3215, %v56
    %v3217 = vpop.permute.xlu0 %3216
    %v3219 = vperm.slane %v40, 3
    %v3220 = vadd.f32 %v3157, %v3219
    %v3221 = vadd.f32 %v3161, %v3219
    %v3222 = vadd.f32 %v3165, %v3219
    %v3223 = vadd.f32 %v3169, %v3219
    %v3224 = vadd.f32 %v3173, %v3219
    %v3225 = vadd.f32 %v3177, %v3219
    %v3226 = vadd.f32 %v3181, %v3219
    %v3227 = vadd.f32 %v3185, %v3219
    %v3228 = vadd.f32 %v3189, %v3219
    %v3229 = vadd.f32 %v3193, %v3219
    %v3230 = vadd.f32 %v3197, %v3219
    %v3231 = vadd.f32 %v3201, %v3219
    %v3232 = vadd.f32 %v3205, %v3219
    %v3233 = vadd.f32 %v3209, %v3219
    %v3234 = vadd.f32 %v3213, %v3219
    %v3235 = vadd.f32 %v3217, %v3219
    %v3236 = vrot.slane %v58, 3
    %s3237 = vtos %v3236
    %v3238 = vstv %s3237
    %v3240 = vmul.f32 %v3238, %v75
    %v3241 = vmul.f32 %v3238, %v76
    %v3242 = vmul.f32 %v3238, %v77
    %v3243 = vmul.f32 %v3238, %v78
    %v3244 = vmul.f32 %v3238, %v79
    %v3245 = vmul.f32 %v3238, %v80
    %v3246 = vmul.f32 %v3238, %v81
    %v3247 = vmul.f32 %v3238, %v82
    %v3248 = vmul.f32 %v3238, %v83
    %v3249 = vmul.f32 %v3238, %v84
    %v3250 = vmul.f32 %v3238, %v85
    %v3251 = vmul.f32 %v3238, %v86
    %v3252 = vmul.f32 %v3238, %v87
    %v3253 = vmul.f32 %v3238, %v88
    %v3254 = vmul.f32 %v3238, %v89
    %v3255 = vmul.f32 %v3238, %v90
    %v3256 = vadd.f32 %v3220, %v3240
    %v3257 = vadd.f32 %v3221, %v3241
    %v3258 = vadd.f32 %v3222, %v3242
    %v3259 = vadd.f32 %v3223, %v3243
    %v3260 = vadd.f32 %v3224, %v3244
    %v3261 = vadd.f32 %v3225, %v3245
    %v3262 = vadd.f32 %v3226, %v3246
    %v3263 = vadd.f32 %v3227, %v3247
    %v3264 = vadd.f32 %v3228, %v3248
    %v3265 = vadd.f32 %v3229, %v3249
    %v3266 = vadd.f32 %v3230, %v3250
    %v3267 = vadd.f32 %v3231, %v3251
    %v3268 = vadd.f32 %v3232, %v3252
    %v3269 = vadd.f32 %v3233, %v3253
    %v3270 = vadd.f32 %v3234, %v3254
    %v3271 = vadd.f32 %v3235, %v3255
    %3272 = vrot.lane.b32.xlu0 %v3236, 127
    %v3273 = vpop.permute.xlu0 %3272
    %s3274 = vtos %v3273
    %v3275 = vstv %s3274
    %v3277 = vmul.f32 %v3275, %v108
    %v3278 = vmul.f32 %v3275, %v109
    %v3279 = vmul.f32 %v3275, %v110
    %v3280 = vmul.f32 %v3275, %v111
    %v3281 = vmul.f32 %v3275, %v112
    %v3282 = vmul.f32 %v3275, %v113
    %v3283 = vmul.f32 %v3275, %v114
    %v3284 = vmul.f32 %v3275, %v115
    %v3285 = vmul.f32 %v3275, %v116
    %v3286 = vmul.f32 %v3275, %v117
    %v3287 = vmul.f32 %v3275, %v118
    %v3288 = vmul.f32 %v3275, %v119
    %v3289 = vmul.f32 %v3275, %v120
    %v3290 = vmul.f32 %v3275, %v121
    %v3291 = vmul.f32 %v3275, %v122
    %v3292 = vmul.f32 %v3275, %v123
    %v3293 = vadd.f32 %v3256, %v3277
    %v3294 = vadd.f32 %v3257, %v3278
    %v3295 = vadd.f32 %v3258, %v3279
    %v3296 = vadd.f32 %v3259, %v3280
    %v3297 = vadd.f32 %v3260, %v3281
    %v3298 = vadd.f32 %v3261, %v3282
    %v3299 = vadd.f32 %v3262, %v3283
    %v3300 = vadd.f32 %v3263, %v3284
    %v3301 = vadd.f32 %v3264, %v3285
    %v3302 = vadd.f32 %v3265, %v3286
    %v3303 = vadd.f32 %v3266, %v3287
    %v3304 = vadd.f32 %v3267, %v3288
    %v3305 = vadd.f32 %v3268, %v3289
    %v3306 = vadd.f32 %v3269, %v3290
    %v3307 = vadd.f32 %v3270, %v3291
    %v3308 = vadd.f32 %v3271, %v3292
    %3309 = vrot.lane.b32.xlu0 %v3236, 126
    %v3310 = vpop.permute.xlu0 %3309
    %s3311 = vtos %v3310
    %v3312 = vstv %s3311
    %v3314 = vmul.f32 %v3312, %v141
    %v3315 = vmul.f32 %v3312, %v142
    %v3316 = vmul.f32 %v3312, %v143
    %v3317 = vmul.f32 %v3312, %v144
    %v3318 = vmul.f32 %v3312, %v145
    %v3319 = vmul.f32 %v3312, %v146
    %v3320 = vmul.f32 %v3312, %v147
    %v3321 = vmul.f32 %v3312, %v148
    %v3322 = vmul.f32 %v3312, %v149
    %v3323 = vmul.f32 %v3312, %v150
    %v3324 = vmul.f32 %v3312, %v151
    %v3325 = vmul.f32 %v3312, %v152
    %v3326 = vmul.f32 %v3312, %v153
    %v3327 = vmul.f32 %v3312, %v154
    %v3328 = vmul.f32 %v3312, %v155
    %v3329 = vmul.f32 %v3312, %v156
    %v3330 = vadd.f32 %v3293, %v3314
    %v3331 = vadd.f32 %v3294, %v3315
    %v3332 = vadd.f32 %v3295, %v3316
    %v3333 = vadd.f32 %v3296, %v3317
    %v3334 = vadd.f32 %v3297, %v3318
    %v3335 = vadd.f32 %v3298, %v3319
    %v3336 = vadd.f32 %v3299, %v3320
    %v3337 = vadd.f32 %v3300, %v3321
    %v3338 = vadd.f32 %v3301, %v3322
    %v3339 = vadd.f32 %v3302, %v3323
    %v3340 = vadd.f32 %v3303, %v3324
    %v3341 = vadd.f32 %v3304, %v3325
    %v3342 = vadd.f32 %v3305, %v3326
    %v3343 = vadd.f32 %v3306, %v3327
    %v3344 = vadd.f32 %v3307, %v3328
    %v3345 = vadd.f32 %v3308, %v3329
    %v3346 = vmul.f32 %v3330, 0.2
    %v3347 = vmul.f32 %v3331, 0.2
    %v3348 = vmul.f32 %v3332, 0.2
    %v3349 = vmul.f32 %v3333, 0.2
    %v3350 = vmul.f32 %v3334, 0.2
    %v3351 = vmul.f32 %v3335, 0.2
    %v3352 = vmul.f32 %v3336, 0.2
    %v3353 = vmul.f32 %v3337, 0.2
    %v3354 = vmul.f32 %v3338, 0.2
    %v3355 = vmul.f32 %v3339, 0.2
    %v3356 = vmul.f32 %v3340, 0.2
    %v3357 = vmul.f32 %v3341, 0.2
    %v3358 = vmul.f32 %v3342, 0.2
    %v3359 = vmul.f32 %v3343, 0.2
    %v3360 = vmul.f32 %v3344, 0.2
    %v3361 = vmul.f32 %v3345, 0.2
    %v3362 = vmax.f32 %v3330, %v3346
    %v3363 = vmax.f32 %v3331, %v3347
    %v3364 = vmax.f32 %v3332, %v3348
    %v3365 = vmax.f32 %v3333, %v3349
    %v3366 = vmax.f32 %v3334, %v3350
    %v3367 = vmax.f32 %v3335, %v3351
    %v3368 = vmax.f32 %v3336, %v3352
    %v3369 = vmax.f32 %v3337, %v3353
    %v3370 = vmax.f32 %v3338, %v3354
    %v3371 = vmax.f32 %v3339, %v3355
    %v3372 = vmax.f32 %v3340, %v3356
    %v3373 = vmax.f32 %v3341, %v3357
    %v3374 = vmax.f32 %v3342, %v3358
    %v3375 = vmax.f32 %v3343, %v3359
    %v3376 = vmax.f32 %v3344, %v3360
    %v3377 = vmax.f32 %v3345, %v3361
    %s3378 = sld [smem:[#allocation2 + $0x83]]
    %v3379 = vstv %s3378
    %v3380 = vmul.f32 %v3379, %v3362
    %v3381 = vmul.f32 %v3379, %v3363
    %v3382 = vmul.f32 %v3379, %v3364
    %v3383 = vmul.f32 %v3379, %v3365
    %v3384 = vmul.f32 %v3379, %v3366
    %v3385 = vmul.f32 %v3379, %v3367
    %v3386 = vmul.f32 %v3379, %v3368
    %v3387 = vmul.f32 %v3379, %v3369
    %v3388 = vmul.f32 %v3379, %v3370
    %v3389 = vmul.f32 %v3379, %v3371
    %v3390 = vmul.f32 %v3379, %v3372
    %v3391 = vmul.f32 %v3379, %v3373
    %v3392 = vmul.f32 %v3379, %v3374
    %v3393 = vmul.f32 %v3379, %v3375
    %v3394 = vmul.f32 %v3379, %v3376
    %v3395 = vmul.f32 %v3379, %v3377
    %v3396 = vadd.f32 %v3139, %v3380
    %v3397 = vadd.f32 %v3140, %v3381
    %v3398 = vadd.f32 %v3141, %v3382
    %v3399 = vadd.f32 %v3142, %v3383
    %v3400 = vadd.f32 %v3143, %v3384
    %v3401 = vadd.f32 %v3144, %v3385
    %v3402 = vadd.f32 %v3145, %v3386
    %v3403 = vadd.f32 %v3146, %v3387
    %v3404 = vadd.f32 %v3147, %v3388
    %v3405 = vadd.f32 %v3148, %v3389
    %v3406 = vadd.f32 %v3149, %v3390
    %v3407 = vadd.f32 %v3150, %v3391
    %v3408 = vadd.f32 %v3151, %v3392
    %v3409 = vadd.f32 %v3152, %v3393
    %v3410 = vadd.f32 %v3153, %v3394
    %v3411 = vadd.f32 %v3154, %v3395
    %3412 = vset.pattern.permute.xlu0 12
    %3413 = vperm.xlu0 %3412, %v41
    %v3414 = vpop.permute.xlu0 %3413
    %3416 = vset.pattern.permute.xlu0 12
    %3417 = vperm.xlu0 %3416, %v42
    %v3418 = vpop.permute.xlu0 %3417
    %3420 = vset.pattern.permute.xlu0 12
    %3421 = vperm.xlu0 %3420, %v43
    %v3422 = vpop.permute.xlu0 %3421
    %3424 = vset.pattern.permute.xlu0 12
    %3425 = vperm.xlu0 %3424, %v44
    %v3426 = vpop.permute.xlu0 %3425
    %3428 = vset.pattern.permute.xlu0 12
    %3429 = vperm.xlu0 %3428, %v45
    %v3430 = vpop.permute.xlu0 %3429
    %3432 = vset.pattern.permute.xlu0 12
    %3433 = vperm.xlu0 %3432, %v46
    %v3434 = vpop.permute.xlu0 %3433
    %3436 = vset.pattern.permute.xlu0 12
    %3437 = vperm.xlu0 %3436, %v47
    %v3438 = vpop.permute.xlu0 %3437
    %3440 = vset.pattern.permute.xlu0 12
    %3441 = vperm.xlu0 %3440, %v48
    %v3442 = vpop.permute.xlu0 %3441
    %3444 = vset.pattern.permute.xlu0 12
    %3445 = vperm.xlu0 %3444, %v49
    %v3446 = vpop.permute.xlu0 %3445
    %3448 = vset.pattern.permute.xlu0 12
    %3449 = vperm.xlu0 %3448, %v50
    %v3450 = vpop.permute.xlu0 %3449
    %3452 = vset.pattern.permute.xlu0 12
    %3453 = vperm.xlu0 %3452, %v51
    %v3454 = vpop.permute.xlu0 %3453
    %3456 = vset.pattern.permute.xlu0 12
    %3457 = vperm.xlu0 %3456, %v52
    %v3458 = vpop.permute.xlu0 %3457
    %3460 = vset.pattern.permute.xlu0 12
    %3461 = vperm.xlu0 %3460, %v53
    %v3462 = vpop.permute.xlu0 %3461
    %3464 = vset.pattern.permute.xlu0 12
    %3465 = vperm.xlu0 %3464, %v54
    %v3466 = vpop.permute.xlu0 %3465
    %3468 = vset.pattern.permute.xlu0 12
    %3469 = vperm.xlu0 %3468, %v55
    %v3470 = vpop.permute.xlu0 %3469
    %3472 = vset.pattern.permute.xlu0 12
    %3473 = vperm.xlu0 %3472, %v56
    %v3474 = vpop.permute.xlu0 %3473
    %v3476 = vperm.slane %v40, 4
    %v3477 = vadd.f32 %v3414, %v3476
    %v3478 = vadd.f32 %v3418, %v3476
    %v3479 = vadd.f32 %v3422, %v3476
    %v3480 = vadd.f32 %v3426, %v3476
    %v3481 = vadd.f32 %v3430, %v3476
    %v3482 = vadd.f32 %v3434, %v3476
    %v3483 = vadd.f32 %v3438, %v3476
    %v3484 = vadd.f32 %v3442, %v3476
    %v3485 = vadd.f32 %v3446, %v3476
    %v3486 = vadd.f32 %v3450, %v3476
    %v3487 = vadd.f32 %v3454, %v3476
    %v3488 = vadd.f32 %v3458, %v3476
    %v3489 = vadd.f32 %v3462, %v3476
    %v3490 = vadd.f32 %v3466, %v3476
    %v3491 = vadd.f32 %v3470, %v3476
    %v3492 = vadd.f32 %v3474, %v3476
    %v3493 = vrot.slane %v58, 4
    %s3494 = vtos %v3493
    %v3495 = vstv %s3494
    %v3497 = vmul.f32 %v3495, %v75
    %v3498 = vmul.f32 %v3495, %v76
    %v3499 = vmul.f32 %v3495, %v77
    %v3500 = vmul.f32 %v3495, %v78
    %v3501 = vmul.f32 %v3495, %v79
    %v3502 = vmul.f32 %v3495, %v80
    %v3503 = vmul.f32 %v3495, %v81
    %v3504 = vmul.f32 %v3495, %v82
    %v3505 = vmul.f32 %v3495, %v83
    %v3506 = vmul.f32 %v3495, %v84
    %v3507 = vmul.f32 %v3495, %v85
    %v3508 = vmul.f32 %v3495, %v86
    %v3509 = vmul.f32 %v3495, %v87
    %v3510 = vmul.f32 %v3495, %v88
    %v3511 = vmul.f32 %v3495, %v89
    %v3512 = vmul.f32 %v3495, %v90
    %v3513 = vadd.f32 %v3477, %v3497
    %v3514 = vadd.f32 %v3478, %v3498
    %v3515 = vadd.f32 %v3479, %v3499
    %v3516 = vadd.f32 %v3480, %v3500
    %v3517 = vadd.f32 %v3481, %v3501
    %v3518 = vadd.f32 %v3482, %v3502
    %v3519 = vadd.f32 %v3483, %v3503
    %v3520 = vadd.f32 %v3484, %v3504
    %v3521 = vadd.f32 %v3485, %v3505
    %v3522 = vadd.f32 %v3486, %v3506
    %v3523 = vadd.f32 %v3487, %v3507
    %v3524 = vadd.f32 %v3488, %v3508
    %v3525 = vadd.f32 %v3489, %v3509
    %v3526 = vadd.f32 %v3490, %v3510
    %v3527 = vadd.f32 %v3491, %v3511
    %v3528 = vadd.f32 %v3492, %v3512
    %3529 = vrot.lane.b32.xlu0 %v3493, 127
    %v3530 = vpop.permute.xlu0 %3529
    %s3531 = vtos %v3530
    %v3532 = vstv %s3531
    %v3534 = vmul.f32 %v3532, %v108
    %v3535 = vmul.f32 %v3532, %v109
    %v3536 = vmul.f32 %v3532, %v110
    %v3537 = vmul.f32 %v3532, %v111
    %v3538 = vmul.f32 %v3532, %v112
    %v3539 = vmul.f32 %v3532, %v113
    %v3540 = vmul.f32 %v3532, %v114
    %v3541 = vmul.f32 %v3532, %v115
    %v3542 = vmul.f32 %v3532, %v116
    %v3543 = vmul.f32 %v3532, %v117
    %v3544 = vmul.f32 %v3532, %v118
    %v3545 = vmul.f32 %v3532, %v119
    %v3546 = vmul.f32 %v3532, %v120
    %v3547 = vmul.f32 %v3532, %v121
    %v3548 = vmul.f32 %v3532, %v122
    %v3549 = vmul.f32 %v3532, %v123
    %v3550 = vadd.f32 %v3513, %v3534
    %v3551 = vadd.f32 %v3514, %v3535
    %v3552 = vadd.f32 %v3515, %v3536
    %v3553 = vadd.f32 %v3516, %v3537
    %v3554 = vadd.f32 %v3517, %v3538
    %v3555 = vadd.f32 %v3518, %v3539
    %v3556 = vadd.f32 %v3519, %v3540
    %v3557 = vadd.f32 %v3520, %v3541
    %v3558 = vadd.f32 %v3521, %v3542
    %v3559 = vadd.f32 %v3522, %v3543
    %v3560 = vadd.f32 %v3523, %v3544
    %v3561 = vadd.f32 %v3524, %v3545
    %v3562 = vadd.f32 %v3525, %v3546
    %v3563 = vadd.f32 %v3526, %v3547
    %v3564 = vadd.f32 %v3527, %v3548
    %v3565 = vadd.f32 %v3528, %v3549
    %3566 = vrot.lane.b32.xlu0 %v3493, 126
    %v3567 = vpop.permute.xlu0 %3566
    %s3568 = vtos %v3567
    %v3569 = vstv %s3568
    %v3571 = vmul.f32 %v3569, %v141
    %v3572 = vmul.f32 %v3569, %v142
    %v3573 = vmul.f32 %v3569, %v143
    %v3574 = vmul.f32 %v3569, %v144
    %v3575 = vmul.f32 %v3569, %v145
    %v3576 = vmul.f32 %v3569, %v146
    %v3577 = vmul.f32 %v3569, %v147
    %v3578 = vmul.f32 %v3569, %v148
    %v3579 = vmul.f32 %v3569, %v149
    %v3580 = vmul.f32 %v3569, %v150
    %v3581 = vmul.f32 %v3569, %v151
    %v3582 = vmul.f32 %v3569, %v152
    %v3583 = vmul.f32 %v3569, %v153
    %v3584 = vmul.f32 %v3569, %v154
    %v3585 = vmul.f32 %v3569, %v155
    %v3586 = vmul.f32 %v3569, %v156
    %v3587 = vadd.f32 %v3550, %v3571
    %v3588 = vadd.f32 %v3551, %v3572
    %v3589 = vadd.f32 %v3552, %v3573
    %v3590 = vadd.f32 %v3553, %v3574
    %v3591 = vadd.f32 %v3554, %v3575
    %v3592 = vadd.f32 %v3555, %v3576
    %v3593 = vadd.f32 %v3556, %v3577
    %v3594 = vadd.f32 %v3557, %v3578
    %v3595 = vadd.f32 %v3558, %v3579
    %v3596 = vadd.f32 %v3559, %v3580
    %v3597 = vadd.f32 %v3560, %v3581
    %v3598 = vadd.f32 %v3561, %v3582
    %v3599 = vadd.f32 %v3562, %v3583
    %v3600 = vadd.f32 %v3563, %v3584
    %v3601 = vadd.f32 %v3564, %v3585
    %v3602 = vadd.f32 %v3565, %v3586
    %v3603 = vmul.f32 %v3587, 0.2
    %v3604 = vmul.f32 %v3588, 0.2
    %v3605 = vmul.f32 %v3589, 0.2
    %v3606 = vmul.f32 %v3590, 0.2
    %v3607 = vmul.f32 %v3591, 0.2
    %v3608 = vmul.f32 %v3592, 0.2
    %v3609 = vmul.f32 %v3593, 0.2
    %v3610 = vmul.f32 %v3594, 0.2
    %v3611 = vmul.f32 %v3595, 0.2
    %v3612 = vmul.f32 %v3596, 0.2
    %v3613 = vmul.f32 %v3597, 0.2
    %v3614 = vmul.f32 %v3598, 0.2
    %v3615 = vmul.f32 %v3599, 0.2
    %v3616 = vmul.f32 %v3600, 0.2
    %v3617 = vmul.f32 %v3601, 0.2
    %v3618 = vmul.f32 %v3602, 0.2
    %v3619 = vmax.f32 %v3587, %v3603
    %v3620 = vmax.f32 %v3588, %v3604
    %v3621 = vmax.f32 %v3589, %v3605
    %v3622 = vmax.f32 %v3590, %v3606
    %v3623 = vmax.f32 %v3591, %v3607
    %v3624 = vmax.f32 %v3592, %v3608
    %v3625 = vmax.f32 %v3593, %v3609
    %v3626 = vmax.f32 %v3594, %v3610
    %v3627 = vmax.f32 %v3595, %v3611
    %v3628 = vmax.f32 %v3596, %v3612
    %v3629 = vmax.f32 %v3597, %v3613
    %v3630 = vmax.f32 %v3598, %v3614
    %v3631 = vmax.f32 %v3599, %v3615
    %v3632 = vmax.f32 %v3600, %v3616
    %v3633 = vmax.f32 %v3601, %v3617
    %v3634 = vmax.f32 %v3602, %v3618
    %s3635 = sld [smem:[#allocation2 + $0x84]]
    %v3636 = vstv %s3635
    %v3637 = vmul.f32 %v3636, %v3619
    %v3638 = vmul.f32 %v3636, %v3620
    %v3639 = vmul.f32 %v3636, %v3621
    %v3640 = vmul.f32 %v3636, %v3622
    %v3641 = vmul.f32 %v3636, %v3623
    %v3642 = vmul.f32 %v3636, %v3624
    %v3643 = vmul.f32 %v3636, %v3625
    %v3644 = vmul.f32 %v3636, %v3626
    %v3645 = vmul.f32 %v3636, %v3627
    %v3646 = vmul.f32 %v3636, %v3628
    %v3647 = vmul.f32 %v3636, %v3629
    %v3648 = vmul.f32 %v3636, %v3630
    %v3649 = vmul.f32 %v3636, %v3631
    %v3650 = vmul.f32 %v3636, %v3632
    %v3651 = vmul.f32 %v3636, %v3633
    %v3652 = vmul.f32 %v3636, %v3634
    %v3653 = vadd.f32 %v3396, %v3637
    %v3654 = vadd.f32 %v3397, %v3638
    %v3655 = vadd.f32 %v3398, %v3639
    %v3656 = vadd.f32 %v3399, %v3640
    %v3657 = vadd.f32 %v3400, %v3641
    %v3658 = vadd.f32 %v3401, %v3642
    %v3659 = vadd.f32 %v3402, %v3643
    %v3660 = vadd.f32 %v3403, %v3644
    %v3661 = vadd.f32 %v3404, %v3645
    %v3662 = vadd.f32 %v3405, %v3646
    %v3663 = vadd.f32 %v3406, %v3647
    %v3664 = vadd.f32 %v3407, %v3648
    %v3665 = vadd.f32 %v3408, %v3649
    %v3666 = vadd.f32 %v3409, %v3650
    %v3667 = vadd.f32 %v3410, %v3651
    %v3668 = vadd.f32 %v3411, %v3652
    %3669 = vset.pattern.permute.xlu0 13
    %3670 = vperm.xlu0 %3669, %v41
    %v3671 = vpop.permute.xlu0 %3670
    %3673 = vset.pattern.permute.xlu0 13
    %3674 = vperm.xlu0 %3673, %v42
    %v3675 = vpop.permute.xlu0 %3674
    %3677 = vset.pattern.permute.xlu0 13
    %3678 = vperm.xlu0 %3677, %v43
    %v3679 = vpop.permute.xlu0 %3678
    %3681 = vset.pattern.permute.xlu0 13
    %3682 = vperm.xlu0 %3681, %v44
    %v3683 = vpop.permute.xlu0 %3682
    %3685 = vset.pattern.permute.xlu0 13
    %3686 = vperm.xlu0 %3685, %v45
    %v3687 = vpop.permute.xlu0 %3686
    %3689 = vset.pattern.permute.xlu0 13
    %3690 = vperm.xlu0 %3689, %v46
    %v3691 = vpop.permute.xlu0 %3690
    %3693 = vset.pattern.permute.xlu0 13
    %3694 = vperm.xlu0 %3693, %v47
    %v3695 = vpop.permute.xlu0 %3694
    %3697 = vset.pattern.permute.xlu0 13
    %3698 = vperm.xlu0 %3697, %v48
    %v3699 = vpop.permute.xlu0 %3698
    %3701 = vset.pattern.permute.xlu0 13
    %3702 = vperm.xlu0 %3701, %v49
    %v3703 = vpop.permute.xlu0 %3702
    %3705 = vset.pattern.permute.xlu0 13
    %3706 = vperm.xlu0 %3705, %v50
    %v3707 = vpop.permute.xlu0 %3706
    %3709 = vset.pattern.permute.xlu0 13
    %3710 = vperm.xlu0 %3709, %v51
    %v3711 = vpop.permute.xlu0 %3710
    %3713 = vset.pattern.permute.xlu0 13
    %3714 = vperm.xlu0 %3713, %v52
    %v3715 = vpop.permute.xlu0 %3714
    %3717 = vset.pattern.permute.xlu0 13
    %3718 = vperm.xlu0 %3717, %v53
    %v3719 = vpop.permute.xlu0 %3718
    %3721 = vset.pattern.permute.xlu0 13
    %3722 = vperm.xlu0 %3721, %v54
    %v3723 = vpop.permute.xlu0 %3722
    %3725 = vset.pattern.permute.xlu0 13
    %3726 = vperm.xlu0 %3725, %v55
    %v3727 = vpop.permute.xlu0 %3726
    %3729 = vset.pattern.permute.xlu0 13
    %3730 = vperm.xlu0 %3729, %v56
    %v3731 = vpop.permute.xlu0 %3730
    %v3733 = vperm.slane %v40, 5
    %v3734 = vadd.f32 %v3671, %v3733
    %v3735 = vadd.f32 %v3675, %v3733
    %v3736 = vadd.f32 %v3679, %v3733
    %v3737 = vadd.f32 %v3683, %v3733
    %v3738 = vadd.f32 %v3687, %v3733
    %v3739 = vadd.f32 %v3691, %v3733
    %v3740 = vadd.f32 %v3695, %v3733
    %v3741 = vadd.f32 %v3699, %v3733
    %v3742 = vadd.f32 %v3703, %v3733
    %v3743 = vadd.f32 %v3707, %v3733
    %v3744 = vadd.f32 %v3711, %v3733
    %v3745 = vadd.f32 %v3715, %v3733
    %v3746 = vadd.f32 %v3719, %v3733
    %v3747 = vadd.f32 %v3723, %v3733
    %v3748 = vadd.f32 %v3727, %v3733
    %v3749 = vadd.f32 %v3731, %v3733
    %v3750 = vrot.slane %v58, 5
    %s3751 = vtos %v3750
    %v3752 = vstv %s3751
    %v3754 = vmul.f32 %v3752, %v75
    %v3755 = vmul.f32 %v3752, %v76
    %v3756 = vmul.f32 %v3752, %v77
    %v3757 = vmul.f32 %v3752, %v78
    %v3758 = vmul.f32 %v3752, %v79
    %v3759 = vmul.f32 %v3752, %v80
    %v3760 = vmul.f32 %v3752, %v81
    %v3761 = vmul.f32 %v3752, %v82
    %v3762 = vmul.f32 %v3752, %v83
    %v3763 = vmul.f32 %v3752, %v84
    %v3764 = vmul.f32 %v3752, %v85
    %v3765 = vmul.f32 %v3752, %v86
    %v3766 = vmul.f32 %v3752, %v87
    %v3767 = vmul.f32 %v3752, %v88
    %v3768 = vmul.f32 %v3752, %v89
    %v3769 = vmul.f32 %v3752, %v90
    %v3770 = vadd.f32 %v3734, %v3754
    %v3771 = vadd.f32 %v3735, %v3755
    %v3772 = vadd.f32 %v3736, %v3756
    %v3773 = vadd.f32 %v3737, %v3757
    %v3774 = vadd.f32 %v3738, %v3758
    %v3775 = vadd.f32 %v3739, %v3759
    %v3776 = vadd.f32 %v3740, %v3760
    %v3777 = vadd.f32 %v3741, %v3761
    %v3778 = vadd.f32 %v3742, %v3762
    %v3779 = vadd.f32 %v3743, %v3763
    %v3780 = vadd.f32 %v3744, %v3764
    %v3781 = vadd.f32 %v3745, %v3765
    %v3782 = vadd.f32 %v3746, %v3766
    %v3783 = vadd.f32 %v3747, %v3767
    %v3784 = vadd.f32 %v3748, %v3768
    %v3785 = vadd.f32 %v3749, %v3769
    %3786 = vrot.lane.b32.xlu0 %v3750, 127
    %v3787 = vpop.permute.xlu0 %3786
    %s3788 = vtos %v3787
    %v3789 = vstv %s3788
    %v3791 = vmul.f32 %v3789, %v108
    %v3792 = vmul.f32 %v3789, %v109
    %v3793 = vmul.f32 %v3789, %v110
    %v3794 = vmul.f32 %v3789, %v111
    %v3795 = vmul.f32 %v3789, %v112
    %v3796 = vmul.f32 %v3789, %v113
    %v3797 = vmul.f32 %v3789, %v114
    %v3798 = vmul.f32 %v3789, %v115
    %v3799 = vmul.f32 %v3789, %v116
    %v3800 = vmul.f32 %v3789, %v117
    %v3801 = vmul.f32 %v3789, %v118
    %v3802 = vmul.f32 %v3789, %v119
    %v3803 = vmul.f32 %v3789, %v120
    %v3804 = vmul.f32 %v3789, %v121
    %v3805 = vmul.f32 %v3789, %v122
    %v3806 = vmul.f32 %v3789, %v123
    %v3807 = vadd.f32 %v3770, %v3791
    %v3808 = vadd.f32 %v3771, %v3792
    %v3809 = vadd.f32 %v3772, %v3793
    %v3810 = vadd.f32 %v3773, %v3794
    %v3811 = vadd.f32 %v3774, %v3795
    %v3812 = vadd.f32 %v3775, %v3796
    %v3813 = vadd.f32 %v3776, %v3797
    %v3814 = vadd.f32 %v3777, %v3798
    %v3815 = vadd.f32 %v3778, %v3799
    %v3816 = vadd.f32 %v3779, %v3800
    %v3817 = vadd.f32 %v3780, %v3801
    %v3818 = vadd.f32 %v3781, %v3802
    %v3819 = vadd.f32 %v3782, %v3803
    %v3820 = vadd.f32 %v3783, %v3804
    %v3821 = vadd.f32 %v3784, %v3805
    %v3822 = vadd.f32 %v3785, %v3806
    %3823 = vrot.lane.b32.xlu0 %v3750, 126
    %v3824 = vpop.permute.xlu0 %3823
    %s3825 = vtos %v3824
    %v3826 = vstv %s3825
    %v3828 = vmul.f32 %v3826, %v141
    %v3829 = vmul.f32 %v3826, %v142
    %v3830 = vmul.f32 %v3826, %v143
    %v3831 = vmul.f32 %v3826, %v144
    %v3832 = vmul.f32 %v3826, %v145
    %v3833 = vmul.f32 %v3826, %v146
    %v3834 = vmul.f32 %v3826, %v147
    %v3835 = vmul.f32 %v3826, %v148
    %v3836 = vmul.f32 %v3826, %v149
    %v3837 = vmul.f32 %v3826, %v150
    %v3838 = vmul.f32 %v3826, %v151
    %v3839 = vmul.f32 %v3826, %v152
    %v3840 = vmul.f32 %v3826, %v153
    %v3841 = vmul.f32 %v3826, %v154
    %v3842 = vmul.f32 %v3826, %v155
    %v3843 = vmul.f32 %v3826, %v156
    %v3844 = vadd.f32 %v3807, %v3828
    %v3845 = vadd.f32 %v3808, %v3829
    %v3846 = vadd.f32 %v3809, %v3830
    %v3847 = vadd.f32 %v3810, %v3831
    %v3848 = vadd.f32 %v3811, %v3832
    %v3849 = vadd.f32 %v3812, %v3833
    %v3850 = vadd.f32 %v3813, %v3834
    %v3851 = vadd.f32 %v3814, %v3835
    %v3852 = vadd.f32 %v3815, %v3836
    %v3853 = vadd.f32 %v3816, %v3837
    %v3854 = vadd.f32 %v3817, %v3838
    %v3855 = vadd.f32 %v3818, %v3839
    %v3856 = vadd.f32 %v3819, %v3840
    %v3857 = vadd.f32 %v3820, %v3841
    %v3858 = vadd.f32 %v3821, %v3842
    %v3859 = vadd.f32 %v3822, %v3843
    %v3860 = vmul.f32 %v3844, 0.2
    %v3861 = vmul.f32 %v3845, 0.2
    %v3862 = vmul.f32 %v3846, 0.2
    %v3863 = vmul.f32 %v3847, 0.2
    %v3864 = vmul.f32 %v3848, 0.2
    %v3865 = vmul.f32 %v3849, 0.2
    %v3866 = vmul.f32 %v3850, 0.2
    %v3867 = vmul.f32 %v3851, 0.2
    %v3868 = vmul.f32 %v3852, 0.2
    %v3869 = vmul.f32 %v3853, 0.2
    %v3870 = vmul.f32 %v3854, 0.2
    %v3871 = vmul.f32 %v3855, 0.2
    %v3872 = vmul.f32 %v3856, 0.2
    %v3873 = vmul.f32 %v3857, 0.2
    %v3874 = vmul.f32 %v3858, 0.2
    %v3875 = vmul.f32 %v3859, 0.2
    %v3876 = vmax.f32 %v3844, %v3860
    %v3877 = vmax.f32 %v3845, %v3861
    %v3878 = vmax.f32 %v3846, %v3862
    %v3879 = vmax.f32 %v3847, %v3863
    %v3880 = vmax.f32 %v3848, %v3864
    %v3881 = vmax.f32 %v3849, %v3865
    %v3882 = vmax.f32 %v3850, %v3866
    %v3883 = vmax.f32 %v3851, %v3867
    %v3884 = vmax.f32 %v3852, %v3868
    %v3885 = vmax.f32 %v3853, %v3869
    %v3886 = vmax.f32 %v3854, %v3870
    %v3887 = vmax.f32 %v3855, %v3871
    %v3888 = vmax.f32 %v3856, %v3872
    %v3889 = vmax.f32 %v3857, %v3873
    %v3890 = vmax.f32 %v3858, %v3874
    %v3891 = vmax.f32 %v3859, %v3875
    %s3892 = sld [smem:[#allocation2 + $0x85]]
    %v3893 = vstv %s3892
    %v3894 = vmul.f32 %v3893, %v3876
    %v3895 = vmul.f32 %v3893, %v3877
    %v3896 = vmul.f32 %v3893, %v3878
    %v3897 = vmul.f32 %v3893, %v3879
    %v3898 = vmul.f32 %v3893, %v3880
    %v3899 = vmul.f32 %v3893, %v3881
    %v3900 = vmul.f32 %v3893, %v3882
    %v3901 = vmul.f32 %v3893, %v3883
    %v3902 = vmul.f32 %v3893, %v3884
    %v3903 = vmul.f32 %v3893, %v3885
    %v3904 = vmul.f32 %v3893, %v3886
    %v3905 = vmul.f32 %v3893, %v3887
    %v3906 = vmul.f32 %v3893, %v3888
    %v3907 = vmul.f32 %v3893, %v3889
    %v3908 = vmul.f32 %v3893, %v3890
    %v3909 = vmul.f32 %v3893, %v3891
    %v3910 = vadd.f32 %v3653, %v3894
    %v3911 = vadd.f32 %v3654, %v3895
    %v3912 = vadd.f32 %v3655, %v3896
    %v3913 = vadd.f32 %v3656, %v3897
    %v3914 = vadd.f32 %v3657, %v3898
    %v3915 = vadd.f32 %v3658, %v3899
    %v3916 = vadd.f32 %v3659, %v3900
    %v3917 = vadd.f32 %v3660, %v3901
    %v3918 = vadd.f32 %v3661, %v3902
    %v3919 = vadd.f32 %v3662, %v3903
    %v3920 = vadd.f32 %v3663, %v3904
    %v3921 = vadd.f32 %v3664, %v3905
    %v3922 = vadd.f32 %v3665, %v3906
    %v3923 = vadd.f32 %v3666, %v3907
    %v3924 = vadd.f32 %v3667, %v3908
    %v3925 = vadd.f32 %v3668, %v3909
    %3926 = vset.pattern.permute.xlu0 14
    %3927 = vperm.xlu0 %3926, %v41
    %v3928 = vpop.permute.xlu0 %3927
    %3930 = vset.pattern.permute.xlu0 14
    %3931 = vperm.xlu0 %3930, %v42
    %v3932 = vpop.permute.xlu0 %3931
    %3934 = vset.pattern.permute.xlu0 14
    %3935 = vperm.xlu0 %3934, %v43
    %v3936 = vpop.permute.xlu0 %3935
    %3938 = vset.pattern.permute.xlu0 14
    %3939 = vperm.xlu0 %3938, %v44
    %v3940 = vpop.permute.xlu0 %3939
    %3942 = vset.pattern.permute.xlu0 14
    %3943 = vperm.xlu0 %3942, %v45
    %v3944 = vpop.permute.xlu0 %3943
    %3946 = vset.pattern.permute.xlu0 14
    %3947 = vperm.xlu0 %3946, %v46
    %v3948 = vpop.permute.xlu0 %3947
    %3950 = vset.pattern.permute.xlu0 14
    %3951 = vperm.xlu0 %3950, %v47
    %v3952 = vpop.permute.xlu0 %3951
    %3954 = vset.pattern.permute.xlu0 14
    %3955 = vperm.xlu0 %3954, %v48
    %v3956 = vpop.permute.xlu0 %3955
    %3958 = vset.pattern.permute.xlu0 14
    %3959 = vperm.xlu0 %3958, %v49
    %v3960 = vpop.permute.xlu0 %3959
    %3962 = vset.pattern.permute.xlu0 14
    %3963 = vperm.xlu0 %3962, %v50
    %v3964 = vpop.permute.xlu0 %3963
    %3966 = vset.pattern.permute.xlu0 14
    %3967 = vperm.xlu0 %3966, %v51
    %v3968 = vpop.permute.xlu0 %3967
    %3970 = vset.pattern.permute.xlu0 14
    %3971 = vperm.xlu0 %3970, %v52
    %v3972 = vpop.permute.xlu0 %3971
    %3974 = vset.pattern.permute.xlu0 14
    %3975 = vperm.xlu0 %3974, %v53
    %v3976 = vpop.permute.xlu0 %3975
    %3978 = vset.pattern.permute.xlu0 14
    %3979 = vperm.xlu0 %3978, %v54
    %v3980 = vpop.permute.xlu0 %3979
    %3982 = vset.pattern.permute.xlu0 14
    %3983 = vperm.xlu0 %3982, %v55
    %v3984 = vpop.permute.xlu0 %3983
    %3986 = vset.pattern.permute.xlu0 14
    %3987 = vperm.xlu0 %3986, %v56
    %v3988 = vpop.permute.xlu0 %3987
    %v3990 = vperm.slane %v40, 6
    %v3991 = vadd.f32 %v3928, %v3990
    %v3992 = vadd.f32 %v3932, %v3990
    %v3993 = vadd.f32 %v3936, %v3990
    %v3994 = vadd.f32 %v3940, %v3990
    %v3995 = vadd.f32 %v3944, %v3990
    %v3996 = vadd.f32 %v3948, %v3990
    %v3997 = vadd.f32 %v3952, %v3990
    %v3998 = vadd.f32 %v3956, %v3990
    %v3999 = vadd.f32 %v3960, %v3990
    %v4000 = vadd.f32 %v3964, %v3990
    %v4001 = vadd.f32 %v3968, %v3990
    %v4002 = vadd.f32 %v3972, %v3990
    %v4003 = vadd.f32 %v3976, %v3990
    %v4004 = vadd.f32 %v3980, %v3990
    %v4005 = vadd.f32 %v3984, %v3990
    %v4006 = vadd.f32 %v3988, %v3990
    %v4007 = vrot.slane %v58, 6
    %s4008 = vtos %v4007
    %v4009 = vstv %s4008
    %v4011 = vmul.f32 %v4009, %v75
    %v4012 = vmul.f32 %v4009, %v76
    %v4013 = vmul.f32 %v4009, %v77
    %v4014 = vmul.f32 %v4009, %v78
    %v4015 = vmul.f32 %v4009, %v79
    %v4016 = vmul.f32 %v4009, %v80
    %v4017 = vmul.f32 %v4009, %v81
    %v4018 = vmul.f32 %v4009, %v82
    %v4019 = vmul.f32 %v4009, %v83
    %v4020 = vmul.f32 %v4009, %v84
    %v4021 = vmul.f32 %v4009, %v85
    %v4022 = vmul.f32 %v4009, %v86
    %v4023 = vmul.f32 %v4009, %v87
    %v4024 = vmul.f32 %v4009, %v88
    %v4025 = vmul.f32 %v4009, %v89
    %v4026 = vmul.f32 %v4009, %v90
    %v4027 = vadd.f32 %v3991, %v4011
    %v4028 = vadd.f32 %v3992, %v4012
    %v4029 = vadd.f32 %v3993, %v4013
    %v4030 = vadd.f32 %v3994, %v4014
    %v4031 = vadd.f32 %v3995, %v4015
    %v4032 = vadd.f32 %v3996, %v4016
    %v4033 = vadd.f32 %v3997, %v4017
    %v4034 = vadd.f32 %v3998, %v4018
    %v4035 = vadd.f32 %v3999, %v4019
    %v4036 = vadd.f32 %v4000, %v4020
    %v4037 = vadd.f32 %v4001, %v4021
    %v4038 = vadd.f32 %v4002, %v4022
    %v4039 = vadd.f32 %v4003, %v4023
    %v4040 = vadd.f32 %v4004, %v4024
    %v4041 = vadd.f32 %v4005, %v4025
    %v4042 = vadd.f32 %v4006, %v4026
    %4043 = vrot.lane.b32.xlu0 %v4007, 127
    %v4044 = vpop.permute.xlu0 %4043
    %s4045 = vtos %v4044
    %v4046 = vstv %s4045
    %v4048 = vmul.f32 %v4046, %v108
    %v4049 = vmul.f32 %v4046, %v109
    %v4050 = vmul.f32 %v4046, %v110
    %v4051 = vmul.f32 %v4046, %v111
    %v4052 = vmul.f32 %v4046, %v112
    %v4053 = vmul.f32 %v4046, %v113
    %v4054 = vmul.f32 %v4046, %v114
    %v4055 = vmul.f32 %v4046, %v115
    %v4056 = vmul.f32 %v4046, %v116
    %v4057 = vmul.f32 %v4046, %v117
    %v4058 = vmul.f32 %v4046, %v118
    %v4059 = vmul.f32 %v4046, %v119
    %v4060 = vmul.f32 %v4046, %v120
    %v4061 = vmul.f32 %v4046, %v121
    %v4062 = vmul.f32 %v4046, %v122
    %v4063 = vmul.f32 %v4046, %v123
    %v4064 = vadd.f32 %v4027, %v4048
    %v4065 = vadd.f32 %v4028, %v4049
    %v4066 = vadd.f32 %v4029, %v4050
    %v4067 = vadd.f32 %v4030, %v4051
    %v4068 = vadd.f32 %v4031, %v4052
    %v4069 = vadd.f32 %v4032, %v4053
    %v4070 = vadd.f32 %v4033, %v4054
    %v4071 = vadd.f32 %v4034, %v4055
    %v4072 = vadd.f32 %v4035, %v4056
    %v4073 = vadd.f32 %v4036, %v4057
    %v4074 = vadd.f32 %v4037, %v4058
    %v4075 = vadd.f32 %v4038, %v4059
    %v4076 = vadd.f32 %v4039, %v4060
    %v4077 = vadd.f32 %v4040, %v4061
    %v4078 = vadd.f32 %v4041, %v4062
    %v4079 = vadd.f32 %v4042, %v4063
    %4080 = vrot.lane.b32.xlu0 %v4007, 126
    %v4081 = vpop.permute.xlu0 %4080
    %s4082 = vtos %v4081
    %v4083 = vstv %s4082
    %v4085 = vmul.f32 %v4083, %v141
    %v4086 = vmul.f32 %v4083, %v142
    %v4087 = vmul.f32 %v4083, %v143
    %v4088 = vmul.f32 %v4083, %v144
    %v4089 = vmul.f32 %v4083, %v145
    %v4090 = vmul.f32 %v4083, %v146
    %v4091 = vmul.f32 %v4083, %v147
    %v4092 = vmul.f32 %v4083, %v148
    %v4093 = vmul.f32 %v4083, %v149
    %v4094 = vmul.f32 %v4083, %v150
    %v4095 = vmul.f32 %v4083, %v151
    %v4096 = vmul.f32 %v4083, %v152
    %v4097 = vmul.f32 %v4083, %v153
    %v4098 = vmul.f32 %v4083, %v154
    %v4099 = vmul.f32 %v4083, %v155
    %v4100 = vmul.f32 %v4083, %v156
    %v4101 = vadd.f32 %v4064, %v4085
    %v4102 = vadd.f32 %v4065, %v4086
    %v4103 = vadd.f32 %v4066, %v4087
    %v4104 = vadd.f32 %v4067, %v4088
    %v4105 = vadd.f32 %v4068, %v4089
    %v4106 = vadd.f32 %v4069, %v4090
    %v4107 = vadd.f32 %v4070, %v4091
    %v4108 = vadd.f32 %v4071, %v4092
    %v4109 = vadd.f32 %v4072, %v4093
    %v4110 = vadd.f32 %v4073, %v4094
    %v4111 = vadd.f32 %v4074, %v4095
    %v4112 = vadd.f32 %v4075, %v4096
    %v4113 = vadd.f32 %v4076, %v4097
    %v4114 = vadd.f32 %v4077, %v4098
    %v4115 = vadd.f32 %v4078, %v4099
    %v4116 = vadd.f32 %v4079, %v4100
    %v4117 = vmul.f32 %v4101, 0.2
    %v4118 = vmul.f32 %v4102, 0.2
    %v4119 = vmul.f32 %v4103, 0.2
    %v4120 = vmul.f32 %v4104, 0.2
    %v4121 = vmul.f32 %v4105, 0.2
    %v4122 = vmul.f32 %v4106, 0.2
    %v4123 = vmul.f32 %v4107, 0.2
    %v4124 = vmul.f32 %v4108, 0.2
    %v4125 = vmul.f32 %v4109, 0.2
    %v4126 = vmul.f32 %v4110, 0.2
    %v4127 = vmul.f32 %v4111, 0.2
    %v4128 = vmul.f32 %v4112, 0.2
    %v4129 = vmul.f32 %v4113, 0.2
    %v4130 = vmul.f32 %v4114, 0.2
    %v4131 = vmul.f32 %v4115, 0.2
    %v4132 = vmul.f32 %v4116, 0.2
    %v4133 = vmax.f32 %v4101, %v4117
    %v4134 = vmax.f32 %v4102, %v4118
    %v4135 = vmax.f32 %v4103, %v4119
    %v4136 = vmax.f32 %v4104, %v4120
    %v4137 = vmax.f32 %v4105, %v4121
    %v4138 = vmax.f32 %v4106, %v4122
    %v4139 = vmax.f32 %v4107, %v4123
    %v4140 = vmax.f32 %v4108, %v4124
    %v4141 = vmax.f32 %v4109, %v4125
    %v4142 = vmax.f32 %v4110, %v4126
    %v4143 = vmax.f32 %v4111, %v4127
    %v4144 = vmax.f32 %v4112, %v4128
    %v4145 = vmax.f32 %v4113, %v4129
    %v4146 = vmax.f32 %v4114, %v4130
    %v4147 = vmax.f32 %v4115, %v4131
    %v4148 = vmax.f32 %v4116, %v4132
    %s4149 = sld [smem:[#allocation2 + $0x86]]
    %v4150 = vstv %s4149
    %v4151 = vmul.f32 %v4150, %v4133
    %v4152 = vmul.f32 %v4150, %v4134
    %v4153 = vmul.f32 %v4150, %v4135
    %v4154 = vmul.f32 %v4150, %v4136
    %v4155 = vmul.f32 %v4150, %v4137
    %v4156 = vmul.f32 %v4150, %v4138
    %v4157 = vmul.f32 %v4150, %v4139
    %v4158 = vmul.f32 %v4150, %v4140
    %v4159 = vmul.f32 %v4150, %v4141
    %v4160 = vmul.f32 %v4150, %v4142
    %v4161 = vmul.f32 %v4150, %v4143
    %v4162 = vmul.f32 %v4150, %v4144
    %v4163 = vmul.f32 %v4150, %v4145
    %v4164 = vmul.f32 %v4150, %v4146
    %v4165 = vmul.f32 %v4150, %v4147
    %v4166 = vmul.f32 %v4150, %v4148
    %v4167 = vadd.f32 %v3910, %v4151
    %v4168 = vadd.f32 %v3911, %v4152
    %v4169 = vadd.f32 %v3912, %v4153
    %v4170 = vadd.f32 %v3913, %v4154
    %v4171 = vadd.f32 %v3914, %v4155
    %v4172 = vadd.f32 %v3915, %v4156
    %v4173 = vadd.f32 %v3916, %v4157
    %v4174 = vadd.f32 %v3917, %v4158
    %v4175 = vadd.f32 %v3918, %v4159
    %v4176 = vadd.f32 %v3919, %v4160
    %v4177 = vadd.f32 %v3920, %v4161
    %v4178 = vadd.f32 %v3921, %v4162
    %v4179 = vadd.f32 %v3922, %v4163
    %v4180 = vadd.f32 %v3923, %v4164
    %v4181 = vadd.f32 %v3924, %v4165
    %v4182 = vadd.f32 %v3925, %v4166
    %4183 = vset.pattern.permute.xlu0 15
    %4184 = vperm.xlu0 %4183, %v41
    %v4185 = vpop.permute.xlu0 %4184
    %4187 = vset.pattern.permute.xlu0 15
    %4188 = vperm.xlu0 %4187, %v42
    %v4189 = vpop.permute.xlu0 %4188
    %4191 = vset.pattern.permute.xlu0 15
    %4192 = vperm.xlu0 %4191, %v43
    %v4193 = vpop.permute.xlu0 %4192
    %4195 = vset.pattern.permute.xlu0 15
    %4196 = vperm.xlu0 %4195, %v44
    %v4197 = vpop.permute.xlu0 %4196
    %4199 = vset.pattern.permute.xlu0 15
    %4200 = vperm.xlu0 %4199, %v45
    %v4201 = vpop.permute.xlu0 %4200
    %4203 = vset.pattern.permute.xlu0 15
    %4204 = vperm.xlu0 %4203, %v46
    %v4205 = vpop.permute.xlu0 %4204
    %4207 = vset.pattern.permute.xlu0 15
    %4208 = vperm.xlu0 %4207, %v47
    %v4209 = vpop.permute.xlu0 %4208
    %4211 = vset.pattern.permute.xlu0 15
    %4212 = vperm.xlu0 %4211, %v48
    %v4213 = vpop.permute.xlu0 %4212
    %4215 = vset.pattern.permute.xlu0 15
    %4216 = vperm.xlu0 %4215, %v49
    %v4217 = vpop.permute.xlu0 %4216
    %4219 = vset.pattern.permute.xlu0 15
    %4220 = vperm.xlu0 %4219, %v50
    %v4221 = vpop.permute.xlu0 %4220
    %4223 = vset.pattern.permute.xlu0 15
    %4224 = vperm.xlu0 %4223, %v51
    %v4225 = vpop.permute.xlu0 %4224
    %4227 = vset.pattern.permute.xlu0 15
    %4228 = vperm.xlu0 %4227, %v52
    %v4229 = vpop.permute.xlu0 %4228
    %4231 = vset.pattern.permute.xlu0 15
    %4232 = vperm.xlu0 %4231, %v53
    %v4233 = vpop.permute.xlu0 %4232
    %4235 = vset.pattern.permute.xlu0 15
    %4236 = vperm.xlu0 %4235, %v54
    %v4237 = vpop.permute.xlu0 %4236
    %4239 = vset.pattern.permute.xlu0 15
    %4240 = vperm.xlu0 %4239, %v55
    %v4241 = vpop.permute.xlu0 %4240
    %4243 = vset.pattern.permute.xlu0 15
    %4244 = vperm.xlu0 %4243, %v56
    %v4245 = vpop.permute.xlu0 %4244
    %v4247 = vperm.slane %v40, 7
    %v4248 = vadd.f32 %v4185, %v4247
    %v4249 = vadd.f32 %v4189, %v4247
    %v4250 = vadd.f32 %v4193, %v4247
    %v4251 = vadd.f32 %v4197, %v4247
    %v4252 = vadd.f32 %v4201, %v4247
    %v4253 = vadd.f32 %v4205, %v4247
    %v4254 = vadd.f32 %v4209, %v4247
    %v4255 = vadd.f32 %v4213, %v4247
    %v4256 = vadd.f32 %v4217, %v4247
    %v4257 = vadd.f32 %v4221, %v4247
    %v4258 = vadd.f32 %v4225, %v4247
    %v4259 = vadd.f32 %v4229, %v4247
    %v4260 = vadd.f32 %v4233, %v4247
    %v4261 = vadd.f32 %v4237, %v4247
    %v4262 = vadd.f32 %v4241, %v4247
    %v4263 = vadd.f32 %v4245, %v4247
    %v4264 = vrot.slane %v58, 7
    %s4265 = vtos %v4264
    %v4266 = vstv %s4265
    %v4268 = vmul.f32 %v4266, %v75
    %v4269 = vmul.f32 %v4266, %v76
    %v4270 = vmul.f32 %v4266, %v77
    %v4271 = vmul.f32 %v4266, %v78
    %v4272 = vmul.f32 %v4266, %v79
    %v4273 = vmul.f32 %v4266, %v80
    %v4274 = vmul.f32 %v4266, %v81
    %v4275 = vmul.f32 %v4266, %v82
    %v4276 = vmul.f32 %v4266, %v83
    %v4277 = vmul.f32 %v4266, %v84
    %v4278 = vmul.f32 %v4266, %v85
    %v4279 = vmul.f32 %v4266, %v86
    %v4280 = vmul.f32 %v4266, %v87
    %v4281 = vmul.f32 %v4266, %v88
    %v4282 = vmul.f32 %v4266, %v89
    %v4283 = vmul.f32 %v4266, %v90
    %v4284 = vadd.f32 %v4248, %v4268
    %v4285 = vadd.f32 %v4249, %v4269
    %v4286 = vadd.f32 %v4250, %v4270
    %v4287 = vadd.f32 %v4251, %v4271
    %v4288 = vadd.f32 %v4252, %v4272
    %v4289 = vadd.f32 %v4253, %v4273
    %v4290 = vadd.f32 %v4254, %v4274
    %v4291 = vadd.f32 %v4255, %v4275
    %v4292 = vadd.f32 %v4256, %v4276
    %v4293 = vadd.f32 %v4257, %v4277
    %v4294 = vadd.f32 %v4258, %v4278
    %v4295 = vadd.f32 %v4259, %v4279
    %v4296 = vadd.f32 %v4260, %v4280
    %v4297 = vadd.f32 %v4261, %v4281
    %v4298 = vadd.f32 %v4262, %v4282
    %v4299 = vadd.f32 %v4263, %v4283
    %4300 = vrot.lane.b32.xlu0 %v4264, 127
    %v4301 = vpop.permute.xlu0 %4300
    %s4302 = vtos %v4301
    %v4303 = vstv %s4302
    %v4305 = vmul.f32 %v4303, %v108
    %v4306 = vmul.f32 %v4303, %v109
    %v4307 = vmul.f32 %v4303, %v110
    %v4308 = vmul.f32 %v4303, %v111
    %v4309 = vmul.f32 %v4303, %v112
    %v4310 = vmul.f32 %v4303, %v113
    %v4311 = vmul.f32 %v4303, %v114
    %v4312 = vmul.f32 %v4303, %v115
    %v4313 = vmul.f32 %v4303, %v116
    %v4314 = vmul.f32 %v4303, %v117
    %v4315 = vmul.f32 %v4303, %v118
    %v4316 = vmul.f32 %v4303, %v119
    %v4317 = vmul.f32 %v4303, %v120
    %v4318 = vmul.f32 %v4303, %v121
    %v4319 = vmul.f32 %v4303, %v122
    %v4320 = vmul.f32 %v4303, %v123
    %v4321 = vadd.f32 %v4284, %v4305
    %v4322 = vadd.f32 %v4285, %v4306
    %v4323 = vadd.f32 %v4286, %v4307
    %v4324 = vadd.f32 %v4287, %v4308
    %v4325 = vadd.f32 %v4288, %v4309
    %v4326 = vadd.f32 %v4289, %v4310
    %v4327 = vadd.f32 %v4290, %v4311
    %v4328 = vadd.f32 %v4291, %v4312
    %v4329 = vadd.f32 %v4292, %v4313
    %v4330 = vadd.f32 %v4293, %v4314
    %v4331 = vadd.f32 %v4294, %v4315
    %v4332 = vadd.f32 %v4295, %v4316
    %v4333 = vadd.f32 %v4296, %v4317
    %v4334 = vadd.f32 %v4297, %v4318
    %v4335 = vadd.f32 %v4298, %v4319
    %v4336 = vadd.f32 %v4299, %v4320
    %4337 = vrot.lane.b32.xlu0 %v4264, 126
    %v4338 = vpop.permute.xlu0 %4337
    %s4339 = vtos %v4338
    %v4340 = vstv %s4339
    %v4342 = vmul.f32 %v4340, %v141
    %v4343 = vmul.f32 %v4340, %v142
    %v4344 = vmul.f32 %v4340, %v143
    %v4345 = vmul.f32 %v4340, %v144
    %v4346 = vmul.f32 %v4340, %v145
    %v4347 = vmul.f32 %v4340, %v146
    %v4348 = vmul.f32 %v4340, %v147
    %v4349 = vmul.f32 %v4340, %v148
    %v4350 = vmul.f32 %v4340, %v149
    %v4351 = vmul.f32 %v4340, %v150
    %v4352 = vmul.f32 %v4340, %v151
    %v4353 = vmul.f32 %v4340, %v152
    %v4354 = vmul.f32 %v4340, %v153
    %v4355 = vmul.f32 %v4340, %v154
    %v4356 = vmul.f32 %v4340, %v155
    %v4357 = vmul.f32 %v4340, %v156
    %v4358 = vadd.f32 %v4321, %v4342
    %v4359 = vadd.f32 %v4322, %v4343
    %v4360 = vadd.f32 %v4323, %v4344
    %v4361 = vadd.f32 %v4324, %v4345
    %v4362 = vadd.f32 %v4325, %v4346
    %v4363 = vadd.f32 %v4326, %v4347
    %v4364 = vadd.f32 %v4327, %v4348
    %v4365 = vadd.f32 %v4328, %v4349
    %v4366 = vadd.f32 %v4329, %v4350
    %v4367 = vadd.f32 %v4330, %v4351
    %v4368 = vadd.f32 %v4331, %v4352
    %v4369 = vadd.f32 %v4332, %v4353
    %v4370 = vadd.f32 %v4333, %v4354
    %v4371 = vadd.f32 %v4334, %v4355
    %v4372 = vadd.f32 %v4335, %v4356
    %v4373 = vadd.f32 %v4336, %v4357
    %v4374 = vmul.f32 %v4358, 0.2
    %v4375 = vmul.f32 %v4359, 0.2
    %v4376 = vmul.f32 %v4360, 0.2
    %v4377 = vmul.f32 %v4361, 0.2
    %v4378 = vmul.f32 %v4362, 0.2
    %v4379 = vmul.f32 %v4363, 0.2
    %v4380 = vmul.f32 %v4364, 0.2
    %v4381 = vmul.f32 %v4365, 0.2
    %v4382 = vmul.f32 %v4366, 0.2
    %v4383 = vmul.f32 %v4367, 0.2
    %v4384 = vmul.f32 %v4368, 0.2
    %v4385 = vmul.f32 %v4369, 0.2
    %v4386 = vmul.f32 %v4370, 0.2
    %v4387 = vmul.f32 %v4371, 0.2
    %v4388 = vmul.f32 %v4372, 0.2
    %v4389 = vmul.f32 %v4373, 0.2
    %v4390 = vmax.f32 %v4358, %v4374
    %v4391 = vmax.f32 %v4359, %v4375
    %v4392 = vmax.f32 %v4360, %v4376
    %v4393 = vmax.f32 %v4361, %v4377
    %v4394 = vmax.f32 %v4362, %v4378
    %v4395 = vmax.f32 %v4363, %v4379
    %v4396 = vmax.f32 %v4364, %v4380
    %v4397 = vmax.f32 %v4365, %v4381
    %v4398 = vmax.f32 %v4366, %v4382
    %v4399 = vmax.f32 %v4367, %v4383
    %v4400 = vmax.f32 %v4368, %v4384
    %v4401 = vmax.f32 %v4369, %v4385
    %v4402 = vmax.f32 %v4370, %v4386
    %v4403 = vmax.f32 %v4371, %v4387
    %v4404 = vmax.f32 %v4372, %v4388
    %v4405 = vmax.f32 %v4373, %v4389
    %s4406 = sld [smem:[#allocation2 + $0x87]]
    %v4407 = vstv %s4406
    %v4408 = vmul.f32 %v4407, %v4390
    %v4409 = vmul.f32 %v4407, %v4391
    %v4410 = vmul.f32 %v4407, %v4392
    %v4411 = vmul.f32 %v4407, %v4393
    %v4412 = vmul.f32 %v4407, %v4394
    %v4413 = vmul.f32 %v4407, %v4395
    %v4414 = vmul.f32 %v4407, %v4396
    %v4415 = vmul.f32 %v4407, %v4397
    %v4416 = vmul.f32 %v4407, %v4398
    %v4417 = vmul.f32 %v4407, %v4399
    %v4418 = vmul.f32 %v4407, %v4400
    %v4419 = vmul.f32 %v4407, %v4401
    %v4420 = vmul.f32 %v4407, %v4402
    %v4421 = vmul.f32 %v4407, %v4403
    %v4422 = vmul.f32 %v4407, %v4404
    %v4423 = vmul.f32 %v4407, %v4405
    %v4424 = vadd.f32 %v4167, %v4408
    %v4425 = vadd.f32 %v4168, %v4409
    %v4426 = vadd.f32 %v4169, %v4410
    %v4427 = vadd.f32 %v4170, %v4411
    %v4428 = vadd.f32 %v4171, %v4412
    %v4429 = vadd.f32 %v4172, %v4413
    %v4430 = vadd.f32 %v4173, %v4414
    %v4431 = vadd.f32 %v4174, %v4415
    %v4432 = vadd.f32 %v4175, %v4416
    %v4433 = vadd.f32 %v4176, %v4417
    %v4434 = vadd.f32 %v4177, %v4418
    %v4435 = vadd.f32 %v4178, %v4419
    %v4436 = vadd.f32 %v4179, %v4420
    %v4437 = vadd.f32 %v4180, %v4421
    %v4438 = vadd.f32 %v4181, %v4422
    %v4439 = vadd.f32 %v4182, %v4423
    %4440 = vmax.xlane.f32.xlu0 %v4424
    %v4441 = vpop.xlane.xlu0 %4440
    %4442 = vmax.xlane.f32.xlu0 %v4425
    %v4443 = vpop.xlane.xlu0 %4442
    %4444 = vmax.xlane.f32.xlu0 %v4426
    %v4445 = vpop.xlane.xlu0 %4444
    %4446 = vmax.xlane.f32.xlu0 %v4427
    %v4447 = vpop.xlane.xlu0 %4446
    %4448 = vmax.xlane.f32.xlu0 %v4428
    %v4449 = vpop.xlane.xlu0 %4448
    %4450 = vmax.xlane.f32.xlu0 %v4429
    %v4451 = vpop.xlane.xlu0 %4450
    %4452 = vmax.xlane.f32.xlu0 %v4430
    %v4453 = vpop.xlane.xlu0 %4452
    %4454 = vmax.xlane.f32.xlu0 %v4431
    %v4455 = vpop.xlane.xlu0 %4454
    %4456 = vmax.xlane.f32.xlu0 %v4432
    %v4457 = vpop.xlane.xlu0 %4456
    %4458 = vmax.xlane.f32.xlu0 %v4433
    %v4459 = vpop.xlane.xlu0 %4458
    %4460 = vmax.xlane.f32.xlu0 %v4434
    %v4461 = vpop.xlane.xlu0 %4460
    %4462 = vmax.xlane.f32.xlu0 %v4435
    %v4463 = vpop.xlane.xlu0 %4462
    %4464 = vmax.xlane.f32.xlu0 %v4436
    %v4465 = vpop.xlane.xlu0 %4464
    %4466 = vmax.xlane.f32.xlu0 %v4437
    %v4467 = vpop.xlane.xlu0 %4466
    %4468 = vmax.xlane.f32.xlu0 %v4438
    %v4469 = vpop.xlane.xlu0 %4468
    %4470 = vmax.xlane.f32.xlu0 %v4439
    %v4471 = vpop.xlane.xlu0 %4470
    %v4472 = vsub.f32 %v4424, %v4441
    %v4473 = vsub.f32 %v4425, %v4443
    %v4474 = vsub.f32 %v4426, %v4445
    %v4475 = vsub.f32 %v4427, %v4447
    %v4476 = vsub.f32 %v4428, %v4449
    %v4477 = vsub.f32 %v4429, %v4451
    %v4478 = vsub.f32 %v4430, %v4453
    %v4479 = vsub.f32 %v4431, %v4455
    %v4480 = vsub.f32 %v4432, %v4457
    %v4481 = vsub.f32 %v4433, %v4459
    %v4482 = vsub.f32 %v4434, %v4461
    %v4483 = vsub.f32 %v4435, %v4463
    %v4484 = vsub.f32 %v4436, %v4465
    %v4485 = vsub.f32 %v4437, %v4467
    %v4486 = vsub.f32 %v4438, %v4469
    %v4487 = vsub.f32 %v4439, %v4471
    %v4488 = vmul.f32 %v4472, 1.442695
    %v4489 = vpow.pop %v4488
    %v4490 = vmul.f32 %v4473, 1.442695
    %v4491 = vpow.pop %v4490
    %v4492 = vmul.f32 %v4474, 1.442695
    %v4493 = vpow.pop %v4492
    %v4494 = vmul.f32 %v4475, 1.442695
    %v4495 = vpow.pop %v4494
    %v4496 = vmul.f32 %v4476, 1.442695
    %v4497 = vpow.pop %v4496
    %v4498 = vmul.f32 %v4477, 1.442695
    %v4499 = vpow.pop %v4498
    %v4500 = vmul.f32 %v4478, 1.442695
    %v4501 = vpow.pop %v4500
    %v4502 = vmul.f32 %v4479, 1.442695
    %v4503 = vpow.pop %v4502
    %v4504 = vmul.f32 %v4480, 1.442695
    %v4505 = vpow.pop %v4504
    %v4506 = vmul.f32 %v4481, 1.442695
    %v4507 = vpow.pop %v4506
    %v4508 = vmul.f32 %v4482, 1.442695
    %v4509 = vpow.pop %v4508
    %v4510 = vmul.f32 %v4483, 1.442695
    %v4511 = vpow.pop %v4510
    %v4512 = vmul.f32 %v4484, 1.442695
    %v4513 = vpow.pop %v4512
    %v4514 = vmul.f32 %v4485, 1.442695
    %v4515 = vpow.pop %v4514
    %v4516 = vmul.f32 %v4486, 1.442695
    %v4517 = vpow.pop %v4516
    %v4518 = vmul.f32 %v4487, 1.442695
    %v4519 = vpow.pop %v4518
    %4520 = vmatpush.xpose.msra.mxu0 %v4519
    %4521 = vmatpush.xpose.msra.mxu0 %v4517
    %4522 = vmatpush.xpose.msra.mxu0 %v4515
    %4523 = vmatpush.xpose.msra.mxu0 %v4513
    %4524 = vmatpush.xpose.msra.mxu0 %v4511
    %4525 = vmatpush.xpose.msra.mxu0 %v4509
    %4526 = vmatpush.xpose.msra.mxu0 %v4507
    %4527 = vmatpush.xpose.msra.mxu0 %v4505
    %4528 = vmatpush.xpose.msra.mxu0 %v4503
    %4529 = vmatpush.xpose.msra.mxu0 %v4501
    %4530 = vmatpush.xpose.msra.mxu0 %v4499
    %4531 = vmatpush.xpose.msra.mxu0 %v4497
    %4532 = vmatpush.xpose.msra.mxu0 %v4495
    %4533 = vmatpush.xpose.msra.mxu0 %v4493
    %4534 = vmatpush.xpose.msra.mxu0 %v4491
    %4535 = vmatpush.xpose.msra.mxu0 %v4489
    %4536 = vmatmul.f32.gmra.mxu0 %v40
    %v4537 = vpop.f32.mrf.mxu0
    %v4538 = vadd.f32 0.0, %v4537
    %4539 = vdwg.mxu0
    %4540 = vmatpush.xpose.msra.mxu0 %v4519
    %4541 = vmatpush.xpose.msra.mxu0 %v4517
    %4542 = vmatpush.xpose.msra.mxu0 %v4515
    %4543 = vmatpush.xpose.msra.mxu0 %v4513
    %4544 = vmatpush.xpose.msra.mxu0 %v4511
    %4545 = vmatpush.xpose.msra.mxu0 %v4509
    %4546 = vmatpush.xpose.msra.mxu0 %v4507
    %4547 = vmatpush.xpose.msra.mxu0 %v4505
    %4548 = vmatpush.xpose.msra.mxu0 %v4503
    %4549 = vmatpush.xpose.msra.mxu0 %v4501
    %4550 = vmatpush.xpose.msra.mxu0 %v4499
    %4551 = vmatpush.xpose.msra.mxu0 %v4497
    %4552 = vmatpush.xpose.msra.mxu0 %v4495
    %4553 = vmatpush.xpose.msra.mxu0 %v4493
    %4554 = vmatpush.xpose.msra.mxu0 %v4491
    %4555 = vmatpush.xpose.msra.mxu0 %v4489
    %4556 = vmatmul.f32.gmra.mxu0 1.0
    %v4557 = vpop.f32.mrf.mxu0
    %v4558 = vadd.f32 0.0, %v4557
    %4559 = vdwg.mxu0
    %v4560 = vrcp.pop %v4558
    %v4561 = vperm.slane %v4560, 0
    %v4562 = vmul.f32 %v4538, %v4561
    %v4563 = vld [vmem:[%s4] sm:$0xff]
    %v4564 = vld [vmem:[%s4 + $0x8] sm:$0xff]
    %4566 = vset.pattern.permute.xlu0 0
    %4567 = vperm.xlu0 %4566, %v4563
    %v4568 = vpop.permute.xlu0 %4567
    %4571 = vset.pattern.permute.xlu0 0
    %4572 = vperm.xlu0 %4571, %v4564
    %v4573 = vpop.permute.xlu0 %4572
    %v4575 = vadd.f32 %v2383, %v4568
    %v4576 = vadd.f32 %v4562, %v4573
    %4577 = vst [vmem:[%s7] sm:$0xff] %v4575
    %4578 = vst [vmem:[%s7 + $0x8] sm:$0xff] %v4576
    // Predicated region
    $region34: #{gatv2_actor_critic_forward.4} parent=1 // pred_check
      _
    $region35: #{gatv2_actor_critic_forward.4} parent=1 // pred_check_branch
      %4580 = sbr.rel (0) target = $region37
    $region36: #{gatv2_actor_critic_forward.4} parent=1 // pred_region
      _
    $region37: #{gatv2_actor_critic_forward.4} parent=1 // pred_fallthru
      _
    // Predicated region
    $region38: #{gatv2_actor_critic_forward.4} parent=1 // pred_check
      _
    $region39: #{gatv2_actor_critic_forward.4} parent=1 // pred_check_branch
      %4582 = sbr.rel (0) target = $region41
    $region40: #{gatv2_actor_critic_forward.4} parent=1 // pred_region
      _
    $region41: #{gatv2_actor_critic_forward.4} parent=1 // pred_fallthru
      _
    %4583 = vsyncpa [#allocation3], 1

// kernel: gatv2_actor_critic_forward.3
$region0: #{gatv2_actor_critic_forward.3}
  #allocation0 [shape = 'u32[]', space=smem, size = 0x4, offset = 0x4, fixed_abs, tag = 'smem constant byte address 0x4 - core index']
  #allocation1 [shape = 'u32[72,128]{1,0:T(1,128)}', space=vmem, size = 0x9000, scoped, tag = 'internal scratch']
  %s0 = inlined_call_operand.vmem [shape: f32[16,128], index: 0, kind: input, shape index: {}]
  %s1 = inlined_call_operand.vmem [shape: f32[128,16], index: 1, kind: input, shape index: {}]
  %s2 = inlined_call_operand.vmem [shape: f32[16,3], index: 2, kind: input, shape index: {}]
  %s3 = inlined_call_operand.vmem [shape: f32[2,8], index: 3, kind: input, shape index: {}]
  %s4 = inlined_call_operand.vmem [shape: f32[16,1], index: 4, kind: input, shape index: {}]
  %s5 = inlined_call_operand.vmem [shape: bf16[3,128,128], index: 5, kind: input, shape index: {}]
  %s6 = inlined_call_operand.vmem [shape: bf16[128,128], index: 6, kind: input, shape index: {}]
  %s7 = inlined_call_operand.vmem [shape: f32[16,128], index: 7, kind: output, shape index: {}]
  %s8 = sld [smem:[#allocation0]]
  $region42: #{gatv2_actor_critic_forward.3} parent=0
    _
  %s10 = ssub.s32 1, %s8
  %s11 = scalar_select 0, %s10, %s8
  $region1: #{gatv2_actor_critic_forward.3} parent=0
    #allocation2 [shape = 'u8[1024]{0}', space=smem, size = 0x400, scoped, tag = 'input window, operand 3, single buffered']
    #allocation3 [shape = 's32[1]{0}', space=sflag, size = 0x4, scoped, tag = 'scoped memory for gatv2_actor_critic_forward.3']
    %12 = vsyncpa [#allocation3], 0
    // Predicated region
    $region2: #{gatv2_actor_critic_forward.3} parent=1 // pred_check
      _
    $region3: #{gatv2_actor_critic_forward.3} parent=1 // pred_check_branch
      %14 = sbr.rel (0) target = $region5
    $region4: #{gatv2_actor_critic_forward.3} parent=1 // pred_region
      _
    $region5: #{gatv2_actor_critic_forward.3} parent=1 // pred_fallthru
      _
    // Predicated region
    $region6: #{gatv2_actor_critic_forward.3} parent=1 // pred_check
      _
    $region7: #{gatv2_actor_critic_forward.3} parent=1 // pred_check_branch
      %16 = sbr.rel (0) target = $region9
    $region8: #{gatv2_actor_critic_forward.3} parent=1 // pred_region
      _
    $region9: #{gatv2_actor_critic_forward.3} parent=1 // pred_fallthru
      _
    // Predicated region
    $region10: #{gatv2_actor_critic_forward.3} parent=1 // pred_check
      _
    $region11: #{gatv2_actor_critic_forward.3} parent=1 // pred_check_branch
      %18 = sbr.rel (0) target = $region13
    $region12: #{gatv2_actor_critic_forward.3} parent=1 // pred_region
      _
    $region13: #{gatv2_actor_critic_forward.3} parent=1 // pred_fallthru
      _
    // Predicated region
    $region14: #{gatv2_actor_critic_forward.3} parent=1 // pred_check
      _
    $region15: #{gatv2_actor_critic_forward.3} parent=1 // pred_check_branch
      %20 = sbr.rel (0) target = $region17
    $region16: #{gatv2_actor_critic_forward.3} parent=1 // pred_region
      %22 = vsyncadd [#allocation3], 0
      %s24 = sshll.u32 %s3, 4
      %s25 = int_to_ptr.vmem [resolvable:$true] %s24
      %27 = dma.vmem_to_smem %s25, 32, [#allocation2], [#allocation3]
    $region17: #{gatv2_actor_critic_forward.3} parent=1 // pred_fallthru
      _
    // Predicated region
    $region18: #{gatv2_actor_critic_forward.3} parent=1 // pred_check
      _
    $region19: #{gatv2_actor_critic_forward.3} parent=1 // pred_check_branch
      %29 = sbr.rel (0) target = $region21
    $region20: #{gatv2_actor_critic_forward.3} parent=1 // pred_region
      _
    $region21: #{gatv2_actor_critic_forward.3} parent=1 // pred_fallthru
      _
    // Predicated region
    $region22: #{gatv2_actor_critic_forward.3} parent=1 // pred_check
      _
    $region23: #{gatv2_actor_critic_forward.3} parent=1 // pred_check_branch
      %31 = sbr.rel (0) target = $region25
    $region24: #{gatv2_actor_critic_forward.3} parent=1 // pred_region
      _
    $region25: #{gatv2_actor_critic_forward.3} parent=1 // pred_fallthru
      _
    // Predicated region
    $region26: #{gatv2_actor_critic_forward.3} parent=1 // pred_check
      _
    $region27: #{gatv2_actor_critic_forward.3} parent=1 // pred_check_branch
      %33 = sbr.rel (0) target = $region29
    $region28: #{gatv2_actor_critic_forward.3} parent=1 // pred_region
      _
    $region29: #{gatv2_actor_critic_forward.3} parent=1 // pred_fallthru
      _
    // Predicated region
    $region30: #{gatv2_actor_critic_forward.3} parent=1 // pred_check
      _
    $region31: #{gatv2_actor_critic_forward.3} parent=1 // pred_check_branch
      %35 = sbr.rel (0) target = $region33
    $region32: #{gatv2_actor_critic_forward.3} parent=1 // pred_region
      %37 = dma.done [#allocation3], 32
    $region33: #{gatv2_actor_critic_forward.3} parent=1 // pred_fallthru
      _
    %38 = sfence
    %v39 = vld [vmem:[%s0] sm:$0xff]
    %v40 = vld [vmem:[%s0 + $0x8] sm:$0xff]
    %v41 = vld [vmem:[%s1] sm:$0xff]
    %v42 = vld [vmem:[%s1 + $0x8] sm:$0xff]
    %v43 = vld [vmem:[%s1 + $0x10] sm:$0xff]
    %v44 = vld [vmem:[%s1 + $0x18] sm:$0xff]
    %v45 = vld [vmem:[%s1 + $0x20] sm:$0xff]
    %v46 = vld [vmem:[%s1 + $0x28] sm:$0xff]
    %v47 = vld [vmem:[%s1 + $0x30] sm:$0xff]
    %v48 = vld [vmem:[%s1 + $0x38] sm:$0xff]
    %v49 = vld [vmem:[%s1 + $0x40] sm:$0xff]
    %v50 = vld [vmem:[%s1 + $0x48] sm:$0xff]
    %v51 = vld [vmem:[%s1 + $0x50] sm:$0xff]
    %v52 = vld [vmem:[%s1 + $0x58] sm:$0xff]
    %v53 = vld [vmem:[%s1 + $0x60] sm:$0xff]
    %v54 = vld [vmem:[%s1 + $0x68] sm:$0xff]
    %v55 = vld [vmem:[%s1 + $0x70] sm:$0xff]
    %v56 = vld [vmem:[%s1 + $0x78] sm:$0xff]
    %v57 = vld [vmem:[%s2] sm:$0xff]
    %v58 = vld [vmem:[%s2 + $0x8] sm:$0xff]
    %v59 = vld [vmem:[%s5] sm:$0xf]
    %v60 = vld [vmem:[%s5 + $0x4] sm:$0xf]
    %v61 = vld [vmem:[%s5 + $0x8] sm:$0xf]
    %v62 = vld [vmem:[%s5 + $0xc] sm:$0xf]
    %v63 = vld [vmem:[%s5 + $0x10] sm:$0xf]
    %v64 = vld [vmem:[%s5 + $0x14] sm:$0xf]
    %v65 = vld [vmem:[%s5 + $0x18] sm:$0xf]
    %v66 = vld [vmem:[%s5 + $0x1c] sm:$0xf]
    %v67 = vld [vmem:[%s5 + $0x20] sm:$0xf]
    %v68 = vld [vmem:[%s5 + $0x24] sm:$0xf]
    %v69 = vld [vmem:[%s5 + $0x28] sm:$0xf]
    %v70 = vld [vmem:[%s5 + $0x2c] sm:$0xf]
    %v71 = vld [vmem:[%s5 + $0x30] sm:$0xf]
    %v72 = vld [vmem:[%s5 + $0x34] sm:$0xf]
    %v73 = vld [vmem:[%s5 + $0x38] sm:$0xf]
    %v74 = vld [vmem:[%s5 + $0x3c] sm:$0xf]
    %v75 = vunpack.c.l.bf16 %v59
    %v76 = vunpack.c.l.bf16 %v60
    %v77 = vunpack.c.l.bf16 %v61
    %v78 = vunpack.c.l.bf16 %v62
    %v79 = vunpack.c.l.bf16 %v63
    %v80 = vunpack.c.l.bf16 %v64
    %v81 = vunpack.c.l.bf16 %v65
    %v82 = vunpack.c.l.bf16 %v66
    %v83 = vunpack.c.l.bf16 %v67
    %v84 = vunpack.c.l.bf16 %v68
    %v85 = vunpack.c.l.bf16 %v69
    %v86 = vunpack.c.l.bf16 %v70
    %v87 = vunpack.c.l.bf16 %v71
    %v88 = vunpack.c.l.bf16 %v72
    %v89 = vunpack.c.l.bf16 %v73
    %v90 = vunpack.c.l.bf16 %v74
    %s91 = scalar_lea.vmem %s5, 64
    %v92 = vld [vmem:[%s91] sm:$0xf]
    %v93 = vld [vmem:[%s91 + $0x4] sm:$0xf]
    %v94 = vld [vmem:[%s91 + $0x8] sm:$0xf]
    %v95 = vld [vmem:[%s91 + $0xc] sm:$0xf]
    %v96 = vld [vmem:[%s91 + $0x10] sm:$0xf]
    %v97 = vld [vmem:[%s91 + $0x14] sm:$0xf]
    %v98 = vld [vmem:[%s91 + $0x18] sm:$0xf]
    %v99 = vld [vmem:[%s91 + $0x1c] sm:$0xf]
    %v100 = vld [vmem:[%s91 + $0x20] sm:$0xf]
    %v101 = vld [vmem:[%s91 + $0x24] sm:$0xf]
    %v102 = vld [vmem:[%s91 + $0x28] sm:$0xf]
    %v103 = vld [vmem:[%s91 + $0x2c] sm:$0xf]
    %v104 = vld [vmem:[%s91 + $0x30] sm:$0xf]
    %v105 = vld [vmem:[%s91 + $0x34] sm:$0xf]
    %v106 = vld [vmem:[%s91 + $0x38] sm:$0xf]
    %v107 = vld [vmem:[%s91 + $0x3c] sm:$0xf]
    %v108 = vunpack.c.l.bf16 %v92
    %v109 = vunpack.c.l.bf16 %v93
    %v110 = vunpack.c.l.bf16 %v94
    %v111 = vunpack.c.l.bf16 %v95
    %v112 = vunpack.c.l.bf16 %v96
    %v113 = vunpack.c.l.bf16 %v97
    %v114 = vunpack.c.l.bf16 %v98
    %v115 = vunpack.c.l.bf16 %v99
    %v116 = vunpack.c.l.bf16 %v100
    %v117 = vunpack.c.l.bf16 %v101
    %v118 = vunpack.c.l.bf16 %v102
    %v119 = vunpack.c.l.bf16 %v103
    %v120 = vunpack.c.l.bf16 %v104
    %v121 = vunpack.c.l.bf16 %v105
    %v122 = vunpack.c.l.bf16 %v106
    %v123 = vunpack.c.l.bf16 %v107
    %s124 = scalar_lea.vmem %s5, 128
    %v125 = vld [vmem:[%s124] sm:$0xf]
    %v126 = vld [vmem:[%s124 + $0x4] sm:$0xf]
    %v127 = vld [vmem:[%s124 + $0x8] sm:$0xf]
    %v128 = vld [vmem:[%s124 + $0xc] sm:$0xf]
    %v129 = vld [vmem:[%s124 + $0x10] sm:$0xf]
    %v130 = vld [vmem:[%s124 + $0x14] sm:$0xf]
    %v131 = vld [vmem:[%s124 + $0x18] sm:$0xf]
    %v132 = vld [vmem:[%s124 + $0x1c] sm:$0xf]
    %v133 = vld [vmem:[%s124 + $0x20] sm:$0xf]
    %v134 = vld [vmem:[%s124 + $0x24] sm:$0xf]
    %v135 = vld [vmem:[%s124 + $0x28] sm:$0xf]
    %v136 = vld [vmem:[%s124 + $0x2c] sm:$0xf]
    %v137 = vld [vmem:[%s124 + $0x30] sm:$0xf]
    %v138 = vld [vmem:[%s124 + $0x34] sm:$0xf]
    %v139 = vld [vmem:[%s124 + $0x38] sm:$0xf]
    %v140 = vld [vmem:[%s124 + $0x3c] sm:$0xf]
    %v141 = vunpack.c.l.bf16 %v125
    %v142 = vunpack.c.l.bf16 %v126
    %v143 = vunpack.c.l.bf16 %v127
    %v144 = vunpack.c.l.bf16 %v128
    %v145 = vunpack.c.l.bf16 %v129
    %v146 = vunpack.c.l.bf16 %v130
    %v147 = vunpack.c.l.bf16 %v131
    %v148 = vunpack.c.l.bf16 %v132
    %v149 = vunpack.c.l.bf16 %v133
    %v150 = vunpack.c.l.bf16 %v134
    %v151 = vunpack.c.l.bf16 %v135
    %v152 = vunpack.c.l.bf16 %v136
    %v153 = vunpack.c.l.bf16 %v137
    %v154 = vunpack.c.l.bf16 %v138
    %v155 = vunpack.c.l.bf16 %v139
    %v156 = vunpack.c.l.bf16 %v140
    %v157 = vld [vmem:[%s6] sm:$0xf]
    %v158 = vld [vmem:[%s6 + $0x4] sm:$0xf]
    %v159 = vld [vmem:[%s6 + $0x8] sm:$0xf]
    %v160 = vld [vmem:[%s6 + $0xc] sm:$0xf]
    %v161 = vld [vmem:[%s6 + $0x10] sm:$0xf]
    %v162 = vld [vmem:[%s6 + $0x14] sm:$0xf]
    %v163 = vld [vmem:[%s6 + $0x18] sm:$0xf]
    %v164 = vld [vmem:[%s6 + $0x1c] sm:$0xf]
    %v165 = vld [vmem:[%s6 + $0x20] sm:$0xf]
    %v166 = vld [vmem:[%s6 + $0x24] sm:$0xf]
    %v167 = vld [vmem:[%s6 + $0x28] sm:$0xf]
    %v168 = vld [vmem:[%s6 + $0x2c] sm:$0xf]
    %v169 = vld [vmem:[%s6 + $0x30] sm:$0xf]
    %v170 = vld [vmem:[%s6 + $0x34] sm:$0xf]
    %v171 = vld [vmem:[%s6 + $0x38] sm:$0xf]
    %v172 = vld [vmem:[%s6 + $0x3c] sm:$0xf]
    %v173 = vunpack.c.l.bf16 %v157
    %v174 = vunpack.c.l.bf16 %v158
    %v175 = vunpack.c.l.bf16 %v159
    %v176 = vunpack.c.l.bf16 %v160
    %v177 = vunpack.c.l.bf16 %v161
    %v178 = vunpack.c.l.bf16 %v162
    %v179 = vunpack.c.l.bf16 %v163
    %v180 = vunpack.c.l.bf16 %v164
    %v181 = vunpack.c.l.bf16 %v165
    %v182 = vunpack.c.l.bf16 %v166
    %v183 = vunpack.c.l.bf16 %v167
    %v184 = vunpack.c.l.bf16 %v168
    %v185 = vunpack.c.l.bf16 %v169
    %v186 = vunpack.c.l.bf16 %v170
    %v187 = vunpack.c.l.bf16 %v171
    %v188 = vunpack.c.l.bf16 %v172
    %190 = vset.pattern.permute.xlu0 0
    %191 = vperm.xlu0 %190, %v41
    %v192 = vpop.permute.xlu0 %191
    %195 = vset.pattern.permute.xlu0 0
    %196 = vperm.xlu0 %195, %v42
    %v197 = vpop.permute.xlu0 %196
    %200 = vset.pattern.permute.xlu0 0
    %201 = vperm.xlu0 %200, %v43
    %v202 = vpop.permute.xlu0 %201
    %205 = vset.pattern.permute.xlu0 0
    %206 = vperm.xlu0 %205, %v44
    %v207 = vpop.permute.xlu0 %206
    %210 = vset.pattern.permute.xlu0 0
    %211 = vperm.xlu0 %210, %v45
    %v212 = vpop.permute.xlu0 %211
    %215 = vset.pattern.permute.xlu0 0
    %216 = vperm.xlu0 %215, %v46
    %v217 = vpop.permute.xlu0 %216
    %220 = vset.pattern.permute.xlu0 0
    %221 = vperm.xlu0 %220, %v47
    %v222 = vpop.permute.xlu0 %221
    %225 = vset.pattern.permute.xlu0 0
    %226 = vperm.xlu0 %225, %v48
    %v227 = vpop.permute.xlu0 %226
    %230 = vset.pattern.permute.xlu0 0
    %231 = vperm.xlu0 %230, %v49
    %v232 = vpop.permute.xlu0 %231
    %235 = vset.pattern.permute.xlu0 0
    %236 = vperm.xlu0 %235, %v50
    %v237 = vpop.permute.xlu0 %236
    %240 = vset.pattern.permute.xlu0 0
    %241 = vperm.xlu0 %240, %v51
    %v242 = vpop.permute.xlu0 %241
    %245 = vset.pattern.permute.xlu0 0
    %246 = vperm.xlu0 %245, %v52
    %v247 = vpop.permute.xlu0 %246
    %250 = vset.pattern.permute.xlu0 0
    %251 = vperm.xlu0 %250, %v53
    %v252 = vpop.permute.xlu0 %251
    %255 = vset.pattern.permute.xlu0 0
    %256 = vperm.xlu0 %255, %v54
    %v257 = vpop.permute.xlu0 %256
    %260 = vset.pattern.permute.xlu0 0
    %261 = vperm.xlu0 %260, %v55
    %v262 = vpop.permute.xlu0 %261
    %265 = vset.pattern.permute.xlu0 0
    %266 = vperm.xlu0 %265, %v56
    %v267 = vpop.permute.xlu0 %266
    %v269 = vperm.slane %v39, 0
    %v270 = vadd.f32 %v192, %v269
    %v271 = vadd.f32 %v197, %v269
    %v272 = vadd.f32 %v202, %v269
    %v273 = vadd.f32 %v207, %v269
    %v274 = vadd.f32 %v212, %v269
    %v275 = vadd.f32 %v217, %v269
    %v276 = vadd.f32 %v222, %v269
    %v277 = vadd.f32 %v227, %v269
    %v278 = vadd.f32 %v232, %v269
    %v279 = vadd.f32 %v237, %v269
    %v280 = vadd.f32 %v242, %v269
    %v281 = vadd.f32 %v247, %v269
    %v282 = vadd.f32 %v252, %v269
    %v283 = vadd.f32 %v257, %v269
    %v284 = vadd.f32 %v262, %v269
    %v285 = vadd.f32 %v267, %v269
    %s287 = vtos %v57
    %v288 = vstv %s287
    %v290 = vmul.f32 %v288, %v75
    %v291 = vmul.f32 %v288, %v76
    %v292 = vmul.f32 %v288, %v77
    %v293 = vmul.f32 %v288, %v78
    %v294 = vmul.f32 %v288, %v79
    %v295 = vmul.f32 %v288, %v80
    %v296 = vmul.f32 %v288, %v81
    %v297 = vmul.f32 %v288, %v82
    %v298 = vmul.f32 %v288, %v83
    %v299 = vmul.f32 %v288, %v84
    %v300 = vmul.f32 %v288, %v85
    %v301 = vmul.f32 %v288, %v86
    %v302 = vmul.f32 %v288, %v87
    %v303 = vmul.f32 %v288, %v88
    %v304 = vmul.f32 %v288, %v89
    %v305 = vmul.f32 %v288, %v90
    %v306 = vadd.f32 %v270, %v290
    %v307 = vadd.f32 %v271, %v291
    %v308 = vadd.f32 %v272, %v292
    %v309 = vadd.f32 %v273, %v293
    %v310 = vadd.f32 %v274, %v294
    %v311 = vadd.f32 %v275, %v295
    %v312 = vadd.f32 %v276, %v296
    %v313 = vadd.f32 %v277, %v297
    %v314 = vadd.f32 %v278, %v298
    %v315 = vadd.f32 %v279, %v299
    %v316 = vadd.f32 %v280, %v300
    %v317 = vadd.f32 %v281, %v301
    %v318 = vadd.f32 %v282, %v302
    %v319 = vadd.f32 %v283, %v303
    %v320 = vadd.f32 %v284, %v304
    %v321 = vadd.f32 %v285, %v305
    %322 = vrot.lane.b32.xlu0 %v57, 127
    %v323 = vpop.permute.xlu0 %322
    %s324 = vtos %v323
    %v325 = vstv %s324
    %v327 = vmul.f32 %v325, %v108
    %v328 = vmul.f32 %v325, %v109
    %v329 = vmul.f32 %v325, %v110
    %v330 = vmul.f32 %v325, %v111
    %v331 = vmul.f32 %v325, %v112
    %v332 = vmul.f32 %v325, %v113
    %v333 = vmul.f32 %v325, %v114
    %v334 = vmul.f32 %v325, %v115
    %v335 = vmul.f32 %v325, %v116
    %v336 = vmul.f32 %v325, %v117
    %v337 = vmul.f32 %v325, %v118
    %v338 = vmul.f32 %v325, %v119
    %v339 = vmul.f32 %v325, %v120
    %v340 = vmul.f32 %v325, %v121
    %v341 = vmul.f32 %v325, %v122
    %v342 = vmul.f32 %v325, %v123
    %v343 = vadd.f32 %v306, %v327
    %v344 = vadd.f32 %v307, %v328
    %v345 = vadd.f32 %v308, %v329
    %v346 = vadd.f32 %v309, %v330
    %v347 = vadd.f32 %v310, %v331
    %v348 = vadd.f32 %v311, %v332
    %v349 = vadd.f32 %v312, %v333
    %v350 = vadd.f32 %v313, %v334
    %v351 = vadd.f32 %v314, %v335
    %v352 = vadd.f32 %v315, %v336
    %v353 = vadd.f32 %v316, %v337
    %v354 = vadd.f32 %v317, %v338
    %v355 = vadd.f32 %v318, %v339
    %v356 = vadd.f32 %v319, %v340
    %v357 = vadd.f32 %v320, %v341
    %v358 = vadd.f32 %v321, %v342
    %359 = vrot.lane.b32.xlu0 %v57, 126
    %v360 = vpop.permute.xlu0 %359
    %s361 = vtos %v360
    %v362 = vstv %s361
    %v364 = vmul.f32 %v362, %v141
    %v365 = vmul.f32 %v362, %v142
    %v366 = vmul.f32 %v362, %v143
    %v367 = vmul.f32 %v362, %v144
    %v368 = vmul.f32 %v362, %v145
    %v369 = vmul.f32 %v362, %v146
    %v370 = vmul.f32 %v362, %v147
    %v371 = vmul.f32 %v362, %v148
    %v372 = vmul.f32 %v362, %v149
    %v373 = vmul.f32 %v362, %v150
    %v374 = vmul.f32 %v362, %v151
    %v375 = vmul.f32 %v362, %v152
    %v376 = vmul.f32 %v362, %v153
    %v377 = vmul.f32 %v362, %v154
    %v378 = vmul.f32 %v362, %v155
    %v379 = vmul.f32 %v362, %v156
    %v380 = vadd.f32 %v343, %v364
    %v381 = vadd.f32 %v344, %v365
    %v382 = vadd.f32 %v345, %v366
    %v383 = vadd.f32 %v346, %v367
    %v384 = vadd.f32 %v347, %v368
    %v385 = vadd.f32 %v348, %v369
    %v386 = vadd.f32 %v349, %v370
    %v387 = vadd.f32 %v350, %v371
    %v388 = vadd.f32 %v351, %v372
    %v389 = vadd.f32 %v352, %v373
    %v390 = vadd.f32 %v353, %v374
    %v391 = vadd.f32 %v354, %v375
    %v392 = vadd.f32 %v355, %v376
    %v393 = vadd.f32 %v356, %v377
    %v394 = vadd.f32 %v357, %v378
    %v395 = vadd.f32 %v358, %v379
    %v396 = vmul.f32 %v380, 0.2
    %v397 = vmul.f32 %v381, 0.2
    %v398 = vmul.f32 %v382, 0.2
    %v399 = vmul.f32 %v383, 0.2
    %v400 = vmul.f32 %v384, 0.2
    %v401 = vmul.f32 %v385, 0.2
    %v402 = vmul.f32 %v386, 0.2
    %v403 = vmul.f32 %v387, 0.2
    %v404 = vmul.f32 %v388, 0.2
    %v405 = vmul.f32 %v389, 0.2
    %v406 = vmul.f32 %v390, 0.2
    %v407 = vmul.f32 %v391, 0.2
    %v408 = vmul.f32 %v392, 0.2
    %v409 = vmul.f32 %v393, 0.2
    %v410 = vmul.f32 %v394, 0.2
    %v411 = vmul.f32 %v395, 0.2
    %v412 = vmax.f32 %v380, %v396
    %v413 = vmax.f32 %v381, %v397
    %v414 = vmax.f32 %v382, %v398
    %v415 = vmax.f32 %v383, %v399
    %v416 = vmax.f32 %v384, %v400
    %v417 = vmax.f32 %v385, %v401
    %v418 = vmax.f32 %v386, %v402
    %v419 = vmax.f32 %v387, %v403
    %v420 = vmax.f32 %v388, %v404
    %v421 = vmax.f32 %v389, %v405
    %v422 = vmax.f32 %v390, %v406
    %v423 = vmax.f32 %v391, %v407
    %v424 = vmax.f32 %v392, %v408
    %v425 = vmax.f32 %v393, %v409
    %v426 = vmax.f32 %v394, %v410
    %v427 = vmax.f32 %v395, %v411
    %s428 = sld [smem:[#allocation2]]
    %v429 = vstv %s428
    %v430 = vmul.f32 %v429, %v412
    %v431 = vmul.f32 %v429, %v413
    %v432 = vmul.f32 %v429, %v414
    %v433 = vmul.f32 %v429, %v415
    %v434 = vmul.f32 %v429, %v416
    %v435 = vmul.f32 %v429, %v417
    %v436 = vmul.f32 %v429, %v418
    %v437 = vmul.f32 %v429, %v419
    %v438 = vmul.f32 %v429, %v420
    %v439 = vmul.f32 %v429, %v421
    %v440 = vmul.f32 %v429, %v422
    %v441 = vmul.f32 %v429, %v423
    %v442 = vmul.f32 %v429, %v424
    %v443 = vmul.f32 %v429, %v425
    %v444 = vmul.f32 %v429, %v426
    %v445 = vmul.f32 %v429, %v427
    %v446 = vadd.f32 %v173, %v430
    %v447 = vadd.f32 %v174, %v431
    %v448 = vadd.f32 %v175, %v432
    %v449 = vadd.f32 %v176, %v433
    %v450 = vadd.f32 %v177, %v434
    %v451 = vadd.f32 %v178, %v435
    %v452 = vadd.f32 %v179, %v436
    %v453 = vadd.f32 %v180, %v437
    %v454 = vadd.f32 %v181, %v438
    %v455 = vadd.f32 %v182, %v439
    %v456 = vadd.f32 %v183, %v440
    %v457 = vadd.f32 %v184, %v441
    %v458 = vadd.f32 %v185, %v442
    %v459 = vadd.f32 %v186, %v443
    %v460 = vadd.f32 %v187, %v444
    %v461 = vadd.f32 %v188, %v445
    %462 = vset.pattern.permute.xlu0 1
    %463 = vperm.xlu0 %462, %v41
    %v464 = vpop.permute.xlu0 %463
    %466 = vset.pattern.permute.xlu0 1
    %467 = vperm.xlu0 %466, %v42
    %v468 = vpop.permute.xlu0 %467
    %470 = vset.pattern.permute.xlu0 1
    %471 = vperm.xlu0 %470, %v43
    %v472 = vpop.permute.xlu0 %471
    %474 = vset.pattern.permute.xlu0 1
    %475 = vperm.xlu0 %474, %v44
    %v476 = vpop.permute.xlu0 %475
    %478 = vset.pattern.permute.xlu0 1
    %479 = vperm.xlu0 %478, %v45
    %v480 = vpop.permute.xlu0 %479
    %482 = vset.pattern.permute.xlu0 1
    %483 = vperm.xlu0 %482, %v46
    %v484 = vpop.permute.xlu0 %483
    %486 = vset.pattern.permute.xlu0 1
    %487 = vperm.xlu0 %486, %v47
    %v488 = vpop.permute.xlu0 %487
    %490 = vset.pattern.permute.xlu0 1
    %491 = vperm.xlu0 %490, %v48
    %v492 = vpop.permute.xlu0 %491
    %494 = vset.pattern.permute.xlu0 1
    %495 = vperm.xlu0 %494, %v49
    %v496 = vpop.permute.xlu0 %495
    %498 = vset.pattern.permute.xlu0 1
    %499 = vperm.xlu0 %498, %v50
    %v500 = vpop.permute.xlu0 %499
    %502 = vset.pattern.permute.xlu0 1
    %503 = vperm.xlu0 %502, %v51
    %v504 = vpop.permute.xlu0 %503
    %506 = vset.pattern.permute.xlu0 1
    %507 = vperm.xlu0 %506, %v52
    %v508 = vpop.permute.xlu0 %507
    %510 = vset.pattern.permute.xlu0 1
    %511 = vperm.xlu0 %510, %v53
    %v512 = vpop.permute.xlu0 %511
    %514 = vset.pattern.permute.xlu0 1
    %515 = vperm.xlu0 %514, %v54
    %v516 = vpop.permute.xlu0 %515
    %518 = vset.pattern.permute.xlu0 1
    %519 = vperm.xlu0 %518, %v55
    %v520 = vpop.permute.xlu0 %519
    %522 = vset.pattern.permute.xlu0 1
    %523 = vperm.xlu0 %522, %v56
    %v524 = vpop.permute.xlu0 %523
    %v526 = vperm.slane %v39, 1
    %v527 = vadd.f32 %v464, %v526
    %v528 = vadd.f32 %v468, %v526
    %v529 = vadd.f32 %v472, %v526
    %v530 = vadd.f32 %v476, %v526
    %v531 = vadd.f32 %v480, %v526
    %v532 = vadd.f32 %v484, %v526
    %v533 = vadd.f32 %v488, %v526
    %v534 = vadd.f32 %v492, %v526
    %v535 = vadd.f32 %v496, %v526
    %v536 = vadd.f32 %v500, %v526
    %v537 = vadd.f32 %v504, %v526
    %v538 = vadd.f32 %v508, %v526
    %v539 = vadd.f32 %v512, %v526
    %v540 = vadd.f32 %v516, %v526
    %v541 = vadd.f32 %v520, %v526
    %v542 = vadd.f32 %v524, %v526
    %v543 = vrot.slane %v57, 1
    %s544 = vtos %v543
    %v545 = vstv %s544
    %v547 = vmul.f32 %v545, %v75
    %v548 = vmul.f32 %v545, %v76
    %v549 = vmul.f32 %v545, %v77
    %v550 = vmul.f32 %v545, %v78
    %v551 = vmul.f32 %v545, %v79
    %v552 = vmul.f32 %v545, %v80
    %v553 = vmul.f32 %v545, %v81
    %v554 = vmul.f32 %v545, %v82
    %v555 = vmul.f32 %v545, %v83
    %v556 = vmul.f32 %v545, %v84
    %v557 = vmul.f32 %v545, %v85
    %v558 = vmul.f32 %v545, %v86
    %v559 = vmul.f32 %v545, %v87
    %v560 = vmul.f32 %v545, %v88
    %v561 = vmul.f32 %v545, %v89
    %v562 = vmul.f32 %v545, %v90
    %v563 = vadd.f32 %v527, %v547
    %v564 = vadd.f32 %v528, %v548
    %v565 = vadd.f32 %v529, %v549
    %v566 = vadd.f32 %v530, %v550
    %v567 = vadd.f32 %v531, %v551
    %v568 = vadd.f32 %v532, %v552
    %v569 = vadd.f32 %v533, %v553
    %v570 = vadd.f32 %v534, %v554
    %v571 = vadd.f32 %v535, %v555
    %v572 = vadd.f32 %v536, %v556
    %v573 = vadd.f32 %v537, %v557
    %v574 = vadd.f32 %v538, %v558
    %v575 = vadd.f32 %v539, %v559
    %v576 = vadd.f32 %v540, %v560
    %v577 = vadd.f32 %v541, %v561
    %v578 = vadd.f32 %v542, %v562
    %579 = vrot.lane.b32.xlu0 %v543, 127
    %v580 = vpop.permute.xlu0 %579
    %s581 = vtos %v580
    %v582 = vstv %s581
    %v584 = vmul.f32 %v582, %v108
    %v585 = vmul.f32 %v582, %v109
    %v586 = vmul.f32 %v582, %v110
    %v587 = vmul.f32 %v582, %v111
    %v588 = vmul.f32 %v582, %v112
    %v589 = vmul.f32 %v582, %v113
    %v590 = vmul.f32 %v582, %v114
    %v591 = vmul.f32 %v582, %v115
    %v592 = vmul.f32 %v582, %v116
    %v593 = vmul.f32 %v582, %v117
    %v594 = vmul.f32 %v582, %v118
    %v595 = vmul.f32 %v582, %v119
    %v596 = vmul.f32 %v582, %v120
    %v597 = vmul.f32 %v582, %v121
    %v598 = vmul.f32 %v582, %v122
    %v599 = vmul.f32 %v582, %v123
    %v600 = vadd.f32 %v563, %v584
    %v601 = vadd.f32 %v564, %v585
    %v602 = vadd.f32 %v565, %v586
    %v603 = vadd.f32 %v566, %v587
    %v604 = vadd.f32 %v567, %v588
    %v605 = vadd.f32 %v568, %v589
    %v606 = vadd.f32 %v569, %v590
    %v607 = vadd.f32 %v570, %v591
    %v608 = vadd.f32 %v571, %v592
    %v609 = vadd.f32 %v572, %v593
    %v610 = vadd.f32 %v573, %v594
    %v611 = vadd.f32 %v574, %v595
    %v612 = vadd.f32 %v575, %v596
    %v613 = vadd.f32 %v576, %v597
    %v614 = vadd.f32 %v577, %v598
    %v615 = vadd.f32 %v578, %v599
    %616 = vrot.lane.b32.xlu0 %v543, 126
    %v617 = vpop.permute.xlu0 %616
    %s618 = vtos %v617
    %v619 = vstv %s618
    %v621 = vmul.f32 %v619, %v141
    %v622 = vmul.f32 %v619, %v142
    %v623 = vmul.f32 %v619, %v143
    %v624 = vmul.f32 %v619, %v144
    %v625 = vmul.f32 %v619, %v145
    %v626 = vmul.f32 %v619, %v146
    %v627 = vmul.f32 %v619, %v147
    %v628 = vmul.f32 %v619, %v148
    %v629 = vmul.f32 %v619, %v149
    %v630 = vmul.f32 %v619, %v150
    %v631 = vmul.f32 %v619, %v151
    %v632 = vmul.f32 %v619, %v152
    %v633 = vmul.f32 %v619, %v153
    %v634 = vmul.f32 %v619, %v154
    %v635 = vmul.f32 %v619, %v155
    %v636 = vmul.f32 %v619, %v156
    %v637 = vadd.f32 %v600, %v621
    %v638 = vadd.f32 %v601, %v622
    %v639 = vadd.f32 %v602, %v623
    %v640 = vadd.f32 %v603, %v624
    %v641 = vadd.f32 %v604, %v625
    %v642 = vadd.f32 %v605, %v626
    %v643 = vadd.f32 %v606, %v627
    %v644 = vadd.f32 %v607, %v628
    %v645 = vadd.f32 %v608, %v629
    %v646 = vadd.f32 %v609, %v630
    %v647 = vadd.f32 %v610, %v631
    %v648 = vadd.f32 %v611, %v632
    %v649 = vadd.f32 %v612, %v633
    %v650 = vadd.f32 %v613, %v634
    %v651 = vadd.f32 %v614, %v635
    %v652 = vadd.f32 %v615, %v636
    %v653 = vmul.f32 %v637, 0.2
    %v654 = vmul.f32 %v638, 0.2
    %v655 = vmul.f32 %v639, 0.2
    %v656 = vmul.f32 %v640, 0.2
    %v657 = vmul.f32 %v641, 0.2
    %v658 = vmul.f32 %v642, 0.2
    %v659 = vmul.f32 %v643, 0.2
    %v660 = vmul.f32 %v644, 0.2
    %v661 = vmul.f32 %v645, 0.2
    %v662 = vmul.f32 %v646, 0.2
    %v663 = vmul.f32 %v647, 0.2
    %v664 = vmul.f32 %v648, 0.2
    %v665 = vmul.f32 %v649, 0.2
    %v666 = vmul.f32 %v650, 0.2
    %v667 = vmul.f32 %v651, 0.2
    %v668 = vmul.f32 %v652, 0.2
    %v669 = vmax.f32 %v637, %v653
    %v670 = vmax.f32 %v638, %v654
    %v671 = vmax.f32 %v639, %v655
    %v672 = vmax.f32 %v640, %v656
    %v673 = vmax.f32 %v641, %v657
    %v674 = vmax.f32 %v642, %v658
    %v675 = vmax.f32 %v643, %v659
    %v676 = vmax.f32 %v644, %v660
    %v677 = vmax.f32 %v645, %v661
    %v678 = vmax.f32 %v646, %v662
    %v679 = vmax.f32 %v647, %v663
    %v680 = vmax.f32 %v648, %v664
    %v681 = vmax.f32 %v649, %v665
    %v682 = vmax.f32 %v650, %v666
    %v683 = vmax.f32 %v651, %v667
    %v684 = vmax.f32 %v652, %v668
    %s685 = sld [smem:[#allocation2 + $0x1]]
    %v686 = vstv %s685
    %v687 = vmul.f32 %v686, %v669
    %v688 = vmul.f32 %v686, %v670
    %v689 = vmul.f32 %v686, %v671
    %v690 = vmul.f32 %v686, %v672
    %v691 = vmul.f32 %v686, %v673
    %v692 = vmul.f32 %v686, %v674
    %v693 = vmul.f32 %v686, %v675
    %v694 = vmul.f32 %v686, %v676
    %v695 = vmul.f32 %v686, %v677
    %v696 = vmul.f32 %v686, %v678
    %v697 = vmul.f32 %v686, %v679
    %v698 = vmul.f32 %v686, %v680
    %v699 = vmul.f32 %v686, %v681
    %v700 = vmul.f32 %v686, %v682
    %v701 = vmul.f32 %v686, %v683
    %v702 = vmul.f32 %v686, %v684
    %v703 = vadd.f32 %v446, %v687
    %v704 = vadd.f32 %v447, %v688
    %v705 = vadd.f32 %v448, %v689
    %v706 = vadd.f32 %v449, %v690
    %v707 = vadd.f32 %v450, %v691
    %v708 = vadd.f32 %v451, %v692
    %v709 = vadd.f32 %v452, %v693
    %v710 = vadd.f32 %v453, %v694
    %v711 = vadd.f32 %v454, %v695
    %v712 = vadd.f32 %v455, %v696
    %v713 = vadd.f32 %v456, %v697
    %v714 = vadd.f32 %v457, %v698
    %v715 = vadd.f32 %v458, %v699
    %v716 = vadd.f32 %v459, %v700
    %v717 = vadd.f32 %v460, %v701
    %v718 = vadd.f32 %v461, %v702
    %719 = vset.pattern.permute.xlu0 2
    %720 = vperm.xlu0 %719, %v41
    %v721 = vpop.permute.xlu0 %720
    %723 = vset.pattern.permute.xlu0 2
    %724 = vperm.xlu0 %723, %v42
    %v725 = vpop.permute.xlu0 %724
    %727 = vset.pattern.permute.xlu0 2
    %728 = vperm.xlu0 %727, %v43
    %v729 = vpop.permute.xlu0 %728
    %731 = vset.pattern.permute.xlu0 2
    %732 = vperm.xlu0 %731, %v44
    %v733 = vpop.permute.xlu0 %732
    %735 = vset.pattern.permute.xlu0 2
    %736 = vperm.xlu0 %735, %v45
    %v737 = vpop.permute.xlu0 %736
    %739 = vset.pattern.permute.xlu0 2
    %740 = vperm.xlu0 %739, %v46
    %v741 = vpop.permute.xlu0 %740
    %743 = vset.pattern.permute.xlu0 2
    %744 = vperm.xlu0 %743, %v47
    %v745 = vpop.permute.xlu0 %744
    %747 = vset.pattern.permute.xlu0 2
    %748 = vperm.xlu0 %747, %v48
    %v749 = vpop.permute.xlu0 %748
    %751 = vset.pattern.permute.xlu0 2
    %752 = vperm.xlu0 %751, %v49
    %v753 = vpop.permute.xlu0 %752
    %755 = vset.pattern.permute.xlu0 2
    %756 = vperm.xlu0 %755, %v50
    %v757 = vpop.permute.xlu0 %756
    %759 = vset.pattern.permute.xlu0 2
    %760 = vperm.xlu0 %759, %v51
    %v761 = vpop.permute.xlu0 %760
    %763 = vset.pattern.permute.xlu0 2
    %764 = vperm.xlu0 %763, %v52
    %v765 = vpop.permute.xlu0 %764
    %767 = vset.pattern.permute.xlu0 2
    %768 = vperm.xlu0 %767, %v53
    %v769 = vpop.permute.xlu0 %768
    %771 = vset.pattern.permute.xlu0 2
    %772 = vperm.xlu0 %771, %v54
    %v773 = vpop.permute.xlu0 %772
    %775 = vset.pattern.permute.xlu0 2
    %776 = vperm.xlu0 %775, %v55
    %v777 = vpop.permute.xlu0 %776
    %779 = vset.pattern.permute.xlu0 2
    %780 = vperm.xlu0 %779, %v56
    %v781 = vpop.permute.xlu0 %780
    %v783 = vperm.slane %v39, 2
    %v784 = vadd.f32 %v721, %v783
    %v785 = vadd.f32 %v725, %v783
    %v786 = vadd.f32 %v729, %v783
    %v787 = vadd.f32 %v733, %v783
    %v788 = vadd.f32 %v737, %v783
    %v789 = vadd.f32 %v741, %v783
    %v790 = vadd.f32 %v745, %v783
    %v791 = vadd.f32 %v749, %v783
    %v792 = vadd.f32 %v753, %v783
    %v793 = vadd.f32 %v757, %v783
    %v794 = vadd.f32 %v761, %v783
    %v795 = vadd.f32 %v765, %v783
    %v796 = vadd.f32 %v769, %v783
    %v797 = vadd.f32 %v773, %v783
    %v798 = vadd.f32 %v777, %v783
    %v799 = vadd.f32 %v781, %v783
    %v800 = vrot.slane %v57, 2
    %s801 = vtos %v800
    %v802 = vstv %s801
    %v804 = vmul.f32 %v802, %v75
    %v805 = vmul.f32 %v802, %v76
    %v806 = vmul.f32 %v802, %v77
    %v807 = vmul.f32 %v802, %v78
    %v808 = vmul.f32 %v802, %v79
    %v809 = vmul.f32 %v802, %v80
    %v810 = vmul.f32 %v802, %v81
    %v811 = vmul.f32 %v802, %v82
    %v812 = vmul.f32 %v802, %v83
    %v813 = vmul.f32 %v802, %v84
    %v814 = vmul.f32 %v802, %v85
    %v815 = vmul.f32 %v802, %v86
    %v816 = vmul.f32 %v802, %v87
    %v817 = vmul.f32 %v802, %v88
    %v818 = vmul.f32 %v802, %v89
    %v819 = vmul.f32 %v802, %v90
    %v820 = vadd.f32 %v784, %v804
    %v821 = vadd.f32 %v785, %v805
    %v822 = vadd.f32 %v786, %v806
    %v823 = vadd.f32 %v787, %v807
    %v824 = vadd.f32 %v788, %v808
    %v825 = vadd.f32 %v789, %v809
    %v826 = vadd.f32 %v790, %v810
    %v827 = vadd.f32 %v791, %v811
    %v828 = vadd.f32 %v792, %v812
    %v829 = vadd.f32 %v793, %v813
    %v830 = vadd.f32 %v794, %v814
    %v831 = vadd.f32 %v795, %v815
    %v832 = vadd.f32 %v796, %v816
    %v833 = vadd.f32 %v797, %v817
    %v834 = vadd.f32 %v798, %v818
    %v835 = vadd.f32 %v799, %v819
    %836 = vrot.lane.b32.xlu0 %v800, 127
    %v837 = vpop.permute.xlu0 %836
    %s838 = vtos %v837
    %v839 = vstv %s838
    %v841 = vmul.f32 %v839, %v108
    %v842 = vmul.f32 %v839, %v109
    %v843 = vmul.f32 %v839, %v110
    %v844 = vmul.f32 %v839, %v111
    %v845 = vmul.f32 %v839, %v112
    %v846 = vmul.f32 %v839, %v113
    %v847 = vmul.f32 %v839, %v114
    %v848 = vmul.f32 %v839, %v115
    %v849 = vmul.f32 %v839, %v116
    %v850 = vmul.f32 %v839, %v117
    %v851 = vmul.f32 %v839, %v118
    %v852 = vmul.f32 %v839, %v119
    %v853 = vmul.f32 %v839, %v120
    %v854 = vmul.f32 %v839, %v121
    %v855 = vmul.f32 %v839, %v122
    %v856 = vmul.f32 %v839, %v123
    %v857 = vadd.f32 %v820, %v841
    %v858 = vadd.f32 %v821, %v842
    %v859 = vadd.f32 %v822, %v843
    %v860 = vadd.f32 %v823, %v844
    %v861 = vadd.f32 %v824, %v845
    %v862 = vadd.f32 %v825, %v846
    %v863 = vadd.f32 %v826, %v847
    %v864 = vadd.f32 %v827, %v848
    %v865 = vadd.f32 %v828, %v849
    %v866 = vadd.f32 %v829, %v850
    %v867 = vadd.f32 %v830, %v851
    %v868 = vadd.f32 %v831, %v852
    %v869 = vadd.f32 %v832, %v853
    %v870 = vadd.f32 %v833, %v854
    %v871 = vadd.f32 %v834, %v855
    %v872 = vadd.f32 %v835, %v856
    %873 = vrot.lane.b32.xlu0 %v800, 126
    %v874 = vpop.permute.xlu0 %873
    %s875 = vtos %v874
    %v876 = vstv %s875
    %v878 = vmul.f32 %v876, %v141
    %v879 = vmul.f32 %v876, %v142
    %v880 = vmul.f32 %v876, %v143
    %v881 = vmul.f32 %v876, %v144
    %v882 = vmul.f32 %v876, %v145
    %v883 = vmul.f32 %v876, %v146
    %v884 = vmul.f32 %v876, %v147
    %v885 = vmul.f32 %v876, %v148
    %v886 = vmul.f32 %v876, %v149
    %v887 = vmul.f32 %v876, %v150
    %v888 = vmul.f32 %v876, %v151
    %v889 = vmul.f32 %v876, %v152
    %v890 = vmul.f32 %v876, %v153
    %v891 = vmul.f32 %v876, %v154
    %v892 = vmul.f32 %v876, %v155
    %v893 = vmul.f32 %v876, %v156
    %v894 = vadd.f32 %v857, %v878
    %v895 = vadd.f32 %v858, %v879
    %v896 = vadd.f32 %v859, %v880
    %v897 = vadd.f32 %v860, %v881
    %v898 = vadd.f32 %v861, %v882
    %v899 = vadd.f32 %v862, %v883
    %v900 = vadd.f32 %v863, %v884
    %v901 = vadd.f32 %v864, %v885
    %v902 = vadd.f32 %v865, %v886
    %v903 = vadd.f32 %v866, %v887
    %v904 = vadd.f32 %v867, %v888
    %v905 = vadd.f32 %v868, %v889
    %v906 = vadd.f32 %v869, %v890
    %v907 = vadd.f32 %v870, %v891
    %v908 = vadd.f32 %v871, %v892
    %v909 = vadd.f32 %v872, %v893
    %v910 = vmul.f32 %v894, 0.2
    %v911 = vmul.f32 %v895, 0.2
    %v912 = vmul.f32 %v896, 0.2
    %v913 = vmul.f32 %v897, 0.2
    %v914 = vmul.f32 %v898, 0.2
    %v915 = vmul.f32 %v899, 0.2
    %v916 = vmul.f32 %v900, 0.2
    %v917 = vmul.f32 %v901, 0.2
    %v918 = vmul.f32 %v902, 0.2
    %v919 = vmul.f32 %v903, 0.2
    %v920 = vmul.f32 %v904, 0.2
    %v921 = vmul.f32 %v905, 0.2
    %v922 = vmul.f32 %v906, 0.2
    %v923 = vmul.f32 %v907, 0.2
    %v924 = vmul.f32 %v908, 0.2
    %v925 = vmul.f32 %v909, 0.2
    %v926 = vmax.f32 %v894, %v910
    %v927 = vmax.f32 %v895, %v911
    %v928 = vmax.f32 %v896, %v912
    %v929 = vmax.f32 %v897, %v913
    %v930 = vmax.f32 %v898, %v914
    %v931 = vmax.f32 %v899, %v915
    %v932 = vmax.f32 %v900, %v916
    %v933 = vmax.f32 %v901, %v917
    %v934 = vmax.f32 %v902, %v918
    %v935 = vmax.f32 %v903, %v919
    %v936 = vmax.f32 %v904, %v920
    %v937 = vmax.f32 %v905, %v921
    %v938 = vmax.f32 %v906, %v922
    %v939 = vmax.f32 %v907, %v923
    %v940 = vmax.f32 %v908, %v924
    %v941 = vmax.f32 %v909, %v925
    %s942 = sld [smem:[#allocation2 + $0x2]]
    %v943 = vstv %s942
    %v944 = vmul.f32 %v943, %v926
    %v945 = vmul.f32 %v943, %v927
    %v946 = vmul.f32 %v943, %v928
    %v947 = vmul.f32 %v943, %v929
    %v948 = vmul.f32 %v943, %v930
    %v949 = vmul.f32 %v943, %v931
    %v950 = vmul.f32 %v943, %v932
    %v951 = vmul.f32 %v943, %v933
    %v952 = vmul.f32 %v943, %v934
    %v953 = vmul.f32 %v943, %v935
    %v954 = vmul.f32 %v943, %v936
    %v955 = vmul.f32 %v943, %v937
    %v956 = vmul.f32 %v943, %v938
    %v957 = vmul.f32 %v943, %v939
    %v958 = vmul.f32 %v943, %v940
    %v959 = vmul.f32 %v943, %v941
    %v960 = vadd.f32 %v703, %v944
    %v961 = vadd.f32 %v704, %v945
    %v962 = vadd.f32 %v705, %v946
    %v963 = vadd.f32 %v706, %v947
    %v964 = vadd.f32 %v707, %v948
    %v965 = vadd.f32 %v708, %v949
    %v966 = vadd.f32 %v709, %v950
    %v967 = vadd.f32 %v710, %v951
    %v968 = vadd.f32 %v711, %v952
    %v969 = vadd.f32 %v712, %v953
    %v970 = vadd.f32 %v713, %v954
    %v971 = vadd.f32 %v714, %v955
    %v972 = vadd.f32 %v715, %v956
    %v973 = vadd.f32 %v716, %v957
    %v974 = vadd.f32 %v717, %v958
    %v975 = vadd.f32 %v718, %v959
    %976 = vset.pattern.permute.xlu0 3
    %977 = vperm.xlu0 %976, %v41
    %v978 = vpop.permute.xlu0 %977
    %980 = vset.pattern.permute.xlu0 3
    %981 = vperm.xlu0 %980, %v42
    %v982 = vpop.permute.xlu0 %981
    %984 = vset.pattern.permute.xlu0 3
    %985 = vperm.xlu0 %984, %v43
    %v986 = vpop.permute.xlu0 %985
    %988 = vset.pattern.permute.xlu0 3
    %989 = vperm.xlu0 %988, %v44
    %v990 = vpop.permute.xlu0 %989
    %992 = vset.pattern.permute.xlu0 3
    %993 = vperm.xlu0 %992, %v45
    %v994 = vpop.permute.xlu0 %993
    %996 = vset.pattern.permute.xlu0 3
    %997 = vperm.xlu0 %996, %v46
    %v998 = vpop.permute.xlu0 %997
    %1000 = vset.pattern.permute.xlu0 3
    %1001 = vperm.xlu0 %1000, %v47
    %v1002 = vpop.permute.xlu0 %1001
    %1004 = vset.pattern.permute.xlu0 3
    %1005 = vperm.xlu0 %1004, %v48
    %v1006 = vpop.permute.xlu0 %1005
    %1008 = vset.pattern.permute.xlu0 3
    %1009 = vperm.xlu0 %1008, %v49
    %v1010 = vpop.permute.xlu0 %1009
    %1012 = vset.pattern.permute.xlu0 3
    %1013 = vperm.xlu0 %1012, %v50
    %v1014 = vpop.permute.xlu0 %1013
    %1016 = vset.pattern.permute.xlu0 3
    %1017 = vperm.xlu0 %1016, %v51
    %v1018 = vpop.permute.xlu0 %1017
    %1020 = vset.pattern.permute.xlu0 3
    %1021 = vperm.xlu0 %1020, %v52
    %v1022 = vpop.permute.xlu0 %1021
    %1024 = vset.pattern.permute.xlu0 3
    %1025 = vperm.xlu0 %1024, %v53
    %v1026 = vpop.permute.xlu0 %1025
    %1028 = vset.pattern.permute.xlu0 3
    %1029 = vperm.xlu0 %1028, %v54
    %v1030 = vpop.permute.xlu0 %1029
    %1032 = vset.pattern.permute.xlu0 3
    %1033 = vperm.xlu0 %1032, %v55
    %v1034 = vpop.permute.xlu0 %1033
    %1036 = vset.pattern.permute.xlu0 3
    %1037 = vperm.xlu0 %1036, %v56
    %v1038 = vpop.permute.xlu0 %1037
    %v1040 = vperm.slane %v39, 3
    %v1041 = vadd.f32 %v978, %v1040
    %v1042 = vadd.f32 %v982, %v1040
    %v1043 = vadd.f32 %v986, %v1040
    %v1044 = vadd.f32 %v990, %v1040
    %v1045 = vadd.f32 %v994, %v1040
    %v1046 = vadd.f32 %v998, %v1040
    %v1047 = vadd.f32 %v1002, %v1040
    %v1048 = vadd.f32 %v1006, %v1040
    %v1049 = vadd.f32 %v1010, %v1040
    %v1050 = vadd.f32 %v1014, %v1040
    %v1051 = vadd.f32 %v1018, %v1040
    %v1052 = vadd.f32 %v1022, %v1040
    %v1053 = vadd.f32 %v1026, %v1040
    %v1054 = vadd.f32 %v1030, %v1040
    %v1055 = vadd.f32 %v1034, %v1040
    %v1056 = vadd.f32 %v1038, %v1040
    %v1057 = vrot.slane %v57, 3
    %s1058 = vtos %v1057
    %v1059 = vstv %s1058
    %v1061 = vmul.f32 %v1059, %v75
    %v1062 = vmul.f32 %v1059, %v76
    %v1063 = vmul.f32 %v1059, %v77
    %v1064 = vmul.f32 %v1059, %v78
    %v1065 = vmul.f32 %v1059, %v79
    %v1066 = vmul.f32 %v1059, %v80
    %v1067 = vmul.f32 %v1059, %v81
    %v1068 = vmul.f32 %v1059, %v82
    %v1069 = vmul.f32 %v1059, %v83
    %v1070 = vmul.f32 %v1059, %v84
    %v1071 = vmul.f32 %v1059, %v85
    %v1072 = vmul.f32 %v1059, %v86
    %v1073 = vmul.f32 %v1059, %v87
    %v1074 = vmul.f32 %v1059, %v88
    %v1075 = vmul.f32 %v1059, %v89
    %v1076 = vmul.f32 %v1059, %v90
    %v1077 = vadd.f32 %v1041, %v1061
    %v1078 = vadd.f32 %v1042, %v1062
    %v1079 = vadd.f32 %v1043, %v1063
    %v1080 = vadd.f32 %v1044, %v1064
    %v1081 = vadd.f32 %v1045, %v1065
    %v1082 = vadd.f32 %v1046, %v1066
    %v1083 = vadd.f32 %v1047, %v1067
    %v1084 = vadd.f32 %v1048, %v1068
    %v1085 = vadd.f32 %v1049, %v1069
    %v1086 = vadd.f32 %v1050, %v1070
    %v1087 = vadd.f32 %v1051, %v1071
    %v1088 = vadd.f32 %v1052, %v1072
    %v1089 = vadd.f32 %v1053, %v1073
    %v1090 = vadd.f32 %v1054, %v1074
    %v1091 = vadd.f32 %v1055, %v1075
    %v1092 = vadd.f32 %v1056, %v1076
    %1093 = vrot.lane.b32.xlu0 %v1057, 127
    %v1094 = vpop.permute.xlu0 %1093
    %s1095 = vtos %v1094
    %v1096 = vstv %s1095
    %v1098 = vmul.f32 %v1096, %v108
    %v1099 = vmul.f32 %v1096, %v109
    %v1100 = vmul.f32 %v1096, %v110
    %v1101 = vmul.f32 %v1096, %v111
    %v1102 = vmul.f32 %v1096, %v112
    %v1103 = vmul.f32 %v1096, %v113
    %v1104 = vmul.f32 %v1096, %v114
    %v1105 = vmul.f32 %v1096, %v115
    %v1106 = vmul.f32 %v1096, %v116
    %v1107 = vmul.f32 %v1096, %v117
    %v1108 = vmul.f32 %v1096, %v118
    %v1109 = vmul.f32 %v1096, %v119
    %v1110 = vmul.f32 %v1096, %v120
    %v1111 = vmul.f32 %v1096, %v121
    %v1112 = vmul.f32 %v1096, %v122
    %v1113 = vmul.f32 %v1096, %v123
    %v1114 = vadd.f32 %v1077, %v1098
    %v1115 = vadd.f32 %v1078, %v1099
    %v1116 = vadd.f32 %v1079, %v1100
    %v1117 = vadd.f32 %v1080, %v1101
    %v1118 = vadd.f32 %v1081, %v1102
    %v1119 = vadd.f32 %v1082, %v1103
    %v1120 = vadd.f32 %v1083, %v1104
    %v1121 = vadd.f32 %v1084, %v1105
    %v1122 = vadd.f32 %v1085, %v1106
    %v1123 = vadd.f32 %v1086, %v1107
    %v1124 = vadd.f32 %v1087, %v1108
    %v1125 = vadd.f32 %v1088, %v1109
    %v1126 = vadd.f32 %v1089, %v1110
    %v1127 = vadd.f32 %v1090, %v1111
    %v1128 = vadd.f32 %v1091, %v1112
    %v1129 = vadd.f32 %v1092, %v1113
    %1130 = vrot.lane.b32.xlu0 %v1057, 126
    %v1131 = vpop.permute.xlu0 %1130
    %s1132 = vtos %v1131
    %v1133 = vstv %s1132
    %v1135 = vmul.f32 %v1133, %v141
    %v1136 = vmul.f32 %v1133, %v142
    %v1137 = vmul.f32 %v1133, %v143
    %v1138 = vmul.f32 %v1133, %v144
    %v1139 = vmul.f32 %v1133, %v145
    %v1140 = vmul.f32 %v1133, %v146
    %v1141 = vmul.f32 %v1133, %v147
    %v1142 = vmul.f32 %v1133, %v148
    %v1143 = vmul.f32 %v1133, %v149
    %v1144 = vmul.f32 %v1133, %v150
    %v1145 = vmul.f32 %v1133, %v151
    %v1146 = vmul.f32 %v1133, %v152
    %v1147 = vmul.f32 %v1133, %v153
    %v1148 = vmul.f32 %v1133, %v154
    %v1149 = vmul.f32 %v1133, %v155
    %v1150 = vmul.f32 %v1133, %v156
    %v1151 = vadd.f32 %v1114, %v1135
    %v1152 = vadd.f32 %v1115, %v1136
    %v1153 = vadd.f32 %v1116, %v1137
    %v1154 = vadd.f32 %v1117, %v1138
    %v1155 = vadd.f32 %v1118, %v1139
    %v1156 = vadd.f32 %v1119, %v1140
    %v1157 = vadd.f32 %v1120, %v1141
    %v1158 = vadd.f32 %v1121, %v1142
    %v1159 = vadd.f32 %v1122, %v1143
    %v1160 = vadd.f32 %v1123, %v1144
    %v1161 = vadd.f32 %v1124, %v1145
    %v1162 = vadd.f32 %v1125, %v1146
    %v1163 = vadd.f32 %v1126, %v1147
    %v1164 = vadd.f32 %v1127, %v1148
    %v1165 = vadd.f32 %v1128, %v1149
    %v1166 = vadd.f32 %v1129, %v1150
    %v1167 = vmul.f32 %v1151, 0.2
    %v1168 = vmul.f32 %v1152, 0.2
    %v1169 = vmul.f32 %v1153, 0.2
    %v1170 = vmul.f32 %v1154, 0.2
    %v1171 = vmul.f32 %v1155, 0.2
    %v1172 = vmul.f32 %v1156, 0.2
    %v1173 = vmul.f32 %v1157, 0.2
    %v1174 = vmul.f32 %v1158, 0.2
    %v1175 = vmul.f32 %v1159, 0.2
    %v1176 = vmul.f32 %v1160, 0.2
    %v1177 = vmul.f32 %v1161, 0.2
    %v1178 = vmul.f32 %v1162, 0.2
    %v1179 = vmul.f32 %v1163, 0.2
    %v1180 = vmul.f32 %v1164, 0.2
    %v1181 = vmul.f32 %v1165, 0.2
    %v1182 = vmul.f32 %v1166, 0.2
    %v1183 = vmax.f32 %v1151, %v1167
    %v1184 = vmax.f32 %v1152, %v1168
    %v1185 = vmax.f32 %v1153, %v1169
    %v1186 = vmax.f32 %v1154, %v1170
    %v1187 = vmax.f32 %v1155, %v1171
    %v1188 = vmax.f32 %v1156, %v1172
    %v1189 = vmax.f32 %v1157, %v1173
    %v1190 = vmax.f32 %v1158, %v1174
    %v1191 = vmax.f32 %v1159, %v1175
    %v1192 = vmax.f32 %v1160, %v1176
    %v1193 = vmax.f32 %v1161, %v1177
    %v1194 = vmax.f32 %v1162, %v1178
    %v1195 = vmax.f32 %v1163, %v1179
    %v1196 = vmax.f32 %v1164, %v1180
    %v1197 = vmax.f32 %v1165, %v1181
    %v1198 = vmax.f32 %v1166, %v1182
    %s1199 = sld [smem:[#allocation2 + $0x3]]
    %v1200 = vstv %s1199
    %v1201 = vmul.f32 %v1200, %v1183
    %v1202 = vmul.f32 %v1200, %v1184
    %v1203 = vmul.f32 %v1200, %v1185
    %v1204 = vmul.f32 %v1200, %v1186
    %v1205 = vmul.f32 %v1200, %v1187
    %v1206 = vmul.f32 %v1200, %v1188
    %v1207 = vmul.f32 %v1200, %v1189
    %v1208 = vmul.f32 %v1200, %v1190
    %v1209 = vmul.f32 %v1200, %v1191
    %v1210 = vmul.f32 %v1200, %v1192
    %v1211 = vmul.f32 %v1200, %v1193
    %v1212 = vmul.f32 %v1200, %v1194
    %v1213 = vmul.f32 %v1200, %v1195
    %v1214 = vmul.f32 %v1200, %v1196
    %v1215 = vmul.f32 %v1200, %v1197
    %v1216 = vmul.f32 %v1200, %v1198
    %v1217 = vadd.f32 %v960, %v1201
    %v1218 = vadd.f32 %v961, %v1202
    %v1219 = vadd.f32 %v962, %v1203
    %v1220 = vadd.f32 %v963, %v1204
    %v1221 = vadd.f32 %v964, %v1205
    %v1222 = vadd.f32 %v965, %v1206
    %v1223 = vadd.f32 %v966, %v1207
    %v1224 = vadd.f32 %v967, %v1208
    %v1225 = vadd.f32 %v968, %v1209
    %v1226 = vadd.f32 %v969, %v1210
    %v1227 = vadd.f32 %v970, %v1211
    %v1228 = vadd.f32 %v971, %v1212
    %v1229 = vadd.f32 %v972, %v1213
    %v1230 = vadd.f32 %v973, %v1214
    %v1231 = vadd.f32 %v974, %v1215
    %v1232 = vadd.f32 %v975, %v1216
    %1233 = vset.pattern.permute.xlu0 4
    %1234 = vperm.xlu0 %1233, %v41
    %v1235 = vpop.permute.xlu0 %1234
    %1237 = vset.pattern.permute.xlu0 4
    %1238 = vperm.xlu0 %1237, %v42
    %v1239 = vpop.permute.xlu0 %1238
    %1241 = vset.pattern.permute.xlu0 4
    %1242 = vperm.xlu0 %1241, %v43
    %v1243 = vpop.permute.xlu0 %1242
    %1245 = vset.pattern.permute.xlu0 4
    %1246 = vperm.xlu0 %1245, %v44
    %v1247 = vpop.permute.xlu0 %1246
    %1249 = vset.pattern.permute.xlu0 4
    %1250 = vperm.xlu0 %1249, %v45
    %v1251 = vpop.permute.xlu0 %1250
    %1253 = vset.pattern.permute.xlu0 4
    %1254 = vperm.xlu0 %1253, %v46
    %v1255 = vpop.permute.xlu0 %1254
    %1257 = vset.pattern.permute.xlu0 4
    %1258 = vperm.xlu0 %1257, %v47
    %v1259 = vpop.permute.xlu0 %1258
    %1261 = vset.pattern.permute.xlu0 4
    %1262 = vperm.xlu0 %1261, %v48
    %v1263 = vpop.permute.xlu0 %1262
    %1265 = vset.pattern.permute.xlu0 4
    %1266 = vperm.xlu0 %1265, %v49
    %v1267 = vpop.permute.xlu0 %1266
    %1269 = vset.pattern.permute.xlu0 4
    %1270 = vperm.xlu0 %1269, %v50
    %v1271 = vpop.permute.xlu0 %1270
    %1273 = vset.pattern.permute.xlu0 4
    %1274 = vperm.xlu0 %1273, %v51
    %v1275 = vpop.permute.xlu0 %1274
    %1277 = vset.pattern.permute.xlu0 4
    %1278 = vperm.xlu0 %1277, %v52
    %v1279 = vpop.permute.xlu0 %1278
    %1281 = vset.pattern.permute.xlu0 4
    %1282 = vperm.xlu0 %1281, %v53
    %v1283 = vpop.permute.xlu0 %1282
    %1285 = vset.pattern.permute.xlu0 4
    %1286 = vperm.xlu0 %1285, %v54
    %v1287 = vpop.permute.xlu0 %1286
    %1289 = vset.pattern.permute.xlu0 4
    %1290 = vperm.xlu0 %1289, %v55
    %v1291 = vpop.permute.xlu0 %1290
    %1293 = vset.pattern.permute.xlu0 4
    %1294 = vperm.xlu0 %1293, %v56
    %v1295 = vpop.permute.xlu0 %1294
    %v1297 = vperm.slane %v39, 4
    %v1298 = vadd.f32 %v1235, %v1297
    %v1299 = vadd.f32 %v1239, %v1297
    %v1300 = vadd.f32 %v1243, %v1297
    %v1301 = vadd.f32 %v1247, %v1297
    %v1302 = vadd.f32 %v1251, %v1297
    %v1303 = vadd.f32 %v1255, %v1297
    %v1304 = vadd.f32 %v1259, %v1297
    %v1305 = vadd.f32 %v1263, %v1297
    %v1306 = vadd.f32 %v1267, %v1297
    %v1307 = vadd.f32 %v1271, %v1297
    %v1308 = vadd.f32 %v1275, %v1297
    %v1309 = vadd.f32 %v1279, %v1297
    %v1310 = vadd.f32 %v1283, %v1297
    %v1311 = vadd.f32 %v1287, %v1297
    %v1312 = vadd.f32 %v1291, %v1297
    %v1313 = vadd.f32 %v1295, %v1297
    %v1314 = vrot.slane %v57, 4
    %s1315 = vtos %v1314
    %v1316 = vstv %s1315
    %v1318 = vmul.f32 %v1316, %v75
    %v1319 = vmul.f32 %v1316, %v76
    %v1320 = vmul.f32 %v1316, %v77
    %v1321 = vmul.f32 %v1316, %v78
    %v1322 = vmul.f32 %v1316, %v79
    %v1323 = vmul.f32 %v1316, %v80
    %v1324 = vmul.f32 %v1316, %v81
    %v1325 = vmul.f32 %v1316, %v82
    %v1326 = vmul.f32 %v1316, %v83
    %v1327 = vmul.f32 %v1316, %v84
    %v1328 = vmul.f32 %v1316, %v85
    %v1329 = vmul.f32 %v1316, %v86
    %v1330 = vmul.f32 %v1316, %v87
    %v1331 = vmul.f32 %v1316, %v88
    %v1332 = vmul.f32 %v1316, %v89
    %v1333 = vmul.f32 %v1316, %v90
    %v1334 = vadd.f32 %v1298, %v1318
    %v1335 = vadd.f32 %v1299, %v1319
    %v1336 = vadd.f32 %v1300, %v1320
    %v1337 = vadd.f32 %v1301, %v1321
    %v1338 = vadd.f32 %v1302, %v1322
    %v1339 = vadd.f32 %v1303, %v1323
    %v1340 = vadd.f32 %v1304, %v1324
    %v1341 = vadd.f32 %v1305, %v1325
    %v1342 = vadd.f32 %v1306, %v1326
    %v1343 = vadd.f32 %v1307, %v1327
    %v1344 = vadd.f32 %v1308, %v1328
    %v1345 = vadd.f32 %v1309, %v1329
    %v1346 = vadd.f32 %v1310, %v1330
    %v1347 = vadd.f32 %v1311, %v1331
    %v1348 = vadd.f32 %v1312, %v1332
    %v1349 = vadd.f32 %v1313, %v1333
    %1350 = vrot.lane.b32.xlu0 %v1314, 127
    %v1351 = vpop.permute.xlu0 %1350
    %s1352 = vtos %v1351
    %v1353 = vstv %s1352
    %v1355 = vmul.f32 %v1353, %v108
    %v1356 = vmul.f32 %v1353, %v109
    %v1357 = vmul.f32 %v1353, %v110
    %v1358 = vmul.f32 %v1353, %v111
    %v1359 = vmul.f32 %v1353, %v112
    %v1360 = vmul.f32 %v1353, %v113
    %v1361 = vmul.f32 %v1353, %v114
    %v1362 = vmul.f32 %v1353, %v115
    %v1363 = vmul.f32 %v1353, %v116
    %v1364 = vmul.f32 %v1353, %v117
    %v1365 = vmul.f32 %v1353, %v118
    %v1366 = vmul.f32 %v1353, %v119
    %v1367 = vmul.f32 %v1353, %v120
    %v1368 = vmul.f32 %v1353, %v121
    %v1369 = vmul.f32 %v1353, %v122
    %v1370 = vmul.f32 %v1353, %v123
    %v1371 = vadd.f32 %v1334, %v1355
    %v1372 = vadd.f32 %v1335, %v1356
    %v1373 = vadd.f32 %v1336, %v1357
    %v1374 = vadd.f32 %v1337, %v1358
    %v1375 = vadd.f32 %v1338, %v1359
    %v1376 = vadd.f32 %v1339, %v1360
    %v1377 = vadd.f32 %v1340, %v1361
    %v1378 = vadd.f32 %v1341, %v1362
    %v1379 = vadd.f32 %v1342, %v1363
    %v1380 = vadd.f32 %v1343, %v1364
    %v1381 = vadd.f32 %v1344, %v1365
    %v1382 = vadd.f32 %v1345, %v1366
    %v1383 = vadd.f32 %v1346, %v1367
    %v1384 = vadd.f32 %v1347, %v1368
    %v1385 = vadd.f32 %v1348, %v1369
    %v1386 = vadd.f32 %v1349, %v1370
    %1387 = vrot.lane.b32.xlu0 %v1314, 126
    %v1388 = vpop.permute.xlu0 %1387
    %s1389 = vtos %v1388
    %v1390 = vstv %s1389
    %v1392 = vmul.f32 %v1390, %v141
    %v1393 = vmul.f32 %v1390, %v142
    %v1394 = vmul.f32 %v1390, %v143
    %v1395 = vmul.f32 %v1390, %v144
    %v1396 = vmul.f32 %v1390, %v145
    %v1397 = vmul.f32 %v1390, %v146
    %v1398 = vmul.f32 %v1390, %v147
    %v1399 = vmul.f32 %v1390, %v148
    %v1400 = vmul.f32 %v1390, %v149
    %v1401 = vmul.f32 %v1390, %v150
    %v1402 = vmul.f32 %v1390, %v151
    %v1403 = vmul.f32 %v1390, %v152
    %v1404 = vmul.f32 %v1390, %v153
    %v1405 = vmul.f32 %v1390, %v154
    %v1406 = vmul.f32 %v1390, %v155
    %v1407 = vmul.f32 %v1390, %v156
    %v1408 = vadd.f32 %v1371, %v1392
    %v1409 = vadd.f32 %v1372, %v1393
    %v1410 = vadd.f32 %v1373, %v1394
    %v1411 = vadd.f32 %v1374, %v1395
    %v1412 = vadd.f32 %v1375, %v1396
    %v1413 = vadd.f32 %v1376, %v1397
    %v1414 = vadd.f32 %v1377, %v1398
    %v1415 = vadd.f32 %v1378, %v1399
    %v1416 = vadd.f32 %v1379, %v1400
    %v1417 = vadd.f32 %v1380, %v1401
    %v1418 = vadd.f32 %v1381, %v1402
    %v1419 = vadd.f32 %v1382, %v1403
    %v1420 = vadd.f32 %v1383, %v1404
    %v1421 = vadd.f32 %v1384, %v1405
    %v1422 = vadd.f32 %v1385, %v1406
    %v1423 = vadd.f32 %v1386, %v1407
    %v1424 = vmul.f32 %v1408, 0.2
    %v1425 = vmul.f32 %v1409, 0.2
    %v1426 = vmul.f32 %v1410, 0.2
    %v1427 = vmul.f32 %v1411, 0.2
    %v1428 = vmul.f32 %v1412, 0.2
    %v1429 = vmul.f32 %v1413, 0.2
    %v1430 = vmul.f32 %v1414, 0.2
    %v1431 = vmul.f32 %v1415, 0.2
    %v1432 = vmul.f32 %v1416, 0.2
    %v1433 = vmul.f32 %v1417, 0.2
    %v1434 = vmul.f32 %v1418, 0.2
    %v1435 = vmul.f32 %v1419, 0.2
    %v1436 = vmul.f32 %v1420, 0.2
    %v1437 = vmul.f32 %v1421, 0.2
    %v1438 = vmul.f32 %v1422, 0.2
    %v1439 = vmul.f32 %v1423, 0.2
    %v1440 = vmax.f32 %v1408, %v1424
    %v1441 = vmax.f32 %v1409, %v1425
    %v1442 = vmax.f32 %v1410, %v1426
    %v1443 = vmax.f32 %v1411, %v1427
    %v1444 = vmax.f32 %v1412, %v1428
    %v1445 = vmax.f32 %v1413, %v1429
    %v1446 = vmax.f32 %v1414, %v1430
    %v1447 = vmax.f32 %v1415, %v1431
    %v1448 = vmax.f32 %v1416, %v1432
    %v1449 = vmax.f32 %v1417, %v1433
    %v1450 = vmax.f32 %v1418, %v1434
    %v1451 = vmax.f32 %v1419, %v1435
    %v1452 = vmax.f32 %v1420, %v1436
    %v1453 = vmax.f32 %v1421, %v1437
    %v1454 = vmax.f32 %v1422, %v1438
    %v1455 = vmax.f32 %v1423, %v1439
    %s1456 = sld [smem:[#allocation2 + $0x4]]
    %v1457 = vstv %s1456
    %v1458 = vmul.f32 %v1457, %v1440
    %v1459 = vmul.f32 %v1457, %v1441
    %v1460 = vmul.f32 %v1457, %v1442
    %v1461 = vmul.f32 %v1457, %v1443
    %v1462 = vmul.f32 %v1457, %v1444
    %v1463 = vmul.f32 %v1457, %v1445
    %v1464 = vmul.f32 %v1457, %v1446
    %v1465 = vmul.f32 %v1457, %v1447
    %v1466 = vmul.f32 %v1457, %v1448
    %v1467 = vmul.f32 %v1457, %v1449
    %v1468 = vmul.f32 %v1457, %v1450
    %v1469 = vmul.f32 %v1457, %v1451
    %v1470 = vmul.f32 %v1457, %v1452
    %v1471 = vmul.f32 %v1457, %v1453
    %v1472 = vmul.f32 %v1457, %v1454
    %v1473 = vmul.f32 %v1457, %v1455
    %v1474 = vadd.f32 %v1217, %v1458
    %v1475 = vadd.f32 %v1218, %v1459
    %v1476 = vadd.f32 %v1219, %v1460
    %v1477 = vadd.f32 %v1220, %v1461
    %v1478 = vadd.f32 %v1221, %v1462
    %v1479 = vadd.f32 %v1222, %v1463
    %v1480 = vadd.f32 %v1223, %v1464
    %v1481 = vadd.f32 %v1224, %v1465
    %v1482 = vadd.f32 %v1225, %v1466
    %v1483 = vadd.f32 %v1226, %v1467
    %v1484 = vadd.f32 %v1227, %v1468
    %v1485 = vadd.f32 %v1228, %v1469
    %v1486 = vadd.f32 %v1229, %v1470
    %v1487 = vadd.f32 %v1230, %v1471
    %v1488 = vadd.f32 %v1231, %v1472
    %v1489 = vadd.f32 %v1232, %v1473
    %1490 = vset.pattern.permute.xlu0 5
    %1491 = vperm.xlu0 %1490, %v41
    %v1492 = vpop.permute.xlu0 %1491
    %1494 = vset.pattern.permute.xlu0 5
    %1495 = vperm.xlu0 %1494, %v42
    %v1496 = vpop.permute.xlu0 %1495
    %1498 = vset.pattern.permute.xlu0 5
    %1499 = vperm.xlu0 %1498, %v43
    %v1500 = vpop.permute.xlu0 %1499
    %1502 = vset.pattern.permute.xlu0 5
    %1503 = vperm.xlu0 %1502, %v44
    %v1504 = vpop.permute.xlu0 %1503
    %1506 = vset.pattern.permute.xlu0 5
    %1507 = vperm.xlu0 %1506, %v45
    %v1508 = vpop.permute.xlu0 %1507
    %1510 = vset.pattern.permute.xlu0 5
    %1511 = vperm.xlu0 %1510, %v46
    %v1512 = vpop.permute.xlu0 %1511
    %1514 = vset.pattern.permute.xlu0 5
    %1515 = vperm.xlu0 %1514, %v47
    %v1516 = vpop.permute.xlu0 %1515
    %1518 = vset.pattern.permute.xlu0 5
    %1519 = vperm.xlu0 %1518, %v48
    %v1520 = vpop.permute.xlu0 %1519
    %1522 = vset.pattern.permute.xlu0 5
    %1523 = vperm.xlu0 %1522, %v49
    %v1524 = vpop.permute.xlu0 %1523
    %1526 = vset.pattern.permute.xlu0 5
    %1527 = vperm.xlu0 %1526, %v50
    %v1528 = vpop.permute.xlu0 %1527
    %1530 = vset.pattern.permute.xlu0 5
    %1531 = vperm.xlu0 %1530, %v51
    %v1532 = vpop.permute.xlu0 %1531
    %1534 = vset.pattern.permute.xlu0 5
    %1535 = vperm.xlu0 %1534, %v52
    %v1536 = vpop.permute.xlu0 %1535
    %1538 = vset.pattern.permute.xlu0 5
    %1539 = vperm.xlu0 %1538, %v53
    %v1540 = vpop.permute.xlu0 %1539
    %1542 = vset.pattern.permute.xlu0 5
    %1543 = vperm.xlu0 %1542, %v54
    %v1544 = vpop.permute.xlu0 %1543
    %1546 = vset.pattern.permute.xlu0 5
    %1547 = vperm.xlu0 %1546, %v55
    %v1548 = vpop.permute.xlu0 %1547
    %1550 = vset.pattern.permute.xlu0 5
    %1551 = vperm.xlu0 %1550, %v56
    %v1552 = vpop.permute.xlu0 %1551
    %v1554 = vperm.slane %v39, 5
    %v1555 = vadd.f32 %v1492, %v1554
    %v1556 = vadd.f32 %v1496, %v1554
    %v1557 = vadd.f32 %v1500, %v1554
    %v1558 = vadd.f32 %v1504, %v1554
    %v1559 = vadd.f32 %v1508, %v1554
    %v1560 = vadd.f32 %v1512, %v1554
    %v1561 = vadd.f32 %v1516, %v1554
    %v1562 = vadd.f32 %v1520, %v1554
    %v1563 = vadd.f32 %v1524, %v1554
    %v1564 = vadd.f32 %v1528, %v1554
    %v1565 = vadd.f32 %v1532, %v1554
    %v1566 = vadd.f32 %v1536, %v1554
    %v1567 = vadd.f32 %v1540, %v1554
    %v1568 = vadd.f32 %v1544, %v1554
    %v1569 = vadd.f32 %v1548, %v1554
    %v1570 = vadd.f32 %v1552, %v1554
    %v1571 = vrot.slane %v57, 5
    %s1572 = vtos %v1571
    %v1573 = vstv %s1572
    %v1575 = vmul.f32 %v1573, %v75
    %v1576 = vmul.f32 %v1573, %v76
    %v1577 = vmul.f32 %v1573, %v77
    %v1578 = vmul.f32 %v1573, %v78
    %v1579 = vmul.f32 %v1573, %v79
    %v1580 = vmul.f32 %v1573, %v80
    %v1581 = vmul.f32 %v1573, %v81
    %v1582 = vmul.f32 %v1573, %v82
    %v1583 = vmul.f32 %v1573, %v83
    %v1584 = vmul.f32 %v1573, %v84
    %v1585 = vmul.f32 %v1573, %v85
    %v1586 = vmul.f32 %v1573, %v86
    %v1587 = vmul.f32 %v1573, %v87
    %v1588 = vmul.f32 %v1573, %v88
    %v1589 = vmul.f32 %v1573, %v89
    %v1590 = vmul.f32 %v1573, %v90
    %v1591 = vadd.f32 %v1555, %v1575
    %v1592 = vadd.f32 %v1556, %v1576
    %v1593 = vadd.f32 %v1557, %v1577
    %v1594 = vadd.f32 %v1558, %v1578
    %v1595 = vadd.f32 %v1559, %v1579
    %v1596 = vadd.f32 %v1560, %v1580
    %v1597 = vadd.f32 %v1561, %v1581
    %v1598 = vadd.f32 %v1562, %v1582
    %v1599 = vadd.f32 %v1563, %v1583
    %v1600 = vadd.f32 %v1564, %v1584
    %v1601 = vadd.f32 %v1565, %v1585
    %v1602 = vadd.f32 %v1566, %v1586
    %v1603 = vadd.f32 %v1567, %v1587
    %v1604 = vadd.f32 %v1568, %v1588
    %v1605 = vadd.f32 %v1569, %v1589
    %v1606 = vadd.f32 %v1570, %v1590
    %1607 = vrot.lane.b32.xlu0 %v1571, 127
    %v1608 = vpop.permute.xlu0 %1607
    %s1609 = vtos %v1608
    %v1610 = vstv %s1609
    %v1612 = vmul.f32 %v1610, %v108
    %v1613 = vmul.f32 %v1610, %v109
    %v1614 = vmul.f32 %v1610, %v110
    %v1615 = vmul.f32 %v1610, %v111
    %v1616 = vmul.f32 %v1610, %v112
    %v1617 = vmul.f32 %v1610, %v113
    %v1618 = vmul.f32 %v1610, %v114
    %v1619 = vmul.f32 %v1610, %v115
    %v1620 = vmul.f32 %v1610, %v116
    %v1621 = vmul.f32 %v1610, %v117
    %v1622 = vmul.f32 %v1610, %v118
    %v1623 = vmul.f32 %v1610, %v119
    %v1624 = vmul.f32 %v1610, %v120
    %v1625 = vmul.f32 %v1610, %v121
    %v1626 = vmul.f32 %v1610, %v122
    %v1627 = vmul.f32 %v1610, %v123
    %v1628 = vadd.f32 %v1591, %v1612
    %v1629 = vadd.f32 %v1592, %v1613
    %v1630 = vadd.f32 %v1593, %v1614
    %v1631 = vadd.f32 %v1594, %v1615
    %v1632 = vadd.f32 %v1595, %v1616
    %v1633 = vadd.f32 %v1596, %v1617
    %v1634 = vadd.f32 %v1597, %v1618
    %v1635 = vadd.f32 %v1598, %v1619
    %v1636 = vadd.f32 %v1599, %v1620
    %v1637 = vadd.f32 %v1600, %v1621
    %v1638 = vadd.f32 %v1601, %v1622
    %v1639 = vadd.f32 %v1602, %v1623
    %v1640 = vadd.f32 %v1603, %v1624
    %v1641 = vadd.f32 %v1604, %v1625
    %v1642 = vadd.f32 %v1605, %v1626
    %v1643 = vadd.f32 %v1606, %v1627
    %1644 = vrot.lane.b32.xlu0 %v1571, 126
    %v1645 = vpop.permute.xlu0 %1644
    %s1646 = vtos %v1645
    %v1647 = vstv %s1646
    %v1649 = vmul.f32 %v1647, %v141
    %v1650 = vmul.f32 %v1647, %v142
    %v1651 = vmul.f32 %v1647, %v143
    %v1652 = vmul.f32 %v1647, %v144
    %v1653 = vmul.f32 %v1647, %v145
    %v1654 = vmul.f32 %v1647, %v146
    %v1655 = vmul.f32 %v1647, %v147
    %v1656 = vmul.f32 %v1647, %v148
    %v1657 = vmul.f32 %v1647, %v149
    %v1658 = vmul.f32 %v1647, %v150
    %v1659 = vmul.f32 %v1647, %v151
    %v1660 = vmul.f32 %v1647, %v152
    %v1661 = vmul.f32 %v1647, %v153
    %v1662 = vmul.f32 %v1647, %v154
    %v1663 = vmul.f32 %v1647, %v155
    %v1664 = vmul.f32 %v1647, %v156
    %v1665 = vadd.f32 %v1628, %v1649
    %v1666 = vadd.f32 %v1629, %v1650
    %v1667 = vadd.f32 %v1630, %v1651
    %v1668 = vadd.f32 %v1631, %v1652
    %v1669 = vadd.f32 %v1632, %v1653
    %v1670 = vadd.f32 %v1633, %v1654
    %v1671 = vadd.f32 %v1634, %v1655
    %v1672 = vadd.f32 %v1635, %v1656
    %v1673 = vadd.f32 %v1636, %v1657
    %v1674 = vadd.f32 %v1637, %v1658
    %v1675 = vadd.f32 %v1638, %v1659
    %v1676 = vadd.f32 %v1639, %v1660
    %v1677 = vadd.f32 %v1640, %v1661
    %v1678 = vadd.f32 %v1641, %v1662
    %v1679 = vadd.f32 %v1642, %v1663
    %v1680 = vadd.f32 %v1643, %v1664
    %v1681 = vmul.f32 %v1665, 0.2
    %v1682 = vmul.f32 %v1666, 0.2
    %v1683 = vmul.f32 %v1667, 0.2
    %v1684 = vmul.f32 %v1668, 0.2
    %v1685 = vmul.f32 %v1669, 0.2
    %v1686 = vmul.f32 %v1670, 0.2
    %v1687 = vmul.f32 %v1671, 0.2
    %v1688 = vmul.f32 %v1672, 0.2
    %v1689 = vmul.f32 %v1673, 0.2
    %v1690 = vmul.f32 %v1674, 0.2
    %v1691 = vmul.f32 %v1675, 0.2
    %v1692 = vmul.f32 %v1676, 0.2
    %v1693 = vmul.f32 %v1677, 0.2
    %v1694 = vmul.f32 %v1678, 0.2
    %v1695 = vmul.f32 %v1679, 0.2
    %v1696 = vmul.f32 %v1680, 0.2
    %v1697 = vmax.f32 %v1665, %v1681
    %v1698 = vmax.f32 %v1666, %v1682
    %v1699 = vmax.f32 %v1667, %v1683
    %v1700 = vmax.f32 %v1668, %v1684
    %v1701 = vmax.f32 %v1669, %v1685
    %v1702 = vmax.f32 %v1670, %v1686
    %v1703 = vmax.f32 %v1671, %v1687
    %v1704 = vmax.f32 %v1672, %v1688
    %v1705 = vmax.f32 %v1673, %v1689
    %v1706 = vmax.f32 %v1674, %v1690
    %v1707 = vmax.f32 %v1675, %v1691
    %v1708 = vmax.f32 %v1676, %v1692
    %v1709 = vmax.f32 %v1677, %v1693
    %v1710 = vmax.f32 %v1678, %v1694
    %v1711 = vmax.f32 %v1679, %v1695
    %v1712 = vmax.f32 %v1680, %v1696
    %s1713 = sld [smem:[#allocation2 + $0x5]]
    %v1714 = vstv %s1713
    %v1715 = vmul.f32 %v1714, %v1697
    %v1716 = vmul.f32 %v1714, %v1698
    %v1717 = vmul.f32 %v1714, %v1699
    %v1718 = vmul.f32 %v1714, %v1700
    %v1719 = vmul.f32 %v1714, %v1701
    %v1720 = vmul.f32 %v1714, %v1702
    %v1721 = vmul.f32 %v1714, %v1703
    %v1722 = vmul.f32 %v1714, %v1704
    %v1723 = vmul.f32 %v1714, %v1705
    %v1724 = vmul.f32 %v1714, %v1706
    %v1725 = vmul.f32 %v1714, %v1707
    %v1726 = vmul.f32 %v1714, %v1708
    %v1727 = vmul.f32 %v1714, %v1709
    %v1728 = vmul.f32 %v1714, %v1710
    %v1729 = vmul.f32 %v1714, %v1711
    %v1730 = vmul.f32 %v1714, %v1712
    %v1731 = vadd.f32 %v1474, %v1715
    %v1732 = vadd.f32 %v1475, %v1716
    %v1733 = vadd.f32 %v1476, %v1717
    %v1734 = vadd.f32 %v1477, %v1718
    %v1735 = vadd.f32 %v1478, %v1719
    %v1736 = vadd.f32 %v1479, %v1720
    %v1737 = vadd.f32 %v1480, %v1721
    %v1738 = vadd.f32 %v1481, %v1722
    %v1739 = vadd.f32 %v1482, %v1723
    %v1740 = vadd.f32 %v1483, %v1724
    %v1741 = vadd.f32 %v1484, %v1725
    %v1742 = vadd.f32 %v1485, %v1726
    %v1743 = vadd.f32 %v1486, %v1727
    %v1744 = vadd.f32 %v1487, %v1728
    %v1745 = vadd.f32 %v1488, %v1729
    %v1746 = vadd.f32 %v1489, %v1730
    %1747 = vset.pattern.permute.xlu0 6
    %1748 = vperm.xlu0 %1747, %v41
    %v1749 = vpop.permute.xlu0 %1748
    %1751 = vset.pattern.permute.xlu0 6
    %1752 = vperm.xlu0 %1751, %v42
    %v1753 = vpop.permute.xlu0 %1752
    %1755 = vset.pattern.permute.xlu0 6
    %1756 = vperm.xlu0 %1755, %v43
    %v1757 = vpop.permute.xlu0 %1756
    %1759 = vset.pattern.permute.xlu0 6
    %1760 = vperm.xlu0 %1759, %v44
    %v1761 = vpop.permute.xlu0 %1760
    %1763 = vset.pattern.permute.xlu0 6
    %1764 = vperm.xlu0 %1763, %v45
    %v1765 = vpop.permute.xlu0 %1764
    %1767 = vset.pattern.permute.xlu0 6
    %1768 = vperm.xlu0 %1767, %v46
    %v1769 = vpop.permute.xlu0 %1768
    %1771 = vset.pattern.permute.xlu0 6
    %1772 = vperm.xlu0 %1771, %v47
    %v1773 = vpop.permute.xlu0 %1772
    %1775 = vset.pattern.permute.xlu0 6
    %1776 = vperm.xlu0 %1775, %v48
    %v1777 = vpop.permute.xlu0 %1776
    %1779 = vset.pattern.permute.xlu0 6
    %1780 = vperm.xlu0 %1779, %v49
    %v1781 = vpop.permute.xlu0 %1780
    %1783 = vset.pattern.permute.xlu0 6
    %1784 = vperm.xlu0 %1783, %v50
    %v1785 = vpop.permute.xlu0 %1784
    %1787 = vset.pattern.permute.xlu0 6
    %1788 = vperm.xlu0 %1787, %v51
    %v1789 = vpop.permute.xlu0 %1788
    %1791 = vset.pattern.permute.xlu0 6
    %1792 = vperm.xlu0 %1791, %v52
    %v1793 = vpop.permute.xlu0 %1792
    %1795 = vset.pattern.permute.xlu0 6
    %1796 = vperm.xlu0 %1795, %v53
    %v1797 = vpop.permute.xlu0 %1796
    %1799 = vset.pattern.permute.xlu0 6
    %1800 = vperm.xlu0 %1799, %v54
    %v1801 = vpop.permute.xlu0 %1800
    %1803 = vset.pattern.permute.xlu0 6
    %1804 = vperm.xlu0 %1803, %v55
    %v1805 = vpop.permute.xlu0 %1804
    %1807 = vset.pattern.permute.xlu0 6
    %1808 = vperm.xlu0 %1807, %v56
    %v1809 = vpop.permute.xlu0 %1808
    %v1811 = vperm.slane %v39, 6
    %v1812 = vadd.f32 %v1749, %v1811
    %v1813 = vadd.f32 %v1753, %v1811
    %v1814 = vadd.f32 %v1757, %v1811
    %v1815 = vadd.f32 %v1761, %v1811
    %v1816 = vadd.f32 %v1765, %v1811
    %v1817 = vadd.f32 %v1769, %v1811
    %v1818 = vadd.f32 %v1773, %v1811
    %v1819 = vadd.f32 %v1777, %v1811
    %v1820 = vadd.f32 %v1781, %v1811
    %v1821 = vadd.f32 %v1785, %v1811
    %v1822 = vadd.f32 %v1789, %v1811
    %v1823 = vadd.f32 %v1793, %v1811
    %v1824 = vadd.f32 %v1797, %v1811
    %v1825 = vadd.f32 %v1801, %v1811
    %v1826 = vadd.f32 %v1805, %v1811
    %v1827 = vadd.f32 %v1809, %v1811
    %v1828 = vrot.slane %v57, 6
    %s1829 = vtos %v1828
    %v1830 = vstv %s1829
    %v1832 = vmul.f32 %v1830, %v75
    %v1833 = vmul.f32 %v1830, %v76
    %v1834 = vmul.f32 %v1830, %v77
    %v1835 = vmul.f32 %v1830, %v78
    %v1836 = vmul.f32 %v1830, %v79
    %v1837 = vmul.f32 %v1830, %v80
    %v1838 = vmul.f32 %v1830, %v81
    %v1839 = vmul.f32 %v1830, %v82
    %v1840 = vmul.f32 %v1830, %v83
    %v1841 = vmul.f32 %v1830, %v84
    %v1842 = vmul.f32 %v1830, %v85
    %v1843 = vmul.f32 %v1830, %v86
    %v1844 = vmul.f32 %v1830, %v87
    %v1845 = vmul.f32 %v1830, %v88
    %v1846 = vmul.f32 %v1830, %v89
    %v1847 = vmul.f32 %v1830, %v90
    %v1848 = vadd.f32 %v1812, %v1832
    %v1849 = vadd.f32 %v1813, %v1833
    %v1850 = vadd.f32 %v1814, %v1834
    %v1851 = vadd.f32 %v1815, %v1835
    %v1852 = vadd.f32 %v1816, %v1836
    %v1853 = vadd.f32 %v1817, %v1837
    %v1854 = vadd.f32 %v1818, %v1838
    %v1855 = vadd.f32 %v1819, %v1839
    %v1856 = vadd.f32 %v1820, %v1840
    %v1857 = vadd.f32 %v1821, %v1841
    %v1858 = vadd.f32 %v1822, %v1842
    %v1859 = vadd.f32 %v1823, %v1843
    %v1860 = vadd.f32 %v1824, %v1844
    %v1861 = vadd.f32 %v1825, %v1845
    %v1862 = vadd.f32 %v1826, %v1846
    %v1863 = vadd.f32 %v1827, %v1847
    %1864 = vrot.lane.b32.xlu0 %v1828, 127
    %v1865 = vpop.permute.xlu0 %1864
    %s1866 = vtos %v1865
    %v1867 = vstv %s1866
    %v1869 = vmul.f32 %v1867, %v108
    %v1870 = vmul.f32 %v1867, %v109
    %v1871 = vmul.f32 %v1867, %v110
    %v1872 = vmul.f32 %v1867, %v111
    %v1873 = vmul.f32 %v1867, %v112
    %v1874 = vmul.f32 %v1867, %v113
    %v1875 = vmul.f32 %v1867, %v114
    %v1876 = vmul.f32 %v1867, %v115
    %v1877 = vmul.f32 %v1867, %v116
    %v1878 = vmul.f32 %v1867, %v117
    %v1879 = vmul.f32 %v1867, %v118
    %v1880 = vmul.f32 %v1867, %v119
    %v1881 = vmul.f32 %v1867, %v120
    %v1882 = vmul.f32 %v1867, %v121
    %v1883 = vmul.f32 %v1867, %v122
    %v1884 = vmul.f32 %v1867, %v123
    %v1885 = vadd.f32 %v1848, %v1869
    %v1886 = vadd.f32 %v1849, %v1870
    %v1887 = vadd.f32 %v1850, %v1871
    %v1888 = vadd.f32 %v1851, %v1872
    %v1889 = vadd.f32 %v1852, %v1873
    %v1890 = vadd.f32 %v1853, %v1874
    %v1891 = vadd.f32 %v1854, %v1875
    %v1892 = vadd.f32 %v1855, %v1876
    %v1893 = vadd.f32 %v1856, %v1877
    %v1894 = vadd.f32 %v1857, %v1878
    %v1895 = vadd.f32 %v1858, %v1879
    %v1896 = vadd.f32 %v1859, %v1880
    %v1897 = vadd.f32 %v1860, %v1881
    %v1898 = vadd.f32 %v1861, %v1882
    %v1899 = vadd.f32 %v1862, %v1883
    %v1900 = vadd.f32 %v1863, %v1884
    %1901 = vrot.lane.b32.xlu0 %v1828, 126
    %v1902 = vpop.permute.xlu0 %1901
    %s1903 = vtos %v1902
    %v1904 = vstv %s1903
    %v1906 = vmul.f32 %v1904, %v141
    %v1907 = vmul.f32 %v1904, %v142
    %v1908 = vmul.f32 %v1904, %v143
    %v1909 = vmul.f32 %v1904, %v144
    %v1910 = vmul.f32 %v1904, %v145
    %v1911 = vmul.f32 %v1904, %v146
    %v1912 = vmul.f32 %v1904, %v147
    %v1913 = vmul.f32 %v1904, %v148
    %v1914 = vmul.f32 %v1904, %v149
    %v1915 = vmul.f32 %v1904, %v150
    %v1916 = vmul.f32 %v1904, %v151
    %v1917 = vmul.f32 %v1904, %v152
    %v1918 = vmul.f32 %v1904, %v153
    %v1919 = vmul.f32 %v1904, %v154
    %v1920 = vmul.f32 %v1904, %v155
    %v1921 = vmul.f32 %v1904, %v156
    %v1922 = vadd.f32 %v1885, %v1906
    %v1923 = vadd.f32 %v1886, %v1907
    %v1924 = vadd.f32 %v1887, %v1908
    %v1925 = vadd.f32 %v1888, %v1909
    %v1926 = vadd.f32 %v1889, %v1910
    %v1927 = vadd.f32 %v1890, %v1911
    %v1928 = vadd.f32 %v1891, %v1912
    %v1929 = vadd.f32 %v1892, %v1913
    %v1930 = vadd.f32 %v1893, %v1914
    %v1931 = vadd.f32 %v1894, %v1915
    %v1932 = vadd.f32 %v1895, %v1916
    %v1933 = vadd.f32 %v1896, %v1917
    %v1934 = vadd.f32 %v1897, %v1918
    %v1935 = vadd.f32 %v1898, %v1919
    %v1936 = vadd.f32 %v1899, %v1920
    %v1937 = vadd.f32 %v1900, %v1921
    %v1938 = vmul.f32 %v1922, 0.2
    %v1939 = vmul.f32 %v1923, 0.2
    %v1940 = vmul.f32 %v1924, 0.2
    %v1941 = vmul.f32 %v1925, 0.2
    %v1942 = vmul.f32 %v1926, 0.2
    %v1943 = vmul.f32 %v1927, 0.2
    %v1944 = vmul.f32 %v1928, 0.2
    %v1945 = vmul.f32 %v1929, 0.2
    %v1946 = vmul.f32 %v1930, 0.2
    %v1947 = vmul.f32 %v1931, 0.2
    %v1948 = vmul.f32 %v1932, 0.2
    %v1949 = vmul.f32 %v1933, 0.2
    %v1950 = vmul.f32 %v1934, 0.2
    %v1951 = vmul.f32 %v1935, 0.2
    %v1952 = vmul.f32 %v1936, 0.2
    %v1953 = vmul.f32 %v1937, 0.2
    %v1954 = vmax.f32 %v1922, %v1938
    %v1955 = vmax.f32 %v1923, %v1939
    %v1956 = vmax.f32 %v1924, %v1940
    %v1957 = vmax.f32 %v1925, %v1941
    %v1958 = vmax.f32 %v1926, %v1942
    %v1959 = vmax.f32 %v1927, %v1943
    %v1960 = vmax.f32 %v1928, %v1944
    %v1961 = vmax.f32 %v1929, %v1945
    %v1962 = vmax.f32 %v1930, %v1946
    %v1963 = vmax.f32 %v1931, %v1947
    %v1964 = vmax.f32 %v1932, %v1948
    %v1965 = vmax.f32 %v1933, %v1949
    %v1966 = vmax.f32 %v1934, %v1950
    %v1967 = vmax.f32 %v1935, %v1951
    %v1968 = vmax.f32 %v1936, %v1952
    %v1969 = vmax.f32 %v1937, %v1953
    %s1970 = sld [smem:[#allocation2 + $0x6]]
    %v1971 = vstv %s1970
    %v1972 = vmul.f32 %v1971, %v1954
    %v1973 = vmul.f32 %v1971, %v1955
    %v1974 = vmul.f32 %v1971, %v1956
    %v1975 = vmul.f32 %v1971, %v1957
    %v1976 = vmul.f32 %v1971, %v1958
    %v1977 = vmul.f32 %v1971, %v1959
    %v1978 = vmul.f32 %v1971, %v1960
    %v1979 = vmul.f32 %v1971, %v1961
    %v1980 = vmul.f32 %v1971, %v1962
    %v1981 = vmul.f32 %v1971, %v1963
    %v1982 = vmul.f32 %v1971, %v1964
    %v1983 = vmul.f32 %v1971, %v1965
    %v1984 = vmul.f32 %v1971, %v1966
    %v1985 = vmul.f32 %v1971, %v1967
    %v1986 = vmul.f32 %v1971, %v1968
    %v1987 = vmul.f32 %v1971, %v1969
    %v1988 = vadd.f32 %v1731, %v1972
    %v1989 = vadd.f32 %v1732, %v1973
    %v1990 = vadd.f32 %v1733, %v1974
    %v1991 = vadd.f32 %v1734, %v1975
    %v1992 = vadd.f32 %v1735, %v1976
    %v1993 = vadd.f32 %v1736, %v1977
    %v1994 = vadd.f32 %v1737, %v1978
    %v1995 = vadd.f32 %v1738, %v1979
    %v1996 = vadd.f32 %v1739, %v1980
    %v1997 = vadd.f32 %v1740, %v1981
    %v1998 = vadd.f32 %v1741, %v1982
    %v1999 = vadd.f32 %v1742, %v1983
    %v2000 = vadd.f32 %v1743, %v1984
    %v2001 = vadd.f32 %v1744, %v1985
    %v2002 = vadd.f32 %v1745, %v1986
    %v2003 = vadd.f32 %v1746, %v1987
    %2004 = vset.pattern.permute.xlu0 7
    %2005 = vperm.xlu0 %2004, %v41
    %v2006 = vpop.permute.xlu0 %2005
    %2008 = vset.pattern.permute.xlu0 7
    %2009 = vperm.xlu0 %2008, %v42
    %v2010 = vpop.permute.xlu0 %2009
    %2012 = vset.pattern.permute.xlu0 7
    %2013 = vperm.xlu0 %2012, %v43
    %v2014 = vpop.permute.xlu0 %2013
    %2016 = vset.pattern.permute.xlu0 7
    %2017 = vperm.xlu0 %2016, %v44
    %v2018 = vpop.permute.xlu0 %2017
    %2020 = vset.pattern.permute.xlu0 7
    %2021 = vperm.xlu0 %2020, %v45
    %v2022 = vpop.permute.xlu0 %2021
    %2024 = vset.pattern.permute.xlu0 7
    %2025 = vperm.xlu0 %2024, %v46
    %v2026 = vpop.permute.xlu0 %2025
    %2028 = vset.pattern.permute.xlu0 7
    %2029 = vperm.xlu0 %2028, %v47
    %v2030 = vpop.permute.xlu0 %2029
    %2032 = vset.pattern.permute.xlu0 7
    %2033 = vperm.xlu0 %2032, %v48
    %v2034 = vpop.permute.xlu0 %2033
    %2036 = vset.pattern.permute.xlu0 7
    %2037 = vperm.xlu0 %2036, %v49
    %v2038 = vpop.permute.xlu0 %2037
    %2040 = vset.pattern.permute.xlu0 7
    %2041 = vperm.xlu0 %2040, %v50
    %v2042 = vpop.permute.xlu0 %2041
    %2044 = vset.pattern.permute.xlu0 7
    %2045 = vperm.xlu0 %2044, %v51
    %v2046 = vpop.permute.xlu0 %2045
    %2048 = vset.pattern.permute.xlu0 7
    %2049 = vperm.xlu0 %2048, %v52
    %v2050 = vpop.permute.xlu0 %2049
    %2052 = vset.pattern.permute.xlu0 7
    %2053 = vperm.xlu0 %2052, %v53
    %v2054 = vpop.permute.xlu0 %2053
    %2056 = vset.pattern.permute.xlu0 7
    %2057 = vperm.xlu0 %2056, %v54
    %v2058 = vpop.permute.xlu0 %2057
    %2060 = vset.pattern.permute.xlu0 7
    %2061 = vperm.xlu0 %2060, %v55
    %v2062 = vpop.permute.xlu0 %2061
    %2064 = vset.pattern.permute.xlu0 7
    %2065 = vperm.xlu0 %2064, %v56
    %v2066 = vpop.permute.xlu0 %2065
    %v2068 = vperm.slane %v39, 7
    %v2069 = vadd.f32 %v2006, %v2068
    %v2070 = vadd.f32 %v2010, %v2068
    %v2071 = vadd.f32 %v2014, %v2068
    %v2072 = vadd.f32 %v2018, %v2068
    %v2073 = vadd.f32 %v2022, %v2068
    %v2074 = vadd.f32 %v2026, %v2068
    %v2075 = vadd.f32 %v2030, %v2068
    %v2076 = vadd.f32 %v2034, %v2068
    %v2077 = vadd.f32 %v2038, %v2068
    %v2078 = vadd.f32 %v2042, %v2068
    %v2079 = vadd.f32 %v2046, %v2068
    %v2080 = vadd.f32 %v2050, %v2068
    %v2081 = vadd.f32 %v2054, %v2068
    %v2082 = vadd.f32 %v2058, %v2068
    %v2083 = vadd.f32 %v2062, %v2068
    %v2084 = vadd.f32 %v2066, %v2068
    %v2085 = vrot.slane %v57, 7
    %s2086 = vtos %v2085
    %v2087 = vstv %s2086
    %v2089 = vmul.f32 %v2087, %v75
    %v2090 = vmul.f32 %v2087, %v76
    %v2091 = vmul.f32 %v2087, %v77
    %v2092 = vmul.f32 %v2087, %v78
    %v2093 = vmul.f32 %v2087, %v79
    %v2094 = vmul.f32 %v2087, %v80
    %v2095 = vmul.f32 %v2087, %v81
    %v2096 = vmul.f32 %v2087, %v82
    %v2097 = vmul.f32 %v2087, %v83
    %v2098 = vmul.f32 %v2087, %v84
    %v2099 = vmul.f32 %v2087, %v85
    %v2100 = vmul.f32 %v2087, %v86
    %v2101 = vmul.f32 %v2087, %v87
    %v2102 = vmul.f32 %v2087, %v88
    %v2103 = vmul.f32 %v2087, %v89
    %v2104 = vmul.f32 %v2087, %v90
    %v2105 = vadd.f32 %v2069, %v2089
    %v2106 = vadd.f32 %v2070, %v2090
    %v2107 = vadd.f32 %v2071, %v2091
    %v2108 = vadd.f32 %v2072, %v2092
    %v2109 = vadd.f32 %v2073, %v2093
    %v2110 = vadd.f32 %v2074, %v2094
    %v2111 = vadd.f32 %v2075, %v2095
    %v2112 = vadd.f32 %v2076, %v2096
    %v2113 = vadd.f32 %v2077, %v2097
    %v2114 = vadd.f32 %v2078, %v2098
    %v2115 = vadd.f32 %v2079, %v2099
    %v2116 = vadd.f32 %v2080, %v2100
    %v2117 = vadd.f32 %v2081, %v2101
    %v2118 = vadd.f32 %v2082, %v2102
    %v2119 = vadd.f32 %v2083, %v2103
    %v2120 = vadd.f32 %v2084, %v2104
    %2121 = vrot.lane.b32.xlu0 %v2085, 127
    %v2122 = vpop.permute.xlu0 %2121
    %s2123 = vtos %v2122
    %v2124 = vstv %s2123
    %v2126 = vmul.f32 %v2124, %v108
    %v2127 = vmul.f32 %v2124, %v109
    %v2128 = vmul.f32 %v2124, %v110
    %v2129 = vmul.f32 %v2124, %v111
    %v2130 = vmul.f32 %v2124, %v112
    %v2131 = vmul.f32 %v2124, %v113
    %v2132 = vmul.f32 %v2124, %v114
    %v2133 = vmul.f32 %v2124, %v115
    %v2134 = vmul.f32 %v2124, %v116
    %v2135 = vmul.f32 %v2124, %v117
    %v2136 = vmul.f32 %v2124, %v118
    %v2137 = vmul.f32 %v2124, %v119
    %v2138 = vmul.f32 %v2124, %v120
    %v2139 = vmul.f32 %v2124, %v121
    %v2140 = vmul.f32 %v2124, %v122
    %v2141 = vmul.f32 %v2124, %v123
    %v2142 = vadd.f32 %v2105, %v2126
    %v2143 = vadd.f32 %v2106, %v2127
    %v2144 = vadd.f32 %v2107, %v2128
    %v2145 = vadd.f32 %v2108, %v2129
    %v2146 = vadd.f32 %v2109, %v2130
    %v2147 = vadd.f32 %v2110, %v2131
    %v2148 = vadd.f32 %v2111, %v2132
    %v2149 = vadd.f32 %v2112, %v2133
    %v2150 = vadd.f32 %v2113, %v2134
    %v2151 = vadd.f32 %v2114, %v2135
    %v2152 = vadd.f32 %v2115, %v2136
    %v2153 = vadd.f32 %v2116, %v2137
    %v2154 = vadd.f32 %v2117, %v2138
    %v2155 = vadd.f32 %v2118, %v2139
    %v2156 = vadd.f32 %v2119, %v2140
    %v2157 = vadd.f32 %v2120, %v2141
    %2158 = vrot.lane.b32.xlu0 %v2085, 126
    %v2159 = vpop.permute.xlu0 %2158
    %s2160 = vtos %v2159
    %v2161 = vstv %s2160
    %v2163 = vmul.f32 %v2161, %v141
    %v2164 = vmul.f32 %v2161, %v142
    %v2165 = vmul.f32 %v2161, %v143
    %v2166 = vmul.f32 %v2161, %v144
    %v2167 = vmul.f32 %v2161, %v145
    %v2168 = vmul.f32 %v2161, %v146
    %v2169 = vmul.f32 %v2161, %v147
    %v2170 = vmul.f32 %v2161, %v148
    %v2171 = vmul.f32 %v2161, %v149
    %v2172 = vmul.f32 %v2161, %v150
    %v2173 = vmul.f32 %v2161, %v151
    %v2174 = vmul.f32 %v2161, %v152
    %v2175 = vmul.f32 %v2161, %v153
    %v2176 = vmul.f32 %v2161, %v154
    %v2177 = vmul.f32 %v2161, %v155
    %v2178 = vmul.f32 %v2161, %v156
    %v2179 = vadd.f32 %v2142, %v2163
    %v2180 = vadd.f32 %v2143, %v2164
    %v2181 = vadd.f32 %v2144, %v2165
    %v2182 = vadd.f32 %v2145, %v2166
    %v2183 = vadd.f32 %v2146, %v2167
    %v2184 = vadd.f32 %v2147, %v2168
    %v2185 = vadd.f32 %v2148, %v2169
    %v2186 = vadd.f32 %v2149, %v2170
    %v2187 = vadd.f32 %v2150, %v2171
    %v2188 = vadd.f32 %v2151, %v2172
    %v2189 = vadd.f32 %v2152, %v2173
    %v2190 = vadd.f32 %v2153, %v2174
    %v2191 = vadd.f32 %v2154, %v2175
    %v2192 = vadd.f32 %v2155, %v2176
    %v2193 = vadd.f32 %v2156, %v2177
    %v2194 = vadd.f32 %v2157, %v2178
    %v2195 = vmul.f32 %v2179, 0.2
    %v2196 = vmul.f32 %v2180, 0.2
    %v2197 = vmul.f32 %v2181, 0.2
    %v2198 = vmul.f32 %v2182, 0.2
    %v2199 = vmul.f32 %v2183, 0.2
    %v2200 = vmul.f32 %v2184, 0.2
    %v2201 = vmul.f32 %v2185, 0.2
    %v2202 = vmul.f32 %v2186, 0.2
    %v2203 = vmul.f32 %v2187, 0.2
    %v2204 = vmul.f32 %v2188, 0.2
    %v2205 = vmul.f32 %v2189, 0.2
    %v2206 = vmul.f32 %v2190, 0.2
    %v2207 = vmul.f32 %v2191, 0.2
    %v2208 = vmul.f32 %v2192, 0.2
    %v2209 = vmul.f32 %v2193, 0.2
    %v2210 = vmul.f32 %v2194, 0.2
    %v2211 = vmax.f32 %v2179, %v2195
    %v2212 = vmax.f32 %v2180, %v2196
    %v2213 = vmax.f32 %v2181, %v2197
    %v2214 = vmax.f32 %v2182, %v2198
    %v2215 = vmax.f32 %v2183, %v2199
    %v2216 = vmax.f32 %v2184, %v2200
    %v2217 = vmax.f32 %v2185, %v2201
    %v2218 = vmax.f32 %v2186, %v2202
    %v2219 = vmax.f32 %v2187, %v2203
    %v2220 = vmax.f32 %v2188, %v2204
    %v2221 = vmax.f32 %v2189, %v2205
    %v2222 = vmax.f32 %v2190, %v2206
    %v2223 = vmax.f32 %v2191, %v2207
    %v2224 = vmax.f32 %v2192, %v2208
    %v2225 = vmax.f32 %v2193, %v2209
    %v2226 = vmax.f32 %v2194, %v2210
    %s2227 = sld [smem:[#allocation2 + $0x7]]
    %v2228 = vstv %s2227
    %v2229 = vmul.f32 %v2228, %v2211
    %v2230 = vmul.f32 %v2228, %v2212
    %v2231 = vmul.f32 %v2228, %v2213
    %v2232 = vmul.f32 %v2228, %v2214
    %v2233 = vmul.f32 %v2228, %v2215
    %v2234 = vmul.f32 %v2228, %v2216
    %v2235 = vmul.f32 %v2228, %v2217
    %v2236 = vmul.f32 %v2228, %v2218
    %v2237 = vmul.f32 %v2228, %v2219
    %v2238 = vmul.f32 %v2228, %v2220
    %v2239 = vmul.f32 %v2228, %v2221
    %v2240 = vmul.f32 %v2228, %v2222
    %v2241 = vmul.f32 %v2228, %v2223
    %v2242 = vmul.f32 %v2228, %v2224
    %v2243 = vmul.f32 %v2228, %v2225
    %v2244 = vmul.f32 %v2228, %v2226
    %v2245 = vadd.f32 %v1988, %v2229
    %v2246 = vadd.f32 %v1989, %v2230
    %v2247 = vadd.f32 %v1990, %v2231
    %v2248 = vadd.f32 %v1991, %v2232
    %v2249 = vadd.f32 %v1992, %v2233
    %v2250 = vadd.f32 %v1993, %v2234
    %v2251 = vadd.f32 %v1994, %v2235
    %v2252 = vadd.f32 %v1995, %v2236
    %v2253 = vadd.f32 %v1996, %v2237
    %v2254 = vadd.f32 %v1997, %v2238
    %v2255 = vadd.f32 %v1998, %v2239
    %v2256 = vadd.f32 %v1999, %v2240
    %v2257 = vadd.f32 %v2000, %v2241
    %v2258 = vadd.f32 %v2001, %v2242
    %v2259 = vadd.f32 %v2002, %v2243
    %v2260 = vadd.f32 %v2003, %v2244
    %2261 = vmax.xlane.f32.xlu0 %v2245
    %v2262 = vpop.xlane.xlu0 %2261
    %2263 = vmax.xlane.f32.xlu0 %v2246
    %v2264 = vpop.xlane.xlu0 %2263
    %2265 = vmax.xlane.f32.xlu0 %v2247
    %v2266 = vpop.xlane.xlu0 %2265
    %2267 = vmax.xlane.f32.xlu0 %v2248
    %v2268 = vpop.xlane.xlu0 %2267
    %2269 = vmax.xlane.f32.xlu0 %v2249
    %v2270 = vpop.xlane.xlu0 %2269
    %2271 = vmax.xlane.f32.xlu0 %v2250
    %v2272 = vpop.xlane.xlu0 %2271
    %2273 = vmax.xlane.f32.xlu0 %v2251
    %v2274 = vpop.xlane.xlu0 %2273
    %2275 = vmax.xlane.f32.xlu0 %v2252
    %v2276 = vpop.xlane.xlu0 %2275
    %2277 = vmax.xlane.f32.xlu0 %v2253
    %v2278 = vpop.xlane.xlu0 %2277
    %2279 = vmax.xlane.f32.xlu0 %v2254
    %v2280 = vpop.xlane.xlu0 %2279
    %2281 = vmax.xlane.f32.xlu0 %v2255
    %v2282 = vpop.xlane.xlu0 %2281
    %2283 = vmax.xlane.f32.xlu0 %v2256
    %v2284 = vpop.xlane.xlu0 %2283
    %2285 = vmax.xlane.f32.xlu0 %v2257
    %v2286 = vpop.xlane.xlu0 %2285
    %2287 = vmax.xlane.f32.xlu0 %v2258
    %v2288 = vpop.xlane.xlu0 %2287
    %2289 = vmax.xlane.f32.xlu0 %v2259
    %v2290 = vpop.xlane.xlu0 %2289
    %2291 = vmax.xlane.f32.xlu0 %v2260
    %v2292 = vpop.xlane.xlu0 %2291
    %v2293 = vsub.f32 %v2245, %v2262
    %v2294 = vsub.f32 %v2246, %v2264
    %v2295 = vsub.f32 %v2247, %v2266
    %v2296 = vsub.f32 %v2248, %v2268
    %v2297 = vsub.f32 %v2249, %v2270
    %v2298 = vsub.f32 %v2250, %v2272
    %v2299 = vsub.f32 %v2251, %v2274
    %v2300 = vsub.f32 %v2252, %v2276
    %v2301 = vsub.f32 %v2253, %v2278
    %v2302 = vsub.f32 %v2254, %v2280
    %v2303 = vsub.f32 %v2255, %v2282
    %v2304 = vsub.f32 %v2256, %v2284
    %v2305 = vsub.f32 %v2257, %v2286
    %v2306 = vsub.f32 %v2258, %v2288
    %v2307 = vsub.f32 %v2259, %v2290
    %v2308 = vsub.f32 %v2260, %v2292
    %v2309 = vmul.f32 %v2293, 1.442695
    %v2310 = vpow.pop %v2309
    %v2311 = vmul.f32 %v2294, 1.442695
    %v2312 = vpow.pop %v2311
    %v2313 = vmul.f32 %v2295, 1.442695
    %v2314 = vpow.pop %v2313
    %v2315 = vmul.f32 %v2296, 1.442695
    %v2316 = vpow.pop %v2315
    %v2317 = vmul.f32 %v2297, 1.442695
    %v2318 = vpow.pop %v2317
    %v2319 = vmul.f32 %v2298, 1.442695
    %v2320 = vpow.pop %v2319
    %v2321 = vmul.f32 %v2299, 1.442695
    %v2322 = vpow.pop %v2321
    %v2323 = vmul.f32 %v2300, 1.442695
    %v2324 = vpow.pop %v2323
    %v2325 = vmul.f32 %v2301, 1.442695
    %v2326 = vpow.pop %v2325
    %v2327 = vmul.f32 %v2302, 1.442695
    %v2328 = vpow.pop %v2327
    %v2329 = vmul.f32 %v2303, 1.442695
    %v2330 = vpow.pop %v2329
    %v2331 = vmul.f32 %v2304, 1.442695
    %v2332 = vpow.pop %v2331
    %v2333 = vmul.f32 %v2305, 1.442695
    %v2334 = vpow.pop %v2333
    %v2335 = vmul.f32 %v2306, 1.442695
    %v2336 = vpow.pop %v2335
    %v2337 = vmul.f32 %v2307, 1.442695
    %v2338 = vpow.pop %v2337
    %v2339 = vmul.f32 %v2308, 1.442695
    %v2340 = vpow.pop %v2339
    %2341 = vmatpush.xpose.msra.mxu0 %v2340
    %2342 = vmatpush.xpose.msra.mxu0 %v2338
    %2343 = vmatpush.xpose.msra.mxu0 %v2336
    %2344 = vmatpush.xpose.msra.mxu0 %v2334
    %2345 = vmatpush.xpose.msra.mxu0 %v2332
    %2346 = vmatpush.xpose.msra.mxu0 %v2330
    %2347 = vmatpush.xpose.msra.mxu0 %v2328
    %2348 = vmatpush.xpose.msra.mxu0 %v2326
    %2349 = vmatpush.xpose.msra.mxu0 %v2324
    %2350 = vmatpush.xpose.msra.mxu0 %v2322
    %2351 = vmatpush.xpose.msra.mxu0 %v2320
    %2352 = vmatpush.xpose.msra.mxu0 %v2318
    %2353 = vmatpush.xpose.msra.mxu0 %v2316
    %2354 = vmatpush.xpose.msra.mxu0 %v2314
    %2355 = vmatpush.xpose.msra.mxu0 %v2312
    %2356 = vmatpush.xpose.msra.mxu0 %v2310
    %2357 = vmatmul.f32.gmra.mxu0 %v39
    %v2358 = vpop.f32.mrf.mxu0
    %v2359 = vadd.f32 0.0, %v2358
    %2360 = vdwg.mxu0
    %2361 = vmatpush.xpose.msra.mxu0 %v2340
    %2362 = vmatpush.xpose.msra.mxu0 %v2338
    %2363 = vmatpush.xpose.msra.mxu0 %v2336
    %2364 = vmatpush.xpose.msra.mxu0 %v2334
    %2365 = vmatpush.xpose.msra.mxu0 %v2332
    %2366 = vmatpush.xpose.msra.mxu0 %v2330
    %2367 = vmatpush.xpose.msra.mxu0 %v2328
    %2368 = vmatpush.xpose.msra.mxu0 %v2326
    %2369 = vmatpush.xpose.msra.mxu0 %v2324
    %2370 = vmatpush.xpose.msra.mxu0 %v2322
    %2371 = vmatpush.xpose.msra.mxu0 %v2320
    %2372 = vmatpush.xpose.msra.mxu0 %v2318
    %2373 = vmatpush.xpose.msra.mxu0 %v2316
    %2374 = vmatpush.xpose.msra.mxu0 %v2314
    %2375 = vmatpush.xpose.msra.mxu0 %v2312
    %2376 = vmatpush.xpose.msra.mxu0 %v2310
    %2377 = vmatmul.f32.gmra.mxu0 1.0
    %v2378 = vpop.f32.mrf.mxu0
    %v2379 = vadd.f32 0.0, %v2378
    %2380 = vdwg.mxu0
    %v2381 = vrcp.pop %v2379
    %v2382 = vperm.slane %v2381, 0
    %v2383 = vmul.f32 %v2359, %v2382
    %2384 = vset.pattern.permute.xlu0 8
    %2385 = vperm.xlu0 %2384, %v41
    %v2386 = vpop.permute.xlu0 %2385
    %2388 = vset.pattern.permute.xlu0 8
    %2389 = vperm.xlu0 %2388, %v42
    %v2390 = vpop.permute.xlu0 %2389
    %2392 = vset.pattern.permute.xlu0 8
    %2393 = vperm.xlu0 %2392, %v43
    %v2394 = vpop.permute.xlu0 %2393
    %2396 = vset.pattern.permute.xlu0 8
    %2397 = vperm.xlu0 %2396, %v44
    %v2398 = vpop.permute.xlu0 %2397
    %2400 = vset.pattern.permute.xlu0 8
    %2401 = vperm.xlu0 %2400, %v45
    %v2402 = vpop.permute.xlu0 %2401
    %2404 = vset.pattern.permute.xlu0 8
    %2405 = vperm.xlu0 %2404, %v46
    %v2406 = vpop.permute.xlu0 %2405
    %2408 = vset.pattern.permute.xlu0 8
    %2409 = vperm.xlu0 %2408, %v47
    %v2410 = vpop.permute.xlu0 %2409
    %2412 = vset.pattern.permute.xlu0 8
    %2413 = vperm.xlu0 %2412, %v48
    %v2414 = vpop.permute.xlu0 %2413
    %2416 = vset.pattern.permute.xlu0 8
    %2417 = vperm.xlu0 %2416, %v49
    %v2418 = vpop.permute.xlu0 %2417
    %2420 = vset.pattern.permute.xlu0 8
    %2421 = vperm.xlu0 %2420, %v50
    %v2422 = vpop.permute.xlu0 %2421
    %2424 = vset.pattern.permute.xlu0 8
    %2425 = vperm.xlu0 %2424, %v51
    %v2426 = vpop.permute.xlu0 %2425
    %2428 = vset.pattern.permute.xlu0 8
    %2429 = vperm.xlu0 %2428, %v52
    %v2430 = vpop.permute.xlu0 %2429
    %2432 = vset.pattern.permute.xlu0 8
    %2433 = vperm.xlu0 %2432, %v53
    %v2434 = vpop.permute.xlu0 %2433
    %2436 = vset.pattern.permute.xlu0 8
    %2437 = vperm.xlu0 %2436, %v54
    %v2438 = vpop.permute.xlu0 %2437
    %2440 = vset.pattern.permute.xlu0 8
    %2441 = vperm.xlu0 %2440, %v55
    %v2442 = vpop.permute.xlu0 %2441
    %2444 = vset.pattern.permute.xlu0 8
    %2445 = vperm.xlu0 %2444, %v56
    %v2446 = vpop.permute.xlu0 %2445
    %v2448 = vperm.slane %v40, 0
    %v2449 = vadd.f32 %v2386, %v2448
    %v2450 = vadd.f32 %v2390, %v2448
    %v2451 = vadd.f32 %v2394, %v2448
    %v2452 = vadd.f32 %v2398, %v2448
    %v2453 = vadd.f32 %v2402, %v2448
    %v2454 = vadd.f32 %v2406, %v2448
    %v2455 = vadd.f32 %v2410, %v2448
    %v2456 = vadd.f32 %v2414, %v2448
    %v2457 = vadd.f32 %v2418, %v2448
    %v2458 = vadd.f32 %v2422, %v2448
    %v2459 = vadd.f32 %v2426, %v2448
    %v2460 = vadd.f32 %v2430, %v2448
    %v2461 = vadd.f32 %v2434, %v2448
    %v2462 = vadd.f32 %v2438, %v2448
    %v2463 = vadd.f32 %v2442, %v2448
    %v2464 = vadd.f32 %v2446, %v2448
    %s2466 = vtos %v58
    %v2467 = vstv %s2466
    %v2469 = vmul.f32 %v2467, %v75
    %v2470 = vmul.f32 %v2467, %v76
    %v2471 = vmul.f32 %v2467, %v77
    %v2472 = vmul.f32 %v2467, %v78
    %v2473 = vmul.f32 %v2467, %v79
    %v2474 = vmul.f32 %v2467, %v80
    %v2475 = vmul.f32 %v2467, %v81
    %v2476 = vmul.f32 %v2467, %v82
    %v2477 = vmul.f32 %v2467, %v83
    %v2478 = vmul.f32 %v2467, %v84
    %v2479 = vmul.f32 %v2467, %v85
    %v2480 = vmul.f32 %v2467, %v86
    %v2481 = vmul.f32 %v2467, %v87
    %v2482 = vmul.f32 %v2467, %v88
    %v2483 = vmul.f32 %v2467, %v89
    %v2484 = vmul.f32 %v2467, %v90
    %v2485 = vadd.f32 %v2449, %v2469
    %v2486 = vadd.f32 %v2450, %v2470
    %v2487 = vadd.f32 %v2451, %v2471
    %v2488 = vadd.f32 %v2452, %v2472
    %v2489 = vadd.f32 %v2453, %v2473
    %v2490 = vadd.f32 %v2454, %v2474
    %v2491 = vadd.f32 %v2455, %v2475
    %v2492 = vadd.f32 %v2456, %v2476
    %v2493 = vadd.f32 %v2457, %v2477
    %v2494 = vadd.f32 %v2458, %v2478
    %v2495 = vadd.f32 %v2459, %v2479
    %v2496 = vadd.f32 %v2460, %v2480
    %v2497 = vadd.f32 %v2461, %v2481
    %v2498 = vadd.f32 %v2462, %v2482
    %v2499 = vadd.f32 %v2463, %v2483
    %v2500 = vadd.f32 %v2464, %v2484
    %2501 = vrot.lane.b32.xlu0 %v58, 127
    %v2502 = vpop.permute.xlu0 %2501
    %s2503 = vtos %v2502
    %v2504 = vstv %s2503
    %v2506 = vmul.f32 %v2504, %v108
    %v2507 = vmul.f32 %v2504, %v109
    %v2508 = vmul.f32 %v2504, %v110
    %v2509 = vmul.f32 %v2504, %v111
    %v2510 = vmul.f32 %v2504, %v112
    %v2511 = vmul.f32 %v2504, %v113
    %v2512 = vmul.f32 %v2504, %v114
    %v2513 = vmul.f32 %v2504, %v115
    %v2514 = vmul.f32 %v2504, %v116
    %v2515 = vmul.f32 %v2504, %v117
    %v2516 = vmul.f32 %v2504, %v118
    %v2517 = vmul.f32 %v2504, %v119
    %v2518 = vmul.f32 %v2504, %v120
    %v2519 = vmul.f32 %v2504, %v121
    %v2520 = vmul.f32 %v2504, %v122
    %v2521 = vmul.f32 %v2504, %v123
    %v2522 = vadd.f32 %v2485, %v2506
    %v2523 = vadd.f32 %v2486, %v2507
    %v2524 = vadd.f32 %v2487, %v2508
    %v2525 = vadd.f32 %v2488, %v2509
    %v2526 = vadd.f32 %v2489, %v2510
    %v2527 = vadd.f32 %v2490, %v2511
    %v2528 = vadd.f32 %v2491, %v2512
    %v2529 = vadd.f32 %v2492, %v2513
    %v2530 = vadd.f32 %v2493, %v2514
    %v2531 = vadd.f32 %v2494, %v2515
    %v2532 = vadd.f32 %v2495, %v2516
    %v2533 = vadd.f32 %v2496, %v2517
    %v2534 = vadd.f32 %v2497, %v2518
    %v2535 = vadd.f32 %v2498, %v2519
    %v2536 = vadd.f32 %v2499, %v2520
    %v2537 = vadd.f32 %v2500, %v2521
    %2538 = vrot.lane.b32.xlu0 %v58, 126
    %v2539 = vpop.permute.xlu0 %2538
    %s2540 = vtos %v2539
    %v2541 = vstv %s2540
    %v2543 = vmul.f32 %v2541, %v141
    %v2544 = vmul.f32 %v2541, %v142
    %v2545 = vmul.f32 %v2541, %v143
    %v2546 = vmul.f32 %v2541, %v144
    %v2547 = vmul.f32 %v2541, %v145
    %v2548 = vmul.f32 %v2541, %v146
    %v2549 = vmul.f32 %v2541, %v147
    %v2550 = vmul.f32 %v2541, %v148
    %v2551 = vmul.f32 %v2541, %v149
    %v2552 = vmul.f32 %v2541, %v150
    %v2553 = vmul.f32 %v2541, %v151
    %v2554 = vmul.f32 %v2541, %v152
    %v2555 = vmul.f32 %v2541, %v153
    %v2556 = vmul.f32 %v2541, %v154
    %v2557 = vmul.f32 %v2541, %v155
    %v2558 = vmul.f32 %v2541, %v156
    %v2559 = vadd.f32 %v2522, %v2543
    %v2560 = vadd.f32 %v2523, %v2544
    %v2561 = vadd.f32 %v2524, %v2545
    %v2562 = vadd.f32 %v2525, %v2546
    %v2563 = vadd.f32 %v2526, %v2547
    %v2564 = vadd.f32 %v2527, %v2548
    %v2565 = vadd.f32 %v2528, %v2549
    %v2566 = vadd.f32 %v2529, %v2550
    %v2567 = vadd.f32 %v2530, %v2551
    %v2568 = vadd.f32 %v2531, %v2552
    %v2569 = vadd.f32 %v2532, %v2553
    %v2570 = vadd.f32 %v2533, %v2554
    %v2571 = vadd.f32 %v2534, %v2555
    %v2572 = vadd.f32 %v2535, %v2556
    %v2573 = vadd.f32 %v2536, %v2557
    %v2574 = vadd.f32 %v2537, %v2558
    %v2575 = vmul.f32 %v2559, 0.2
    %v2576 = vmul.f32 %v2560, 0.2
    %v2577 = vmul.f32 %v2561, 0.2
    %v2578 = vmul.f32 %v2562, 0.2
    %v2579 = vmul.f32 %v2563, 0.2
    %v2580 = vmul.f32 %v2564, 0.2
    %v2581 = vmul.f32 %v2565, 0.2
    %v2582 = vmul.f32 %v2566, 0.2
    %v2583 = vmul.f32 %v2567, 0.2
    %v2584 = vmul.f32 %v2568, 0.2
    %v2585 = vmul.f32 %v2569, 0.2
    %v2586 = vmul.f32 %v2570, 0.2
    %v2587 = vmul.f32 %v2571, 0.2
    %v2588 = vmul.f32 %v2572, 0.2
    %v2589 = vmul.f32 %v2573, 0.2
    %v2590 = vmul.f32 %v2574, 0.2
    %v2591 = vmax.f32 %v2559, %v2575
    %v2592 = vmax.f32 %v2560, %v2576
    %v2593 = vmax.f32 %v2561, %v2577
    %v2594 = vmax.f32 %v2562, %v2578
    %v2595 = vmax.f32 %v2563, %v2579
    %v2596 = vmax.f32 %v2564, %v2580
    %v2597 = vmax.f32 %v2565, %v2581
    %v2598 = vmax.f32 %v2566, %v2582
    %v2599 = vmax.f32 %v2567, %v2583
    %v2600 = vmax.f32 %v2568, %v2584
    %v2601 = vmax.f32 %v2569, %v2585
    %v2602 = vmax.f32 %v2570, %v2586
    %v2603 = vmax.f32 %v2571, %v2587
    %v2604 = vmax.f32 %v2572, %v2588
    %v2605 = vmax.f32 %v2573, %v2589
    %v2606 = vmax.f32 %v2574, %v2590
    %s2607 = sld [smem:[#allocation2 + $0x80]]
    %v2608 = vstv %s2607
    %v2609 = vmul.f32 %v2608, %v2591
    %v2610 = vmul.f32 %v2608, %v2592
    %v2611 = vmul.f32 %v2608, %v2593
    %v2612 = vmul.f32 %v2608, %v2594
    %v2613 = vmul.f32 %v2608, %v2595
    %v2614 = vmul.f32 %v2608, %v2596
    %v2615 = vmul.f32 %v2608, %v2597
    %v2616 = vmul.f32 %v2608, %v2598
    %v2617 = vmul.f32 %v2608, %v2599
    %v2618 = vmul.f32 %v2608, %v2600
    %v2619 = vmul.f32 %v2608, %v2601
    %v2620 = vmul.f32 %v2608, %v2602
    %v2621 = vmul.f32 %v2608, %v2603
    %v2622 = vmul.f32 %v2608, %v2604
    %v2623 = vmul.f32 %v2608, %v2605
    %v2624 = vmul.f32 %v2608, %v2606
    %v2625 = vadd.f32 %v173, %v2609
    %v2626 = vadd.f32 %v174, %v2610
    %v2627 = vadd.f32 %v175, %v2611
    %v2628 = vadd.f32 %v176, %v2612
    %v2629 = vadd.f32 %v177, %v2613
    %v2630 = vadd.f32 %v178, %v2614
    %v2631 = vadd.f32 %v179, %v2615
    %v2632 = vadd.f32 %v180, %v2616
    %v2633 = vadd.f32 %v181, %v2617
    %v2634 = vadd.f32 %v182, %v2618
    %v2635 = vadd.f32 %v183, %v2619
    %v2636 = vadd.f32 %v184, %v2620
    %v2637 = vadd.f32 %v185, %v2621
    %v2638 = vadd.f32 %v186, %v2622
    %v2639 = vadd.f32 %v187, %v2623
    %v2640 = vadd.f32 %v188, %v2624
    %2641 = vset.pattern.permute.xlu0 9
    %2642 = vperm.xlu0 %2641, %v41
    %v2643 = vpop.permute.xlu0 %2642
    %2645 = vset.pattern.permute.xlu0 9
    %2646 = vperm.xlu0 %2645, %v42
    %v2647 = vpop.permute.xlu0 %2646
    %2649 = vset.pattern.permute.xlu0 9
    %2650 = vperm.xlu0 %2649, %v43
    %v2651 = vpop.permute.xlu0 %2650
    %2653 = vset.pattern.permute.xlu0 9
    %2654 = vperm.xlu0 %2653, %v44
    %v2655 = vpop.permute.xlu0 %2654
    %2657 = vset.pattern.permute.xlu0 9
    %2658 = vperm.xlu0 %2657, %v45
    %v2659 = vpop.permute.xlu0 %2658
    %2661 = vset.pattern.permute.xlu0 9
    %2662 = vperm.xlu0 %2661, %v46
    %v2663 = vpop.permute.xlu0 %2662
    %2665 = vset.pattern.permute.xlu0 9
    %2666 = vperm.xlu0 %2665, %v47
    %v2667 = vpop.permute.xlu0 %2666
    %2669 = vset.pattern.permute.xlu0 9
    %2670 = vperm.xlu0 %2669, %v48
    %v2671 = vpop.permute.xlu0 %2670
    %2673 = vset.pattern.permute.xlu0 9
    %2674 = vperm.xlu0 %2673, %v49
    %v2675 = vpop.permute.xlu0 %2674
    %2677 = vset.pattern.permute.xlu0 9
    %2678 = vperm.xlu0 %2677, %v50
    %v2679 = vpop.permute.xlu0 %2678
    %2681 = vset.pattern.permute.xlu0 9
    %2682 = vperm.xlu0 %2681, %v51
    %v2683 = vpop.permute.xlu0 %2682
    %2685 = vset.pattern.permute.xlu0 9
    %2686 = vperm.xlu0 %2685, %v52
    %v2687 = vpop.permute.xlu0 %2686
    %2689 = vset.pattern.permute.xlu0 9
    %2690 = vperm.xlu0 %2689, %v53
    %v2691 = vpop.permute.xlu0 %2690
    %2693 = vset.pattern.permute.xlu0 9
    %2694 = vperm.xlu0 %2693, %v54
    %v2695 = vpop.permute.xlu0 %2694
    %2697 = vset.pattern.permute.xlu0 9
    %2698 = vperm.xlu0 %2697, %v55
    %v2699 = vpop.permute.xlu0 %2698
    %2701 = vset.pattern.permute.xlu0 9
    %2702 = vperm.xlu0 %2701, %v56
    %v2703 = vpop.permute.xlu0 %2702
    %v2705 = vperm.slane %v40, 1
    %v2706 = vadd.f32 %v2643, %v2705
    %v2707 = vadd.f32 %v2647, %v2705
    %v2708 = vadd.f32 %v2651, %v2705
    %v2709 = vadd.f32 %v2655, %v2705
    %v2710 = vadd.f32 %v2659, %v2705
    %v2711 = vadd.f32 %v2663, %v2705
    %v2712 = vadd.f32 %v2667, %v2705
    %v2713 = vadd.f32 %v2671, %v2705
    %v2714 = vadd.f32 %v2675, %v2705
    %v2715 = vadd.f32 %v2679, %v2705
    %v2716 = vadd.f32 %v2683, %v2705
    %v2717 = vadd.f32 %v2687, %v2705
    %v2718 = vadd.f32 %v2691, %v2705
    %v2719 = vadd.f32 %v2695, %v2705
    %v2720 = vadd.f32 %v2699, %v2705
    %v2721 = vadd.f32 %v2703, %v2705
    %v2722 = vrot.slane %v58, 1
    %s2723 = vtos %v2722
    %v2724 = vstv %s2723
    %v2726 = vmul.f32 %v2724, %v75
    %v2727 = vmul.f32 %v2724, %v76
    %v2728 = vmul.f32 %v2724, %v77
    %v2729 = vmul.f32 %v2724, %v78
    %v2730 = vmul.f32 %v2724, %v79
    %v2731 = vmul.f32 %v2724, %v80
    %v2732 = vmul.f32 %v2724, %v81
    %v2733 = vmul.f32 %v2724, %v82
    %v2734 = vmul.f32 %v2724, %v83
    %v2735 = vmul.f32 %v2724, %v84
    %v2736 = vmul.f32 %v2724, %v85
    %v2737 = vmul.f32 %v2724, %v86
    %v2738 = vmul.f32 %v2724, %v87
    %v2739 = vmul.f32 %v2724, %v88
    %v2740 = vmul.f32 %v2724, %v89
    %v2741 = vmul.f32 %v2724, %v90
    %v2742 = vadd.f32 %v2706, %v2726
    %v2743 = vadd.f32 %v2707, %v2727
    %v2744 = vadd.f32 %v2708, %v2728
    %v2745 = vadd.f32 %v2709, %v2729
    %v2746 = vadd.f32 %v2710, %v2730
    %v2747 = vadd.f32 %v2711, %v2731
    %v2748 = vadd.f32 %v2712, %v2732
    %v2749 = vadd.f32 %v2713, %v2733
    %v2750 = vadd.f32 %v2714, %v2734
    %v2751 = vadd.f32 %v2715, %v2735
    %v2752 = vadd.f32 %v2716, %v2736
    %v2753 = vadd.f32 %v2717, %v2737
    %v2754 = vadd.f32 %v2718, %v2738
    %v2755 = vadd.f32 %v2719, %v2739
    %v2756 = vadd.f32 %v2720, %v2740
    %v2757 = vadd.f32 %v2721, %v2741
    %2758 = vrot.lane.b32.xlu0 %v2722, 127
    %v2759 = vpop.permute.xlu0 %2758
    %s2760 = vtos %v2759
    %v2761 = vstv %s2760
    %v2763 = vmul.f32 %v2761, %v108
    %v2764 = vmul.f32 %v2761, %v109
    %v2765 = vmul.f32 %v2761, %v110
    %v2766 = vmul.f32 %v2761, %v111
    %v2767 = vmul.f32 %v2761, %v112
    %v2768 = vmul.f32 %v2761, %v113
    %v2769 = vmul.f32 %v2761, %v114
    %v2770 = vmul.f32 %v2761, %v115
    %v2771 = vmul.f32 %v2761, %v116
    %v2772 = vmul.f32 %v2761, %v117
    %v2773 = vmul.f32 %v2761, %v118
    %v2774 = vmul.f32 %v2761, %v119
    %v2775 = vmul.f32 %v2761, %v120
    %v2776 = vmul.f32 %v2761, %v121
    %v2777 = vmul.f32 %v2761, %v122
    %v2778 = vmul.f32 %v2761, %v123
    %v2779 = vadd.f32 %v2742, %v2763
    %v2780 = vadd.f32 %v2743, %v2764
    %v2781 = vadd.f32 %v2744, %v2765
    %v2782 = vadd.f32 %v2745, %v2766
    %v2783 = vadd.f32 %v2746, %v2767
    %v2784 = vadd.f32 %v2747, %v2768
    %v2785 = vadd.f32 %v2748, %v2769
    %v2786 = vadd.f32 %v2749, %v2770
    %v2787 = vadd.f32 %v2750, %v2771
    %v2788 = vadd.f32 %v2751, %v2772
    %v2789 = vadd.f32 %v2752, %v2773
    %v2790 = vadd.f32 %v2753, %v2774
    %v2791 = vadd.f32 %v2754, %v2775
    %v2792 = vadd.f32 %v2755, %v2776
    %v2793 = vadd.f32 %v2756, %v2777
    %v2794 = vadd.f32 %v2757, %v2778
    %2795 = vrot.lane.b32.xlu0 %v2722, 126
    %v2796 = vpop.permute.xlu0 %2795
    %s2797 = vtos %v2796
    %v2798 = vstv %s2797
    %v2800 = vmul.f32 %v2798, %v141
    %v2801 = vmul.f32 %v2798, %v142
    %v2802 = vmul.f32 %v2798, %v143
    %v2803 = vmul.f32 %v2798, %v144
    %v2804 = vmul.f32 %v2798, %v145
    %v2805 = vmul.f32 %v2798, %v146
    %v2806 = vmul.f32 %v2798, %v147
    %v2807 = vmul.f32 %v2798, %v148
    %v2808 = vmul.f32 %v2798, %v149
    %v2809 = vmul.f32 %v2798, %v150
    %v2810 = vmul.f32 %v2798, %v151
    %v2811 = vmul.f32 %v2798, %v152
    %v2812 = vmul.f32 %v2798, %v153
    %v2813 = vmul.f32 %v2798, %v154
    %v2814 = vmul.f32 %v2798, %v155
    %v2815 = vmul.f32 %v2798, %v156
    %v2816 = vadd.f32 %v2779, %v2800
    %v2817 = vadd.f32 %v2780, %v2801
    %v2818 = vadd.f32 %v2781, %v2802
    %v2819 = vadd.f32 %v2782, %v2803
    %v2820 = vadd.f32 %v2783, %v2804
    %v2821 = vadd.f32 %v2784, %v2805
    %v2822 = vadd.f32 %v2785, %v2806
    %v2823 = vadd.f32 %v2786, %v2807
    %v2824 = vadd.f32 %v2787, %v2808
    %v2825 = vadd.f32 %v2788, %v2809
    %v2826 = vadd.f32 %v2789, %v2810
    %v2827 = vadd.f32 %v2790, %v2811
    %v2828 = vadd.f32 %v2791, %v2812
    %v2829 = vadd.f32 %v2792, %v2813
    %v2830 = vadd.f32 %v2793, %v2814
    %v2831 = vadd.f32 %v2794, %v2815
    %v2832 = vmul.f32 %v2816, 0.2
    %v2833 = vmul.f32 %v2817, 0.2
    %v2834 = vmul.f32 %v2818, 0.2
    %v2835 = vmul.f32 %v2819, 0.2
    %v2836 = vmul.f32 %v2820, 0.2
    %v2837 = vmul.f32 %v2821, 0.2
    %v2838 = vmul.f32 %v2822, 0.2
    %v2839 = vmul.f32 %v2823, 0.2
    %v2840 = vmul.f32 %v2824, 0.2
    %v2841 = vmul.f32 %v2825, 0.2
    %v2842 = vmul.f32 %v2826, 0.2
    %v2843 = vmul.f32 %v2827, 0.2
    %v2844 = vmul.f32 %v2828, 0.2
    %v2845 = vmul.f32 %v2829, 0.2
    %v2846 = vmul.f32 %v2830, 0.2
    %v2847 = vmul.f32 %v2831, 0.2
    %v2848 = vmax.f32 %v2816, %v2832
    %v2849 = vmax.f32 %v2817, %v2833
    %v2850 = vmax.f32 %v2818, %v2834
    %v2851 = vmax.f32 %v2819, %v2835
    %v2852 = vmax.f32 %v2820, %v2836
    %v2853 = vmax.f32 %v2821, %v2837
    %v2854 = vmax.f32 %v2822, %v2838
    %v2855 = vmax.f32 %v2823, %v2839
    %v2856 = vmax.f32 %v2824, %v2840
    %v2857 = vmax.f32 %v2825, %v2841
    %v2858 = vmax.f32 %v2826, %v2842
    %v2859 = vmax.f32 %v2827, %v2843
    %v2860 = vmax.f32 %v2828, %v2844
    %v2861 = vmax.f32 %v2829, %v2845
    %v2862 = vmax.f32 %v2830, %v2846
    %v2863 = vmax.f32 %v2831, %v2847
    %s2864 = sld [smem:[#allocation2 + $0x81]]
    %v2865 = vstv %s2864
    %v2866 = vmul.f32 %v2865, %v2848
    %v2867 = vmul.f32 %v2865, %v2849
    %v2868 = vmul.f32 %v2865, %v2850
    %v2869 = vmul.f32 %v2865, %v2851
    %v2870 = vmul.f32 %v2865, %v2852
    %v2871 = vmul.f32 %v2865, %v2853
    %v2872 = vmul.f32 %v2865, %v2854
    %v2873 = vmul.f32 %v2865, %v2855
    %v2874 = vmul.f32 %v2865, %v2856
    %v2875 = vmul.f32 %v2865, %v2857
    %v2876 = vmul.f32 %v2865, %v2858
    %v2877 = vmul.f32 %v2865, %v2859
    %v2878 = vmul.f32 %v2865, %v2860
    %v2879 = vmul.f32 %v2865, %v2861
    %v2880 = vmul.f32 %v2865, %v2862
    %v2881 = vmul.f32 %v2865, %v2863
    %v2882 = vadd.f32 %v2625, %v2866
    %v2883 = vadd.f32 %v2626, %v2867
    %v2884 = vadd.f32 %v2627, %v2868
    %v2885 = vadd.f32 %v2628, %v2869
    %v2886 = vadd.f32 %v2629, %v2870
    %v2887 = vadd.f32 %v2630, %v2871
    %v2888 = vadd.f32 %v2631, %v2872
    %v2889 = vadd.f32 %v2632, %v2873
    %v2890 = vadd.f32 %v2633, %v2874
    %v2891 = vadd.f32 %v2634, %v2875
    %v2892 = vadd.f32 %v2635, %v2876
    %v2893 = vadd.f32 %v2636, %v2877
    %v2894 = vadd.f32 %v2637, %v2878
    %v2895 = vadd.f32 %v2638, %v2879
    %v2896 = vadd.f32 %v2639, %v2880
    %v2897 = vadd.f32 %v2640, %v2881
    %2898 = vset.pattern.permute.xlu0 10
    %2899 = vperm.xlu0 %2898, %v41
    %v2900 = vpop.permute.xlu0 %2899
    %2902 = vset.pattern.permute.xlu0 10
    %2903 = vperm.xlu0 %2902, %v42
    %v2904 = vpop.permute.xlu0 %2903
    %2906 = vset.pattern.permute.xlu0 10
    %2907 = vperm.xlu0 %2906, %v43
    %v2908 = vpop.permute.xlu0 %2907
    %2910 = vset.pattern.permute.xlu0 10
    %2911 = vperm.xlu0 %2910, %v44
    %v2912 = vpop.permute.xlu0 %2911
    %2914 = vset.pattern.permute.xlu0 10
    %2915 = vperm.xlu0 %2914, %v45
    %v2916 = vpop.permute.xlu0 %2915
    %2918 = vset.pattern.permute.xlu0 10
    %2919 = vperm.xlu0 %2918, %v46
    %v2920 = vpop.permute.xlu0 %2919
    %2922 = vset.pattern.permute.xlu0 10
    %2923 = vperm.xlu0 %2922, %v47
    %v2924 = vpop.permute.xlu0 %2923
    %2926 = vset.pattern.permute.xlu0 10
    %2927 = vperm.xlu0 %2926, %v48
    %v2928 = vpop.permute.xlu0 %2927
    %2930 = vset.pattern.permute.xlu0 10
    %2931 = vperm.xlu0 %2930, %v49
    %v2932 = vpop.permute.xlu0 %2931
    %2934 = vset.pattern.permute.xlu0 10
    %2935 = vperm.xlu0 %2934, %v50
    %v2936 = vpop.permute.xlu0 %2935
    %2938 = vset.pattern.permute.xlu0 10
    %2939 = vperm.xlu0 %2938, %v51
    %v2940 = vpop.permute.xlu0 %2939
    %2942 = vset.pattern.permute.xlu0 10
    %2943 = vperm.xlu0 %2942, %v52
    %v2944 = vpop.permute.xlu0 %2943
    %2946 = vset.pattern.permute.xlu0 10
    %2947 = vperm.xlu0 %2946, %v53
    %v2948 = vpop.permute.xlu0 %2947
    %2950 = vset.pattern.permute.xlu0 10
    %2951 = vperm.xlu0 %2950, %v54
    %v2952 = vpop.permute.xlu0 %2951
    %2954 = vset.pattern.permute.xlu0 10
    %2955 = vperm.xlu0 %2954, %v55
    %v2956 = vpop.permute.xlu0 %2955
    %2958 = vset.pattern.permute.xlu0 10
    %2959 = vperm.xlu0 %2958, %v56
    %v2960 = vpop.permute.xlu0 %2959
    %v2962 = vperm.slane %v40, 2
    %v2963 = vadd.f32 %v2900, %v2962
    %v2964 = vadd.f32 %v2904, %v2962
    %v2965 = vadd.f32 %v2908, %v2962
    %v2966 = vadd.f32 %v2912, %v2962
    %v2967 = vadd.f32 %v2916, %v2962
    %v2968 = vadd.f32 %v2920, %v2962
    %v2969 = vadd.f32 %v2924, %v2962
    %v2970 = vadd.f32 %v2928, %v2962
    %v2971 = vadd.f32 %v2932, %v2962
    %v2972 = vadd.f32 %v2936, %v2962
    %v2973 = vadd.f32 %v2940, %v2962
    %v2974 = vadd.f32 %v2944, %v2962
    %v2975 = vadd.f32 %v2948, %v2962
    %v2976 = vadd.f32 %v2952, %v2962
    %v2977 = vadd.f32 %v2956, %v2962
    %v2978 = vadd.f32 %v2960, %v2962
    %v2979 = vrot.slane %v58, 2
    %s2980 = vtos %v2979
    %v2981 = vstv %s2980
    %v2983 = vmul.f32 %v2981, %v75
    %v2984 = vmul.f32 %v2981, %v76
    %v2985 = vmul.f32 %v2981, %v77
    %v2986 = vmul.f32 %v2981, %v78
    %v2987 = vmul.f32 %v2981, %v79
    %v2988 = vmul.f32 %v2981, %v80
    %v2989 = vmul.f32 %v2981, %v81
    %v2990 = vmul.f32 %v2981, %v82
    %v2991 = vmul.f32 %v2981, %v83
    %v2992 = vmul.f32 %v2981, %v84
    %v2993 = vmul.f32 %v2981, %v85
    %v2994 = vmul.f32 %v2981, %v86
    %v2995 = vmul.f32 %v2981, %v87
    %v2996 = vmul.f32 %v2981, %v88
    %v2997 = vmul.f32 %v2981, %v89
    %v2998 = vmul.f32 %v2981, %v90
    %v2999 = vadd.f32 %v2963, %v2983
    %v3000 = vadd.f32 %v2964, %v2984
    %v3001 = vadd.f32 %v2965, %v2985
    %v3002 = vadd.f32 %v2966, %v2986
    %v3003 = vadd.f32 %v2967, %v2987
    %v3004 = vadd.f32 %v2968, %v2988
    %v3005 = vadd.f32 %v2969, %v2989
    %v3006 = vadd.f32 %v2970, %v2990
    %v3007 = vadd.f32 %v2971, %v2991
    %v3008 = vadd.f32 %v2972, %v2992
    %v3009 = vadd.f32 %v2973, %v2993
    %v3010 = vadd.f32 %v2974, %v2994
    %v3011 = vadd.f32 %v2975, %v2995
    %v3012 = vadd.f32 %v2976, %v2996
    %v3013 = vadd.f32 %v2977, %v2997
    %v3014 = vadd.f32 %v2978, %v2998
    %3015 = vrot.lane.b32.xlu0 %v2979, 127
    %v3016 = vpop.permute.xlu0 %3015
    %s3017 = vtos %v3016
    %v3018 = vstv %s3017
    %v3020 = vmul.f32 %v3018, %v108
    %v3021 = vmul.f32 %v3018, %v109
    %v3022 = vmul.f32 %v3018, %v110
    %v3023 = vmul.f32 %v3018, %v111
    %v3024 = vmul.f32 %v3018, %v112
    %v3025 = vmul.f32 %v3018, %v113
    %v3026 = vmul.f32 %v3018, %v114
    %v3027 = vmul.f32 %v3018, %v115
    %v3028 = vmul.f32 %v3018, %v116
    %v3029 = vmul.f32 %v3018, %v117
    %v3030 = vmul.f32 %v3018, %v118
    %v3031 = vmul.f32 %v3018, %v119
    %v3032 = vmul.f32 %v3018, %v120
    %v3033 = vmul.f32 %v3018, %v121
    %v3034 = vmul.f32 %v3018, %v122
    %v3035 = vmul.f32 %v3018, %v123
    %v3036 = vadd.f32 %v2999, %v3020
    %v3037 = vadd.f32 %v3000, %v3021
    %v3038 = vadd.f32 %v3001, %v3022
    %v3039 = vadd.f32 %v3002, %v3023
    %v3040 = vadd.f32 %v3003, %v3024
    %v3041 = vadd.f32 %v3004, %v3025
    %v3042 = vadd.f32 %v3005, %v3026
    %v3043 = vadd.f32 %v3006, %v3027
    %v3044 = vadd.f32 %v3007, %v3028
    %v3045 = vadd.f32 %v3008, %v3029
    %v3046 = vadd.f32 %v3009, %v3030
    %v3047 = vadd.f32 %v3010, %v3031
    %v3048 = vadd.f32 %v3011, %v3032
    %v3049 = vadd.f32 %v3012, %v3033
    %v3050 = vadd.f32 %v3013, %v3034
    %v3051 = vadd.f32 %v3014, %v3035
    %3052 = vrot.lane.b32.xlu0 %v2979, 126
    %v3053 = vpop.permute.xlu0 %3052
    %s3054 = vtos %v3053
    %v3055 = vstv %s3054
    %v3057 = vmul.f32 %v3055, %v141
    %v3058 = vmul.f32 %v3055, %v142
    %v3059 = vmul.f32 %v3055, %v143
    %v3060 = vmul.f32 %v3055, %v144
    %v3061 = vmul.f32 %v3055, %v145
    %v3062 = vmul.f32 %v3055, %v146
    %v3063 = vmul.f32 %v3055, %v147
    %v3064 = vmul.f32 %v3055, %v148
    %v3065 = vmul.f32 %v3055, %v149
    %v3066 = vmul.f32 %v3055, %v150
    %v3067 = vmul.f32 %v3055, %v151
    %v3068 = vmul.f32 %v3055, %v152
    %v3069 = vmul.f32 %v3055, %v153
    %v3070 = vmul.f32 %v3055, %v154
    %v3071 = vmul.f32 %v3055, %v155
    %v3072 = vmul.f32 %v3055, %v156
    %v3073 = vadd.f32 %v3036, %v3057
    %v3074 = vadd.f32 %v3037, %v3058
    %v3075 = vadd.f32 %v3038, %v3059
    %v3076 = vadd.f32 %v3039, %v3060
    %v3077 = vadd.f32 %v3040, %v3061
    %v3078 = vadd.f32 %v3041, %v3062
    %v3079 = vadd.f32 %v3042, %v3063
    %v3080 = vadd.f32 %v3043, %v3064
    %v3081 = vadd.f32 %v3044, %v3065
    %v3082 = vadd.f32 %v3045, %v3066
    %v3083 = vadd.f32 %v3046, %v3067
    %v3084 = vadd.f32 %v3047, %v3068
    %v3085 = vadd.f32 %v3048, %v3069
    %v3086 = vadd.f32 %v3049, %v3070
    %v3087 = vadd.f32 %v3050, %v3071
    %v3088 = vadd.f32 %v3051, %v3072
    %v3089 = vmul.f32 %v3073, 0.2
    %v3090 = vmul.f32 %v3074, 0.2
    %v3091 = vmul.f32 %v3075, 0.2
    %v3092 = vmul.f32 %v3076, 0.2
    %v3093 = vmul.f32 %v3077, 0.2
    %v3094 = vmul.f32 %v3078, 0.2
    %v3095 = vmul.f32 %v3079, 0.2
    %v3096 = vmul.f32 %v3080, 0.2
    %v3097 = vmul.f32 %v3081, 0.2
    %v3098 = vmul.f32 %v3082, 0.2
    %v3099 = vmul.f32 %v3083, 0.2
    %v3100 = vmul.f32 %v3084, 0.2
    %v3101 = vmul.f32 %v3085, 0.2
    %v3102 = vmul.f32 %v3086, 0.2
    %v3103 = vmul.f32 %v3087, 0.2
    %v3104 = vmul.f32 %v3088, 0.2
    %v3105 = vmax.f32 %v3073, %v3089
    %v3106 = vmax.f32 %v3074, %v3090
    %v3107 = vmax.f32 %v3075, %v3091
    %v3108 = vmax.f32 %v3076, %v3092
    %v3109 = vmax.f32 %v3077, %v3093
    %v3110 = vmax.f32 %v3078, %v3094
    %v3111 = vmax.f32 %v3079, %v3095
    %v3112 = vmax.f32 %v3080, %v3096
    %v3113 = vmax.f32 %v3081, %v3097
    %v3114 = vmax.f32 %v3082, %v3098
    %v3115 = vmax.f32 %v3083, %v3099
    %v3116 = vmax.f32 %v3084, %v3100
    %v3117 = vmax.f32 %v3085, %v3101
    %v3118 = vmax.f32 %v3086, %v3102
    %v3119 = vmax.f32 %v3087, %v3103
    %v3120 = vmax.f32 %v3088, %v3104
    %s3121 = sld [smem:[#allocation2 + $0x82]]
    %v3122 = vstv %s3121
    %v3123 = vmul.f32 %v3122, %v3105
    %v3124 = vmul.f32 %v3122, %v3106
    %v3125 = vmul.f32 %v3122, %v3107
    %v3126 = vmul.f32 %v3122, %v3108
    %v3127 = vmul.f32 %v3122, %v3109
    %v3128 = vmul.f32 %v3122, %v3110
    %v3129 = vmul.f32 %v3122, %v3111
    %v3130 = vmul.f32 %v3122, %v3112
    %v3131 = vmul.f32 %v3122, %v3113
    %v3132 = vmul.f32 %v3122, %v3114
    %v3133 = vmul.f32 %v3122, %v3115
    %v3134 = vmul.f32 %v3122, %v3116
    %v3135 = vmul.f32 %v3122, %v3117
    %v3136 = vmul.f32 %v3122, %v3118
    %v3137 = vmul.f32 %v3122, %v3119
    %v3138 = vmul.f32 %v3122, %v3120
    %v3139 = vadd.f32 %v2882, %v3123
    %v3140 = vadd.f32 %v2883, %v3124
    %v3141 = vadd.f32 %v2884, %v3125
    %v3142 = vadd.f32 %v2885, %v3126
    %v3143 = vadd.f32 %v2886, %v3127
    %v3144 = vadd.f32 %v2887, %v3128
    %v3145 = vadd.f32 %v2888, %v3129
    %v3146 = vadd.f32 %v2889, %v3130
    %v3147 = vadd.f32 %v2890, %v3131
    %v3148 = vadd.f32 %v2891, %v3132
    %v3149 = vadd.f32 %v2892, %v3133
    %v3150 = vadd.f32 %v2893, %v3134
    %v3151 = vadd.f32 %v2894, %v3135
    %v3152 = vadd.f32 %v2895, %v3136
    %v3153 = vadd.f32 %v2896, %v3137
    %v3154 = vadd.f32 %v2897, %v3138
    %3155 = vset.pattern.permute.xlu0 11
    %3156 = vperm.xlu0 %3155, %v41
    %v3157 = vpop.permute.xlu0 %3156
    %3159 = vset.pattern.permute.xlu0 11
    %3160 = vperm.xlu0 %3159, %v42
    %v3161 = vpop.permute.xlu0 %3160
    %3163 = vset.pattern.permute.xlu0 11
    %3164 = vperm.xlu0 %3163, %v43
    %v3165 = vpop.permute.xlu0 %3164
    %3167 = vset.pattern.permute.xlu0 11
    %3168 = vperm.xlu0 %3167, %v44
    %v3169 = vpop.permute.xlu0 %3168
    %3171 = vset.pattern.permute.xlu0 11
    %3172 = vperm.xlu0 %3171, %v45
    %v3173 = vpop.permute.xlu0 %3172
    %3175 = vset.pattern.permute.xlu0 11
    %3176 = vperm.xlu0 %3175, %v46
    %v3177 = vpop.permute.xlu0 %3176
    %3179 = vset.pattern.permute.xlu0 11
    %3180 = vperm.xlu0 %3179, %v47
    %v3181 = vpop.permute.xlu0 %3180
    %3183 = vset.pattern.permute.xlu0 11
    %3184 = vperm.xlu0 %3183, %v48
    %v3185 = vpop.permute.xlu0 %3184
    %3187 = vset.pattern.permute.xlu0 11
    %3188 = vperm.xlu0 %3187, %v49
    %v3189 = vpop.permute.xlu0 %3188
    %3191 = vset.pattern.permute.xlu0 11
    %3192 = vperm.xlu0 %3191, %v50
    %v3193 = vpop.permute.xlu0 %3192
    %3195 = vset.pattern.permute.xlu0 11
    %3196 = vperm.xlu0 %3195, %v51
    %v3197 = vpop.permute.xlu0 %3196
    %3199 = vset.pattern.permute.xlu0 11
    %3200 = vperm.xlu0 %3199, %v52
    %v3201 = vpop.permute.xlu0 %3200
    %3203 = vset.pattern.permute.xlu0 11
    %3204 = vperm.xlu0 %3203, %v53
    %v3205 = vpop.permute.xlu0 %3204
    %3207 = vset.pattern.permute.xlu0 11
    %3208 = vperm.xlu0 %3207, %v54
    %v3209 = vpop.permute.xlu0 %3208
    %3211 = vset.pattern.permute.xlu0 11
    %3212 = vperm.xlu0 %3211, %v55
    %v3213 = vpop.permute.xlu0 %3212
    %3215 = vset.pattern.permute.xlu0 11
    %3216 = vperm.xlu0 %3215, %v56
    %v3217 = vpop.permute.xlu0 %3216
    %v3219 = vperm.slane %v40, 3
    %v3220 = vadd.f32 %v3157, %v3219
    %v3221 = vadd.f32 %v3161, %v3219
    %v3222 = vadd.f32 %v3165, %v3219
    %v3223 = vadd.f32 %v3169, %v3219
    %v3224 = vadd.f32 %v3173, %v3219
    %v3225 = vadd.f32 %v3177, %v3219
    %v3226 = vadd.f32 %v3181, %v3219
    %v3227 = vadd.f32 %v3185, %v3219
    %v3228 = vadd.f32 %v3189, %v3219
    %v3229 = vadd.f32 %v3193, %v3219
    %v3230 = vadd.f32 %v3197, %v3219
    %v3231 = vadd.f32 %v3201, %v3219
    %v3232 = vadd.f32 %v3205, %v3219
    %v3233 = vadd.f32 %v3209, %v3219
    %v3234 = vadd.f32 %v3213, %v3219
    %v3235 = vadd.f32 %v3217, %v3219
    %v3236 = vrot.slane %v58, 3
    %s3237 = vtos %v3236
    %v3238 = vstv %s3237
    %v3240 = vmul.f32 %v3238, %v75
    %v3241 = vmul.f32 %v3238, %v76
    %v3242 = vmul.f32 %v3238, %v77
    %v3243 = vmul.f32 %v3238, %v78
    %v3244 = vmul.f32 %v3238, %v79
    %v3245 = vmul.f32 %v3238, %v80
    %v3246 = vmul.f32 %v3238, %v81
    %v3247 = vmul.f32 %v3238, %v82
    %v3248 = vmul.f32 %v3238, %v83
    %v3249 = vmul.f32 %v3238, %v84
    %v3250 = vmul.f32 %v3238, %v85
    %v3251 = vmul.f32 %v3238, %v86
    %v3252 = vmul.f32 %v3238, %v87
    %v3253 = vmul.f32 %v3238, %v88
    %v3254 = vmul.f32 %v3238, %v89
    %v3255 = vmul.f32 %v3238, %v90
    %v3256 = vadd.f32 %v3220, %v3240
    %v3257 = vadd.f32 %v3221, %v3241
    %v3258 = vadd.f32 %v3222, %v3242
    %v3259 = vadd.f32 %v3223, %v3243
    %v3260 = vadd.f32 %v3224, %v3244
    %v3261 = vadd.f32 %v3225, %v3245
    %v3262 = vadd.f32 %v3226, %v3246
    %v3263 = vadd.f32 %v3227, %v3247
    %v3264 = vadd.f32 %v3228, %v3248
    %v3265 = vadd.f32 %v3229, %v3249
    %v3266 = vadd.f32 %v3230, %v3250
    %v3267 = vadd.f32 %v3231, %v3251
    %v3268 = vadd.f32 %v3232, %v3252
    %v3269 = vadd.f32 %v3233, %v3253
    %v3270 = vadd.f32 %v3234, %v3254
    %v3271 = vadd.f32 %v3235, %v3255
    %3272 = vrot.lane.b32.xlu0 %v3236, 127
    %v3273 = vpop.permute.xlu0 %3272
    %s3274 = vtos %v3273
    %v3275 = vstv %s3274
    %v3277 = vmul.f32 %v3275, %v108
    %v3278 = vmul.f32 %v3275, %v109
    %v3279 = vmul.f32 %v3275, %v110
    %v3280 = vmul.f32 %v3275, %v111
    %v3281 = vmul.f32 %v3275, %v112
    %v3282 = vmul.f32 %v3275, %v113
    %v3283 = vmul.f32 %v3275, %v114
    %v3284 = vmul.f32 %v3275, %v115
    %v3285 = vmul.f32 %v3275, %v116
    %v3286 = vmul.f32 %v3275, %v117
    %v3287 = vmul.f32 %v3275, %v118
    %v3288 = vmul.f32 %v3275, %v119
    %v3289 = vmul.f32 %v3275, %v120
    %v3290 = vmul.f32 %v3275, %v121
    %v3291 = vmul.f32 %v3275, %v122
    %v3292 = vmul.f32 %v3275, %v123
    %v3293 = vadd.f32 %v3256, %v3277
    %v3294 = vadd.f32 %v3257, %v3278
    %v3295 = vadd.f32 %v3258, %v3279
    %v3296 = vadd.f32 %v3259, %v3280
    %v3297 = vadd.f32 %v3260, %v3281
    %v3298 = vadd.f32 %v3261, %v3282
    %v3299 = vadd.f32 %v3262, %v3283
    %v3300 = vadd.f32 %v3263, %v3284
    %v3301 = vadd.f32 %v3264, %v3285
    %v3302 = vadd.f32 %v3265, %v3286
    %v3303 = vadd.f32 %v3266, %v3287
    %v3304 = vadd.f32 %v3267, %v3288
    %v3305 = vadd.f32 %v3268, %v3289
    %v3306 = vadd.f32 %v3269, %v3290
    %v3307 = vadd.f32 %v3270, %v3291
    %v3308 = vadd.f32 %v3271, %v3292
    %3309 = vrot.lane.b32.xlu0 %v3236, 126
    %v3310 = vpop.permute.xlu0 %3309
    %s3311 = vtos %v3310
    %v3312 = vstv %s3311
    %v3314 = vmul.f32 %v3312, %v141
    %v3315 = vmul.f32 %v3312, %v142
    %v3316 = vmul.f32 %v3312, %v143
    %v3317 = vmul.f32 %v3312, %v144
    %v3318 = vmul.f32 %v3312, %v145
    %v3319 = vmul.f32 %v3312, %v146
    %v3320 = vmul.f32 %v3312, %v147
    %v3321 = vmul.f32 %v3312, %v148
    %v3322 = vmul.f32 %v3312, %v149
    %v3323 = vmul.f32 %v3312, %v150
    %v3324 = vmul.f32 %v3312, %v151
    %v3325 = vmul.f32 %v3312, %v152
    %v3326 = vmul.f32 %v3312, %v153
    %v3327 = vmul.f32 %v3312, %v154
    %v3328 = vmul.f32 %v3312, %v155
    %v3329 = vmul.f32 %v3312, %v156
    %v3330 = vadd.f32 %v3293, %v3314
    %v3331 = vadd.f32 %v3294, %v3315
    %v3332 = vadd.f32 %v3295, %v3316
    %v3333 = vadd.f32 %v3296, %v3317
    %v3334 = vadd.f32 %v3297, %v3318
    %v3335 = vadd.f32 %v3298, %v3319
    %v3336 = vadd.f32 %v3299, %v3320
    %v3337 = vadd.f32 %v3300, %v3321
    %v3338 = vadd.f32 %v3301, %v3322
    %v3339 = vadd.f32 %v3302, %v3323
    %v3340 = vadd.f32 %v3303, %v3324
    %v3341 = vadd.f32 %v3304, %v3325
    %v3342 = vadd.f32 %v3305, %v3326
    %v3343 = vadd.f32 %v3306, %v3327
    %v3344 = vadd.f32 %v3307, %v3328
    %v3345 = vadd.f32 %v3308, %v3329
    %v3346 = vmul.f32 %v3330, 0.2
    %v3347 = vmul.f32 %v3331, 0.2
    %v3348 = vmul.f32 %v3332, 0.2
    %v3349 = vmul.f32 %v3333, 0.2
    %v3350 = vmul.f32 %v3334, 0.2
    %v3351 = vmul.f32 %v3335, 0.2
    %v3352 = vmul.f32 %v3336, 0.2
    %v3353 = vmul.f32 %v3337, 0.2
    %v3354 = vmul.f32 %v3338, 0.2
    %v3355 = vmul.f32 %v3339, 0.2
    %v3356 = vmul.f32 %v3340, 0.2
    %v3357 = vmul.f32 %v3341, 0.2
    %v3358 = vmul.f32 %v3342, 0.2
    %v3359 = vmul.f32 %v3343, 0.2
    %v3360 = vmul.f32 %v3344, 0.2
    %v3361 = vmul.f32 %v3345, 0.2
    %v3362 = vmax.f32 %v3330, %v3346
    %v3363 = vmax.f32 %v3331, %v3347
    %v3364 = vmax.f32 %v3332, %v3348
    %v3365 = vmax.f32 %v3333, %v3349
    %v3366 = vmax.f32 %v3334, %v3350
    %v3367 = vmax.f32 %v3335, %v3351
    %v3368 = vmax.f32 %v3336, %v3352
    %v3369 = vmax.f32 %v3337, %v3353
    %v3370 = vmax.f32 %v3338, %v3354
    %v3371 = vmax.f32 %v3339, %v3355
    %v3372 = vmax.f32 %v3340, %v3356
    %v3373 = vmax.f32 %v3341, %v3357
    %v3374 = vmax.f32 %v3342, %v3358
    %v3375 = vmax.f32 %v3343, %v3359
    %v3376 = vmax.f32 %v3344, %v3360
    %v3377 = vmax.f32 %v3345, %v3361
    %s3378 = sld [smem:[#allocation2 + $0x83]]
    %v3379 = vstv %s3378
    %v3380 = vmul.f32 %v3379, %v3362
    %v3381 = vmul.f32 %v3379, %v3363
    %v3382 = vmul.f32 %v3379, %v3364
    %v3383 = vmul.f32 %v3379, %v3365
    %v3384 = vmul.f32 %v3379, %v3366
    %v3385 = vmul.f32 %v3379, %v3367
    %v3386 = vmul.f32 %v3379, %v3368
    %v3387 = vmul.f32 %v3379, %v3369
    %v3388 = vmul.f32 %v3379, %v3370
    %v3389 = vmul.f32 %v3379, %v3371
    %v3390 = vmul.f32 %v3379, %v3372
    %v3391 = vmul.f32 %v3379, %v3373
    %v3392 = vmul.f32 %v3379, %v3374
    %v3393 = vmul.f32 %v3379, %v3375
    %v3394 = vmul.f32 %v3379, %v3376
    %v3395 = vmul.f32 %v3379, %v3377
    %v3396 = vadd.f32 %v3139, %v3380
    %v3397 = vadd.f32 %v3140, %v3381
    %v3398 = vadd.f32 %v3141, %v3382
    %v3399 = vadd.f32 %v3142, %v3383
    %v3400 = vadd.f32 %v3143, %v3384
    %v3401 = vadd.f32 %v3144, %v3385
    %v3402 = vadd.f32 %v3145, %v3386
    %v3403 = vadd.f32 %v3146, %v3387
    %v3404 = vadd.f32 %v3147, %v3388
    %v3405 = vadd.f32 %v3148, %v3389
    %v3406 = vadd.f32 %v3149, %v3390
    %v3407 = vadd.f32 %v3150, %v3391
    %v3408 = vadd.f32 %v3151, %v3392
    %v3409 = vadd.f32 %v3152, %v3393
    %v3410 = vadd.f32 %v3153, %v3394
    %v3411 = vadd.f32 %v3154, %v3395
    %3412 = vset.pattern.permute.xlu0 12
    %3413 = vperm.xlu0 %3412, %v41
    %v3414 = vpop.permute.xlu0 %3413
    %3416 = vset.pattern.permute.xlu0 12
    %3417 = vperm.xlu0 %3416, %v42
    %v3418 = vpop.permute.xlu0 %3417
    %3420 = vset.pattern.permute.xlu0 12
    %3421 = vperm.xlu0 %3420, %v43
    %v3422 = vpop.permute.xlu0 %3421
    %3424 = vset.pattern.permute.xlu0 12
    %3425 = vperm.xlu0 %3424, %v44
    %v3426 = vpop.permute.xlu0 %3425
    %3428 = vset.pattern.permute.xlu0 12
    %3429 = vperm.xlu0 %3428, %v45
    %v3430 = vpop.permute.xlu0 %3429
    %3432 = vset.pattern.permute.xlu0 12
    %3433 = vperm.xlu0 %3432, %v46
    %v3434 = vpop.permute.xlu0 %3433
    %3436 = vset.pattern.permute.xlu0 12
    %3437 = vperm.xlu0 %3436, %v47
    %v3438 = vpop.permute.xlu0 %3437
    %3440 = vset.pattern.permute.xlu0 12
    %3441 = vperm.xlu0 %3440, %v48
    %v3442 = vpop.permute.xlu0 %3441
    %3444 = vset.pattern.permute.xlu0 12
    %3445 = vperm.xlu0 %3444, %v49
    %v3446 = vpop.permute.xlu0 %3445
    %3448 = vset.pattern.permute.xlu0 12
    %3449 = vperm.xlu0 %3448, %v50
    %v3450 = vpop.permute.xlu0 %3449
    %3452 = vset.pattern.permute.xlu0 12
    %3453 = vperm.xlu0 %3452, %v51
    %v3454 = vpop.permute.xlu0 %3453
    %3456 = vset.pattern.permute.xlu0 12
    %3457 = vperm.xlu0 %3456, %v52
    %v3458 = vpop.permute.xlu0 %3457
    %3460 = vset.pattern.permute.xlu0 12
    %3461 = vperm.xlu0 %3460, %v53
    %v3462 = vpop.permute.xlu0 %3461
    %3464 = vset.pattern.permute.xlu0 12
    %3465 = vperm.xlu0 %3464, %v54
    %v3466 = vpop.permute.xlu0 %3465
    %3468 = vset.pattern.permute.xlu0 12
    %3469 = vperm.xlu0 %3468, %v55
    %v3470 = vpop.permute.xlu0 %3469
    %3472 = vset.pattern.permute.xlu0 12
    %3473 = vperm.xlu0 %3472, %v56
    %v3474 = vpop.permute.xlu0 %3473
    %v3476 = vperm.slane %v40, 4
    %v3477 = vadd.f32 %v3414, %v3476
    %v3478 = vadd.f32 %v3418, %v3476
    %v3479 = vadd.f32 %v3422, %v3476
    %v3480 = vadd.f32 %v3426, %v3476
    %v3481 = vadd.f32 %v3430, %v3476
    %v3482 = vadd.f32 %v3434, %v3476
    %v3483 = vadd.f32 %v3438, %v3476
    %v3484 = vadd.f32 %v3442, %v3476
    %v3485 = vadd.f32 %v3446, %v3476
    %v3486 = vadd.f32 %v3450, %v3476
    %v3487 = vadd.f32 %v3454, %v3476
    %v3488 = vadd.f32 %v3458, %v3476
    %v3489 = vadd.f32 %v3462, %v3476
    %v3490 = vadd.f32 %v3466, %v3476
    %v3491 = vadd.f32 %v3470, %v3476
    %v3492 = vadd.f32 %v3474, %v3476
    %v3493 = vrot.slane %v58, 4
    %s3494 = vtos %v3493
    %v3495 = vstv %s3494
    %v3497 = vmul.f32 %v3495, %v75
    %v3498 = vmul.f32 %v3495, %v76
    %v3499 = vmul.f32 %v3495, %v77
    %v3500 = vmul.f32 %v3495, %v78
    %v3501 = vmul.f32 %v3495, %v79
    %v3502 = vmul.f32 %v3495, %v80
    %v3503 = vmul.f32 %v3495, %v81
    %v3504 = vmul.f32 %v3495, %v82
    %v3505 = vmul.f32 %v3495, %v83
    %v3506 = vmul.f32 %v3495, %v84
    %v3507 = vmul.f32 %v3495, %v85
    %v3508 = vmul.f32 %v3495, %v86
    %v3509 = vmul.f32 %v3495, %v87
    %v3510 = vmul.f32 %v3495, %v88
    %v3511 = vmul.f32 %v3495, %v89
    %v3512 = vmul.f32 %v3495, %v90
    %v3513 = vadd.f32 %v3477, %v3497
    %v3514 = vadd.f32 %v3478, %v3498
    %v3515 = vadd.f32 %v3479, %v3499
    %v3516 = vadd.f32 %v3480, %v3500
    %v3517 = vadd.f32 %v3481, %v3501
    %v3518 = vadd.f32 %v3482, %v3502
    %v3519 = vadd.f32 %v3483, %v3503
    %v3520 = vadd.f32 %v3484, %v3504
    %v3521 = vadd.f32 %v3485, %v3505
    %v3522 = vadd.f32 %v3486, %v3506
    %v3523 = vadd.f32 %v3487, %v3507
    %v3524 = vadd.f32 %v3488, %v3508
    %v3525 = vadd.f32 %v3489, %v3509
    %v3526 = vadd.f32 %v3490, %v3510
    %v3527 = vadd.f32 %v3491, %v3511
    %v3528 = vadd.f32 %v3492, %v3512
    %3529 = vrot.lane.b32.xlu0 %v3493, 127
    %v3530 = vpop.permute.xlu0 %3529
    %s3531 = vtos %v3530
    %v3532 = vstv %s3531
    %v3534 = vmul.f32 %v3532, %v108
    %v3535 = vmul.f32 %v3532, %v109
    %v3536 = vmul.f32 %v3532, %v110
    %v3537 = vmul.f32 %v3532, %v111
    %v3538 = vmul.f32 %v3532, %v112
    %v3539 = vmul.f32 %v3532, %v113
    %v3540 = vmul.f32 %v3532, %v114
    %v3541 = vmul.f32 %v3532, %v115
    %v3542 = vmul.f32 %v3532, %v116
    %v3543 = vmul.f32 %v3532, %v117
    %v3544 = vmul.f32 %v3532, %v118
    %v3545 = vmul.f32 %v3532, %v119
    %v3546 = vmul.f32 %v3532, %v120
    %v3547 = vmul.f32 %v3532, %v121
    %v3548 = vmul.f32 %v3532, %v122
    %v3549 = vmul.f32 %v3532, %v123
    %v3550 = vadd.f32 %v3513, %v3534
    %v3551 = vadd.f32 %v3514, %v3535
    %v3552 = vadd.f32 %v3515, %v3536
    %v3553 = vadd.f32 %v3516, %v3537
    %v3554 = vadd.f32 %v3517, %v3538
    %v3555 = vadd.f32 %v3518, %v3539
    %v3556 = vadd.f32 %v3519, %v3540
    %v3557 = vadd.f32 %v3520, %v3541
    %v3558 = vadd.f32 %v3521, %v3542
    %v3559 = vadd.f32 %v3522, %v3543
    %v3560 = vadd.f32 %v3523, %v3544
    %v3561 = vadd.f32 %v3524, %v3545
    %v3562 = vadd.f32 %v3525, %v3546
    %v3563 = vadd.f32 %v3526, %v3547
    %v3564 = vadd.f32 %v3527, %v3548
    %v3565 = vadd.f32 %v3528, %v3549
    %3566 = vrot.lane.b32.xlu0 %v3493, 126
    %v3567 = vpop.permute.xlu0 %3566
    %s3568 = vtos %v3567
    %v3569 = vstv %s3568
    %v3571 = vmul.f32 %v3569, %v141
    %v3572 = vmul.f32 %v3569, %v142
    %v3573 = vmul.f32 %v3569, %v143
    %v3574 = vmul.f32 %v3569, %v144
    %v3575 = vmul.f32 %v3569, %v145
    %v3576 = vmul.f32 %v3569, %v146
    %v3577 = vmul.f32 %v3569, %v147
    %v3578 = vmul.f32 %v3569, %v148
    %v3579 = vmul.f32 %v3569, %v149
    %v3580 = vmul.f32 %v3569, %v150
    %v3581 = vmul.f32 %v3569, %v151
    %v3582 = vmul.f32 %v3569, %v152
    %v3583 = vmul.f32 %v3569, %v153
    %v3584 = vmul.f32 %v3569, %v154
    %v3585 = vmul.f32 %v3569, %v155
    %v3586 = vmul.f32 %v3569, %v156
    %v3587 = vadd.f32 %v3550, %v3571
    %v3588 = vadd.f32 %v3551, %v3572
    %v3589 = vadd.f32 %v3552, %v3573
    %v3590 = vadd.f32 %v3553, %v3574
    %v3591 = vadd.f32 %v3554, %v3575
    %v3592 = vadd.f32 %v3555, %v3576
    %v3593 = vadd.f32 %v3556, %v3577
    %v3594 = vadd.f32 %v3557, %v3578
    %v3595 = vadd.f32 %v3558, %v3579
    %v3596 = vadd.f32 %v3559, %v3580
    %v3597 = vadd.f32 %v3560, %v3581
    %v3598 = vadd.f32 %v3561, %v3582
    %v3599 = vadd.f32 %v3562, %v3583
    %v3600 = vadd.f32 %v3563, %v3584
    %v3601 = vadd.f32 %v3564, %v3585
    %v3602 = vadd.f32 %v3565, %v3586
    %v3603 = vmul.f32 %v3587, 0.2
    %v3604 = vmul.f32 %v3588, 0.2
    %v3605 = vmul.f32 %v3589, 0.2
    %v3606 = vmul.f32 %v3590, 0.2
    %v3607 = vmul.f32 %v3591, 0.2
    %v3608 = vmul.f32 %v3592, 0.2
    %v3609 = vmul.f32 %v3593, 0.2
    %v3610 = vmul.f32 %v3594, 0.2
    %v3611 = vmul.f32 %v3595, 0.2
    %v3612 = vmul.f32 %v3596, 0.2
    %v3613 = vmul.f32 %v3597, 0.2
    %v3614 = vmul.f32 %v3598, 0.2
    %v3615 = vmul.f32 %v3599, 0.2
    %v3616 = vmul.f32 %v3600, 0.2
    %v3617 = vmul.f32 %v3601, 0.2
    %v3618 = vmul.f32 %v3602, 0.2
    %v3619 = vmax.f32 %v3587, %v3603
    %v3620 = vmax.f32 %v3588, %v3604
    %v3621 = vmax.f32 %v3589, %v3605
    %v3622 = vmax.f32 %v3590, %v3606
    %v3623 = vmax.f32 %v3591, %v3607
    %v3624 = vmax.f32 %v3592, %v3608
    %v3625 = vmax.f32 %v3593, %v3609
    %v3626 = vmax.f32 %v3594, %v3610
    %v3627 = vmax.f32 %v3595, %v3611
    %v3628 = vmax.f32 %v3596, %v3612
    %v3629 = vmax.f32 %v3597, %v3613
    %v3630 = vmax.f32 %v3598, %v3614
    %v3631 = vmax.f32 %v3599, %v3615
    %v3632 = vmax.f32 %v3600, %v3616
    %v3633 = vmax.f32 %v3601, %v3617
    %v3634 = vmax.f32 %v3602, %v3618
    %s3635 = sld [smem:[#allocation2 + $0x84]]
    %v3636 = vstv %s3635
    %v3637 = vmul.f32 %v3636, %v3619
    %v3638 = vmul.f32 %v3636, %v3620
    %v3639 = vmul.f32 %v3636, %v3621
    %v3640 = vmul.f32 %v3636, %v3622
    %v3641 = vmul.f32 %v3636, %v3623
    %v3642 = vmul.f32 %v3636, %v3624
    %v3643 = vmul.f32 %v3636, %v3625
    %v3644 = vmul.f32 %v3636, %v3626
    %v3645 = vmul.f32 %v3636, %v3627
    %v3646 = vmul.f32 %v3636, %v3628
    %v3647 = vmul.f32 %v3636, %v3629
    %v3648 = vmul.f32 %v3636, %v3630
    %v3649 = vmul.f32 %v3636, %v3631
    %v3650 = vmul.f32 %v3636, %v3632
    %v3651 = vmul.f32 %v3636, %v3633
    %v3652 = vmul.f32 %v3636, %v3634
    %v3653 = vadd.f32 %v3396, %v3637
    %v3654 = vadd.f32 %v3397, %v3638
    %v3655 = vadd.f32 %v3398, %v3639
    %v3656 = vadd.f32 %v3399, %v3640
    %v3657 = vadd.f32 %v3400, %v3641
    %v3658 = vadd.f32 %v3401, %v3642
    %v3659 = vadd.f32 %v3402, %v3643
    %v3660 = vadd.f32 %v3403, %v3644
    %v3661 = vadd.f32 %v3404, %v3645
    %v3662 = vadd.f32 %v3405, %v3646
    %v3663 = vadd.f32 %v3406, %v3647
    %v3664 = vadd.f32 %v3407, %v3648
    %v3665 = vadd.f32 %v3408, %v3649
    %v3666 = vadd.f32 %v3409, %v3650
    %v3667 = vadd.f32 %v3410, %v3651
    %v3668 = vadd.f32 %v3411, %v3652
    %3669 = vset.pattern.permute.xlu0 13
    %3670 = vperm.xlu0 %3669, %v41
    %v3671 = vpop.permute.xlu0 %3670
    %3673 = vset.pattern.permute.xlu0 13
    %3674 = vperm.xlu0 %3673, %v42
    %v3675 = vpop.permute.xlu0 %3674
    %3677 = vset.pattern.permute.xlu0 13
    %3678 = vperm.xlu0 %3677, %v43
    %v3679 = vpop.permute.xlu0 %3678
    %3681 = vset.pattern.permute.xlu0 13
    %3682 = vperm.xlu0 %3681, %v44
    %v3683 = vpop.permute.xlu0 %3682
    %3685 = vset.pattern.permute.xlu0 13
    %3686 = vperm.xlu0 %3685, %v45
    %v3687 = vpop.permute.xlu0 %3686
    %3689 = vset.pattern.permute.xlu0 13
    %3690 = vperm.xlu0 %3689, %v46
    %v3691 = vpop.permute.xlu0 %3690
    %3693 = vset.pattern.permute.xlu0 13
    %3694 = vperm.xlu0 %3693, %v47
    %v3695 = vpop.permute.xlu0 %3694
    %3697 = vset.pattern.permute.xlu0 13
    %3698 = vperm.xlu0 %3697, %v48
    %v3699 = vpop.permute.xlu0 %3698
    %3701 = vset.pattern.permute.xlu0 13
    %3702 = vperm.xlu0 %3701, %v49
    %v3703 = vpop.permute.xlu0 %3702
    %3705 = vset.pattern.permute.xlu0 13
    %3706 = vperm.xlu0 %3705, %v50
    %v3707 = vpop.permute.xlu0 %3706
    %3709 = vset.pattern.permute.xlu0 13
    %3710 = vperm.xlu0 %3709, %v51
    %v3711 = vpop.permute.xlu0 %3710
    %3713 = vset.pattern.permute.xlu0 13
    %3714 = vperm.xlu0 %3713, %v52
    %v3715 = vpop.permute.xlu0 %3714
    %3717 = vset.pattern.permute.xlu0 13
    %3718 = vperm.xlu0 %3717, %v53
    %v3719 = vpop.permute.xlu0 %3718
    %3721 = vset.pattern.permute.xlu0 13
    %3722 = vperm.xlu0 %3721, %v54
    %v3723 = vpop.permute.xlu0 %3722
    %3725 = vset.pattern.permute.xlu0 13
    %3726 = vperm.xlu0 %3725, %v55
    %v3727 = vpop.permute.xlu0 %3726
    %3729 = vset.pattern.permute.xlu0 13
    %3730 = vperm.xlu0 %3729, %v56
    %v3731 = vpop.permute.xlu0 %3730
    %v3733 = vperm.slane %v40, 5
    %v3734 = vadd.f32 %v3671, %v3733
    %v3735 = vadd.f32 %v3675, %v3733
    %v3736 = vadd.f32 %v3679, %v3733
    %v3737 = vadd.f32 %v3683, %v3733
    %v3738 = vadd.f32 %v3687, %v3733
    %v3739 = vadd.f32 %v3691, %v3733
    %v3740 = vadd.f32 %v3695, %v3733
    %v3741 = vadd.f32 %v3699, %v3733
    %v3742 = vadd.f32 %v3703, %v3733
    %v3743 = vadd.f32 %v3707, %v3733
    %v3744 = vadd.f32 %v3711, %v3733
    %v3745 = vadd.f32 %v3715, %v3733
    %v3746 = vadd.f32 %v3719, %v3733
    %v3747 = vadd.f32 %v3723, %v3733
    %v3748 = vadd.f32 %v3727, %v3733
    %v3749 = vadd.f32 %v3731, %v3733
    %v3750 = vrot.slane %v58, 5
    %s3751 = vtos %v3750
    %v3752 = vstv %s3751
    %v3754 = vmul.f32 %v3752, %v75
    %v3755 = vmul.f32 %v3752, %v76
    %v3756 = vmul.f32 %v3752, %v77
    %v3757 = vmul.f32 %v3752, %v78
    %v3758 = vmul.f32 %v3752, %v79
    %v3759 = vmul.f32 %v3752, %v80
    %v3760 = vmul.f32 %v3752, %v81
    %v3761 = vmul.f32 %v3752, %v82
    %v3762 = vmul.f32 %v3752, %v83
    %v3763 = vmul.f32 %v3752, %v84
    %v3764 = vmul.f32 %v3752, %v85
    %v3765 = vmul.f32 %v3752, %v86
    %v3766 = vmul.f32 %v3752, %v87
    %v3767 = vmul.f32 %v3752, %v88
    %v3768 = vmul.f32 %v3752, %v89
    %v3769 = vmul.f32 %v3752, %v90
    %v3770 = vadd.f32 %v3734, %v3754
    %v3771 = vadd.f32 %v3735, %v3755
    %v3772 = vadd.f32 %v3736, %v3756
    %v3773 = vadd.f32 %v3737, %v3757
    %v3774 = vadd.f32 %v3738, %v3758
    %v3775 = vadd.f32 %v3739, %v3759
    %v3776 = vadd.f32 %v3740, %v3760
    %v3777 = vadd.f32 %v3741, %v3761
    %v3778 = vadd.f32 %v3742, %v3762
    %v3779 = vadd.f32 %v3743, %v3763
    %v3780 = vadd.f32 %v3744, %v3764
    %v3781 = vadd.f32 %v3745, %v3765
    %v3782 = vadd.f32 %v3746, %v3766
    %v3783 = vadd.f32 %v3747, %v3767
    %v3784 = vadd.f32 %v3748, %v3768
    %v3785 = vadd.f32 %v3749, %v3769
    %3786 = vrot.lane.b32.xlu0 %v3750, 127
    %v3787 = vpop.permute.xlu0 %3786
    %s3788 = vtos %v3787
    %v3789 = vstv %s3788
    %v3791 = vmul.f32 %v3789, %v108
    %v3792 = vmul.f32 %v3789, %v109
    %v3793 = vmul.f32 %v3789, %v110
    %v3794 = vmul.f32 %v3789, %v111
    %v3795 = vmul.f32 %v3789, %v112
    %v3796 = vmul.f32 %v3789, %v113
    %v3797 = vmul.f32 %v3789, %v114
    %v3798 = vmul.f32 %v3789, %v115
    %v3799 = vmul.f32 %v3789, %v116
    %v3800 = vmul.f32 %v3789, %v117
    %v3801 = vmul.f32 %v3789, %v118
    %v3802 = vmul.f32 %v3789, %v119
    %v3803 = vmul.f32 %v3789, %v120
    %v3804 = vmul.f32 %v3789, %v121
    %v3805 = vmul.f32 %v3789, %v122
    %v3806 = vmul.f32 %v3789, %v123
    %v3807 = vadd.f32 %v3770, %v3791
    %v3808 = vadd.f32 %v3771, %v3792
    %v3809 = vadd.f32 %v3772, %v3793
    %v3810 = vadd.f32 %v3773, %v3794
    %v3811 = vadd.f32 %v3774, %v3795
    %v3812 = vadd.f32 %v3775, %v3796
    %v3813 = vadd.f32 %v3776, %v3797
    %v3814 = vadd.f32 %v3777, %v3798
    %v3815 = vadd.f32 %v3778, %v3799
    %v3816 = vadd.f32 %v3779, %v3800
    %v3817 = vadd.f32 %v3780, %v3801
    %v3818 = vadd.f32 %v3781, %v3802
    %v3819 = vadd.f32 %v3782, %v3803
    %v3820 = vadd.f32 %v3783, %v3804
    %v3821 = vadd.f32 %v3784, %v3805
    %v3822 = vadd.f32 %v3785, %v3806
    %3823 = vrot.lane.b32.xlu0 %v3750, 126
    %v3824 = vpop.permute.xlu0 %3823
    %s3825 = vtos %v3824
    %v3826 = vstv %s3825
    %v3828 = vmul.f32 %v3826, %v141
    %v3829 = vmul.f32 %v3826, %v142
    %v3830 = vmul.f32 %v3826, %v143
    %v3831 = vmul.f32 %v3826, %v144
    %v3832 = vmul.f32 %v3826, %v145
    %v3833 = vmul.f32 %v3826, %v146
    %v3834 = vmul.f32 %v3826, %v147
    %v3835 = vmul.f32 %v3826, %v148
    %v3836 = vmul.f32 %v3826, %v149
    %v3837 = vmul.f32 %v3826, %v150
    %v3838 = vmul.f32 %v3826, %v151
    %v3839 = vmul.f32 %v3826, %v152
    %v3840 = vmul.f32 %v3826, %v153
    %v3841 = vmul.f32 %v3826, %v154
    %v3842 = vmul.f32 %v3826, %v155
    %v3843 = vmul.f32 %v3826, %v156
    %v3844 = vadd.f32 %v3807, %v3828
    %v3845 = vadd.f32 %v3808, %v3829
    %v3846 = vadd.f32 %v3809, %v3830
    %v3847 = vadd.f32 %v3810, %v3831
    %v3848 = vadd.f32 %v3811, %v3832
    %v3849 = vadd.f32 %v3812, %v3833
    %v3850 = vadd.f32 %v3813, %v3834
    %v3851 = vadd.f32 %v3814, %v3835
    %v3852 = vadd.f32 %v3815, %v3836
    %v3853 = vadd.f32 %v3816, %v3837
    %v3854 = vadd.f32 %v3817, %v3838
    %v3855 = vadd.f32 %v3818, %v3839
    %v3856 = vadd.f32 %v3819, %v3840
    %v3857 = vadd.f32 %v3820, %v3841
    %v3858 = vadd.f32 %v3821, %v3842
    %v3859 = vadd.f32 %v3822, %v3843
    %v3860 = vmul.f32 %v3844, 0.2
    %v3861 = vmul.f32 %v3845, 0.2
    %v3862 = vmul.f32 %v3846, 0.2
    %v3863 = vmul.f32 %v3847, 0.2
    %v3864 = vmul.f32 %v3848, 0.2
    %v3865 = vmul.f32 %v3849, 0.2
    %v3866 = vmul.f32 %v3850, 0.2
    %v3867 = vmul.f32 %v3851, 0.2
    %v3868 = vmul.f32 %v3852, 0.2
    %v3869 = vmul.f32 %v3853, 0.2
    %v3870 = vmul.f32 %v3854, 0.2
    %v3871 = vmul.f32 %v3855, 0.2
    %v3872 = vmul.f32 %v3856, 0.2
    %v3873 = vmul.f32 %v3857, 0.2
    %v3874 = vmul.f32 %v3858, 0.2
    %v3875 = vmul.f32 %v3859, 0.2
    %v3876 = vmax.f32 %v3844, %v3860
    %v3877 = vmax.f32 %v3845, %v3861
    %v3878 = vmax.f32 %v3846, %v3862
    %v3879 = vmax.f32 %v3847, %v3863
    %v3880 = vmax.f32 %v3848, %v3864
    %v3881 = vmax.f32 %v3849, %v3865
    %v3882 = vmax.f32 %v3850, %v3866
    %v3883 = vmax.f32 %v3851, %v3867
    %v3884 = vmax.f32 %v3852, %v3868
    %v3885 = vmax.f32 %v3853, %v3869
    %v3886 = vmax.f32 %v3854, %v3870
    %v3887 = vmax.f32 %v3855, %v3871
    %v3888 = vmax.f32 %v3856, %v3872
    %v3889 = vmax.f32 %v3857, %v3873
    %v3890 = vmax.f32 %v3858, %v3874
    %v3891 = vmax.f32 %v3859, %v3875
    %s3892 = sld [smem:[#allocation2 + $0x85]]
    %v3893 = vstv %s3892
    %v3894 = vmul.f32 %v3893, %v3876
    %v3895 = vmul.f32 %v3893, %v3877
    %v3896 = vmul.f32 %v3893, %v3878
    %v3897 = vmul.f32 %v3893, %v3879
    %v3898 = vmul.f32 %v3893, %v3880
    %v3899 = vmul.f32 %v3893, %v3881
    %v3900 = vmul.f32 %v3893, %v3882
    %v3901 = vmul.f32 %v3893, %v3883
    %v3902 = vmul.f32 %v3893, %v3884
    %v3903 = vmul.f32 %v3893, %v3885
    %v3904 = vmul.f32 %v3893, %v3886
    %v3905 = vmul.f32 %v3893, %v3887
    %v3906 = vmul.f32 %v3893, %v3888
    %v3907 = vmul.f32 %v3893, %v3889
    %v3908 = vmul.f32 %v3893, %v3890
    %v3909 = vmul.f32 %v3893, %v3891
    %v3910 = vadd.f32 %v3653, %v3894
    %v3911 = vadd.f32 %v3654, %v3895
    %v3912 = vadd.f32 %v3655, %v3896
    %v3913 = vadd.f32 %v3656, %v3897
    %v3914 = vadd.f32 %v3657, %v3898
    %v3915 = vadd.f32 %v3658, %v3899
    %v3916 = vadd.f32 %v3659, %v3900
    %v3917 = vadd.f32 %v3660, %v3901
    %v3918 = vadd.f32 %v3661, %v3902
    %v3919 = vadd.f32 %v3662, %v3903
    %v3920 = vadd.f32 %v3663, %v3904
    %v3921 = vadd.f32 %v3664, %v3905
    %v3922 = vadd.f32 %v3665, %v3906
    %v3923 = vadd.f32 %v3666, %v3907
    %v3924 = vadd.f32 %v3667, %v3908
    %v3925 = vadd.f32 %v3668, %v3909
    %3926 = vset.pattern.permute.xlu0 14
    %3927 = vperm.xlu0 %3926, %v41
    %v3928 = vpop.permute.xlu0 %3927
    %3930 = vset.pattern.permute.xlu0 14
    %3931 = vperm.xlu0 %3930, %v42
    %v3932 = vpop.permute.xlu0 %3931
    %3934 = vset.pattern.permute.xlu0 14
    %3935 = vperm.xlu0 %3934, %v43
    %v3936 = vpop.permute.xlu0 %3935
    %3938 = vset.pattern.permute.xlu0 14
    %3939 = vperm.xlu0 %3938, %v44
    %v3940 = vpop.permute.xlu0 %3939
    %3942 = vset.pattern.permute.xlu0 14
    %3943 = vperm.xlu0 %3942, %v45
    %v3944 = vpop.permute.xlu0 %3943
    %3946 = vset.pattern.permute.xlu0 14
    %3947 = vperm.xlu0 %3946, %v46
    %v3948 = vpop.permute.xlu0 %3947
    %3950 = vset.pattern.permute.xlu0 14
    %3951 = vperm.xlu0 %3950, %v47
    %v3952 = vpop.permute.xlu0 %3951
    %3954 = vset.pattern.permute.xlu0 14
    %3955 = vperm.xlu0 %3954, %v48
    %v3956 = vpop.permute.xlu0 %3955
    %3958 = vset.pattern.permute.xlu0 14
    %3959 = vperm.xlu0 %3958, %v49
    %v3960 = vpop.permute.xlu0 %3959
    %3962 = vset.pattern.permute.xlu0 14
    %3963 = vperm.xlu0 %3962, %v50
    %v3964 = vpop.permute.xlu0 %3963
    %3966 = vset.pattern.permute.xlu0 14
    %3967 = vperm.xlu0 %3966, %v51
    %v3968 = vpop.permute.xlu0 %3967
    %3970 = vset.pattern.permute.xlu0 14
    %3971 = vperm.xlu0 %3970, %v52
    %v3972 = vpop.permute.xlu0 %3971
    %3974 = vset.pattern.permute.xlu0 14
    %3975 = vperm.xlu0 %3974, %v53
    %v3976 = vpop.permute.xlu0 %3975
    %3978 = vset.pattern.permute.xlu0 14
    %3979 = vperm.xlu0 %3978, %v54
    %v3980 = vpop.permute.xlu0 %3979
    %3982 = vset.pattern.permute.xlu0 14
    %3983 = vperm.xlu0 %3982, %v55
    %v3984 = vpop.permute.xlu0 %3983
    %3986 = vset.pattern.permute.xlu0 14
    %3987 = vperm.xlu0 %3986, %v56
    %v3988 = vpop.permute.xlu0 %3987
    %v3990 = vperm.slane %v40, 6
    %v3991 = vadd.f32 %v3928, %v3990
    %v3992 = vadd.f32 %v3932, %v3990
    %v3993 = vadd.f32 %v3936, %v3990
    %v3994 = vadd.f32 %v3940, %v3990
    %v3995 = vadd.f32 %v3944, %v3990
    %v3996 = vadd.f32 %v3948, %v3990
    %v3997 = vadd.f32 %v3952, %v3990
    %v3998 = vadd.f32 %v3956, %v3990
    %v3999 = vadd.f32 %v3960, %v3990
    %v4000 = vadd.f32 %v3964, %v3990
    %v4001 = vadd.f32 %v3968, %v3990
    %v4002 = vadd.f32 %v3972, %v3990
    %v4003 = vadd.f32 %v3976, %v3990
    %v4004 = vadd.f32 %v3980, %v3990
    %v4005 = vadd.f32 %v3984, %v3990
    %v4006 = vadd.f32 %v3988, %v3990
    %v4007 = vrot.slane %v58, 6
    %s4008 = vtos %v4007
    %v4009 = vstv %s4008
    %v4011 = vmul.f32 %v4009, %v75
    %v4012 = vmul.f32 %v4009, %v76
    %v4013 = vmul.f32 %v4009, %v77
    %v4014 = vmul.f32 %v4009, %v78
    %v4015 = vmul.f32 %v4009, %v79
    %v4016 = vmul.f32 %v4009, %v80
    %v4017 = vmul.f32 %v4009, %v81
    %v4018 = vmul.f32 %v4009, %v82
    %v4019 = vmul.f32 %v4009, %v83
    %v4020 = vmul.f32 %v4009, %v84
    %v4021 = vmul.f32 %v4009, %v85
    %v4022 = vmul.f32 %v4009, %v86
    %v4023 = vmul.f32 %v4009, %v87
    %v4024 = vmul.f32 %v4009, %v88
    %v4025 = vmul.f32 %v4009, %v89
    %v4026 = vmul.f32 %v4009, %v90
    %v4027 = vadd.f32 %v3991, %v4011
    %v4028 = vadd.f32 %v3992, %v4012
    %v4029 = vadd.f32 %v3993, %v4013
    %v4030 = vadd.f32 %v3994, %v4014
    %v4031 = vadd.f32 %v3995, %v4015
    %v4032 = vadd.f32 %v3996, %v4016
    %v4033 = vadd.f32 %v3997, %v4017
    %v4034 = vadd.f32 %v3998, %v4018
    %v4035 = vadd.f32 %v3999, %v4019
    %v4036 = vadd.f32 %v4000, %v4020
    %v4037 = vadd.f32 %v4001, %v4021
    %v4038 = vadd.f32 %v4002, %v4022
    %v4039 = vadd.f32 %v4003, %v4023
    %v4040 = vadd.f32 %v4004, %v4024
    %v4041 = vadd.f32 %v4005, %v4025
    %v4042 = vadd.f32 %v4006, %v4026
    %4043 = vrot.lane.b32.xlu0 %v4007, 127
    %v4044 = vpop.permute.xlu0 %4043
    %s4045 = vtos %v4044
    %v4046 = vstv %s4045
    %v4048 = vmul.f32 %v4046, %v108
    %v4049 = vmul.f32 %v4046, %v109
    %v4050 = vmul.f32 %v4046, %v110
    %v4051 = vmul.f32 %v4046, %v111
    %v4052 = vmul.f32 %v4046, %v112
    %v4053 = vmul.f32 %v4046, %v113
    %v4054 = vmul.f32 %v4046, %v114
    %v4055 = vmul.f32 %v4046, %v115
    %v4056 = vmul.f32 %v4046, %v116
    %v4057 = vmul.f32 %v4046, %v117
    %v4058 = vmul.f32 %v4046, %v118
    %v4059 = vmul.f32 %v4046, %v119
    %v4060 = vmul.f32 %v4046, %v120
    %v4061 = vmul.f32 %v4046, %v121
    %v4062 = vmul.f32 %v4046, %v122
    %v4063 = vmul.f32 %v4046, %v123
    %v4064 = vadd.f32 %v4027, %v4048
    %v4065 = vadd.f32 %v4028, %v4049
    %v4066 = vadd.f32 %v4029, %v4050
    %v4067 = vadd.f32 %v4030, %v4051
    %v4068 = vadd.f32 %v4031, %v4052
    %v4069 = vadd.f32 %v4032, %v4053
    %v4070 = vadd.f32 %v4033, %v4054
    %v4071 = vadd.f32 %v4034, %v4055
    %v4072 = vadd.f32 %v4035, %v4056
    %v4073 = vadd.f32 %v4036, %v4057
    %v4074 = vadd.f32 %v4037, %v4058
    %v4075 = vadd.f32 %v4038, %v4059
    %v4076 = vadd.f32 %v4039, %v4060
    %v4077 = vadd.f32 %v4040, %v4061
    %v4078 = vadd.f32 %v4041, %v4062
    %v4079 = vadd.f32 %v4042, %v4063
    %4080 = vrot.lane.b32.xlu0 %v4007, 126
    %v4081 = vpop.permute.xlu0 %4080
    %s4082 = vtos %v4081
    %v4083 = vstv %s4082
    %v4085 = vmul.f32 %v4083, %v141
    %v4086 = vmul.f32 %v4083, %v142
    %v4087 = vmul.f32 %v4083, %v143
    %v4088 = vmul.f32 %v4083, %v144
    %v4089 = vmul.f32 %v4083, %v145
    %v4090 = vmul.f32 %v4083, %v146
    %v4091 = vmul.f32 %v4083, %v147
    %v4092 = vmul.f32 %v4083, %v148
    %v4093 = vmul.f32 %v4083, %v149
    %v4094 = vmul.f32 %v4083, %v150
    %v4095 = vmul.f32 %v4083, %v151
    %v4096 = vmul.f32 %v4083, %v152
    %v4097 = vmul.f32 %v4083, %v153
    %v4098 = vmul.f32 %v4083, %v154
    %v4099 = vmul.f32 %v4083, %v155
    %v4100 = vmul.f32 %v4083, %v156
    %v4101 = vadd.f32 %v4064, %v4085
    %v4102 = vadd.f32 %v4065, %v4086
    %v4103 = vadd.f32 %v4066, %v4087
    %v4104 = vadd.f32 %v4067, %v4088
    %v4105 = vadd.f32 %v4068, %v4089
    %v4106 = vadd.f32 %v4069, %v4090
    %v4107 = vadd.f32 %v4070, %v4091
    %v4108 = vadd.f32 %v4071, %v4092
    %v4109 = vadd.f32 %v4072, %v4093
    %v4110 = vadd.f32 %v4073, %v4094
    %v4111 = vadd.f32 %v4074, %v4095
    %v4112 = vadd.f32 %v4075, %v4096
    %v4113 = vadd.f32 %v4076, %v4097
    %v4114 = vadd.f32 %v4077, %v4098
    %v4115 = vadd.f32 %v4078, %v4099
    %v4116 = vadd.f32 %v4079, %v4100
    %v4117 = vmul.f32 %v4101, 0.2
    %v4118 = vmul.f32 %v4102, 0.2
    %v4119 = vmul.f32 %v4103, 0.2
    %v4120 = vmul.f32 %v4104, 0.2
    %v4121 = vmul.f32 %v4105, 0.2
    %v4122 = vmul.f32 %v4106, 0.2
    %v4123 = vmul.f32 %v4107, 0.2
    %v4124 = vmul.f32 %v4108, 0.2
    %v4125 = vmul.f32 %v4109, 0.2
    %v4126 = vmul.f32 %v4110, 0.2
    %v4127 = vmul.f32 %v4111, 0.2
    %v4128 = vmul.f32 %v4112, 0.2
    %v4129 = vmul.f32 %v4113, 0.2
    %v4130 = vmul.f32 %v4114, 0.2
    %v4131 = vmul.f32 %v4115, 0.2
    %v4132 = vmul.f32 %v4116, 0.2
    %v4133 = vmax.f32 %v4101, %v4117
    %v4134 = vmax.f32 %v4102, %v4118
    %v4135 = vmax.f32 %v4103, %v4119
    %v4136 = vmax.f32 %v4104, %v4120
    %v4137 = vmax.f32 %v4105, %v4121
    %v4138 = vmax.f32 %v4106, %v4122
    %v4139 = vmax.f32 %v4107, %v4123
    %v4140 = vmax.f32 %v4108, %v4124
    %v4141 = vmax.f32 %v4109, %v4125
    %v4142 = vmax.f32 %v4110, %v4126
    %v4143 = vmax.f32 %v4111, %v4127
    %v4144 = vmax.f32 %v4112, %v4128
    %v4145 = vmax.f32 %v4113, %v4129
    %v4146 = vmax.f32 %v4114, %v4130
    %v4147 = vmax.f32 %v4115, %v4131
    %v4148 = vmax.f32 %v4116, %v4132
    %s4149 = sld [smem:[#allocation2 + $0x86]]
    %v4150 = vstv %s4149
    %v4151 = vmul.f32 %v4150, %v4133
    %v4152 = vmul.f32 %v4150, %v4134
    %v4153 = vmul.f32 %v4150, %v4135
    %v4154 = vmul.f32 %v4150, %v4136
    %v4155 = vmul.f32 %v4150, %v4137
    %v4156 = vmul.f32 %v4150, %v4138
    %v4157 = vmul.f32 %v4150, %v4139
    %v4158 = vmul.f32 %v4150, %v4140
    %v4159 = vmul.f32 %v4150, %v4141
    %v4160 = vmul.f32 %v4150, %v4142
    %v4161 = vmul.f32 %v4150, %v4143
    %v4162 = vmul.f32 %v4150, %v4144
    %v4163 = vmul.f32 %v4150, %v4145
    %v4164 = vmul.f32 %v4150, %v4146
    %v4165 = vmul.f32 %v4150, %v4147
    %v4166 = vmul.f32 %v4150, %v4148
    %v4167 = vadd.f32 %v3910, %v4151
    %v4168 = vadd.f32 %v3911, %v4152
    %v4169 = vadd.f32 %v3912, %v4153
    %v4170 = vadd.f32 %v3913, %v4154
    %v4171 = vadd.f32 %v3914, %v4155
    %v4172 = vadd.f32 %v3915, %v4156
    %v4173 = vadd.f32 %v3916, %v4157
    %v4174 = vadd.f32 %v3917, %v4158
    %v4175 = vadd.f32 %v3918, %v4159
    %v4176 = vadd.f32 %v3919, %v4160
    %v4177 = vadd.f32 %v3920, %v4161
    %v4178 = vadd.f32 %v3921, %v4162
    %v4179 = vadd.f32 %v3922, %v4163
    %v4180 = vadd.f32 %v3923, %v4164
    %v4181 = vadd.f32 %v3924, %v4165
    %v4182 = vadd.f32 %v3925, %v4166
    %4183 = vset.pattern.permute.xlu0 15
    %4184 = vperm.xlu0 %4183, %v41
    %v4185 = vpop.permute.xlu0 %4184
    %4187 = vset.pattern.permute.xlu0 15
    %4188 = vperm.xlu0 %4187, %v42
    %v4189 = vpop.permute.xlu0 %4188
    %4191 = vset.pattern.permute.xlu0 15
    %4192 = vperm.xlu0 %4191, %v43
    %v4193 = vpop.permute.xlu0 %4192
    %4195 = vset.pattern.permute.xlu0 15
    %4196 = vperm.xlu0 %4195, %v44
    %v4197 = vpop.permute.xlu0 %4196
    %4199 = vset.pattern.permute.xlu0 15
    %4200 = vperm.xlu0 %4199, %v45
    %v4201 = vpop.permute.xlu0 %4200
    %4203 = vset.pattern.permute.xlu0 15
    %4204 = vperm.xlu0 %4203, %v46
    %v4205 = vpop.permute.xlu0 %4204
    %4207 = vset.pattern.permute.xlu0 15
    %4208 = vperm.xlu0 %4207, %v47
    %v4209 = vpop.permute.xlu0 %4208
    %4211 = vset.pattern.permute.xlu0 15
    %4212 = vperm.xlu0 %4211, %v48
    %v4213 = vpop.permute.xlu0 %4212
    %4215 = vset.pattern.permute.xlu0 15
    %4216 = vperm.xlu0 %4215, %v49
    %v4217 = vpop.permute.xlu0 %4216
    %4219 = vset.pattern.permute.xlu0 15
    %4220 = vperm.xlu0 %4219, %v50
    %v4221 = vpop.permute.xlu0 %4220
    %4223 = vset.pattern.permute.xlu0 15
    %4224 = vperm.xlu0 %4223, %v51
    %v4225 = vpop.permute.xlu0 %4224
    %4227 = vset.pattern.permute.xlu0 15
    %4228 = vperm.xlu0 %4227, %v52
    %v4229 = vpop.permute.xlu0 %4228
    %4231 = vset.pattern.permute.xlu0 15
    %4232 = vperm.xlu0 %4231, %v53
    %v4233 = vpop.permute.xlu0 %4232
    %4235 = vset.pattern.permute.xlu0 15
    %4236 = vperm.xlu0 %4235, %v54
    %v4237 = vpop.permute.xlu0 %4236
    %4239 = vset.pattern.permute.xlu0 15
    %4240 = vperm.xlu0 %4239, %v55
    %v4241 = vpop.permute.xlu0 %4240
    %4243 = vset.pattern.permute.xlu0 15
    %4244 = vperm.xlu0 %4243, %v56
    %v4245 = vpop.permute.xlu0 %4244
    %v4247 = vperm.slane %v40, 7
    %v4248 = vadd.f32 %v4185, %v4247
    %v4249 = vadd.f32 %v4189, %v4247
    %v4250 = vadd.f32 %v4193, %v4247
    %v4251 = vadd.f32 %v4197, %v4247
    %v4252 = vadd.f32 %v4201, %v4247
    %v4253 = vadd.f32 %v4205, %v4247
    %v4254 = vadd.f32 %v4209, %v4247
    %v4255 = vadd.f32 %v4213, %v4247
    %v4256 = vadd.f32 %v4217, %v4247
    %v4257 = vadd.f32 %v4221, %v4247
    %v4258 = vadd.f32 %v4225, %v4247
    %v4259 = vadd.f32 %v4229, %v4247
    %v4260 = vadd.f32 %v4233, %v4247
    %v4261 = vadd.f32 %v4237, %v4247
    %v4262 = vadd.f32 %v4241, %v4247
    %v4263 = vadd.f32 %v4245, %v4247
    %v4264 = vrot.slane %v58, 7
    %s4265 = vtos %v4264
    %v4266 = vstv %s4265
    %v4268 = vmul.f32 %v4266, %v75
    %v4269 = vmul.f32 %v4266, %v76
    %v4270 = vmul.f32 %v4266, %v77
    %v4271 = vmul.f32 %v4266, %v78
    %v4272 = vmul.f32 %v4266, %v79
    %v4273 = vmul.f32 %v4266, %v80
    %v4274 = vmul.f32 %v4266, %v81
    %v4275 = vmul.f32 %v4266, %v82
    %v4276 = vmul.f32 %v4266, %v83
    %v4277 = vmul.f32 %v4266, %v84
    %v4278 = vmul.f32 %v4266, %v85
    %v4279 = vmul.f32 %v4266, %v86
    %v4280 = vmul.f32 %v4266, %v87
    %v4281 = vmul.f32 %v4266, %v88
    %v4282 = vmul.f32 %v4266, %v89
    %v4283 = vmul.f32 %v4266, %v90
    %v4284 = vadd.f32 %v4248, %v4268
    %v4285 = vadd.f32 %v4249, %v4269
    %v4286 = vadd.f32 %v4250, %v4270
    %v4287 = vadd.f32 %v4251, %v4271
    %v4288 = vadd.f32 %v4252, %v4272
    %v4289 = vadd.f32 %v4253, %v4273
    %v4290 = vadd.f32 %v4254, %v4274
    %v4291 = vadd.f32 %v4255, %v4275
    %v4292 = vadd.f32 %v4256, %v4276
    %v4293 = vadd.f32 %v4257, %v4277
    %v4294 = vadd.f32 %v4258, %v4278
    %v4295 = vadd.f32 %v4259, %v4279
    %v4296 = vadd.f32 %v4260, %v4280
    %v4297 = vadd.f32 %v4261, %v4281
    %v4298 = vadd.f32 %v4262, %v4282
    %v4299 = vadd.f32 %v4263, %v4283
    %4300 = vrot.lane.b32.xlu0 %v4264, 127
    %v4301 = vpop.permute.xlu0 %4300
    %s4302 = vtos %v4301
    %v4303 = vstv %s4302
    %v4305 = vmul.f32 %v4303, %v108
    %v4306 = vmul.f32 %v4303, %v109
    %v4307 = vmul.f32 %v4303, %v110
    %v4308 = vmul.f32 %v4303, %v111
    %v4309 = vmul.f32 %v4303, %v112
    %v4310 = vmul.f32 %v4303, %v113
    %v4311 = vmul.f32 %v4303, %v114
    %v4312 = vmul.f32 %v4303, %v115
    %v4313 = vmul.f32 %v4303, %v116
    %v4314 = vmul.f32 %v4303, %v117
    %v4315 = vmul.f32 %v4303, %v118
    %v4316 = vmul.f32 %v4303, %v119
    %v4317 = vmul.f32 %v4303, %v120
    %v4318 = vmul.f32 %v4303, %v121
    %v4319 = vmul.f32 %v4303, %v122
    %v4320 = vmul.f32 %v4303, %v123
    %v4321 = vadd.f32 %v4284, %v4305
    %v4322 = vadd.f32 %v4285, %v4306
    %v4323 = vadd.f32 %v4286, %v4307
    %v4324 = vadd.f32 %v4287, %v4308
    %v4325 = vadd.f32 %v4288, %v4309
    %v4326 = vadd.f32 %v4289, %v4310
    %v4327 = vadd.f32 %v4290, %v4311
    %v4328 = vadd.f32 %v4291, %v4312
    %v4329 = vadd.f32 %v4292, %v4313
    %v4330 = vadd.f32 %v4293, %v4314
    %v4331 = vadd.f32 %v4294, %v4315
    %v4332 = vadd.f32 %v4295, %v4316
    %v4333 = vadd.f32 %v4296, %v4317
    %v4334 = vadd.f32 %v4297, %v4318
    %v4335 = vadd.f32 %v4298, %v4319
    %v4336 = vadd.f32 %v4299, %v4320
    %4337 = vrot.lane.b32.xlu0 %v4264, 126
    %v4338 = vpop.permute.xlu0 %4337
    %s4339 = vtos %v4338
    %v4340 = vstv %s4339
    %v4342 = vmul.f32 %v4340, %v141
    %v4343 = vmul.f32 %v4340, %v142
    %v4344 = vmul.f32 %v4340, %v143
    %v4345 = vmul.f32 %v4340, %v144
    %v4346 = vmul.f32 %v4340, %v145
    %v4347 = vmul.f32 %v4340, %v146
    %v4348 = vmul.f32 %v4340, %v147
    %v4349 = vmul.f32 %v4340, %v148
    %v4350 = vmul.f32 %v4340, %v149
    %v4351 = vmul.f32 %v4340, %v150
    %v4352 = vmul.f32 %v4340, %v151
    %v4353 = vmul.f32 %v4340, %v152
    %v4354 = vmul.f32 %v4340, %v153
    %v4355 = vmul.f32 %v4340, %v154
    %v4356 = vmul.f32 %v4340, %v155
    %v4357 = vmul.f32 %v4340, %v156
    %v4358 = vadd.f32 %v4321, %v4342
    %v4359 = vadd.f32 %v4322, %v4343
    %v4360 = vadd.f32 %v4323, %v4344
    %v4361 = vadd.f32 %v4324, %v4345
    %v4362 = vadd.f32 %v4325, %v4346
    %v4363 = vadd.f32 %v4326, %v4347
    %v4364 = vadd.f32 %v4327, %v4348
    %v4365 = vadd.f32 %v4328, %v4349
    %v4366 = vadd.f32 %v4329, %v4350
    %v4367 = vadd.f32 %v4330, %v4351
    %v4368 = vadd.f32 %v4331, %v4352
    %v4369 = vadd.f32 %v4332, %v4353
    %v4370 = vadd.f32 %v4333, %v4354
    %v4371 = vadd.f32 %v4334, %v4355
    %v4372 = vadd.f32 %v4335, %v4356
    %v4373 = vadd.f32 %v4336, %v4357
    %v4374 = vmul.f32 %v4358, 0.2
    %v4375 = vmul.f32 %v4359, 0.2
    %v4376 = vmul.f32 %v4360, 0.2
    %v4377 = vmul.f32 %v4361, 0.2
    %v4378 = vmul.f32 %v4362, 0.2
    %v4379 = vmul.f32 %v4363, 0.2
    %v4380 = vmul.f32 %v4364, 0.2
    %v4381 = vmul.f32 %v4365, 0.2
    %v4382 = vmul.f32 %v4366, 0.2
    %v4383 = vmul.f32 %v4367, 0.2
    %v4384 = vmul.f32 %v4368, 0.2
    %v4385 = vmul.f32 %v4369, 0.2
    %v4386 = vmul.f32 %v4370, 0.2
    %v4387 = vmul.f32 %v4371, 0.2
    %v4388 = vmul.f32 %v4372, 0.2
    %v4389 = vmul.f32 %v4373, 0.2
    %v4390 = vmax.f32 %v4358, %v4374
    %v4391 = vmax.f32 %v4359, %v4375
    %v4392 = vmax.f32 %v4360, %v4376
    %v4393 = vmax.f32 %v4361, %v4377
    %v4394 = vmax.f32 %v4362, %v4378
    %v4395 = vmax.f32 %v4363, %v4379
    %v4396 = vmax.f32 %v4364, %v4380
    %v4397 = vmax.f32 %v4365, %v4381
    %v4398 = vmax.f32 %v4366, %v4382
    %v4399 = vmax.f32 %v4367, %v4383
    %v4400 = vmax.f32 %v4368, %v4384
    %v4401 = vmax.f32 %v4369, %v4385
    %v4402 = vmax.f32 %v4370, %v4386
    %v4403 = vmax.f32 %v4371, %v4387
    %v4404 = vmax.f32 %v4372, %v4388
    %v4405 = vmax.f32 %v4373, %v4389
    %s4406 = sld [smem:[#allocation2 + $0x87]]
    %v4407 = vstv %s4406
    %v4408 = vmul.f32 %v4407, %v4390
    %v4409 = vmul.f32 %v4407, %v4391
    %v4410 = vmul.f32 %v4407, %v4392
    %v4411 = vmul.f32 %v4407, %v4393
    %v4412 = vmul.f32 %v4407, %v4394
    %v4413 = vmul.f32 %v4407, %v4395
    %v4414 = vmul.f32 %v4407, %v4396
    %v4415 = vmul.f32 %v4407, %v4397
    %v4416 = vmul.f32 %v4407, %v4398
    %v4417 = vmul.f32 %v4407, %v4399
    %v4418 = vmul.f32 %v4407, %v4400
    %v4419 = vmul.f32 %v4407, %v4401
    %v4420 = vmul.f32 %v4407, %v4402
    %v4421 = vmul.f32 %v4407, %v4403
    %v4422 = vmul.f32 %v4407, %v4404
    %v4423 = vmul.f32 %v4407, %v4405
    %v4424 = vadd.f32 %v4167, %v4408
    %v4425 = vadd.f32 %v4168, %v4409
    %v4426 = vadd.f32 %v4169, %v4410
    %v4427 = vadd.f32 %v4170, %v4411
    %v4428 = vadd.f32 %v4171, %v4412
    %v4429 = vadd.f32 %v4172, %v4413
    %v4430 = vadd.f32 %v4173, %v4414
    %v4431 = vadd.f32 %v4174, %v4415
    %v4432 = vadd.f32 %v4175, %v4416
    %v4433 = vadd.f32 %v4176, %v4417
    %v4434 = vadd.f32 %v4177, %v4418
    %v4435 = vadd.f32 %v4178, %v4419
    %v4436 = vadd.f32 %v4179, %v4420
    %v4437 = vadd.f32 %v4180, %v4421
    %v4438 = vadd.f32 %v4181, %v4422
    %v4439 = vadd.f32 %v4182, %v4423
    %4440 = vmax.xlane.f32.xlu0 %v4424
    %v4441 = vpop.xlane.xlu0 %4440
    %4442 = vmax.xlane.f32.xlu0 %v4425
    %v4443 = vpop.xlane.xlu0 %4442
    %4444 = vmax.xlane.f32.xlu0 %v4426
    %v4445 = vpop.xlane.xlu0 %4444
    %4446 = vmax.xlane.f32.xlu0 %v4427
    %v4447 = vpop.xlane.xlu0 %4446
    %4448 = vmax.xlane.f32.xlu0 %v4428
    %v4449 = vpop.xlane.xlu0 %4448
    %4450 = vmax.xlane.f32.xlu0 %v4429
    %v4451 = vpop.xlane.xlu0 %4450
    %4452 = vmax.xlane.f32.xlu0 %v4430
    %v4453 = vpop.xlane.xlu0 %4452
    %4454 = vmax.xlane.f32.xlu0 %v4431
    %v4455 = vpop.xlane.xlu0 %4454
    %4456 = vmax.xlane.f32.xlu0 %v4432
    %v4457 = vpop.xlane.xlu0 %4456
    %4458 = vmax.xlane.f32.xlu0 %v4433
    %v4459 = vpop.xlane.xlu0 %4458
    %4460 = vmax.xlane.f32.xlu0 %v4434
    %v4461 = vpop.xlane.xlu0 %4460
    %4462 = vmax.xlane.f32.xlu0 %v4435
    %v4463 = vpop.xlane.xlu0 %4462
    %4464 = vmax.xlane.f32.xlu0 %v4436
    %v4465 = vpop.xlane.xlu0 %4464
    %4466 = vmax.xlane.f32.xlu0 %v4437
    %v4467 = vpop.xlane.xlu0 %4466
    %4468 = vmax.xlane.f32.xlu0 %v4438
    %v4469 = vpop.xlane.xlu0 %4468
    %4470 = vmax.xlane.f32.xlu0 %v4439
    %v4471 = vpop.xlane.xlu0 %4470
    %v4472 = vsub.f32 %v4424, %v4441
    %v4473 = vsub.f32 %v4425, %v4443
    %v4474 = vsub.f32 %v4426, %v4445
    %v4475 = vsub.f32 %v4427, %v4447
    %v4476 = vsub.f32 %v4428, %v4449
    %v4477 = vsub.f32 %v4429, %v4451
    %v4478 = vsub.f32 %v4430, %v4453
    %v4479 = vsub.f32 %v4431, %v4455
    %v4480 = vsub.f32 %v4432, %v4457
    %v4481 = vsub.f32 %v4433, %v4459
    %v4482 = vsub.f32 %v4434, %v4461
    %v4483 = vsub.f32 %v4435, %v4463
    %v4484 = vsub.f32 %v4436, %v4465
    %v4485 = vsub.f32 %v4437, %v4467
    %v4486 = vsub.f32 %v4438, %v4469
    %v4487 = vsub.f32 %v4439, %v4471
    %v4488 = vmul.f32 %v4472, 1.442695
    %v4489 = vpow.pop %v4488
    %v4490 = vmul.f32 %v4473, 1.442695
    %v4491 = vpow.pop %v4490
    %v4492 = vmul.f32 %v4474, 1.442695
    %v4493 = vpow.pop %v4492
    %v4494 = vmul.f32 %v4475, 1.442695
    %v4495 = vpow.pop %v4494
    %v4496 = vmul.f32 %v4476, 1.442695
    %v4497 = vpow.pop %v4496
    %v4498 = vmul.f32 %v4477, 1.442695
    %v4499 = vpow.pop %v4498
    %v4500 = vmul.f32 %v4478, 1.442695
    %v4501 = vpow.pop %v4500
    %v4502 = vmul.f32 %v4479, 1.442695
    %v4503 = vpow.pop %v4502
    %v4504 = vmul.f32 %v4480, 1.442695
    %v4505 = vpow.pop %v4504
    %v4506 = vmul.f32 %v4481, 1.442695
    %v4507 = vpow.pop %v4506
    %v4508 = vmul.f32 %v4482, 1.442695
    %v4509 = vpow.pop %v4508
    %v4510 = vmul.f32 %v4483, 1.442695
    %v4511 = vpow.pop %v4510
    %v4512 = vmul.f32 %v4484, 1.442695
    %v4513 = vpow.pop %v4512
    %v4514 = vmul.f32 %v4485, 1.442695
    %v4515 = vpow.pop %v4514
    %v4516 = vmul.f32 %v4486, 1.442695
    %v4517 = vpow.pop %v4516
    %v4518 = vmul.f32 %v4487, 1.442695
    %v4519 = vpow.pop %v4518
    %4520 = vmatpush.xpose.msra.mxu0 %v4519
    %4521 = vmatpush.xpose.msra.mxu0 %v4517
    %4522 = vmatpush.xpose.msra.mxu0 %v4515
    %4523 = vmatpush.xpose.msra.mxu0 %v4513
    %4524 = vmatpush.xpose.msra.mxu0 %v4511
    %4525 = vmatpush.xpose.msra.mxu0 %v4509
    %4526 = vmatpush.xpose.msra.mxu0 %v4507
    %4527 = vmatpush.xpose.msra.mxu0 %v4505
    %4528 = vmatpush.xpose.msra.mxu0 %v4503
    %4529 = vmatpush.xpose.msra.mxu0 %v4501
    %4530 = vmatpush.xpose.msra.mxu0 %v4499
    %4531 = vmatpush.xpose.msra.mxu0 %v4497
    %4532 = vmatpush.xpose.msra.mxu0 %v4495
    %4533 = vmatpush.xpose.msra.mxu0 %v4493
    %4534 = vmatpush.xpose.msra.mxu0 %v4491
    %4535 = vmatpush.xpose.msra.mxu0 %v4489
    %4536 = vmatmul.f32.gmra.mxu0 %v40
    %v4537 = vpop.f32.mrf.mxu0
    %v4538 = vadd.f32 0.0, %v4537
    %4539 = vdwg.mxu0
    %4540 = vmatpush.xpose.msra.mxu0 %v4519
    %4541 = vmatpush.xpose.msra.mxu0 %v4517
    %4542 = vmatpush.xpose.msra.mxu0 %v4515
    %4543 = vmatpush.xpose.msra.mxu0 %v4513
    %4544 = vmatpush.xpose.msra.mxu0 %v4511
    %4545 = vmatpush.xpose.msra.mxu0 %v4509
    %4546 = vmatpush.xpose.msra.mxu0 %v4507
    %4547 = vmatpush.xpose.msra.mxu0 %v4505
    %4548 = vmatpush.xpose.msra.mxu0 %v4503
    %4549 = vmatpush.xpose.msra.mxu0 %v4501
    %4550 = vmatpush.xpose.msra.mxu0 %v4499
    %4551 = vmatpush.xpose.msra.mxu0 %v4497
    %4552 = vmatpush.xpose.msra.mxu0 %v4495
    %4553 = vmatpush.xpose.msra.mxu0 %v4493
    %4554 = vmatpush.xpose.msra.mxu0 %v4491
    %4555 = vmatpush.xpose.msra.mxu0 %v4489
    %4556 = vmatmul.f32.gmra.mxu0 1.0
    %v4557 = vpop.f32.mrf.mxu0
    %v4558 = vadd.f32 0.0, %v4557
    %4559 = vdwg.mxu0
    %v4560 = vrcp.pop %v4558
    %v4561 = vperm.slane %v4560, 0
    %v4562 = vmul.f32 %v4538, %v4561
    %v4563 = vld [vmem:[%s4] sm:$0xff]
    %v4564 = vld [vmem:[%s4 + $0x8] sm:$0xff]
    %4566 = vset.pattern.permute.xlu0 0
    %4567 = vperm.xlu0 %4566, %v4563
    %v4568 = vpop.permute.xlu0 %4567
    %4571 = vset.pattern.permute.xlu0 0
    %4572 = vperm.xlu0 %4571, %v4564
    %v4573 = vpop.permute.xlu0 %4572
    %v4575 = vadd.f32 %v2383, %v4568
    %v4576 = vadd.f32 %v4562, %v4573
    %vm4577 = vcmp.gt.f32.partialorder %v4575, 0.0
    %vm4578 = vcmp.gt.f32.partialorder %v4576, 0.0
    %v4579 = vmin.f32 %v4575, 0.0
    %v4580 = vmin.f32 %v4576, 0.0
    %v4581 = vmul.f32 %v4579, 1.442695
    %v4582 = vpow.pop %v4581
    %v4583 = vmul.f32 %v4580, 1.442695
    %v4584 = vpow.pop %v4583
    %v4585 = vsub.f32 %v4582, 1.0
    %v4586 = vsub.f32 %v4584, 1.0
    %v4587 = vsel %vm4577, %v4575, %v4585
    %v4588 = vsel %vm4578, %v4576, %v4586
    %4589 = vst [vmem:[%s7] sm:$0xff] %v4587
    %4590 = vst [vmem:[%s7 + $0x8] sm:$0xff] %v4588
    // Predicated region
    $region34: #{gatv2_actor_critic_forward.3} parent=1 // pred_check
      _
    $region35: #{gatv2_actor_critic_forward.3} parent=1 // pred_check_branch
      %4592 = sbr.rel (0) target = $region37
    $region36: #{gatv2_actor_critic_forward.3} parent=1 // pred_region
      _
    $region37: #{gatv2_actor_critic_forward.3} parent=1 // pred_fallthru
      _
    // Predicated region
    $region38: #{gatv2_actor_critic_forward.3} parent=1 // pred_check
      _
    $region39: #{gatv2_actor_critic_forward.3} parent=1 // pred_check_branch
      %4594 = sbr.rel (0) target = $region41
    $region40: #{gatv2_actor_critic_forward.3} parent=1 // pred_region
      _
    $region41: #{gatv2_actor_critic_forward.3} parent=1 // pred_fallthru
      _
    %4595 = vsyncpa [#allocation3], 1

</llo_original>
